<compile_context>
chip_gen: v7x
topology: tpu7x:2x2x1
jax: 0.10.0
libtpu: 0.0.40
codegen_flags: <defaults>
</compile_context>

<pallas_src>
from functools import partial

import jax
import jax.numpy as jnp
from jax.experimental import pallas as pl
from jax.experimental.pallas import tpu as pltpu

VAR_SIZE = {
    'dsads':  {'in_size': 45, 'ker_size': 9, 'fc_size': 32 * 25},
    'pamap':  {'in_size': 27, 'ker_size': 9, 'fc_size': 32 * 122},
    'uschad': {'in_size': 6,  'ker_size': 6, 'fc_size': 64 * 58},
}


def _make_fused_kernel(layer_dims):
    """layer_dims: tuple of (c_in, c_out, k, w_conv, w_pool) per conv block (static)."""

    def _layer(x_val, w_ref, shift_ref, y_scr, dims):
        c_in, c_out, k, w_conv, w_pool = dims
        # Conv(1xK) as K-tap matmul accumulation on the MXU (in-kernel im2col).
        # bf16 operands, f32 accumulation.
        acc = jnp.zeros((w_conv, c_out), jnp.float32)
        for t in range(k):
            xt = x_val[t:t + w_conv, :].astype(jnp.bfloat16)      # (w_conv, c_in)
            acc = acc + jnp.dot(xt, w_ref[t],                     # (c_in, c_out) bf16
                                preferred_element_type=jnp.float32)
        # Eval-mode BN (scale folded into weights) + conv bias -> per-channel shift; ReLU.
        y = jnp.maximum(acc + shift_ref[...], 0.0)
        # MaxPool2d((1,2), stride=2), floor semantics: drop trailing column if w_conv odd.
        y_scr[...] = y[:2 * w_pool, :]
        return jnp.maximum(y_scr[pl.ds(0, w_pool, stride=2), :],
                           y_scr[pl.ds(1, w_pool, stride=2), :])

    def kernel(x_ref, w1_ref, s1_ref, w2_ref, s2_ref, w3_ref, s3_ref,
               o_ref, y1_scr, y2_scr, y3_scr):
        a = x_ref[0]                                              # (W, C_in) f32
        a = _layer(a, w1_ref, s1_ref, y1_scr, layer_dims[0])      # (wp1, 16) f32
        a = _layer(a, w2_ref, s2_ref, y2_scr, layer_dims[1])      # (wp2, 32) f32
        a = _layer(a, w3_ref, s3_ref, y3_scr, layer_dims[2])      # (wp3, 64) f32
        o_ref[0] = a.astype(o_ref.dtype)

    return kernel


@partial(jax.jit, static_argnames=('taskname',))
def act_network_usc_forward(x_nchw, params, taskname='uschad'):
    """Forward pass of ActNetwork_usc.  x_nchw: (N, C_in, 1, W) float32."""
    n, c_in0, h, w_in = x_nchw.shape
    assert h == 1, "ActNetwork_usc uses kernel_size=(1, K); expects H == 1"

    # (N, C, 1, W) -> (N, W, C): the only input-side glue op.
    x_nwc = jnp.transpose(x_nchw.reshape(n, c_in0, w_in), (0, 2, 1))

    # Fold eval-mode BN (+ conv bias) into per-tap weights / per-channel shift.
    w_taps, shifts, layer_dims = [], [], []
    w_cur = w_in
    for (weight, bias, gamma, beta, run_mean, run_var) in params:
        c_out, c_in, _, k = weight.shape
        inv_std = gamma / jnp.sqrt(run_var + 1e-5)
        w3d = jnp.transpose(weight[:, :, 0, :], (2, 1, 0))        # (K, C_in, C_out)
        w_taps.append((w3d * inv_std[None, None, :]).astype(jnp.bfloat16))
        shifts.append((beta + (bias - run_mean) * inv_std)
                      .reshape(1, c_out).astype(jnp.float32))
        w_conv = w_cur - k + 1
        w_pool = (w_conv - 2) // 2 + 1
        layer_dims.append((c_in, c_out, k, w_conv, w_pool))
        w_cur = w_pool
    layer_dims = tuple(layer_dims)

    wp3, c_out3 = layer_dims[-1][4], layer_dims[-1][1]
    kernel = _make_fused_kernel(layer_dims)

    def full_spec(arr):
        nd = arr.ndim
        return pl.BlockSpec(arr.shape, lambda i, _nd=nd: (0,) * _nd)

    out_nwc = pl.pallas_call(
        kernel,
        out_shape=jax.ShapeDtypeStruct((n, wp3, c_out3), jnp.float32),
        grid_spec=pltpu.PrefetchScalarGridSpec(
            num_scalar_prefetch=0,
            grid=(n,),
            in_specs=[
                pl.BlockSpec((1, w_in, c_in0), lambda i: (i, 0, 0)),
                full_spec(w_taps[0]), full_spec(shifts[0]),
                full_spec(w_taps[1]), full_spec(shifts[1]),
                full_spec(w_taps[2]), full_spec(shifts[2]),
            ],
            out_specs=pl.BlockSpec((1, wp3, c_out3), lambda i: (i, 0, 0)),
            scratch_shapes=[
                pltpu.VMEM((2 * d[4], d[1]), jnp.float32) for d in layer_dims
            ],
        ),
        compiler_params=pltpu.CompilerParams(dimension_semantics=("parallel",)),
    )(x_nwc, w_taps[0], shifts[0], w_taps[1], shifts[1], w_taps[2], shifts[2])

    # PyTorch x.view(-1, fc_size) on NCHW-contiguous output => channel-major flatten.
    fc_size = VAR_SIZE[taskname]['fc_size']
    return jnp.transpose(out_nwc, (0, 2, 1)).reshape(-1, fc_size)


def init_params(key, taskname='uschad'):
    """Deterministic parameter init mimicking PyTorch defaults."""
    cfg = VAR_SIZE[taskname]
    k = cfg['ker_size']
    layer_channels = [(cfg['in_size'], 16), (16, 32), (32, 64)]
    params = []
    for c_in, c_out in layer_channels:
        key, kw, kb = jax.random.split(key, 3)
        fan_in = c_in * k
        bound = 1.0 / jnp.sqrt(jnp.float32(fan_in))
        w = jax.random.uniform(kw, (c_out, c_in, 1, k), jnp.float32, -bound, bound)
        b = jax.random.uniform(kb, (c_out,), jnp.float32, -bound, bound)
        gamma = jnp.ones((c_out,), jnp.float32)
        beta = jnp.zeros((c_out,), jnp.float32)
        run_mean = jnp.zeros((c_out,), jnp.float32)
        run_var = jnp.ones((c_out,), jnp.float32)
        params.append((w, b, gamma, beta, run_mean, run_var))
    return params


if __name__ == "__main__":
    key = jax.random.PRNGKey(0)
    key, kx = jax.random.split(key)

    # Small batch; W=500 is the canonical USC-HAD sequence length implied by
    # fc_size = 64*58 (500 ->495->247 ->242->121 ->116->58).
    x = jax.random.normal(kx, (2, 6, 1, 500), dtype=jnp.float32)

    params = init_params(key, 'uschad')
    out = act_network_usc_forward(x, params, 'uschad')
    out = jax.block_until_ready(out)

    assert out.shape == (2, VAR_SIZE['uschad']['fc_size']), out.shape
    assert bool(jnp.all(jnp.isfinite(out)))
    print("KERNEL_OK")
</pallas_src>

<mosaic_0001>
module attributes {stable_mosaic.version = 11 : i64} {
  func.func @kernel(%arg0: i32, %arg1: memref<1x500x6xf32, #tpu.memory_space<vmem>>, %arg2: memref<6x6x16xbf16, #tpu.memory_space<vmem>>, %arg3: memref<1x16xf32, #tpu.memory_space<vmem>>, %arg4: memref<6x16x32xbf16, #tpu.memory_space<vmem>>, %arg5: memref<1x32xf32, #tpu.memory_space<vmem>>, %arg6: memref<6x32x64xbf16, #tpu.memory_space<vmem>>, %arg7: memref<1x64xf32, #tpu.memory_space<vmem>>, %arg8: memref<1x58x64xf32, #tpu.memory_space<vmem>>, %arg9: memref<494x16xf32, #tpu.memory_space<vmem>>, %arg10: memref<242x32xf32, #tpu.memory_space<vmem>>, %arg11: memref<116x64xf32, #tpu.memory_space<vmem>>) attributes {dimension_semantics = [#tpu.dimension_semantics<parallel>], iteration_bounds = array<i64: 2>, scalar_prefetch = 0 : i64, scratch_operands = 3 : i64, tpu.core_type = #tpu.core_type<tc>, window_params = [{transform_indices = @transform_0, window_bounds = array<i64: 1, 500, 6>}, {pipeline_mode = #tpu.pipeline_mode<synchronous>, transform_indices = @transform_1, window_bounds = array<i64: 6, 6, 16>}, {pipeline_mode = #tpu.pipeline_mode<synchronous>, transform_indices = @transform_2, window_bounds = array<i64: 1, 16>}, {pipeline_mode = #tpu.pipeline_mode<synchronous>, transform_indices = @transform_3, window_bounds = array<i64: 6, 16, 32>}, {pipeline_mode = #tpu.pipeline_mode<synchronous>, transform_indices = @transform_4, window_bounds = array<i64: 1, 32>}, {pipeline_mode = #tpu.pipeline_mode<synchronous>, transform_indices = @transform_5, window_bounds = array<i64: 6, 32, 64>}, {pipeline_mode = #tpu.pipeline_mode<synchronous>, transform_indices = @transform_6, window_bounds = array<i64: 1, 64>}, {transform_indices = @transform_7, window_bounds = array<i64: 1, 58, 64>}]} {
    %c0 = arith.constant 0 : index
    %c0_0 = arith.constant 0 : index
    %c0_1 = arith.constant 0 : index
    %0 = vector.load %arg1[%c0, %c0_0, %c0_1] : memref<1x500x6xf32, #tpu.memory_space<vmem>>, vector<1x500x6xf32>
    %1 = vector.shape_cast %0 : vector<1x500x6xf32> to vector<500x6xf32>
    %cst = arith.constant 0.000000e+00 : f32
    %2 = vector.broadcast %cst : f32 to vector<495x16xf32>
    %3 = vector.extract_strided_slice %1 {offsets = [0, 0], sizes = [495, 6], strides = [1, 1]} : vector<500x6xf32> to vector<495x6xf32>
    %4 = arith.truncf %3 : vector<495x6xf32> to vector<495x6xbf16>
    %c0_2 = arith.constant 0 : index
    %c0_3 = arith.constant 0 : index
    %c0_4 = arith.constant 0 : index
    %5 = vector.load %arg2[%c0_2, %c0_3, %c0_4] : memref<6x6x16xbf16, #tpu.memory_space<vmem>>, vector<1x6x16xbf16>
    %6 = vector.shape_cast %5 : vector<1x6x16xbf16> to vector<6x16xbf16>
    %cst_5 = arith.constant dense<0.000000e+00> : vector<495x16xf32>
    %7 = tpu.matmul %4, %6, %cst_5 {dimension_numbers = #tpu.dot_dimension_numbers<[1], [0], [0], [1], [0, 0, 1, 1], [], []>} : vector<495x6xbf16>, vector<6x16xbf16>, vector<495x16xf32> -> vector<495x16xf32>
    %8 = arith.addf %2, %7 : vector<495x16xf32>
    %9 = vector.extract_strided_slice %1 {offsets = [1, 0], sizes = [495, 6], strides = [1, 1]} : vector<500x6xf32> to vector<495x6xf32>
    %10 = arith.truncf %9 : vector<495x6xf32> to vector<495x6xbf16>
    %c1 = arith.constant 1 : index
    %c0_6 = arith.constant 0 : index
    %c0_7 = arith.constant 0 : index
    %11 = vector.load %arg2[%c1, %c0_6, %c0_7] : memref<6x6x16xbf16, #tpu.memory_space<vmem>>, vector<1x6x16xbf16>
    %12 = vector.shape_cast %11 : vector<1x6x16xbf16> to vector<6x16xbf16>
    %cst_8 = arith.constant dense<0.000000e+00> : vector<495x16xf32>
    %13 = tpu.matmul %10, %12, %cst_8 {dimension_numbers = #tpu.dot_dimension_numbers<[1], [0], [0], [1], [0, 0, 1, 1], [], []>} : vector<495x6xbf16>, vector<6x16xbf16>, vector<495x16xf32> -> vector<495x16xf32>
    %14 = arith.addf %8, %13 : vector<495x16xf32>
    %15 = vector.extract_strided_slice %1 {offsets = [2, 0], sizes = [495, 6], strides = [1, 1]} : vector<500x6xf32> to vector<495x6xf32>
    %16 = arith.truncf %15 : vector<495x6xf32> to vector<495x6xbf16>
    %c2 = arith.constant 2 : index
    %c0_9 = arith.constant 0 : index
    %c0_10 = arith.constant 0 : index
    %17 = vector.load %arg2[%c2, %c0_9, %c0_10] : memref<6x6x16xbf16, #tpu.memory_space<vmem>>, vector<1x6x16xbf16>
    %18 = vector.shape_cast %17 : vector<1x6x16xbf16> to vector<6x16xbf16>
    %cst_11 = arith.constant dense<0.000000e+00> : vector<495x16xf32>
    %19 = tpu.matmul %16, %18, %cst_11 {dimension_numbers = #tpu.dot_dimension_numbers<[1], [0], [0], [1], [0, 0, 1, 1], [], []>} : vector<495x6xbf16>, vector<6x16xbf16>, vector<495x16xf32> -> vector<495x16xf32>
    %20 = arith.addf %14, %19 : vector<495x16xf32>
    %21 = vector.extract_strided_slice %1 {offsets = [3, 0], sizes = [495, 6], strides = [1, 1]} : vector<500x6xf32> to vector<495x6xf32>
    %22 = arith.truncf %21 : vector<495x6xf32> to vector<495x6xbf16>
    %c3 = arith.constant 3 : index
    %c0_12 = arith.constant 0 : index
    %c0_13 = arith.constant 0 : index
    %23 = vector.load %arg2[%c3, %c0_12, %c0_13] : memref<6x6x16xbf16, #tpu.memory_space<vmem>>, vector<1x6x16xbf16>
    %24 = vector.shape_cast %23 : vector<1x6x16xbf16> to vector<6x16xbf16>
    %cst_14 = arith.constant dense<0.000000e+00> : vector<495x16xf32>
    %25 = tpu.matmul %22, %24, %cst_14 {dimension_numbers = #tpu.dot_dimension_numbers<[1], [0], [0], [1], [0, 0, 1, 1], [], []>} : vector<495x6xbf16>, vector<6x16xbf16>, vector<495x16xf32> -> vector<495x16xf32>
    %26 = arith.addf %20, %25 : vector<495x16xf32>
    %27 = vector.extract_strided_slice %1 {offsets = [4, 0], sizes = [495, 6], strides = [1, 1]} : vector<500x6xf32> to vector<495x6xf32>
    %28 = arith.truncf %27 : vector<495x6xf32> to vector<495x6xbf16>
    %c4 = arith.constant 4 : index
    %c0_15 = arith.constant 0 : index
    %c0_16 = arith.constant 0 : index
    %29 = vector.load %arg2[%c4, %c0_15, %c0_16] : memref<6x6x16xbf16, #tpu.memory_space<vmem>>, vector<1x6x16xbf16>
    %30 = vector.shape_cast %29 : vector<1x6x16xbf16> to vector<6x16xbf16>
    %cst_17 = arith.constant dense<0.000000e+00> : vector<495x16xf32>
    %31 = tpu.matmul %28, %30, %cst_17 {dimension_numbers = #tpu.dot_dimension_numbers<[1], [0], [0], [1], [0, 0, 1, 1], [], []>} : vector<495x6xbf16>, vector<6x16xbf16>, vector<495x16xf32> -> vector<495x16xf32>
    %32 = arith.addf %26, %31 : vector<495x16xf32>
    %33 = vector.extract_strided_slice %1 {offsets = [5, 0], sizes = [495, 6], strides = [1, 1]} : vector<500x6xf32> to vector<495x6xf32>
    %34 = arith.truncf %33 : vector<495x6xf32> to vector<495x6xbf16>
    %c5 = arith.constant 5 : index
    %c0_18 = arith.constant 0 : index
    %c0_19 = arith.constant 0 : index
    %35 = vector.load %arg2[%c5, %c0_18, %c0_19] : memref<6x6x16xbf16, #tpu.memory_space<vmem>>, vector<1x6x16xbf16>
    %36 = vector.shape_cast %35 : vector<1x6x16xbf16> to vector<6x16xbf16>
    %cst_20 = arith.constant dense<0.000000e+00> : vector<495x16xf32>
    %37 = tpu.matmul %34, %36, %cst_20 {dimension_numbers = #tpu.dot_dimension_numbers<[1], [0], [0], [1], [0, 0, 1, 1], [], []>} : vector<495x6xbf16>, vector<6x16xbf16>, vector<495x16xf32> -> vector<495x16xf32>
    %38 = arith.addf %32, %37 : vector<495x16xf32>
    %c0_21 = arith.constant 0 : index
    %c0_22 = arith.constant 0 : index
    %39 = vector.load %arg3[%c0_21, %c0_22] : memref<1x16xf32, #tpu.memory_space<vmem>>, vector<1x16xf32>
    %40 = vector.broadcast %39 : vector<1x16xf32> to vector<495x16xf32>
    %41 = arith.addf %38, %40 : vector<495x16xf32>
    %cst_23 = arith.constant 0.000000e+00 : f32
    %42 = vector.broadcast %cst_23 : f32 to vector<495x16xf32>
    %43 = arith.maximumf %41, %42 : vector<495x16xf32>
    %44 = vector.extract_strided_slice %43 {offsets = [0, 0], sizes = [494, 16], strides = [1, 1]} : vector<495x16xf32> to vector<494x16xf32>
    %c0_24 = arith.constant 0 : index
    %c0_25 = arith.constant 0 : index
    %45 = vector.load %arg9[%c0_24, %c0_25] : memref<494x16xf32, #tpu.memory_space<vmem>>, vector<494x16xf32>
    tpu.vector_store %arg9[%c0_24, %c0_25], %44 {strides = array<i32>} : memref<494x16xf32, #tpu.memory_space<vmem>>, vector<494x16xf32>,
    %c0_26 = arith.constant 0 : index
    %c0_27 = arith.constant 0 : index
    %46 = tpu.strided_load %arg9[%c0_26, %c0_27] {strides = array<i32: 2, 1>} : memref<494x16xf32, #tpu.memory_space<vmem>>, vector<247x16xf32>
    %c1_28 = arith.constant 1 : index
    %c0_29 = arith.constant 0 : index
    %47 = tpu.strided_load %arg9[%c1_28, %c0_29] {strides = array<i32: 2, 1>} : memref<494x16xf32, #tpu.memory_space<vmem>>, vector<247x16xf32>
    %48 = arith.maximumf %46, %47 : vector<247x16xf32>
    %cst_30 = arith.constant 0.000000e+00 : f32
    %49 = vector.broadcast %cst_30 : f32 to vector<242x32xf32>
    %50 = vector.extract_strided_slice %48 {offsets = [0, 0], sizes = [242, 16], strides = [1, 1]} : vector<247x16xf32> to vector<242x16xf32>
    %51 = arith.truncf %50 : vector<242x16xf32> to vector<242x16xbf16>
    %c0_31 = arith.constant 0 : index
    %c0_32 = arith.constant 0 : index
    %c0_33 = arith.constant 0 : index
    %52 = vector.load %arg4[%c0_31, %c0_32, %c0_33] : memref<6x16x32xbf16, #tpu.memory_space<vmem>>, vector<1x16x32xbf16>
    %53 = vector.shape_cast %52 : vector<1x16x32xbf16> to vector<16x32xbf16>
    %cst_34 = arith.constant dense<0.000000e+00> : vector<242x32xf32>
    %54 = tpu.matmul %51, %53, %cst_34 {dimension_numbers = #tpu.dot_dimension_numbers<[1], [0], [0], [1], [0, 0, 1, 1], [], []>} : vector<242x16xbf16>, vector<16x32xbf16>, vector<242x32xf32> -> vector<242x32xf32>
    %55 = arith.addf %49, %54 : vector<242x32xf32>
    %56 = vector.extract_strided_slice %48 {offsets = [1, 0], sizes = [242, 16], strides = [1, 1]} : vector<247x16xf32> to vector<242x16xf32>
    %57 = arith.truncf %56 : vector<242x16xf32> to vector<242x16xbf16>
    %c1_35 = arith.constant 1 : index
    %c0_36 = arith.constant 0 : index
    %c0_37 = arith.constant 0 : index
    %58 = vector.load %arg4[%c1_35, %c0_36, %c0_37] : memref<6x16x32xbf16, #tpu.memory_space<vmem>>, vector<1x16x32xbf16>
    %59 = vector.shape_cast %58 : vector<1x16x32xbf16> to vector<16x32xbf16>
    %cst_38 = arith.constant dense<0.000000e+00> : vector<242x32xf32>
    %60 = tpu.matmul %57, %59, %cst_38 {dimension_numbers = #tpu.dot_dimension_numbers<[1], [0], [0], [1], [0, 0, 1, 1], [], []>} : vector<242x16xbf16>, vector<16x32xbf16>, vector<242x32xf32> -> vector<242x32xf32>
    %61 = arith.addf %55, %60 : vector<242x32xf32>
    %62 = vector.extract_strided_slice %48 {offsets = [2, 0], sizes = [242, 16], strides = [1, 1]} : vector<247x16xf32> to vector<242x16xf32>
    %63 = arith.truncf %62 : vector<242x16xf32> to vector<242x16xbf16>
    %c2_39 = arith.constant 2 : index
    %c0_40 = arith.constant 0 : index
    %c0_41 = arith.constant 0 : index
    %64 = vector.load %arg4[%c2_39, %c0_40, %c0_41] : memref<6x16x32xbf16, #tpu.memory_space<vmem>>, vector<1x16x32xbf16>
    %65 = vector.shape_cast %64 : vector<1x16x32xbf16> to vector<16x32xbf16>
    %cst_42 = arith.constant dense<0.000000e+00> : vector<242x32xf32>
    %66 = tpu.matmul %63, %65, %cst_42 {dimension_numbers = #tpu.dot_dimension_numbers<[1], [0], [0], [1], [0, 0, 1, 1], [], []>} : vector<242x16xbf16>, vector<16x32xbf16>, vector<242x32xf32> -> vector<242x32xf32>
    %67 = arith.addf %61, %66 : vector<242x32xf32>
    %68 = vector.extract_strided_slice %48 {offsets = [3, 0], sizes = [242, 16], strides = [1, 1]} : vector<247x16xf32> to vector<242x16xf32>
    %69 = arith.truncf %68 : vector<242x16xf32> to vector<242x16xbf16>
    %c3_43 = arith.constant 3 : index
    %c0_44 = arith.constant 0 : index
    %c0_45 = arith.constant 0 : index
    %70 = vector.load %arg4[%c3_43, %c0_44, %c0_45] : memref<6x16x32xbf16, #tpu.memory_space<vmem>>, vector<1x16x32xbf16>
    %71 = vector.shape_cast %70 : vector<1x16x32xbf16> to vector<16x32xbf16>
    %cst_46 = arith.constant dense<0.000000e+00> : vector<242x32xf32>
    %72 = tpu.matmul %69, %71, %cst_46 {dimension_numbers = #tpu.dot_dimension_numbers<[1], [0], [0], [1], [0, 0, 1, 1], [], []>} : vector<242x16xbf16>, vector<16x32xbf16>, vector<242x32xf32> -> vector<242x32xf32>
    %73 = arith.addf %67, %72 : vector<242x32xf32>
    %74 = vector.extract_strided_slice %48 {offsets = [4, 0], sizes = [242, 16], strides = [1, 1]} : vector<247x16xf32> to vector<242x16xf32>
    %75 = arith.truncf %74 : vector<242x16xf32> to vector<242x16xbf16>
    %c4_47 = arith.constant 4 : index
    %c0_48 = arith.constant 0 : index
    %c0_49 = arith.constant 0 : index
    %76 = vector.load %arg4[%c4_47, %c0_48, %c0_49] : memref<6x16x32xbf16, #tpu.memory_space<vmem>>, vector<1x16x32xbf16>
    %77 = vector.shape_cast %76 : vector<1x16x32xbf16> to vector<16x32xbf16>
    %cst_50 = arith.constant dense<0.000000e+00> : vector<242x32xf32>
    %78 = tpu.matmul %75, %77, %cst_50 {dimension_numbers = #tpu.dot_dimension_numbers<[1], [0], [0], [1], [0, 0, 1, 1], [], []>} : vector<242x16xbf16>, vector<16x32xbf16>, vector<242x32xf32> -> vector<242x32xf32>
    %79 = arith.addf %73, %78 : vector<242x32xf32>
    %80 = vector.extract_strided_slice %48 {offsets = [5, 0], sizes = [242, 16], strides = [1, 1]} : vector<247x16xf32> to vector<242x16xf32>
    %81 = arith.truncf %80 : vector<242x16xf32> to vector<242x16xbf16>
    %c5_51 = arith.constant 5 : index
    %c0_52 = arith.constant 0 : index
    %c0_53 = arith.constant 0 : index
    %82 = vector.load %arg4[%c5_51, %c0_52, %c0_53] : memref<6x16x32xbf16, #tpu.memory_space<vmem>>, vector<1x16x32xbf16>
    %83 = vector.shape_cast %82 : vector<1x16x32xbf16> to vector<16x32xbf16>
    %cst_54 = arith.constant dense<0.000000e+00> : vector<242x32xf32>
    %84 = tpu.matmul %81, %83, %cst_54 {dimension_numbers = #tpu.dot_dimension_numbers<[1], [0], [0], [1], [0, 0, 1, 1], [], []>} : vector<242x16xbf16>, vector<16x32xbf16>, vector<242x32xf32> -> vector<242x32xf32>
    %85 = arith.addf %79, %84 : vector<242x32xf32>
    %c0_55 = arith.constant 0 : index
    %c0_56 = arith.constant 0 : index
    %86 = vector.load %arg5[%c0_55, %c0_56] : memref<1x32xf32, #tpu.memory_space<vmem>>, vector<1x32xf32>
    %87 = vector.broadcast %86 : vector<1x32xf32> to vector<242x32xf32>
    %88 = arith.addf %85, %87 : vector<242x32xf32>
    %cst_57 = arith.constant 0.000000e+00 : f32
    %89 = vector.broadcast %cst_57 : f32 to vector<242x32xf32>
    %90 = arith.maximumf %88, %89 : vector<242x32xf32>
    %c0_58 = arith.constant 0 : index
    %c0_59 = arith.constant 0 : index
    %91 = vector.load %arg10[%c0_58, %c0_59] : memref<242x32xf32, #tpu.memory_space<vmem>>, vector<242x32xf32>
    tpu.vector_store %arg10[%c0_58, %c0_59], %90 {strides = array<i32>} : memref<242x32xf32, #tpu.memory_space<vmem>>, vector<242x32xf32>,
    %c0_60 = arith.constant 0 : index
    %c0_61 = arith.constant 0 : index
    %92 = tpu.strided_load %arg10[%c0_60, %c0_61] {strides = array<i32: 2, 1>} : memref<242x32xf32, #tpu.memory_space<vmem>>, vector<121x32xf32>
    %c1_62 = arith.constant 1 : index
    %c0_63 = arith.constant 0 : index
    %93 = tpu.strided_load %arg10[%c1_62, %c0_63] {strides = array<i32: 2, 1>} : memref<242x32xf32, #tpu.memory_space<vmem>>, vector<121x32xf32>
    %94 = arith.maximumf %92, %93 : vector<121x32xf32>
    %cst_64 = arith.constant 0.000000e+00 : f32
    %95 = vector.broadcast %cst_64 : f32 to vector<116x64xf32>
    %96 = vector.extract_strided_slice %94 {offsets = [0, 0], sizes = [116, 32], strides = [1, 1]} : vector<121x32xf32> to vector<116x32xf32>
    %97 = arith.truncf %96 : vector<116x32xf32> to vector<116x32xbf16>
    %c0_65 = arith.constant 0 : index
    %c0_66 = arith.constant 0 : index
    %c0_67 = arith.constant 0 : index
    %98 = vector.load %arg6[%c0_65, %c0_66, %c0_67] : memref<6x32x64xbf16, #tpu.memory_space<vmem>>, vector<1x32x64xbf16>
    %99 = vector.shape_cast %98 : vector<1x32x64xbf16> to vector<32x64xbf16>
    %cst_68 = arith.constant dense<0.000000e+00> : vector<116x64xf32>
    %100 = tpu.matmul %97, %99, %cst_68 {dimension_numbers = #tpu.dot_dimension_numbers<[1], [0], [0], [1], [0, 0, 1, 1], [], []>} : vector<116x32xbf16>, vector<32x64xbf16>, vector<116x64xf32> -> vector<116x64xf32>
    %101 = arith.addf %95, %100 : vector<116x64xf32>
    %102 = vector.extract_strided_slice %94 {offsets = [1, 0], sizes = [116, 32], strides = [1, 1]} : vector<121x32xf32> to vector<116x32xf32>
    %103 = arith.truncf %102 : vector<116x32xf32> to vector<116x32xbf16>
    %c1_69 = arith.constant 1 : index
    %c0_70 = arith.constant 0 : index
    %c0_71 = arith.constant 0 : index
    %104 = vector.load %arg6[%c1_69, %c0_70, %c0_71] : memref<6x32x64xbf16, #tpu.memory_space<vmem>>, vector<1x32x64xbf16>
    %105 = vector.shape_cast %104 : vector<1x32x64xbf16> to vector<32x64xbf16>
    %cst_72 = arith.constant dense<0.000000e+00> : vector<116x64xf32>
    %106 = tpu.matmul %103, %105, %cst_72 {dimension_numbers = #tpu.dot_dimension_numbers<[1], [0], [0], [1], [0, 0, 1, 1], [], []>} : vector<116x32xbf16>, vector<32x64xbf16>, vector<116x64xf32> -> vector<116x64xf32>
    %107 = arith.addf %101, %106 : vector<116x64xf32>
    %108 = vector.extract_strided_slice %94 {offsets = [2, 0], sizes = [116, 32], strides = [1, 1]} : vector<121x32xf32> to vector<116x32xf32>
    %109 = arith.truncf %108 : vector<116x32xf32> to vector<116x32xbf16>
    %c2_73 = arith.constant 2 : index
    %c0_74 = arith.constant 0 : index
    %c0_75 = arith.constant 0 : index
    %110 = vector.load %arg6[%c2_73, %c0_74, %c0_75] : memref<6x32x64xbf16, #tpu.memory_space<vmem>>, vector<1x32x64xbf16>
    %111 = vector.shape_cast %110 : vector<1x32x64xbf16> to vector<32x64xbf16>
    %cst_76 = arith.constant dense<0.000000e+00> : vector<116x64xf32>
    %112 = tpu.matmul %109, %111, %cst_76 {dimension_numbers = #tpu.dot_dimension_numbers<[1], [0], [0], [1], [0, 0, 1, 1], [], []>} : vector<116x32xbf16>, vector<32x64xbf16>, vector<116x64xf32> -> vector<116x64xf32>
    %113 = arith.addf %107, %112 : vector<116x64xf32>
    %114 = vector.extract_strided_slice %94 {offsets = [3, 0], sizes = [116, 32], strides = [1, 1]} : vector<121x32xf32> to vector<116x32xf32>
    %115 = arith.truncf %114 : vector<116x32xf32> to vector<116x32xbf16>
    %c3_77 = arith.constant 3 : index
    %c0_78 = arith.constant 0 : index
    %c0_79 = arith.constant 0 : index
    %116 = vector.load %arg6[%c3_77, %c0_78, %c0_79] : memref<6x32x64xbf16, #tpu.memory_space<vmem>>, vector<1x32x64xbf16>
    %117 = vector.shape_cast %116 : vector<1x32x64xbf16> to vector<32x64xbf16>
    %cst_80 = arith.constant dense<0.000000e+00> : vector<116x64xf32>
    %118 = tpu.matmul %115, %117, %cst_80 {dimension_numbers = #tpu.dot_dimension_numbers<[1], [0], [0], [1], [0, 0, 1, 1], [], []>} : vector<116x32xbf16>, vector<32x64xbf16>, vector<116x64xf32> -> vector<116x64xf32>
    %119 = arith.addf %113, %118 : vector<116x64xf32>
    %120 = vector.extract_strided_slice %94 {offsets = [4, 0], sizes = [116, 32], strides = [1, 1]} : vector<121x32xf32> to vector<116x32xf32>
    %121 = arith.truncf %120 : vector<116x32xf32> to vector<116x32xbf16>
    %c4_81 = arith.constant 4 : index
    %c0_82 = arith.constant 0 : index
    %c0_83 = arith.constant 0 : index
    %122 = vector.load %arg6[%c4_81, %c0_82, %c0_83] : memref<6x32x64xbf16, #tpu.memory_space<vmem>>, vector<1x32x64xbf16>
    %123 = vector.shape_cast %122 : vector<1x32x64xbf16> to vector<32x64xbf16>
    %cst_84 = arith.constant dense<0.000000e+00> : vector<116x64xf32>
    %124 = tpu.matmul %121, %123, %cst_84 {dimension_numbers = #tpu.dot_dimension_numbers<[1], [0], [0], [1], [0, 0, 1, 1], [], []>} : vector<116x32xbf16>, vector<32x64xbf16>, vector<116x64xf32> -> vector<116x64xf32>
    %125 = arith.addf %119, %124 : vector<116x64xf32>
    %126 = vector.extract_strided_slice %94 {offsets = [5, 0], sizes = [116, 32], strides = [1, 1]} : vector<121x32xf32> to vector<116x32xf32>
    %127 = arith.truncf %126 : vector<116x32xf32> to vector<116x32xbf16>
    %c5_85 = arith.constant 5 : index
    %c0_86 = arith.constant 0 : index
    %c0_87 = arith.constant 0 : index
    %128 = vector.load %arg6[%c5_85, %c0_86, %c0_87] : memref<6x32x64xbf16, #tpu.memory_space<vmem>>, vector<1x32x64xbf16>
    %129 = vector.shape_cast %128 : vector<1x32x64xbf16> to vector<32x64xbf16>
    %cst_88 = arith.constant dense<0.000000e+00> : vector<116x64xf32>
    %130 = tpu.matmul %127, %129, %cst_88 {dimension_numbers = #tpu.dot_dimension_numbers<[1], [0], [0], [1], [0, 0, 1, 1], [], []>} : vector<116x32xbf16>, vector<32x64xbf16>, vector<116x64xf32> -> vector<116x64xf32>
    %131 = arith.addf %125, %130 : vector<116x64xf32>
    %c0_89 = arith.constant 0 : index
    %c0_90 = arith.constant 0 : index
    %132 = vector.load %arg7[%c0_89, %c0_90] : memref<1x64xf32, #tpu.memory_space<vmem>>, vector<1x64xf32>
    %133 = vector.broadcast %132 : vector<1x64xf32> to vector<116x64xf32>
    %134 = arith.addf %131, %133 : vector<116x64xf32>
    %cst_91 = arith.constant 0.000000e+00 : f32
    %135 = vector.broadcast %cst_91 : f32 to vector<116x64xf32>
    %136 = arith.maximumf %134, %135 : vector<116x64xf32>
    %c0_92 = arith.constant 0 : index
    %c0_93 = arith.constant 0 : index
    %137 = vector.load %arg11[%c0_92, %c0_93] : memref<116x64xf32, #tpu.memory_space<vmem>>, vector<116x64xf32>
    tpu.vector_store %arg11[%c0_92, %c0_93], %136 {strides = array<i32>} : memref<116x64xf32, #tpu.memory_space<vmem>>, vector<116x64xf32>,
    %c0_94 = arith.constant 0 : index
    %c0_95 = arith.constant 0 : index
    %138 = tpu.strided_load %arg11[%c0_94, %c0_95] {strides = array<i32: 2, 1>} : memref<116x64xf32, #tpu.memory_space<vmem>>, vector<58x64xf32>
    %c1_96 = arith.constant 1 : index
    %c0_97 = arith.constant 0 : index
    %139 = tpu.strided_load %arg11[%c1_96, %c0_97] {strides = array<i32: 2, 1>} : memref<116x64xf32, #tpu.memory_space<vmem>>, vector<58x64xf32>
    %140 = arith.maximumf %138, %139 : vector<58x64xf32>
    %c0_98 = arith.constant 0 : index
    %c0_99 = arith.constant 0 : index
    %c0_100 = arith.constant 0 : index
    %141 = vector.load %arg8[%c0_98, %c0_99, %c0_100] : memref<1x58x64xf32, #tpu.memory_space<vmem>>, vector<1x58x64xf32>
    %142 = vector.shape_cast %141 : vector<1x58x64xf32> to vector<58x64xf32>
    %143 = vector.shape_cast %140 : vector<58x64xf32> to vector<1x58x64xf32>
    tpu.vector_store %arg8[%c0_98, %c0_99, %c0_100], %143 {strides = array<i32>} : memref<1x58x64xf32, #tpu.memory_space<vmem>>, vector<1x58x64xf32>,
    return
  }
  func.func @transform_0(%arg0: i32) -> (i32, i32, i32) {
    %c0_i32 = arith.constant 0 : i32
    %c0_i32_0 = arith.constant 0 : i32
    %c0_i32_1 = arith.constant 0 : i32
    return %arg0, %c0_i32, %c0_i32_0 : i32, i32, i32
  }
  func.func @transform_1(%arg0: i32) -> (i32, i32, i32) {
    %c0_i32 = arith.constant 0 : i32
    %c0_i32_0 = arith.constant 0 : i32
    %c0_i32_1 = arith.constant 0 : i32
    %c0_i32_2 = arith.constant 0 : i32
    return %c0_i32, %c0_i32_0, %c0_i32_1 : i32, i32, i32
  }
  func.func @transform_2(%arg0: i32) -> (i32, i32) {
    %c0_i32 = arith.constant 0 : i32
    %c0_i32_0 = arith.constant 0 : i32
    %c0_i32_1 = arith.constant 0 : i32
    return %c0_i32, %c0_i32_0 : i32, i32
  }
  func.func @transform_3(%arg0: i32) -> (i32, i32, i32) {
    %c0_i32 = arith.constant 0 : i32
    %c0_i32_0 = arith.constant 0 : i32
    %c0_i32_1 = arith.constant 0 : i32
    %c0_i32_2 = arith.constant 0 : i32
    return %c0_i32, %c0_i32_0, %c0_i32_1 : i32, i32, i32
  }
  func.func @transform_4(%arg0: i32) -> (i32, i32) {
    %c0_i32 = arith.constant 0 : i32
    %c0_i32_0 = arith.constant 0 : i32
    %c0_i32_1 = arith.constant 0 : i32
    return %c0_i32, %c0_i32_0 : i32, i32
  }
  func.func @transform_5(%arg0: i32) -> (i32, i32, i32) {
    %c0_i32 = arith.constant 0 : i32
    %c0_i32_0 = arith.constant 0 : i32
    %c0_i32_1 = arith.constant 0 : i32
    %c0_i32_2 = arith.constant 0 : i32
    return %c0_i32, %c0_i32_0, %c0_i32_1 : i32, i32, i32
  }
  func.func @transform_6(%arg0: i32) -> (i32, i32) {
    %c0_i32 = arith.constant 0 : i32
    %c0_i32_0 = arith.constant 0 : i32
    %c0_i32_1 = arith.constant 0 : i32
    return %c0_i32, %c0_i32_0 : i32, i32
  }
  func.func @transform_7(%arg0: i32) -> (i32, i32, i32) {
    %c0_i32 = arith.constant 0 : i32
    %c0_i32_0 = arith.constant 0 : i32
    %c0_i32_1 = arith.constant 0 : i32
    return %arg0, %c0_i32, %c0_i32_0 : i32, i32, i32
  }
}

</mosaic_0001>

<llo_original>
// kernel: act_network_usc_forward.1
$region0: #{act_network_usc_forward.1}
  #allocation0 [shape = 'u32[]', space=smem, size = 0x4, offset = 0x4, fixed_abs, tag = 'smem constant byte address 0x4 - core index']
  #allocation1 [shape = 'u32[144,128]{1,0:T(1,128)}', space=vmem, size = 0x12000, scoped, tag = 'internal scratch']
  #allocation2 [shape = 'f32[494,16]{1,0:T(8,128)}', space=vmem, size = 0x3e000, scoped, tag = 'scratch operand']
  #allocation3 [shape = 'f32[242,32]{1,0:T(8,128)}', space=vmem, size = 0x1f000, scoped, tag = 'scratch operand']
  #allocation4 [shape = 'f32[116,64]{1,0:T(8,128)}', space=vmem, size = 0xf000, scoped, tag = 'scratch operand']
  %s0 = inlined_call_operand.vmem [shape: f32[2,500,6], index: 0, kind: input, shape index: {}]
  %s1 = inlined_call_operand.vmem [shape: bf16[6,6,16], index: 1, kind: input, shape index: {}]
  %s2 = inlined_call_operand.vmem [shape: f32[1,16], index: 2, kind: input, shape index: {}]
  %s3 = inlined_call_operand.vmem [shape: bf16[6,16,32], index: 3, kind: input, shape index: {}]
  %s4 = inlined_call_operand.vmem [shape: f32[1,32], index: 4, kind: input, shape index: {}]
  %s5 = inlined_call_operand.vmem [shape: bf16[6,32,64], index: 5, kind: input, shape index: {}]
  %s6 = inlined_call_operand.vmem [shape: f32[1,64], index: 6, kind: input, shape index: {}]
  %s7 = inlined_call_operand.vmem [shape: f32[2,58,64], index: 7, kind: output, shape index: {}]
  %s8 = sld [smem:[#allocation0]]
  $region61: #{act_network_usc_forward.1} parent=0
    _
  %s10 = ssub.s32 1, %s8
  %s11 = scalar_select 0, %s10, %s8
  loop: start=0, step=1, limit=4
  $region2: #{act_network_usc_forward.1} parent=0 // loop_pre_header
    _
  $region3: #{act_network_usc_forward.1} parent=0 // loop_header
    %s13 = sphi 0, %s17
    %p14 = scmp.ge.s32.totalorder %s13, 4
    %s23 = sphi 0, %s25
    %s26 = sphi 0, %s23
    %s27 = sphi 0, %s26
    %s43 = sphi 0, %s27
    %s47 = sphi 0, %s47
    %s49 = sphi 0, %s47
    %s50 = sphi 0, %s49
    %s64 = sphi 0, %s50
    %s68 = sphi 0, %s68
    %s70 = sphi 0, %s68
    %s71 = sphi 0, %s70
    %s85 = sphi 0, %s71
    %s89 = sphi 0, %s89
    %s91 = sphi 0, %s89
    %s92 = sphi 0, %s91
    %s106 = sphi 0, %s92
    %s110 = sphi 0, %s110
    %s112 = sphi 0, %s110
    %s113 = sphi 0, %s112
    %s127 = sphi 0, %s113
    %s131 = sphi 0, %s131
    %s133 = sphi 0, %s131
    %s134 = sphi 0, %s133
    %s148 = sphi 0, %s134
    %s152 = sphi 0, %s152
    %s154 = sphi 0, %s152
    %s155 = sphi 0, %s154
    %s169 = sphi 0, %s155
    %s175 = sphi 0, %s177
    %s178 = sphi 0, %s175
    %s179 = sphi 0, %s178
    %s195 = sphi 0, %s179
  $region4: #{act_network_usc_forward.1} parent=0 // loop_header_branch
    %16 = sbr.rel (%p14) target = $region8
  $region5: #{act_network_usc_forward.1} parent=0 // loop_body
    %s18 = ssub.s32 %s13, 1
    %s19 = ssub.s32 %s13, 2
    %s20 = sadd.s32 %s13, 1
    %s21 = ssub.s32 %s13, %s20
    %p22 = scmp.eq.s32.totalorder %s21, 0
    %s24 = sadd.s32 %s23, 1
    %s25 = scalar_select %p22, %s23, %s24
    %p28 = pneg %p22
    %p29 = scmp.eq.s32.totalorder %s13, 1
    %p30 = por %p28, %p29
    %p31 = scmp.ne.s32.totalorder %s23, %s26
    %p32 = scmp.eq.s32.totalorder %s13, 0
    %p33 = por %p31, %p32
    %p34 = scmp.ne.s32.totalorder %s23, %s26
    %p35 = scmp.eq.s32.totalorder %s18, 1
    %p36 = por %p34, %p35
    %p37 = scmp.ne.s32.totalorder %s26, %s27
    %p38 = scmp.eq.s32.totalorder %s18, 0
    %p39 = por %p37, %p38
    %p40 = scmp.ne.s32.totalorder %s26, %s27
    %p41 = scmp.eq.s32.totalorder %s19, 1
    %p42 = por %p40, %p41
    %p44 = scmp.ne.s32.totalorder %s27, %s43
    %p45 = scmp.eq.s32.totalorder %s19, 0
    %p46 = por %p44, %p45
    %s48 = sadd.s32 %s47, 1
    %p51 = scmp.eq.s32.totalorder %s13, 1
    %p52 = scmp.ne.s32.totalorder %s47, %s49
    %p53 = scmp.eq.s32.totalorder %s13, 0
    %p54 = por %p52, %p53
    %p55 = scmp.ne.s32.totalorder %s47, %s49
    %p56 = scmp.eq.s32.totalorder %s18, 1
    %p57 = por %p55, %p56
    %p58 = scmp.ne.s32.totalorder %s49, %s50
    %p59 = scmp.eq.s32.totalorder %s18, 0
    %p60 = por %p58, %p59
    %p61 = scmp.ne.s32.totalorder %s49, %s50
    %p62 = scmp.eq.s32.totalorder %s19, 1
    %p63 = por %p61, %p62
    %p65 = scmp.ne.s32.totalorder %s50, %s64
    %p66 = scmp.eq.s32.totalorder %s19, 0
    %p67 = por %p65, %p66
    %s69 = sadd.s32 %s68, 1
    %p72 = scmp.eq.s32.totalorder %s13, 1
    %p73 = scmp.ne.s32.totalorder %s68, %s70
    %p74 = scmp.eq.s32.totalorder %s13, 0
    %p75 = por %p73, %p74
    %p76 = scmp.ne.s32.totalorder %s68, %s70
    %p77 = scmp.eq.s32.totalorder %s18, 1
    %p78 = por %p76, %p77
    %p79 = scmp.ne.s32.totalorder %s70, %s71
    %p80 = scmp.eq.s32.totalorder %s18, 0
    %p81 = por %p79, %p80
    %p82 = scmp.ne.s32.totalorder %s70, %s71
    %p83 = scmp.eq.s32.totalorder %s19, 1
    %p84 = por %p82, %p83
    %p86 = scmp.ne.s32.totalorder %s71, %s85
    %p87 = scmp.eq.s32.totalorder %s19, 0
    %p88 = por %p86, %p87
    %s90 = sadd.s32 %s89, 1
    %p93 = scmp.eq.s32.totalorder %s13, 1
    %p94 = scmp.ne.s32.totalorder %s89, %s91
    %p95 = scmp.eq.s32.totalorder %s13, 0
    %p96 = por %p94, %p95
    %p97 = scmp.ne.s32.totalorder %s89, %s91
    %p98 = scmp.eq.s32.totalorder %s18, 1
    %p99 = por %p97, %p98
    %p100 = scmp.ne.s32.totalorder %s91, %s92
    %p101 = scmp.eq.s32.totalorder %s18, 0
    %p102 = por %p100, %p101
    %p103 = scmp.ne.s32.totalorder %s91, %s92
    %p104 = scmp.eq.s32.totalorder %s19, 1
    %p105 = por %p103, %p104
    %p107 = scmp.ne.s32.totalorder %s92, %s106
    %p108 = scmp.eq.s32.totalorder %s19, 0
    %p109 = por %p107, %p108
    %s111 = sadd.s32 %s110, 1
    %p114 = scmp.eq.s32.totalorder %s13, 1
    %p115 = scmp.ne.s32.totalorder %s110, %s112
    %p116 = scmp.eq.s32.totalorder %s13, 0
    %p117 = por %p115, %p116
    %p118 = scmp.ne.s32.totalorder %s110, %s112
    %p119 = scmp.eq.s32.totalorder %s18, 1
    %p120 = por %p118, %p119
    %p121 = scmp.ne.s32.totalorder %s112, %s113
    %p122 = scmp.eq.s32.totalorder %s18, 0
    %p123 = por %p121, %p122
    %p124 = scmp.ne.s32.totalorder %s112, %s113
    %p125 = scmp.eq.s32.totalorder %s19, 1
    %p126 = por %p124, %p125
    %p128 = scmp.ne.s32.totalorder %s113, %s127
    %p129 = scmp.eq.s32.totalorder %s19, 0
    %p130 = por %p128, %p129
    %s132 = sadd.s32 %s131, 1
    %p135 = scmp.eq.s32.totalorder %s13, 1
    %p136 = scmp.ne.s32.totalorder %s131, %s133
    %p137 = scmp.eq.s32.totalorder %s13, 0
    %p138 = por %p136, %p137
    %p139 = scmp.ne.s32.totalorder %s131, %s133
    %p140 = scmp.eq.s32.totalorder %s18, 1
    %p141 = por %p139, %p140
    %p142 = scmp.ne.s32.totalorder %s133, %s134
    %p143 = scmp.eq.s32.totalorder %s18, 0
    %p144 = por %p142, %p143
    %p145 = scmp.ne.s32.totalorder %s133, %s134
    %p146 = scmp.eq.s32.totalorder %s19, 1
    %p147 = por %p145, %p146
    %p149 = scmp.ne.s32.totalorder %s134, %s148
    %p150 = scmp.eq.s32.totalorder %s19, 0
    %p151 = por %p149, %p150
    %s153 = sadd.s32 %s152, 1
    %p156 = scmp.eq.s32.totalorder %s13, 1
    %p157 = scmp.ne.s32.totalorder %s152, %s154
    %p158 = scmp.eq.s32.totalorder %s13, 0
    %p159 = por %p157, %p158
    %p160 = scmp.ne.s32.totalorder %s152, %s154
    %p161 = scmp.eq.s32.totalorder %s18, 1
    %p162 = por %p160, %p161
    %p163 = scmp.ne.s32.totalorder %s154, %s155
    %p164 = scmp.eq.s32.totalorder %s18, 0
    %p165 = por %p163, %p164
    %p166 = scmp.ne.s32.totalorder %s154, %s155
    %p167 = scmp.eq.s32.totalorder %s19, 1
    %p168 = por %p166, %p167
    %p170 = scmp.ne.s32.totalorder %s155, %s169
    %p171 = scmp.eq.s32.totalorder %s19, 0
    %p172 = por %p170, %p171
    %s173 = ssub.s32 %s13, %s20
    %p174 = scmp.eq.s32.totalorder %s173, 0
    %s176 = sadd.s32 %s175, 1
    %s177 = scalar_select %p174, %s175, %s176
    %p180 = pneg %p174
    %p181 = scmp.eq.s32.totalorder %s13, 1
    %p182 = por %p180, %p181
    %p183 = scmp.ne.s32.totalorder %s175, %s178
    %p184 = scmp.eq.s32.totalorder %s13, 0
    %p185 = por %p183, %p184
    %p186 = scmp.ne.s32.totalorder %s175, %s178
    %p187 = scmp.eq.s32.totalorder %s18, 1
    %p188 = por %p186, %p187
    %p189 = scmp.ne.s32.totalorder %s178, %s179
    %p190 = scmp.eq.s32.totalorder %s18, 0
    %p191 = por %p189, %p190
    %p192 = scmp.ne.s32.totalorder %s178, %s179
    %p193 = scmp.eq.s32.totalorder %s19, 1
    %p194 = por %p192, %p193
    %p196 = scmp.ne.s32.totalorder %s179, %s195
    %p197 = scmp.eq.s32.totalorder %s19, 0
    %p198 = por %p196, %p197
    %p199 = scmp.le.s32.totalorder 1, %s13
    %p200 = scmp.lt.s32.totalorder %s13, 3
    %p201 = pnand %p199, %p200
    %p202 = pneg %p201
    // Predicated region
    $region9: #{act_network_usc_forward.1} parent=5 // pred_check
      _
    $region10: #{act_network_usc_forward.1} parent=5 // pred_check_branch
      %204 = sbr.rel (%p201) target = $region12
    $region11: #{act_network_usc_forward.1} parent=5 // pred_region
      %s205 = ssub.s32 %s13, 1
      // Predicated region
      $region13: #{act_network_usc_forward.1} parent=11 // pred_check
        %p206 = pneg %p60
      $region14: #{act_network_usc_forward.1} parent=11 // pred_check_branch
        %208 = sbr.rel (%p206) target = $region16
      $region15: #{act_network_usc_forward.1} parent=11 // pred_region
        _
      $region16: #{act_network_usc_forward.1} parent=11 // pred_fallthru
        _
      // Predicated region
      $region17: #{act_network_usc_forward.1} parent=11 // pred_check
        %p209 = pneg %p81
      $region18: #{act_network_usc_forward.1} parent=11 // pred_check_branch
        %211 = sbr.rel (%p209) target = $region20
      $region19: #{act_network_usc_forward.1} parent=11 // pred_region
        _
      $region20: #{act_network_usc_forward.1} parent=11 // pred_fallthru
        _
      // Predicated region
      $region21: #{act_network_usc_forward.1} parent=11 // pred_check
        %p212 = pneg %p102
      $region22: #{act_network_usc_forward.1} parent=11 // pred_check_branch
        %214 = sbr.rel (%p212) target = $region24
      $region23: #{act_network_usc_forward.1} parent=11 // pred_region
        _
      $region24: #{act_network_usc_forward.1} parent=11 // pred_fallthru
        _
      // Predicated region
      $region25: #{act_network_usc_forward.1} parent=11 // pred_check
        %p215 = pneg %p123
      $region26: #{act_network_usc_forward.1} parent=11 // pred_check_branch
        %217 = sbr.rel (%p215) target = $region28
      $region27: #{act_network_usc_forward.1} parent=11 // pred_region
        _
      $region28: #{act_network_usc_forward.1} parent=11 // pred_fallthru
        _
      // Predicated region
      $region29: #{act_network_usc_forward.1} parent=11 // pred_check
        %p218 = pneg %p144
      $region30: #{act_network_usc_forward.1} parent=11 // pred_check_branch
        %220 = sbr.rel (%p218) target = $region32
      $region31: #{act_network_usc_forward.1} parent=11 // pred_region
        _
      $region32: #{act_network_usc_forward.1} parent=11 // pred_fallthru
        _
      // Predicated region
      $region33: #{act_network_usc_forward.1} parent=11 // pred_check
        %p221 = pneg %p165
      $region34: #{act_network_usc_forward.1} parent=11 // pred_check_branch
        %223 = sbr.rel (%p221) target = $region36
      $region35: #{act_network_usc_forward.1} parent=11 // pred_region
        _
      $region36: #{act_network_usc_forward.1} parent=11 // pred_fallthru
        _
    $region12: #{act_network_usc_forward.1} parent=5 // pred_fallthru
      _
    %p224 = scmp.lt.s32.totalorder %s13, 2
    // Predicated region
    $region37: #{act_network_usc_forward.1} parent=5 // pred_check
      %p225 = pneg %p224
    $region38: #{act_network_usc_forward.1} parent=5 // pred_check_branch
      %227 = sbr.rel (%p225) target = $region40
    $region39: #{act_network_usc_forward.1} parent=5 // pred_region
      // Predicated region
      $region41: #{act_network_usc_forward.1} parent=39 // pred_check
        %p228 = pneg %p33
      $region42: #{act_network_usc_forward.1} parent=39 // pred_check_branch
        %230 = sbr.rel (%p228) target = $region44
      $region43: #{act_network_usc_forward.1} parent=39 // pred_region
        %p231 = scmp.lt.s32.totalorder %s13, 1
        %s232 = scalar_select %p231, %s13, 1
        %s233 = smul.addr %s232, 63
        %s234 = smul.addr %s233, 8
        %s235 = scalar_lea.vmem %s0, %s234
      $region44: #{act_network_usc_forward.1} parent=39 // pred_fallthru
        _
    $region40: #{act_network_usc_forward.1} parent=5 // pred_fallthru
      _
    %p236 = scmp.le.s32.totalorder 1, %s13
    %p237 = scmp.lt.s32.totalorder %s13, 3
    %p238 = pnand %p236, %p237
    %p239 = pneg %p238
    // Predicated region
    $region45: #{act_network_usc_forward.1} parent=5 // pred_check
      _
    $region46: #{act_network_usc_forward.1} parent=5 // pred_check_branch
      %241 = sbr.rel (%p238) target = $region48
    $region47: #{act_network_usc_forward.1} parent=5 // pred_region
      %s242 = ssub.s32 %s13, 1
      %p243 = scmp.lt.s32.totalorder %s18, 1
      %s244 = scalar_select %p243, %s18, 1
      %s245 = smul.addr %s244, 63
      %s246 = smul.addr %s245, 8
      %s247 = scalar_lea.vmem %s0, %s246
      %p248 = pneg %p39
      %p249 = pneg %p36
      %p250 = pneg %p60
      %p251 = pneg %p57
      %p252 = pneg %p81
      %p253 = pneg %p78
      %p254 = pneg %p102
      %p255 = pneg %p99
      %p256 = pneg %p123
      %p257 = pneg %p120
      %p258 = pneg %p144
      %p259 = pneg %p141
      %p260 = pneg %p165
      %p261 = pneg %p162
      %p262 = pneg %p191
      %p263 = pneg %p188
      %p264 = scmp.lt.s32.totalorder %s18, 1
      %s265 = scalar_select %p264, %s18, 1
      %s266 = smul.addr %s265, 8
      %s267 = smul.addr %s266, 8
      %s268 = scalar_lea.vmem %s7, %s267
      %p269 = scmp.lt.s32.totalorder %s18, 1
      %s270 = scalar_select %p269, %s18, 1
      %s271 = smul.addr %s270, 63
      %s272 = smul.addr %s271, 8
      %s273 = scalar_lea.vmem %s0, %s272
      %p274 = scmp.lt.s32.totalorder %s18, 1
      %s275 = scalar_select %p274, %s18, 1
      %s276 = smul.addr %s275, 8
      %s277 = smul.addr %s276, 8
      %s278 = scalar_lea.vmem %s7, %s277
      %v280 = vld [vmem:[%s273] sm:$0xff]
      %v281 = vld [vmem:[%s273 + $0x8] sm:$0xff]
      %v282 = vld [vmem:[%s273 + $0x10] sm:$0xff]
      %v283 = vld [vmem:[%s273 + $0x18] sm:$0xff]
      %v284 = vld [vmem:[%s273 + $0x20] sm:$0xff]
      %v285 = vld [vmem:[%s273 + $0x28] sm:$0xff]
      %v286 = vld [vmem:[%s273 + $0x30] sm:$0xff]
      %v287 = vld [vmem:[%s273 + $0x38] sm:$0xff]
      %v288 = vld [vmem:[%s273 + $0x40] sm:$0xff]
      %v289 = vld [vmem:[%s273 + $0x48] sm:$0xff]
      %v290 = vld [vmem:[%s273 + $0x50] sm:$0xff]
      %v291 = vld [vmem:[%s273 + $0x58] sm:$0xff]
      %v292 = vld [vmem:[%s273 + $0x60] sm:$0xff]
      %v293 = vld [vmem:[%s273 + $0x68] sm:$0xff]
      %v294 = vld [vmem:[%s273 + $0x70] sm:$0xff]
      %v295 = vld [vmem:[%s273 + $0x78] sm:$0xff]
      %v296 = vld [vmem:[%s273 + $0x80] sm:$0xff]
      %v297 = vld [vmem:[%s273 + $0x88] sm:$0xff]
      %v298 = vld [vmem:[%s273 + $0x90] sm:$0xff]
      %v299 = vld [vmem:[%s273 + $0x98] sm:$0xff]
      %v300 = vld [vmem:[%s273 + $0xa0] sm:$0xff]
      %v301 = vld [vmem:[%s273 + $0xa8] sm:$0xff]
      %v302 = vld [vmem:[%s273 + $0xb0] sm:$0xff]
      %v303 = vld [vmem:[%s273 + $0xb8] sm:$0xff]
      %v304 = vld [vmem:[%s273 + $0xc0] sm:$0xff]
      %v305 = vld [vmem:[%s273 + $0xc8] sm:$0xff]
      %v306 = vld [vmem:[%s273 + $0xd0] sm:$0xff]
      %v307 = vld [vmem:[%s273 + $0xd8] sm:$0xff]
      %v308 = vld [vmem:[%s273 + $0xe0] sm:$0xff]
      %v309 = vld [vmem:[%s273 + $0xe8] sm:$0xff]
      %v310 = vld [vmem:[%s273 + $0xf0] sm:$0xff]
      %v311 = vld [vmem:[%s273 + $0xf8] sm:$0xff]
      %v312 = vld [vmem:[%s273 + $0x100] sm:$0xff]
      %v313 = vld [vmem:[%s273 + $0x108] sm:$0xff]
      %v314 = vld [vmem:[%s273 + $0x110] sm:$0xff]
      %v315 = vld [vmem:[%s273 + $0x118] sm:$0xff]
      %v316 = vld [vmem:[%s273 + $0x120] sm:$0xff]
      %v317 = vld [vmem:[%s273 + $0x128] sm:$0xff]
      %v318 = vld [vmem:[%s273 + $0x130] sm:$0xff]
      %v319 = vld [vmem:[%s273 + $0x138] sm:$0xff]
      %v320 = vld [vmem:[%s273 + $0x140] sm:$0xff]
      %v321 = vld [vmem:[%s273 + $0x148] sm:$0xff]
      %v322 = vld [vmem:[%s273 + $0x150] sm:$0xff]
      %v323 = vld [vmem:[%s273 + $0x158] sm:$0xff]
      %v324 = vld [vmem:[%s273 + $0x160] sm:$0xff]
      %v325 = vld [vmem:[%s273 + $0x168] sm:$0xff]
      %v326 = vld [vmem:[%s273 + $0x170] sm:$0xff]
      %v327 = vld [vmem:[%s273 + $0x178] sm:$0xff]
      %v328 = vld [vmem:[%s273 + $0x180] sm:$0xff]
      %v329 = vld [vmem:[%s273 + $0x188] sm:$0xff]
      %v330 = vld [vmem:[%s273 + $0x190] sm:$0xff]
      %v331 = vld [vmem:[%s273 + $0x198] sm:$0xff]
      %v332 = vld [vmem:[%s273 + $0x1a0] sm:$0xff]
      %v333 = vld [vmem:[%s273 + $0x1a8] sm:$0xff]
      %v334 = vld [vmem:[%s273 + $0x1b0] sm:$0xff]
      %v335 = vld [vmem:[%s273 + $0x1b8] sm:$0xff]
      %v336 = vld [vmem:[%s273 + $0x1c0] sm:$0xff]
      %v337 = vld [vmem:[%s273 + $0x1c8] sm:$0xff]
      %v338 = vld [vmem:[%s273 + $0x1d0] sm:$0xff]
      %v339 = vld [vmem:[%s273 + $0x1d8] sm:$0xff]
      %v340 = vld [vmem:[%s273 + $0x1e0] sm:$0xff]
      %v341 = vld [vmem:[%s273 + $0x1e8] sm:$0xff]
      %v342 = vld [vmem:[%s273 + $0x1f0] sm:$0xf]
      %v343 = vpack.c.bf16 %v281, %v280
      %v344 = vpack.c.bf16 %v283, %v282
      %v345 = vpack.c.bf16 %v285, %v284
      %v346 = vpack.c.bf16 %v287, %v286
      %v347 = vpack.c.bf16 %v289, %v288
      %v348 = vpack.c.bf16 %v291, %v290
      %v349 = vpack.c.bf16 %v293, %v292
      %v350 = vpack.c.bf16 %v295, %v294
      %v351 = vpack.c.bf16 %v297, %v296
      %v352 = vpack.c.bf16 %v299, %v298
      %v353 = vpack.c.bf16 %v301, %v300
      %v354 = vpack.c.bf16 %v303, %v302
      %v355 = vpack.c.bf16 %v305, %v304
      %v356 = vpack.c.bf16 %v307, %v306
      %v357 = vpack.c.bf16 %v309, %v308
      %v358 = vpack.c.bf16 %v311, %v310
      %v359 = vpack.c.bf16 %v313, %v312
      %v360 = vpack.c.bf16 %v315, %v314
      %v361 = vpack.c.bf16 %v317, %v316
      %v362 = vpack.c.bf16 %v319, %v318
      %v363 = vpack.c.bf16 %v321, %v320
      %v364 = vpack.c.bf16 %v323, %v322
      %v365 = vpack.c.bf16 %v325, %v324
      %v366 = vpack.c.bf16 %v327, %v326
      %v367 = vpack.c.bf16 %v329, %v328
      %v368 = vpack.c.bf16 %v331, %v330
      %v369 = vpack.c.bf16 %v333, %v332
      %v370 = vpack.c.bf16 %v335, %v334
      %v371 = vpack.c.bf16 %v337, %v336
      %v372 = vpack.c.bf16 %v339, %v338
      %v373 = vpack.c.bf16 %v341, %v340
      %v374 = vld [vmem:[%s1] sm:$0x7]
      %s375 = scalar_lea.vmem %s1, 4
      %v376 = vld [vmem:[%s375] sm:$0x7]
      %vm377 = vsmask.f32 7424
      %v379 = vshrl.u32 %v343, 16
      %v381 = vshll.u32 %v343, 16
      %v383 = vrot.slane %v381, 1
      %v384 = vor.u32 %v379, %v383
      %v386 = vshll.u32 %v344, 16
      %v388 = vrot.slane %v386, 1
      %v389 = vsel %vm377, %v384, %v388
      %v390 = vshrl.u32 %v344, 16
      %v392 = vor.u32 %v390, %v388
      %v394 = vshll.u32 %v345, 16
      %v396 = vrot.slane %v394, 1
      %v397 = vsel %vm377, %v392, %v396
      %v398 = vshrl.u32 %v345, 16
      %v400 = vor.u32 %v398, %v396
      %v402 = vshll.u32 %v346, 16
      %v404 = vrot.slane %v402, 1
      %v405 = vsel %vm377, %v400, %v404
      %v406 = vshrl.u32 %v346, 16
      %v408 = vor.u32 %v406, %v404
      %v410 = vshll.u32 %v347, 16
      %v412 = vrot.slane %v410, 1
      %v413 = vsel %vm377, %v408, %v412
      %v414 = vshrl.u32 %v347, 16
      %v416 = vor.u32 %v414, %v412
      %v418 = vshll.u32 %v348, 16
      %v420 = vrot.slane %v418, 1
      %v421 = vsel %vm377, %v416, %v420
      %v422 = vshrl.u32 %v348, 16
      %v424 = vor.u32 %v422, %v420
      %v426 = vshll.u32 %v349, 16
      %v428 = vrot.slane %v426, 1
      %v429 = vsel %vm377, %v424, %v428
      %v430 = vshrl.u32 %v349, 16
      %v432 = vor.u32 %v430, %v428
      %v434 = vshll.u32 %v350, 16
      %v436 = vrot.slane %v434, 1
      %v437 = vsel %vm377, %v432, %v436
      %v438 = vshrl.u32 %v350, 16
      %v440 = vor.u32 %v438, %v436
      %v442 = vshll.u32 %v351, 16
      %v444 = vrot.slane %v442, 1
      %v445 = vsel %vm377, %v440, %v444
      %v446 = vshrl.u32 %v351, 16
      %v448 = vor.u32 %v446, %v444
      %v450 = vshll.u32 %v352, 16
      %v452 = vrot.slane %v450, 1
      %v453 = vsel %vm377, %v448, %v452
      %v454 = vshrl.u32 %v352, 16
      %v456 = vor.u32 %v454, %v452
      %v458 = vshll.u32 %v353, 16
      %v460 = vrot.slane %v458, 1
      %v461 = vsel %vm377, %v456, %v460
      %v462 = vshrl.u32 %v353, 16
      %v464 = vor.u32 %v462, %v460
      %v466 = vshll.u32 %v354, 16
      %v468 = vrot.slane %v466, 1
      %v469 = vsel %vm377, %v464, %v468
      %v470 = vshrl.u32 %v354, 16
      %v472 = vor.u32 %v470, %v468
      %v474 = vshll.u32 %v355, 16
      %v476 = vrot.slane %v474, 1
      %v477 = vsel %vm377, %v472, %v476
      %v478 = vshrl.u32 %v355, 16
      %v480 = vor.u32 %v478, %v476
      %v482 = vshll.u32 %v356, 16
      %v484 = vrot.slane %v482, 1
      %v485 = vsel %vm377, %v480, %v484
      %v486 = vshrl.u32 %v356, 16
      %v488 = vor.u32 %v486, %v484
      %v490 = vshll.u32 %v357, 16
      %v492 = vrot.slane %v490, 1
      %v493 = vsel %vm377, %v488, %v492
      %v494 = vshrl.u32 %v357, 16
      %v496 = vor.u32 %v494, %v492
      %v498 = vshll.u32 %v358, 16
      %v500 = vrot.slane %v498, 1
      %v501 = vsel %vm377, %v496, %v500
      %v502 = vshrl.u32 %v358, 16
      %v504 = vor.u32 %v502, %v500
      %v506 = vshll.u32 %v359, 16
      %v508 = vrot.slane %v506, 1
      %v509 = vsel %vm377, %v504, %v508
      %v510 = vshrl.u32 %v359, 16
      %v512 = vor.u32 %v510, %v508
      %v514 = vshll.u32 %v360, 16
      %v516 = vrot.slane %v514, 1
      %v517 = vsel %vm377, %v512, %v516
      %v518 = vshrl.u32 %v360, 16
      %v520 = vor.u32 %v518, %v516
      %v522 = vshll.u32 %v361, 16
      %v524 = vrot.slane %v522, 1
      %v525 = vsel %vm377, %v520, %v524
      %v526 = vshrl.u32 %v361, 16
      %v528 = vor.u32 %v526, %v524
      %v530 = vshll.u32 %v362, 16
      %v532 = vrot.slane %v530, 1
      %v533 = vsel %vm377, %v528, %v532
      %v534 = vshrl.u32 %v362, 16
      %v536 = vor.u32 %v534, %v532
      %v538 = vshll.u32 %v363, 16
      %v540 = vrot.slane %v538, 1
      %v541 = vsel %vm377, %v536, %v540
      %v542 = vshrl.u32 %v363, 16
      %v544 = vor.u32 %v542, %v540
      %v546 = vshll.u32 %v364, 16
      %v548 = vrot.slane %v546, 1
      %v549 = vsel %vm377, %v544, %v548
      %v550 = vshrl.u32 %v364, 16
      %v552 = vor.u32 %v550, %v548
      %v554 = vshll.u32 %v365, 16
      %v556 = vrot.slane %v554, 1
      %v557 = vsel %vm377, %v552, %v556
      %v558 = vshrl.u32 %v365, 16
      %v560 = vor.u32 %v558, %v556
      %v562 = vshll.u32 %v366, 16
      %v564 = vrot.slane %v562, 1
      %v565 = vsel %vm377, %v560, %v564
      %v566 = vshrl.u32 %v366, 16
      %v568 = vor.u32 %v566, %v564
      %v570 = vshll.u32 %v367, 16
      %v572 = vrot.slane %v570, 1
      %v573 = vsel %vm377, %v568, %v572
      %v574 = vshrl.u32 %v367, 16
      %v576 = vor.u32 %v574, %v572
      %v578 = vshll.u32 %v368, 16
      %v580 = vrot.slane %v578, 1
      %v581 = vsel %vm377, %v576, %v580
      %v582 = vshrl.u32 %v368, 16
      %v584 = vor.u32 %v582, %v580
      %v586 = vshll.u32 %v369, 16
      %v588 = vrot.slane %v586, 1
      %v589 = vsel %vm377, %v584, %v588
      %v590 = vshrl.u32 %v369, 16
      %v592 = vor.u32 %v590, %v588
      %v594 = vshll.u32 %v370, 16
      %v596 = vrot.slane %v594, 1
      %v597 = vsel %vm377, %v592, %v596
      %v598 = vshrl.u32 %v370, 16
      %v600 = vor.u32 %v598, %v596
      %v602 = vshll.u32 %v371, 16
      %v604 = vrot.slane %v602, 1
      %v605 = vsel %vm377, %v600, %v604
      %v606 = vshrl.u32 %v371, 16
      %v608 = vor.u32 %v606, %v604
      %v610 = vshll.u32 %v372, 16
      %v612 = vrot.slane %v610, 1
      %v613 = vsel %vm377, %v608, %v612
      %v614 = vshrl.u32 %v372, 16
      %v616 = vor.u32 %v614, %v612
      %v618 = vshll.u32 %v373, 16
      %v620 = vrot.slane %v618, 1
      %v621 = vsel %vm377, %v616, %v620
      %v622 = vshrl.u32 %v373, 16
      %v624 = vor.u32 %v622, %v620
      %vm625 = vcmask 48128
      %v627 = vsel %vm625, %v389, 0
      %v630 = vsel %vm625, %v397, 0
      %v633 = vsel %vm625, %v405, 0
      %v636 = vsel %vm625, %v413, 0
      %v639 = vsel %vm625, %v421, 0
      %v642 = vsel %vm625, %v429, 0
      %v645 = vsel %vm625, %v437, 0
      %v648 = vsel %vm625, %v445, 0
      %v651 = vsel %vm625, %v453, 0
      %v654 = vsel %vm625, %v461, 0
      %v657 = vsel %vm625, %v469, 0
      %v660 = vsel %vm625, %v477, 0
      %v663 = vsel %vm625, %v485, 0
      %v666 = vsel %vm625, %v493, 0
      %v669 = vsel %vm625, %v501, 0
      %v672 = vsel %vm625, %v509, 0
      %v675 = vsel %vm625, %v517, 0
      %v678 = vsel %vm625, %v525, 0
      %v681 = vsel %vm625, %v533, 0
      %v684 = vsel %vm625, %v541, 0
      %v687 = vsel %vm625, %v549, 0
      %v690 = vsel %vm625, %v557, 0
      %v693 = vsel %vm625, %v565, 0
      %v696 = vsel %vm625, %v573, 0
      %v699 = vsel %vm625, %v581, 0
      %v702 = vsel %vm625, %v589, 0
      %v705 = vsel %vm625, %v597, 0
      %v708 = vsel %vm625, %v605, 0
      %v711 = vsel %vm625, %v613, 0
      %v714 = vsel %vm625, %v621, 0
      %v717 = vsel %vm625, %v624, 0
      %vm719 = vcmask 1042432
      %v721 = vsel %vm719, %v376, 0
      %723 = vmatprep.subr.bf16.mxu0 0
      %724 = vmatpush1.bf16.msra.mxu0 %v721
      %725 = vmatprep.subr.bf16.mxu0 0
      %726 = vmatpush1.bf16.msra.mxu0 0
      %727 = vmatprep.subr.bf16.mxu0 0
      %728 = vmatpush1.bf16.msra.mxu0 0
      %729 = vmatprep.subr.bf16.mxu0 0
      %730 = vmatpush1.bf16.msra.mxu0 0
      %731 = vmatprep.subr.bf16.mxu0 0
      %732 = vmatpush1.bf16.msra.mxu0 0
      %733 = vmatprep.subr.bf16.mxu0 0
      %734 = vmatpush1.bf16.msra.mxu0 0
      %735 = vmatprep.subr.bf16.mxu0 0
      %736 = vmatpush1.bf16.msra.mxu0 0
      %737 = vmatprep.subr.bf16.mxu0 0
      %738 = vmatpush1.bf16.msra.mxu0 0
      %739 = vmatprep.subr.bf16.mxu0 0
      %740 = vmatpush1.bf16.msra.mxu0 0
      %741 = vmatprep.subr.bf16.mxu0 0
      %742 = vmatpush1.bf16.msra.mxu0 0
      %743 = vmatprep.subr.bf16.mxu0 0
      %744 = vmatpush1.bf16.msra.mxu0 0
      %745 = vmatprep.subr.bf16.mxu0 0
      %746 = vmatpush1.bf16.msra.mxu0 0
      %747 = vmatprep.subr.bf16.mxu0 0
      %748 = vmatpush1.bf16.msra.mxu0 0
      %749 = vmatprep.subr.bf16.mxu0 0
      %750 = vmatpush1.bf16.msra.mxu0 0
      %751 = vmatprep.subr.bf16.mxu0 0
      %752 = vmatpush1.bf16.msra.mxu0 0
      %753 = vmatprep.subr.bf16.mxu0 0
      %754 = vmatpush1.bf16.msra.mxu0 0
      %755 = vmatprep.mubr.bf16.mxu0 0
      %756 = vmatmul.mubr.bf16.gmra.mrb[0].mxu0 %v627
      %v757 = vpop.f32.mrb[0].mxu0
      %v758 = vadd.f32 0.0, %v757
      %v759 = vpop.f32.mrb[0].mxu0
      %v760 = vpop.f32.mrb[0].mxu0
      %v761 = vadd.f32 0.0, %v760
      %v762 = vpop.f32.mrb[0].mxu0
      %763 = vmatprep.mubr.bf16.mxu0 0
      %764 = vmatmul.mubr.bf16.gmra.mrb[0].mxu0 %v630
      %v765 = vpop.f32.mrb[0].mxu0
      %v766 = vadd.f32 0.0, %v765
      %v767 = vpop.f32.mrb[0].mxu0
      %v768 = vpop.f32.mrb[0].mxu0
      %v769 = vadd.f32 0.0, %v768
      %v770 = vpop.f32.mrb[0].mxu0
      %771 = vmatprep.mubr.bf16.mxu0 0
      %772 = vmatmul.mubr.bf16.gmra.mrb[0].mxu0 %v633
      %v773 = vpop.f32.mrb[0].mxu0
      %v774 = vadd.f32 0.0, %v773
      %v775 = vpop.f32.mrb[0].mxu0
      %v776 = vpop.f32.mrb[0].mxu0
      %v777 = vadd.f32 0.0, %v776
      %v778 = vpop.f32.mrb[0].mxu0
      %779 = vmatprep.mubr.bf16.mxu0 0
      %780 = vmatmul.mubr.bf16.gmra.mrb[0].mxu0 %v636
      %v781 = vpop.f32.mrb[0].mxu0
      %v782 = vadd.f32 0.0, %v781
      %v783 = vpop.f32.mrb[0].mxu0
      %v784 = vpop.f32.mrb[0].mxu0
      %v785 = vadd.f32 0.0, %v784
      %v786 = vpop.f32.mrb[0].mxu0
      %787 = vmatprep.mubr.bf16.mxu0 0
      %788 = vmatmul.mubr.bf16.gmra.mrb[0].mxu0 %v639
      %v789 = vpop.f32.mrb[0].mxu0
      %v790 = vadd.f32 0.0, %v789
      %v791 = vpop.f32.mrb[0].mxu0
      %v792 = vpop.f32.mrb[0].mxu0
      %v793 = vadd.f32 0.0, %v792
      %v794 = vpop.f32.mrb[0].mxu0
      %795 = vmatprep.mubr.bf16.mxu0 0
      %796 = vmatmul.mubr.bf16.gmra.mrb[0].mxu0 %v642
      %v797 = vpop.f32.mrb[0].mxu0
      %v798 = vadd.f32 0.0, %v797
      %v799 = vpop.f32.mrb[0].mxu0
      %v800 = vpop.f32.mrb[0].mxu0
      %v801 = vadd.f32 0.0, %v800
      %v802 = vpop.f32.mrb[0].mxu0
      %803 = vmatprep.mubr.bf16.mxu0 0
      %804 = vmatmul.mubr.bf16.gmra.mrb[0].mxu0 %v645
      %v805 = vpop.f32.mrb[0].mxu0
      %v806 = vadd.f32 0.0, %v805
      %v807 = vpop.f32.mrb[0].mxu0
      %v808 = vpop.f32.mrb[0].mxu0
      %v809 = vadd.f32 0.0, %v808
      %v810 = vpop.f32.mrb[0].mxu0
      %811 = vmatprep.mubr.bf16.mxu0 0
      %812 = vmatmul.mubr.bf16.gmra.mrb[0].mxu0 %v648
      %v813 = vpop.f32.mrb[0].mxu0
      %v814 = vadd.f32 0.0, %v813
      %v815 = vpop.f32.mrb[0].mxu0
      %v816 = vpop.f32.mrb[0].mxu0
      %v817 = vadd.f32 0.0, %v816
      %v818 = vpop.f32.mrb[0].mxu0
      %819 = vmatprep.mubr.bf16.mxu0 0
      %820 = vmatmul.mubr.bf16.gmra.mrb[0].mxu0 %v651
      %v821 = vpop.f32.mrb[0].mxu0
      %v822 = vadd.f32 0.0, %v821
      %v823 = vpop.f32.mrb[0].mxu0
      %v824 = vpop.f32.mrb[0].mxu0
      %v825 = vadd.f32 0.0, %v824
      %v826 = vpop.f32.mrb[0].mxu0
      %827 = vmatprep.mubr.bf16.mxu0 0
      %828 = vmatmul.mubr.bf16.gmra.mrb[0].mxu0 %v654
      %v829 = vpop.f32.mrb[0].mxu0
      %v830 = vadd.f32 0.0, %v829
      %v831 = vpop.f32.mrb[0].mxu0
      %v832 = vpop.f32.mrb[0].mxu0
      %v833 = vadd.f32 0.0, %v832
      %v834 = vpop.f32.mrb[0].mxu0
      %835 = vmatprep.mubr.bf16.mxu0 0
      %836 = vmatmul.mubr.bf16.gmra.mrb[0].mxu0 %v657
      %v837 = vpop.f32.mrb[0].mxu0
      %v838 = vadd.f32 0.0, %v837
      %v839 = vpop.f32.mrb[0].mxu0
      %v840 = vpop.f32.mrb[0].mxu0
      %v841 = vadd.f32 0.0, %v840
      %v842 = vpop.f32.mrb[0].mxu0
      %843 = vmatprep.mubr.bf16.mxu0 0
      %844 = vmatmul.mubr.bf16.gmra.mrb[0].mxu0 %v660
      %v845 = vpop.f32.mrb[0].mxu0
      %v846 = vadd.f32 0.0, %v845
      %v847 = vpop.f32.mrb[0].mxu0
      %v848 = vpop.f32.mrb[0].mxu0
      %v849 = vadd.f32 0.0, %v848
      %v850 = vpop.f32.mrb[0].mxu0
      %851 = vmatprep.mubr.bf16.mxu0 0
      %852 = vmatmul.mubr.bf16.gmra.mrb[0].mxu0 %v663
      %v853 = vpop.f32.mrb[0].mxu0
      %v854 = vadd.f32 0.0, %v853
      %v855 = vpop.f32.mrb[0].mxu0
      %v856 = vpop.f32.mrb[0].mxu0
      %v857 = vadd.f32 0.0, %v856
      %v858 = vpop.f32.mrb[0].mxu0
      %859 = vmatprep.mubr.bf16.mxu0 0
      %860 = vmatmul.mubr.bf16.gmra.mrb[0].mxu0 %v666
      %v861 = vpop.f32.mrb[0].mxu0
      %v862 = vadd.f32 0.0, %v861
      %v863 = vpop.f32.mrb[0].mxu0
      %v864 = vpop.f32.mrb[0].mxu0
      %v865 = vadd.f32 0.0, %v864
      %v866 = vpop.f32.mrb[0].mxu0
      %867 = vmatprep.mubr.bf16.mxu0 0
      %868 = vmatmul.mubr.bf16.gmra.mrb[0].mxu0 %v669
      %v869 = vpop.f32.mrb[0].mxu0
      %v870 = vadd.f32 0.0, %v869
      %v871 = vpop.f32.mrb[0].mxu0
      %v872 = vpop.f32.mrb[0].mxu0
      %v873 = vadd.f32 0.0, %v872
      %v874 = vpop.f32.mrb[0].mxu0
      %875 = vmatprep.mubr.bf16.mxu0 0
      %876 = vmatmul.mubr.bf16.gmra.mrb[0].mxu0 %v672
      %v877 = vpop.f32.mrb[0].mxu0
      %v878 = vadd.f32 0.0, %v877
      %v879 = vpop.f32.mrb[0].mxu0
      %v880 = vpop.f32.mrb[0].mxu0
      %v881 = vadd.f32 0.0, %v880
      %v882 = vpop.f32.mrb[0].mxu0
      %883 = vmatprep.mubr.bf16.mxu0 0
      %884 = vmatmul.mubr.bf16.gmra.mrb[0].mxu0 %v675
      %v885 = vpop.f32.mrb[0].mxu0
      %v886 = vadd.f32 0.0, %v885
      %v887 = vpop.f32.mrb[0].mxu0
      %v888 = vpop.f32.mrb[0].mxu0
      %v889 = vadd.f32 0.0, %v888
      %v890 = vpop.f32.mrb[0].mxu0
      %891 = vmatprep.mubr.bf16.mxu0 0
      %892 = vmatmul.mubr.bf16.gmra.mrb[0].mxu0 %v678
      %v893 = vpop.f32.mrb[0].mxu0
      %v894 = vadd.f32 0.0, %v893
      %v895 = vpop.f32.mrb[0].mxu0
      %v896 = vpop.f32.mrb[0].mxu0
      %v897 = vadd.f32 0.0, %v896
      %v898 = vpop.f32.mrb[0].mxu0
      %899 = vmatprep.mubr.bf16.mxu0 0
      %900 = vmatmul.mubr.bf16.gmra.mrb[0].mxu0 %v681
      %v901 = vpop.f32.mrb[0].mxu0
      %v902 = vadd.f32 0.0, %v901
      %v903 = vpop.f32.mrb[0].mxu0
      %v904 = vpop.f32.mrb[0].mxu0
      %v905 = vadd.f32 0.0, %v904
      %v906 = vpop.f32.mrb[0].mxu0
      %907 = vmatprep.mubr.bf16.mxu0 0
      %908 = vmatmul.mubr.bf16.gmra.mrb[0].mxu0 %v684
      %v909 = vpop.f32.mrb[0].mxu0
      %v910 = vadd.f32 0.0, %v909
      %v911 = vpop.f32.mrb[0].mxu0
      %v912 = vpop.f32.mrb[0].mxu0
      %v913 = vadd.f32 0.0, %v912
      %v914 = vpop.f32.mrb[0].mxu0
      %915 = vmatprep.mubr.bf16.mxu0 0
      %916 = vmatmul.mubr.bf16.gmra.mrb[0].mxu0 %v687
      %v917 = vpop.f32.mrb[0].mxu0
      %v918 = vadd.f32 0.0, %v917
      %v919 = vpop.f32.mrb[0].mxu0
      %v920 = vpop.f32.mrb[0].mxu0
      %v921 = vadd.f32 0.0, %v920
      %v922 = vpop.f32.mrb[0].mxu0
      %923 = vmatprep.mubr.bf16.mxu0 0
      %924 = vmatmul.mubr.bf16.gmra.mrb[0].mxu0 %v690
      %v925 = vpop.f32.mrb[0].mxu0
      %v926 = vadd.f32 0.0, %v925
      %v927 = vpop.f32.mrb[0].mxu0
      %v928 = vpop.f32.mrb[0].mxu0
      %v929 = vadd.f32 0.0, %v928
      %v930 = vpop.f32.mrb[0].mxu0
      %931 = vmatprep.mubr.bf16.mxu0 0
      %932 = vmatmul.mubr.bf16.gmra.mrb[0].mxu0 %v693
      %v933 = vpop.f32.mrb[0].mxu0
      %v934 = vadd.f32 0.0, %v933
      %v935 = vpop.f32.mrb[0].mxu0
      %v936 = vpop.f32.mrb[0].mxu0
      %v937 = vadd.f32 0.0, %v936
      %v938 = vpop.f32.mrb[0].mxu0
      %939 = vmatprep.mubr.bf16.mxu0 0
      %940 = vmatmul.mubr.bf16.gmra.mrb[0].mxu0 %v696
      %v941 = vpop.f32.mrb[0].mxu0
      %v942 = vadd.f32 0.0, %v941
      %v943 = vpop.f32.mrb[0].mxu0
      %v944 = vpop.f32.mrb[0].mxu0
      %v945 = vadd.f32 0.0, %v944
      %v946 = vpop.f32.mrb[0].mxu0
      %947 = vmatprep.mubr.bf16.mxu0 0
      %948 = vmatmul.mubr.bf16.gmra.mrb[0].mxu0 %v699
      %v949 = vpop.f32.mrb[0].mxu0
      %v950 = vadd.f32 0.0, %v949
      %v951 = vpop.f32.mrb[0].mxu0
      %v952 = vpop.f32.mrb[0].mxu0
      %v953 = vadd.f32 0.0, %v952
      %v954 = vpop.f32.mrb[0].mxu0
      %955 = vmatprep.mubr.bf16.mxu0 0
      %956 = vmatmul.mubr.bf16.gmra.mrb[0].mxu0 %v702
      %v957 = vpop.f32.mrb[0].mxu0
      %v958 = vadd.f32 0.0, %v957
      %v959 = vpop.f32.mrb[0].mxu0
      %v960 = vpop.f32.mrb[0].mxu0
      %v961 = vadd.f32 0.0, %v960
      %v962 = vpop.f32.mrb[0].mxu0
      %963 = vmatprep.mubr.bf16.mxu0 0
      %964 = vmatmul.mubr.bf16.gmra.mrb[0].mxu0 %v705
      %v965 = vpop.f32.mrb[0].mxu0
      %v966 = vadd.f32 0.0, %v965
      %v967 = vpop.f32.mrb[0].mxu0
      %v968 = vpop.f32.mrb[0].mxu0
      %v969 = vadd.f32 0.0, %v968
      %v970 = vpop.f32.mrb[0].mxu0
      %971 = vmatprep.mubr.bf16.mxu0 0
      %972 = vmatmul.mubr.bf16.gmra.mrb[0].mxu0 %v708
      %v973 = vpop.f32.mrb[0].mxu0
      %v974 = vadd.f32 0.0, %v973
      %v975 = vpop.f32.mrb[0].mxu0
      %v976 = vpop.f32.mrb[0].mxu0
      %v977 = vadd.f32 0.0, %v976
      %v978 = vpop.f32.mrb[0].mxu0
      %979 = vmatprep.mubr.bf16.mxu0 0
      %980 = vmatmul.mubr.bf16.gmra.mrb[0].mxu0 %v711
      %v981 = vpop.f32.mrb[0].mxu0
      %v982 = vadd.f32 0.0, %v981
      %v983 = vpop.f32.mrb[0].mxu0
      %v984 = vpop.f32.mrb[0].mxu0
      %v985 = vadd.f32 0.0, %v984
      %v986 = vpop.f32.mrb[0].mxu0
      %987 = vmatprep.mubr.bf16.mxu0 0
      %988 = vmatmul.mubr.bf16.gmra.mrb[0].mxu0 %v714
      %v989 = vpop.f32.mrb[0].mxu0
      %v990 = vadd.f32 0.0, %v989
      %v991 = vpop.f32.mrb[0].mxu0
      %v992 = vpop.f32.mrb[0].mxu0
      %v993 = vadd.f32 0.0, %v992
      %v994 = vpop.f32.mrb[0].mxu0
      %995 = vmatprep.mubr.bf16.mxu0 0
      %996 = vmatmul.mubr.bf16.gmra.mrb[0].mxu0 %v717
      %v997 = vpop.f32.mrb[0].mxu0
      %v998 = vadd.f32 0.0, %v997
      %v999 = vpop.f32.mrb[0].mxu0
      %v1000 = vpop.f32.mrb[0].mxu0
      %v1001 = vadd.f32 0.0, %v1000
      %v1002 = vpop.f32.mrb[0].mxu0
      %1003 = vdwg.mxu0
      %v1004 = vsel %vm625, %v343, 0
      %v1006 = vsel %vm625, %v344, 0
      %v1008 = vsel %vm625, %v345, 0
      %v1010 = vsel %vm625, %v346, 0
      %v1012 = vsel %vm625, %v347, 0
      %v1014 = vsel %vm625, %v348, 0
      %v1016 = vsel %vm625, %v349, 0
      %v1018 = vsel %vm625, %v350, 0
      %v1020 = vsel %vm625, %v351, 0
      %v1022 = vsel %vm625, %v352, 0
      %v1024 = vsel %vm625, %v353, 0
      %v1026 = vsel %vm625, %v354, 0
      %v1028 = vsel %vm625, %v355, 0
      %v1030 = vsel %vm625, %v356, 0
      %v1032 = vsel %vm625, %v357, 0
      %v1034 = vsel %vm625, %v358, 0
      %v1036 = vsel %vm625, %v359, 0
      %v1038 = vsel %vm625, %v360, 0
      %v1040 = vsel %vm625, %v361, 0
      %v1042 = vsel %vm625, %v362, 0
      %v1044 = vsel %vm625, %v363, 0
      %v1046 = vsel %vm625, %v364, 0
      %v1048 = vsel %vm625, %v365, 0
      %v1050 = vsel %vm625, %v366, 0
      %v1052 = vsel %vm625, %v367, 0
      %v1054 = vsel %vm625, %v368, 0
      %v1056 = vsel %vm625, %v369, 0
      %v1058 = vsel %vm625, %v370, 0
      %v1060 = vsel %vm625, %v371, 0
      %v1062 = vsel %vm625, %v372, 0
      %v1064 = vsel %vm625, %v373, 0
      %v1067 = vsel %vm719, %v374, 0
      %1069 = vmatprep.subr.bf16.mxu0 0
      %1070 = vmatpush1.bf16.msra.mxu0 %v1067
      %1071 = vmatprep.subr.bf16.mxu0 0
      %1072 = vmatpush1.bf16.msra.mxu0 0
      %1073 = vmatprep.subr.bf16.mxu0 0
      %1074 = vmatpush1.bf16.msra.mxu0 0
      %1075 = vmatprep.subr.bf16.mxu0 0
      %1076 = vmatpush1.bf16.msra.mxu0 0
      %1077 = vmatprep.subr.bf16.mxu0 0
      %1078 = vmatpush1.bf16.msra.mxu0 0
      %1079 = vmatprep.subr.bf16.mxu0 0
      %1080 = vmatpush1.bf16.msra.mxu0 0
      %1081 = vmatprep.subr.bf16.mxu0 0
      %1082 = vmatpush1.bf16.msra.mxu0 0
      %1083 = vmatprep.subr.bf16.mxu0 0
      %1084 = vmatpush1.bf16.msra.mxu0 0
      %1085 = vmatprep.subr.bf16.mxu0 0
      %1086 = vmatpush1.bf16.msra.mxu0 0
      %1087 = vmatprep.subr.bf16.mxu0 0
      %1088 = vmatpush1.bf16.msra.mxu0 0
      %1089 = vmatprep.subr.bf16.mxu0 0
      %1090 = vmatpush1.bf16.msra.mxu0 0
      %1091 = vmatprep.subr.bf16.mxu0 0
      %1092 = vmatpush1.bf16.msra.mxu0 0
      %1093 = vmatprep.subr.bf16.mxu0 0
      %1094 = vmatpush1.bf16.msra.mxu0 0
      %1095 = vmatprep.subr.bf16.mxu0 0
      %1096 = vmatpush1.bf16.msra.mxu0 0
      %1097 = vmatprep.subr.bf16.mxu0 0
      %1098 = vmatpush1.bf16.msra.mxu0 0
      %1099 = vmatprep.subr.bf16.mxu0 0
      %1100 = vmatpush1.bf16.msra.mxu0 0
      %1101 = vmatprep.mubr.bf16.mxu0 0
      %1102 = vmatmul.mubr.bf16.gmra.mrb[0].mxu0 %v1004
      %v1103 = vpop.f32.mrb[0].mxu0
      %v1104 = vadd.f32 %v758, %v1103
      %v1105 = vpop.f32.mrb[0].mxu0
      %v1106 = vpop.f32.mrb[0].mxu0
      %v1107 = vadd.f32 %v761, %v1106
      %v1108 = vpop.f32.mrb[0].mxu0
      %1109 = vmatprep.mubr.bf16.mxu0 0
      %1110 = vmatmul.mubr.bf16.gmra.mrb[0].mxu0 %v1006
      %v1111 = vpop.f32.mrb[0].mxu0
      %v1112 = vadd.f32 %v766, %v1111
      %v1113 = vpop.f32.mrb[0].mxu0
      %v1114 = vpop.f32.mrb[0].mxu0
      %v1115 = vadd.f32 %v769, %v1114
      %v1116 = vpop.f32.mrb[0].mxu0
      %1117 = vmatprep.mubr.bf16.mxu0 0
      %1118 = vmatmul.mubr.bf16.gmra.mrb[0].mxu0 %v1008
      %v1119 = vpop.f32.mrb[0].mxu0
      %v1120 = vadd.f32 %v774, %v1119
      %v1121 = vpop.f32.mrb[0].mxu0
      %v1122 = vpop.f32.mrb[0].mxu0
      %v1123 = vadd.f32 %v777, %v1122
      %v1124 = vpop.f32.mrb[0].mxu0
      %1125 = vmatprep.mubr.bf16.mxu0 0
      %1126 = vmatmul.mubr.bf16.gmra.mrb[0].mxu0 %v1010
      %v1127 = vpop.f32.mrb[0].mxu0
      %v1128 = vadd.f32 %v782, %v1127
      %v1129 = vpop.f32.mrb[0].mxu0
      %v1130 = vpop.f32.mrb[0].mxu0
      %v1131 = vadd.f32 %v785, %v1130
      %v1132 = vpop.f32.mrb[0].mxu0
      %1133 = vmatprep.mubr.bf16.mxu0 0
      %1134 = vmatmul.mubr.bf16.gmra.mrb[0].mxu0 %v1012
      %v1135 = vpop.f32.mrb[0].mxu0
      %v1136 = vadd.f32 %v790, %v1135
      %v1137 = vpop.f32.mrb[0].mxu0
      %v1138 = vpop.f32.mrb[0].mxu0
      %v1139 = vadd.f32 %v793, %v1138
      %v1140 = vpop.f32.mrb[0].mxu0
      %1141 = vmatprep.mubr.bf16.mxu0 0
      %1142 = vmatmul.mubr.bf16.gmra.mrb[0].mxu0 %v1014
      %v1143 = vpop.f32.mrb[0].mxu0
      %v1144 = vadd.f32 %v798, %v1143
      %v1145 = vpop.f32.mrb[0].mxu0
      %v1146 = vpop.f32.mrb[0].mxu0
      %v1147 = vadd.f32 %v801, %v1146
      %v1148 = vpop.f32.mrb[0].mxu0
      %1149 = vmatprep.mubr.bf16.mxu0 0
      %1150 = vmatmul.mubr.bf16.gmra.mrb[0].mxu0 %v1016
      %v1151 = vpop.f32.mrb[0].mxu0
      %v1152 = vadd.f32 %v806, %v1151
      %v1153 = vpop.f32.mrb[0].mxu0
      %v1154 = vpop.f32.mrb[0].mxu0
      %v1155 = vadd.f32 %v809, %v1154
      %v1156 = vpop.f32.mrb[0].mxu0
      %1157 = vmatprep.mubr.bf16.mxu0 0
      %1158 = vmatmul.mubr.bf16.gmra.mrb[0].mxu0 %v1018
      %v1159 = vpop.f32.mrb[0].mxu0
      %v1160 = vadd.f32 %v814, %v1159
      %v1161 = vpop.f32.mrb[0].mxu0
      %v1162 = vpop.f32.mrb[0].mxu0
      %v1163 = vadd.f32 %v817, %v1162
      %v1164 = vpop.f32.mrb[0].mxu0
      %1165 = vmatprep.mubr.bf16.mxu0 0
      %1166 = vmatmul.mubr.bf16.gmra.mrb[0].mxu0 %v1020
      %v1167 = vpop.f32.mrb[0].mxu0
      %v1168 = vadd.f32 %v822, %v1167
      %v1169 = vpop.f32.mrb[0].mxu0
      %v1170 = vpop.f32.mrb[0].mxu0
      %v1171 = vadd.f32 %v825, %v1170
      %v1172 = vpop.f32.mrb[0].mxu0
      %1173 = vmatprep.mubr.bf16.mxu0 0
      %1174 = vmatmul.mubr.bf16.gmra.mrb[0].mxu0 %v1022
      %v1175 = vpop.f32.mrb[0].mxu0
      %v1176 = vadd.f32 %v830, %v1175
      %v1177 = vpop.f32.mrb[0].mxu0
      %v1178 = vpop.f32.mrb[0].mxu0
      %v1179 = vadd.f32 %v833, %v1178
      %v1180 = vpop.f32.mrb[0].mxu0
      %1181 = vmatprep.mubr.bf16.mxu0 0
      %1182 = vmatmul.mubr.bf16.gmra.mrb[0].mxu0 %v1024
      %v1183 = vpop.f32.mrb[0].mxu0
      %v1184 = vadd.f32 %v838, %v1183
      %v1185 = vpop.f32.mrb[0].mxu0
      %v1186 = vpop.f32.mrb[0].mxu0
      %v1187 = vadd.f32 %v841, %v1186
      %v1188 = vpop.f32.mrb[0].mxu0
      %1189 = vmatprep.mubr.bf16.mxu0 0
      %1190 = vmatmul.mubr.bf16.gmra.mrb[0].mxu0 %v1026
      %v1191 = vpop.f32.mrb[0].mxu0
      %v1192 = vadd.f32 %v846, %v1191
      %v1193 = vpop.f32.mrb[0].mxu0
      %v1194 = vpop.f32.mrb[0].mxu0
      %v1195 = vadd.f32 %v849, %v1194
      %v1196 = vpop.f32.mrb[0].mxu0
      %1197 = vmatprep.mubr.bf16.mxu0 0
      %1198 = vmatmul.mubr.bf16.gmra.mrb[0].mxu0 %v1028
      %v1199 = vpop.f32.mrb[0].mxu0
      %v1200 = vadd.f32 %v854, %v1199
      %v1201 = vpop.f32.mrb[0].mxu0
      %v1202 = vpop.f32.mrb[0].mxu0
      %v1203 = vadd.f32 %v857, %v1202
      %v1204 = vpop.f32.mrb[0].mxu0
      %1205 = vmatprep.mubr.bf16.mxu0 0
      %1206 = vmatmul.mubr.bf16.gmra.mrb[0].mxu0 %v1030
      %v1207 = vpop.f32.mrb[0].mxu0
      %v1208 = vadd.f32 %v862, %v1207
      %v1209 = vpop.f32.mrb[0].mxu0
      %v1210 = vpop.f32.mrb[0].mxu0
      %v1211 = vadd.f32 %v865, %v1210
      %v1212 = vpop.f32.mrb[0].mxu0
      %1213 = vmatprep.mubr.bf16.mxu0 0
      %1214 = vmatmul.mubr.bf16.gmra.mrb[0].mxu0 %v1032
      %v1215 = vpop.f32.mrb[0].mxu0
      %v1216 = vadd.f32 %v870, %v1215
      %v1217 = vpop.f32.mrb[0].mxu0
      %v1218 = vpop.f32.mrb[0].mxu0
      %v1219 = vadd.f32 %v873, %v1218
      %v1220 = vpop.f32.mrb[0].mxu0
      %1221 = vmatprep.mubr.bf16.mxu0 0
      %1222 = vmatmul.mubr.bf16.gmra.mrb[0].mxu0 %v1034
      %v1223 = vpop.f32.mrb[0].mxu0
      %v1224 = vadd.f32 %v878, %v1223
      %v1225 = vpop.f32.mrb[0].mxu0
      %v1226 = vpop.f32.mrb[0].mxu0
      %v1227 = vadd.f32 %v881, %v1226
      %v1228 = vpop.f32.mrb[0].mxu0
      %1229 = vmatprep.mubr.bf16.mxu0 0
      %1230 = vmatmul.mubr.bf16.gmra.mrb[0].mxu0 %v1036
      %v1231 = vpop.f32.mrb[0].mxu0
      %v1232 = vadd.f32 %v886, %v1231
      %v1233 = vpop.f32.mrb[0].mxu0
      %v1234 = vpop.f32.mrb[0].mxu0
      %v1235 = vadd.f32 %v889, %v1234
      %v1236 = vpop.f32.mrb[0].mxu0
      %1237 = vmatprep.mubr.bf16.mxu0 0
      %1238 = vmatmul.mubr.bf16.gmra.mrb[0].mxu0 %v1038
      %v1239 = vpop.f32.mrb[0].mxu0
      %v1240 = vadd.f32 %v894, %v1239
      %v1241 = vpop.f32.mrb[0].mxu0
      %v1242 = vpop.f32.mrb[0].mxu0
      %v1243 = vadd.f32 %v897, %v1242
      %v1244 = vpop.f32.mrb[0].mxu0
      %1245 = vmatprep.mubr.bf16.mxu0 0
      %1246 = vmatmul.mubr.bf16.gmra.mrb[0].mxu0 %v1040
      %v1247 = vpop.f32.mrb[0].mxu0
      %v1248 = vadd.f32 %v902, %v1247
      %v1249 = vpop.f32.mrb[0].mxu0
      %v1250 = vpop.f32.mrb[0].mxu0
      %v1251 = vadd.f32 %v905, %v1250
      %v1252 = vpop.f32.mrb[0].mxu0
      %1253 = vmatprep.mubr.bf16.mxu0 0
      %1254 = vmatmul.mubr.bf16.gmra.mrb[0].mxu0 %v1042
      %v1255 = vpop.f32.mrb[0].mxu0
      %v1256 = vadd.f32 %v910, %v1255
      %v1257 = vpop.f32.mrb[0].mxu0
      %v1258 = vpop.f32.mrb[0].mxu0
      %v1259 = vadd.f32 %v913, %v1258
      %v1260 = vpop.f32.mrb[0].mxu0
      %1261 = vmatprep.mubr.bf16.mxu0 0
      %1262 = vmatmul.mubr.bf16.gmra.mrb[0].mxu0 %v1044
      %v1263 = vpop.f32.mrb[0].mxu0
      %v1264 = vadd.f32 %v918, %v1263
      %v1265 = vpop.f32.mrb[0].mxu0
      %v1266 = vpop.f32.mrb[0].mxu0
      %v1267 = vadd.f32 %v921, %v1266
      %v1268 = vpop.f32.mrb[0].mxu0
      %1269 = vmatprep.mubr.bf16.mxu0 0
      %1270 = vmatmul.mubr.bf16.gmra.mrb[0].mxu0 %v1046
      %v1271 = vpop.f32.mrb[0].mxu0
      %v1272 = vadd.f32 %v926, %v1271
      %v1273 = vpop.f32.mrb[0].mxu0
      %v1274 = vpop.f32.mrb[0].mxu0
      %v1275 = vadd.f32 %v929, %v1274
      %v1276 = vpop.f32.mrb[0].mxu0
      %1277 = vmatprep.mubr.bf16.mxu0 0
      %1278 = vmatmul.mubr.bf16.gmra.mrb[0].mxu0 %v1048
      %v1279 = vpop.f32.mrb[0].mxu0
      %v1280 = vadd.f32 %v934, %v1279
      %v1281 = vpop.f32.mrb[0].mxu0
      %v1282 = vpop.f32.mrb[0].mxu0
      %v1283 = vadd.f32 %v937, %v1282
      %v1284 = vpop.f32.mrb[0].mxu0
      %1285 = vmatprep.mubr.bf16.mxu0 0
      %1286 = vmatmul.mubr.bf16.gmra.mrb[0].mxu0 %v1050
      %v1287 = vpop.f32.mrb[0].mxu0
      %v1288 = vadd.f32 %v942, %v1287
      %v1289 = vpop.f32.mrb[0].mxu0
      %v1290 = vpop.f32.mrb[0].mxu0
      %v1291 = vadd.f32 %v945, %v1290
      %v1292 = vpop.f32.mrb[0].mxu0
      %1293 = vmatprep.mubr.bf16.mxu0 0
      %1294 = vmatmul.mubr.bf16.gmra.mrb[0].mxu0 %v1052
      %v1295 = vpop.f32.mrb[0].mxu0
      %v1296 = vadd.f32 %v950, %v1295
      %v1297 = vpop.f32.mrb[0].mxu0
      %v1298 = vpop.f32.mrb[0].mxu0
      %v1299 = vadd.f32 %v953, %v1298
      %v1300 = vpop.f32.mrb[0].mxu0
      %1301 = vmatprep.mubr.bf16.mxu0 0
      %1302 = vmatmul.mubr.bf16.gmra.mrb[0].mxu0 %v1054
      %v1303 = vpop.f32.mrb[0].mxu0
      %v1304 = vadd.f32 %v958, %v1303
      %v1305 = vpop.f32.mrb[0].mxu0
      %v1306 = vpop.f32.mrb[0].mxu0
      %v1307 = vadd.f32 %v961, %v1306
      %v1308 = vpop.f32.mrb[0].mxu0
      %1309 = vmatprep.mubr.bf16.mxu0 0
      %1310 = vmatmul.mubr.bf16.gmra.mrb[0].mxu0 %v1056
      %v1311 = vpop.f32.mrb[0].mxu0
      %v1312 = vadd.f32 %v966, %v1311
      %v1313 = vpop.f32.mrb[0].mxu0
      %v1314 = vpop.f32.mrb[0].mxu0
      %v1315 = vadd.f32 %v969, %v1314
      %v1316 = vpop.f32.mrb[0].mxu0
      %1317 = vmatprep.mubr.bf16.mxu0 0
      %1318 = vmatmul.mubr.bf16.gmra.mrb[0].mxu0 %v1058
      %v1319 = vpop.f32.mrb[0].mxu0
      %v1320 = vadd.f32 %v974, %v1319
      %v1321 = vpop.f32.mrb[0].mxu0
      %v1322 = vpop.f32.mrb[0].mxu0
      %v1323 = vadd.f32 %v977, %v1322
      %v1324 = vpop.f32.mrb[0].mxu0
      %1325 = vmatprep.mubr.bf16.mxu0 0
      %1326 = vmatmul.mubr.bf16.gmra.mrb[0].mxu0 %v1060
      %v1327 = vpop.f32.mrb[0].mxu0
      %v1328 = vadd.f32 %v982, %v1327
      %v1329 = vpop.f32.mrb[0].mxu0
      %v1330 = vpop.f32.mrb[0].mxu0
      %v1331 = vadd.f32 %v985, %v1330
      %v1332 = vpop.f32.mrb[0].mxu0
      %1333 = vmatprep.mubr.bf16.mxu0 0
      %1334 = vmatmul.mubr.bf16.gmra.mrb[0].mxu0 %v1062
      %v1335 = vpop.f32.mrb[0].mxu0
      %v1336 = vadd.f32 %v990, %v1335
      %v1337 = vpop.f32.mrb[0].mxu0
      %v1338 = vpop.f32.mrb[0].mxu0
      %v1339 = vadd.f32 %v993, %v1338
      %v1340 = vpop.f32.mrb[0].mxu0
      %1341 = vmatprep.mubr.bf16.mxu0 0
      %1342 = vmatmul.mubr.bf16.gmra.mrb[0].mxu0 %v1064
      %v1343 = vpop.f32.mrb[0].mxu0
      %v1344 = vadd.f32 %v998, %v1343
      %v1345 = vpop.f32.mrb[0].mxu0
      %v1346 = vpop.f32.mrb[0].mxu0
      %v1347 = vadd.f32 %v1001, %v1346
      %v1348 = vpop.f32.mrb[0].mxu0
      %1349 = vdwg.mxu0
      %v1350 = vpack.c.bf16 %v342, %v342
      %s1351 = scalar_lea.vmem %s1, 8
      %v1352 = vld [vmem:[%s1351] sm:$0x7]
      %vm1385 = vcmask 1046528
      %v1386 = vrot.slane %v343, 1
      %v1387 = vrot.slane %v344, 1
      %v1388 = vsel %vm1385, %v1386, %v1387
      %v1389 = vrot.slane %v345, 1
      %v1390 = vsel %vm1385, %v1387, %v1389
      %v1391 = vrot.slane %v346, 1
      %v1392 = vsel %vm1385, %v1389, %v1391
      %v1393 = vrot.slane %v347, 1
      %v1394 = vsel %vm1385, %v1391, %v1393
      %v1395 = vrot.slane %v348, 1
      %v1396 = vsel %vm1385, %v1393, %v1395
      %v1397 = vrot.slane %v349, 1
      %v1398 = vsel %vm1385, %v1395, %v1397
      %v1399 = vrot.slane %v350, 1
      %v1400 = vsel %vm1385, %v1397, %v1399
      %v1401 = vrot.slane %v351, 1
      %v1402 = vsel %vm1385, %v1399, %v1401
      %v1403 = vrot.slane %v352, 1
      %v1404 = vsel %vm1385, %v1401, %v1403
      %v1405 = vrot.slane %v353, 1
      %v1406 = vsel %vm1385, %v1403, %v1405
      %v1407 = vrot.slane %v354, 1
      %v1408 = vsel %vm1385, %v1405, %v1407
      %v1409 = vrot.slane %v355, 1
      %v1410 = vsel %vm1385, %v1407, %v1409
      %v1411 = vrot.slane %v356, 1
      %v1412 = vsel %vm1385, %v1409, %v1411
      %v1413 = vrot.slane %v357, 1
      %v1414 = vsel %vm1385, %v1411, %v1413
      %v1415 = vrot.slane %v358, 1
      %v1416 = vsel %vm1385, %v1413, %v1415
      %v1417 = vrot.slane %v359, 1
      %v1418 = vsel %vm1385, %v1415, %v1417
      %v1419 = vrot.slane %v360, 1
      %v1420 = vsel %vm1385, %v1417, %v1419
      %v1421 = vrot.slane %v361, 1
      %v1422 = vsel %vm1385, %v1419, %v1421
      %v1423 = vrot.slane %v362, 1
      %v1424 = vsel %vm1385, %v1421, %v1423
      %v1425 = vrot.slane %v363, 1
      %v1426 = vsel %vm1385, %v1423, %v1425
      %v1427 = vrot.slane %v364, 1
      %v1428 = vsel %vm1385, %v1425, %v1427
      %v1429 = vrot.slane %v365, 1
      %v1430 = vsel %vm1385, %v1427, %v1429
      %v1431 = vrot.slane %v366, 1
      %v1432 = vsel %vm1385, %v1429, %v1431
      %v1433 = vrot.slane %v367, 1
      %v1434 = vsel %vm1385, %v1431, %v1433
      %v1435 = vrot.slane %v368, 1
      %v1436 = vsel %vm1385, %v1433, %v1435
      %v1437 = vrot.slane %v369, 1
      %v1438 = vsel %vm1385, %v1435, %v1437
      %v1439 = vrot.slane %v370, 1
      %v1440 = vsel %vm1385, %v1437, %v1439
      %v1441 = vrot.slane %v371, 1
      %v1442 = vsel %vm1385, %v1439, %v1441
      %v1443 = vrot.slane %v372, 1
      %v1444 = vsel %vm1385, %v1441, %v1443
      %v1445 = vrot.slane %v373, 1
      %v1446 = vsel %vm1385, %v1443, %v1445
      %v1447 = vrot.slane %v1350, 1
      %v1448 = vsel %vm1385, %v1445, %v1447
      %v1450 = vsel %vm625, %v1388, 0
      %v1453 = vsel %vm625, %v1390, 0
      %v1456 = vsel %vm625, %v1392, 0
      %v1459 = vsel %vm625, %v1394, 0
      %v1462 = vsel %vm625, %v1396, 0
      %v1465 = vsel %vm625, %v1398, 0
      %v1468 = vsel %vm625, %v1400, 0
      %v1471 = vsel %vm625, %v1402, 0
      %v1474 = vsel %vm625, %v1404, 0
      %v1477 = vsel %vm625, %v1406, 0
      %v1480 = vsel %vm625, %v1408, 0
      %v1483 = vsel %vm625, %v1410, 0
      %v1486 = vsel %vm625, %v1412, 0
      %v1489 = vsel %vm625, %v1414, 0
      %v1492 = vsel %vm625, %v1416, 0
      %v1495 = vsel %vm625, %v1418, 0
      %v1498 = vsel %vm625, %v1420, 0
      %v1501 = vsel %vm625, %v1422, 0
      %v1504 = vsel %vm625, %v1424, 0
      %v1507 = vsel %vm625, %v1426, 0
      %v1510 = vsel %vm625, %v1428, 0
      %v1513 = vsel %vm625, %v1430, 0
      %v1516 = vsel %vm625, %v1432, 0
      %v1519 = vsel %vm625, %v1434, 0
      %v1522 = vsel %vm625, %v1436, 0
      %v1525 = vsel %vm625, %v1438, 0
      %v1528 = vsel %vm625, %v1440, 0
      %v1531 = vsel %vm625, %v1442, 0
      %v1534 = vsel %vm625, %v1444, 0
      %v1537 = vsel %vm625, %v1446, 0
      %v1540 = vsel %vm625, %v1448, 0
      %v1543 = vsel %vm719, %v1352, 0
      %1545 = vmatprep.subr.bf16.mxu0 0
      %1546 = vmatpush1.bf16.msra.mxu0 %v1543
      %1547 = vmatprep.subr.bf16.mxu0 0
      %1548 = vmatpush1.bf16.msra.mxu0 0
      %1549 = vmatprep.subr.bf16.mxu0 0
      %1550 = vmatpush1.bf16.msra.mxu0 0
      %1551 = vmatprep.subr.bf16.mxu0 0
      %1552 = vmatpush1.bf16.msra.mxu0 0
      %1553 = vmatprep.subr.bf16.mxu0 0
      %1554 = vmatpush1.bf16.msra.mxu0 0
      %1555 = vmatprep.subr.bf16.mxu0 0
      %1556 = vmatpush1.bf16.msra.mxu0 0
      %1557 = vmatprep.subr.bf16.mxu0 0
      %1558 = vmatpush1.bf16.msra.mxu0 0
      %1559 = vmatprep.subr.bf16.mxu0 0
      %1560 = vmatpush1.bf16.msra.mxu0 0
      %1561 = vmatprep.subr.bf16.mxu0 0
      %1562 = vmatpush1.bf16.msra.mxu0 0
      %1563 = vmatprep.subr.bf16.mxu0 0
      %1564 = vmatpush1.bf16.msra.mxu0 0
      %1565 = vmatprep.subr.bf16.mxu0 0
      %1566 = vmatpush1.bf16.msra.mxu0 0
      %1567 = vmatprep.subr.bf16.mxu0 0
      %1568 = vmatpush1.bf16.msra.mxu0 0
      %1569 = vmatprep.subr.bf16.mxu0 0
      %1570 = vmatpush1.bf16.msra.mxu0 0
      %1571 = vmatprep.subr.bf16.mxu0 0
      %1572 = vmatpush1.bf16.msra.mxu0 0
      %1573 = vmatprep.subr.bf16.mxu0 0
      %1574 = vmatpush1.bf16.msra.mxu0 0
      %1575 = vmatprep.subr.bf16.mxu0 0
      %1576 = vmatpush1.bf16.msra.mxu0 0
      %1577 = vmatprep.mubr.bf16.mxu0 0
      %1578 = vmatmul.mubr.bf16.gmra.mrb[0].mxu0 %v1450
      %v1579 = vpop.f32.mrb[0].mxu0
      %v1580 = vadd.f32 0.0, %v1579
      %v1581 = vpop.f32.mrb[0].mxu0
      %v1582 = vpop.f32.mrb[0].mxu0
      %v1583 = vadd.f32 0.0, %v1582
      %v1584 = vpop.f32.mrb[0].mxu0
      %1585 = vmatprep.mubr.bf16.mxu0 0
      %1586 = vmatmul.mubr.bf16.gmra.mrb[0].mxu0 %v1453
      %v1587 = vpop.f32.mrb[0].mxu0
      %v1588 = vadd.f32 0.0, %v1587
      %v1589 = vpop.f32.mrb[0].mxu0
      %v1590 = vpop.f32.mrb[0].mxu0
      %v1591 = vadd.f32 0.0, %v1590
      %v1592 = vpop.f32.mrb[0].mxu0
      %1593 = vmatprep.mubr.bf16.mxu0 0
      %1594 = vmatmul.mubr.bf16.gmra.mrb[0].mxu0 %v1456
      %v1595 = vpop.f32.mrb[0].mxu0
      %v1596 = vadd.f32 0.0, %v1595
      %v1597 = vpop.f32.mrb[0].mxu0
      %v1598 = vpop.f32.mrb[0].mxu0
      %v1599 = vadd.f32 0.0, %v1598
      %v1600 = vpop.f32.mrb[0].mxu0
      %1601 = vmatprep.mubr.bf16.mxu0 0
      %1602 = vmatmul.mubr.bf16.gmra.mrb[0].mxu0 %v1459
      %v1603 = vpop.f32.mrb[0].mxu0
      %v1604 = vadd.f32 0.0, %v1603
      %v1605 = vpop.f32.mrb[0].mxu0
      %v1606 = vpop.f32.mrb[0].mxu0
      %v1607 = vadd.f32 0.0, %v1606
      %v1608 = vpop.f32.mrb[0].mxu0
      %1609 = vmatprep.mubr.bf16.mxu0 0
      %1610 = vmatmul.mubr.bf16.gmra.mrb[0].mxu0 %v1462
      %v1611 = vpop.f32.mrb[0].mxu0
      %v1612 = vadd.f32 0.0, %v1611
      %v1613 = vpop.f32.mrb[0].mxu0
      %v1614 = vpop.f32.mrb[0].mxu0
      %v1615 = vadd.f32 0.0, %v1614
      %v1616 = vpop.f32.mrb[0].mxu0
      %1617 = vmatprep.mubr.bf16.mxu0 0
      %1618 = vmatmul.mubr.bf16.gmra.mrb[0].mxu0 %v1465
      %v1619 = vpop.f32.mrb[0].mxu0
      %v1620 = vadd.f32 0.0, %v1619
      %v1621 = vpop.f32.mrb[0].mxu0
      %v1622 = vpop.f32.mrb[0].mxu0
      %v1623 = vadd.f32 0.0, %v1622
      %v1624 = vpop.f32.mrb[0].mxu0
      %1625 = vmatprep.mubr.bf16.mxu0 0
      %1626 = vmatmul.mubr.bf16.gmra.mrb[0].mxu0 %v1468
      %v1627 = vpop.f32.mrb[0].mxu0
      %v1628 = vadd.f32 0.0, %v1627
      %v1629 = vpop.f32.mrb[0].mxu0
      %v1630 = vpop.f32.mrb[0].mxu0
      %v1631 = vadd.f32 0.0, %v1630
      %v1632 = vpop.f32.mrb[0].mxu0
      %1633 = vmatprep.mubr.bf16.mxu0 0
      %1634 = vmatmul.mubr.bf16.gmra.mrb[0].mxu0 %v1471
      %v1635 = vpop.f32.mrb[0].mxu0
      %v1636 = vadd.f32 0.0, %v1635
      %v1637 = vpop.f32.mrb[0].mxu0
      %v1638 = vpop.f32.mrb[0].mxu0
      %v1639 = vadd.f32 0.0, %v1638
      %v1640 = vpop.f32.mrb[0].mxu0
      %1641 = vmatprep.mubr.bf16.mxu0 0
      %1642 = vmatmul.mubr.bf16.gmra.mrb[0].mxu0 %v1474
      %v1643 = vpop.f32.mrb[0].mxu0
      %v1644 = vadd.f32 0.0, %v1643
      %v1645 = vpop.f32.mrb[0].mxu0
      %v1646 = vpop.f32.mrb[0].mxu0
      %v1647 = vadd.f32 0.0, %v1646
      %v1648 = vpop.f32.mrb[0].mxu0
      %1649 = vmatprep.mubr.bf16.mxu0 0
      %1650 = vmatmul.mubr.bf16.gmra.mrb[0].mxu0 %v1477
      %v1651 = vpop.f32.mrb[0].mxu0
      %v1652 = vadd.f32 0.0, %v1651
      %v1653 = vpop.f32.mrb[0].mxu0
      %v1654 = vpop.f32.mrb[0].mxu0
      %v1655 = vadd.f32 0.0, %v1654
      %v1656 = vpop.f32.mrb[0].mxu0
      %1657 = vmatprep.mubr.bf16.mxu0 0
      %1658 = vmatmul.mubr.bf16.gmra.mrb[0].mxu0 %v1480
      %v1659 = vpop.f32.mrb[0].mxu0
      %v1660 = vadd.f32 0.0, %v1659
      %v1661 = vpop.f32.mrb[0].mxu0
      %v1662 = vpop.f32.mrb[0].mxu0
      %v1663 = vadd.f32 0.0, %v1662
      %v1664 = vpop.f32.mrb[0].mxu0
      %1665 = vmatprep.mubr.bf16.mxu0 0
      %1666 = vmatmul.mubr.bf16.gmra.mrb[0].mxu0 %v1483
      %v1667 = vpop.f32.mrb[0].mxu0
      %v1668 = vadd.f32 0.0, %v1667
      %v1669 = vpop.f32.mrb[0].mxu0
      %v1670 = vpop.f32.mrb[0].mxu0
      %v1671 = vadd.f32 0.0, %v1670
      %v1672 = vpop.f32.mrb[0].mxu0
      %1673 = vmatprep.mubr.bf16.mxu0 0
      %1674 = vmatmul.mubr.bf16.gmra.mrb[0].mxu0 %v1486
      %v1675 = vpop.f32.mrb[0].mxu0
      %v1676 = vadd.f32 0.0, %v1675
      %v1677 = vpop.f32.mrb[0].mxu0
      %v1678 = vpop.f32.mrb[0].mxu0
      %v1679 = vadd.f32 0.0, %v1678
      %v1680 = vpop.f32.mrb[0].mxu0
      %1681 = vmatprep.mubr.bf16.mxu0 0
      %1682 = vmatmul.mubr.bf16.gmra.mrb[0].mxu0 %v1489
      %v1683 = vpop.f32.mrb[0].mxu0
      %v1684 = vadd.f32 0.0, %v1683
      %v1685 = vpop.f32.mrb[0].mxu0
      %v1686 = vpop.f32.mrb[0].mxu0
      %v1687 = vadd.f32 0.0, %v1686
      %v1688 = vpop.f32.mrb[0].mxu0
      %1689 = vmatprep.mubr.bf16.mxu0 0
      %1690 = vmatmul.mubr.bf16.gmra.mrb[0].mxu0 %v1492
      %v1691 = vpop.f32.mrb[0].mxu0
      %v1692 = vadd.f32 0.0, %v1691
      %v1693 = vpop.f32.mrb[0].mxu0
      %v1694 = vpop.f32.mrb[0].mxu0
      %v1695 = vadd.f32 0.0, %v1694
      %v1696 = vpop.f32.mrb[0].mxu0
      %1697 = vmatprep.mubr.bf16.mxu0 0
      %1698 = vmatmul.mubr.bf16.gmra.mrb[0].mxu0 %v1495
      %v1699 = vpop.f32.mrb[0].mxu0
      %v1700 = vadd.f32 0.0, %v1699
      %v1701 = vpop.f32.mrb[0].mxu0
      %v1702 = vpop.f32.mrb[0].mxu0
      %v1703 = vadd.f32 0.0, %v1702
      %v1704 = vpop.f32.mrb[0].mxu0
      %1705 = vmatprep.mubr.bf16.mxu0 0
      %1706 = vmatmul.mubr.bf16.gmra.mrb[0].mxu0 %v1498
      %v1707 = vpop.f32.mrb[0].mxu0
      %v1708 = vadd.f32 0.0, %v1707
      %v1709 = vpop.f32.mrb[0].mxu0
      %v1710 = vpop.f32.mrb[0].mxu0
      %v1711 = vadd.f32 0.0, %v1710
      %v1712 = vpop.f32.mrb[0].mxu0
      %1713 = vmatprep.mubr.bf16.mxu0 0
      %1714 = vmatmul.mubr.bf16.gmra.mrb[0].mxu0 %v1501
      %v1715 = vpop.f32.mrb[0].mxu0
      %v1716 = vadd.f32 0.0, %v1715
      %v1717 = vpop.f32.mrb[0].mxu0
      %v1718 = vpop.f32.mrb[0].mxu0
      %v1719 = vadd.f32 0.0, %v1718
      %v1720 = vpop.f32.mrb[0].mxu0
      %1721 = vmatprep.mubr.bf16.mxu0 0
      %1722 = vmatmul.mubr.bf16.gmra.mrb[0].mxu0 %v1504
      %v1723 = vpop.f32.mrb[0].mxu0
      %v1724 = vadd.f32 0.0, %v1723
      %v1725 = vpop.f32.mrb[0].mxu0
      %v1726 = vpop.f32.mrb[0].mxu0
      %v1727 = vadd.f32 0.0, %v1726
      %v1728 = vpop.f32.mrb[0].mxu0
      %1729 = vmatprep.mubr.bf16.mxu0 0
      %1730 = vmatmul.mubr.bf16.gmra.mrb[0].mxu0 %v1507
      %v1731 = vpop.f32.mrb[0].mxu0
      %v1732 = vadd.f32 0.0, %v1731
      %v1733 = vpop.f32.mrb[0].mxu0
      %v1734 = vpop.f32.mrb[0].mxu0
      %v1735 = vadd.f32 0.0, %v1734
      %v1736 = vpop.f32.mrb[0].mxu0
      %1737 = vmatprep.mubr.bf16.mxu0 0
      %1738 = vmatmul.mubr.bf16.gmra.mrb[0].mxu0 %v1510
      %v1739 = vpop.f32.mrb[0].mxu0
      %v1740 = vadd.f32 0.0, %v1739
      %v1741 = vpop.f32.mrb[0].mxu0
      %v1742 = vpop.f32.mrb[0].mxu0
      %v1743 = vadd.f32 0.0, %v1742
      %v1744 = vpop.f32.mrb[0].mxu0
      %1745 = vmatprep.mubr.bf16.mxu0 0
      %1746 = vmatmul.mubr.bf16.gmra.mrb[0].mxu0 %v1513
      %v1747 = vpop.f32.mrb[0].mxu0
      %v1748 = vadd.f32 0.0, %v1747
      %v1749 = vpop.f32.mrb[0].mxu0
      %v1750 = vpop.f32.mrb[0].mxu0
      %v1751 = vadd.f32 0.0, %v1750
      %v1752 = vpop.f32.mrb[0].mxu0
      %1753 = vmatprep.mubr.bf16.mxu0 0
      %1754 = vmatmul.mubr.bf16.gmra.mrb[0].mxu0 %v1516
      %v1755 = vpop.f32.mrb[0].mxu0
      %v1756 = vadd.f32 0.0, %v1755
      %v1757 = vpop.f32.mrb[0].mxu0
      %v1758 = vpop.f32.mrb[0].mxu0
      %v1759 = vadd.f32 0.0, %v1758
      %v1760 = vpop.f32.mrb[0].mxu0
      %1761 = vmatprep.mubr.bf16.mxu0 0
      %1762 = vmatmul.mubr.bf16.gmra.mrb[0].mxu0 %v1519
      %v1763 = vpop.f32.mrb[0].mxu0
      %v1764 = vadd.f32 0.0, %v1763
      %v1765 = vpop.f32.mrb[0].mxu0
      %v1766 = vpop.f32.mrb[0].mxu0
      %v1767 = vadd.f32 0.0, %v1766
      %v1768 = vpop.f32.mrb[0].mxu0
      %1769 = vmatprep.mubr.bf16.mxu0 0
      %1770 = vmatmul.mubr.bf16.gmra.mrb[0].mxu0 %v1522
      %v1771 = vpop.f32.mrb[0].mxu0
      %v1772 = vadd.f32 0.0, %v1771
      %v1773 = vpop.f32.mrb[0].mxu0
      %v1774 = vpop.f32.mrb[0].mxu0
      %v1775 = vadd.f32 0.0, %v1774
      %v1776 = vpop.f32.mrb[0].mxu0
      %1777 = vmatprep.mubr.bf16.mxu0 0
      %1778 = vmatmul.mubr.bf16.gmra.mrb[0].mxu0 %v1525
      %v1779 = vpop.f32.mrb[0].mxu0
      %v1780 = vadd.f32 0.0, %v1779
      %v1781 = vpop.f32.mrb[0].mxu0
      %v1782 = vpop.f32.mrb[0].mxu0
      %v1783 = vadd.f32 0.0, %v1782
      %v1784 = vpop.f32.mrb[0].mxu0
      %1785 = vmatprep.mubr.bf16.mxu0 0
      %1786 = vmatmul.mubr.bf16.gmra.mrb[0].mxu0 %v1528
      %v1787 = vpop.f32.mrb[0].mxu0
      %v1788 = vadd.f32 0.0, %v1787
      %v1789 = vpop.f32.mrb[0].mxu0
      %v1790 = vpop.f32.mrb[0].mxu0
      %v1791 = vadd.f32 0.0, %v1790
      %v1792 = vpop.f32.mrb[0].mxu0
      %1793 = vmatprep.mubr.bf16.mxu0 0
      %1794 = vmatmul.mubr.bf16.gmra.mrb[0].mxu0 %v1531
      %v1795 = vpop.f32.mrb[0].mxu0
      %v1796 = vadd.f32 0.0, %v1795
      %v1797 = vpop.f32.mrb[0].mxu0
      %v1798 = vpop.f32.mrb[0].mxu0
      %v1799 = vadd.f32 0.0, %v1798
      %v1800 = vpop.f32.mrb[0].mxu0
      %1801 = vmatprep.mubr.bf16.mxu0 0
      %1802 = vmatmul.mubr.bf16.gmra.mrb[0].mxu0 %v1534
      %v1803 = vpop.f32.mrb[0].mxu0
      %v1804 = vadd.f32 0.0, %v1803
      %v1805 = vpop.f32.mrb[0].mxu0
      %v1806 = vpop.f32.mrb[0].mxu0
      %v1807 = vadd.f32 0.0, %v1806
      %v1808 = vpop.f32.mrb[0].mxu0
      %1809 = vmatprep.mubr.bf16.mxu0 0
      %1810 = vmatmul.mubr.bf16.gmra.mrb[0].mxu0 %v1537
      %v1811 = vpop.f32.mrb[0].mxu0
      %v1812 = vadd.f32 0.0, %v1811
      %v1813 = vpop.f32.mrb[0].mxu0
      %v1814 = vpop.f32.mrb[0].mxu0
      %v1815 = vadd.f32 0.0, %v1814
      %v1816 = vpop.f32.mrb[0].mxu0
      %1817 = vmatprep.mubr.bf16.mxu0 0
      %1818 = vmatmul.mubr.bf16.gmra.mrb[0].mxu0 %v1540
      %v1819 = vpop.f32.mrb[0].mxu0
      %v1820 = vadd.f32 0.0, %v1819
      %v1821 = vpop.f32.mrb[0].mxu0
      %v1822 = vpop.f32.mrb[0].mxu0
      %v1823 = vadd.f32 0.0, %v1822
      %v1824 = vpop.f32.mrb[0].mxu0
      %1825 = vdwg.mxu0
      %v1826 = vadd.f32 %v1104, %v1580
      %v1827 = vadd.f32 %v1107, %v1583
      %v1828 = vadd.f32 %v1112, %v1588
      %v1829 = vadd.f32 %v1115, %v1591
      %v1830 = vadd.f32 %v1120, %v1596
      %v1831 = vadd.f32 %v1123, %v1599
      %v1832 = vadd.f32 %v1128, %v1604
      %v1833 = vadd.f32 %v1131, %v1607
      %v1834 = vadd.f32 %v1136, %v1612
      %v1835 = vadd.f32 %v1139, %v1615
      %v1836 = vadd.f32 %v1144, %v1620
      %v1837 = vadd.f32 %v1147, %v1623
      %v1838 = vadd.f32 %v1152, %v1628
      %v1839 = vadd.f32 %v1155, %v1631
      %v1840 = vadd.f32 %v1160, %v1636
      %v1841 = vadd.f32 %v1163, %v1639
      %v1842 = vadd.f32 %v1168, %v1644
      %v1843 = vadd.f32 %v1171, %v1647
      %v1844 = vadd.f32 %v1176, %v1652
      %v1845 = vadd.f32 %v1179, %v1655
      %v1846 = vadd.f32 %v1184, %v1660
      %v1847 = vadd.f32 %v1187, %v1663
      %v1848 = vadd.f32 %v1192, %v1668
      %v1849 = vadd.f32 %v1195, %v1671
      %v1850 = vadd.f32 %v1200, %v1676
      %v1851 = vadd.f32 %v1203, %v1679
      %v1852 = vadd.f32 %v1208, %v1684
      %v1853 = vadd.f32 %v1211, %v1687
      %v1854 = vadd.f32 %v1216, %v1692
      %v1855 = vadd.f32 %v1219, %v1695
      %v1856 = vadd.f32 %v1224, %v1700
      %v1857 = vadd.f32 %v1227, %v1703
      %v1858 = vadd.f32 %v1232, %v1708
      %v1859 = vadd.f32 %v1235, %v1711
      %v1860 = vadd.f32 %v1240, %v1716
      %v1861 = vadd.f32 %v1243, %v1719
      %v1862 = vadd.f32 %v1248, %v1724
      %v1863 = vadd.f32 %v1251, %v1727
      %v1864 = vadd.f32 %v1256, %v1732
      %v1865 = vadd.f32 %v1259, %v1735
      %v1866 = vadd.f32 %v1264, %v1740
      %v1867 = vadd.f32 %v1267, %v1743
      %v1868 = vadd.f32 %v1272, %v1748
      %v1869 = vadd.f32 %v1275, %v1751
      %v1870 = vadd.f32 %v1280, %v1756
      %v1871 = vadd.f32 %v1283, %v1759
      %v1872 = vadd.f32 %v1288, %v1764
      %v1873 = vadd.f32 %v1291, %v1767
      %v1874 = vadd.f32 %v1296, %v1772
      %v1875 = vadd.f32 %v1299, %v1775
      %v1876 = vadd.f32 %v1304, %v1780
      %v1877 = vadd.f32 %v1307, %v1783
      %v1878 = vadd.f32 %v1312, %v1788
      %v1879 = vadd.f32 %v1315, %v1791
      %v1880 = vadd.f32 %v1320, %v1796
      %v1881 = vadd.f32 %v1323, %v1799
      %v1882 = vadd.f32 %v1328, %v1804
      %v1883 = vadd.f32 %v1331, %v1807
      %v1884 = vadd.f32 %v1336, %v1812
      %v1885 = vadd.f32 %v1339, %v1815
      %v1886 = vadd.f32 %v1344, %v1820
      %v1887 = vadd.f32 %v1347, %v1823
      %s1888 = scalar_lea.vmem %s1, 12
      %v1889 = vld [vmem:[%s1888] sm:$0x7]
      %vm1890 = vsmask.f32 6400
      %v1891 = vrot.slane %v379, 1
      %v1892 = vrot.slane %v381, 2
      %v1893 = vor.u32 %v1891, %v1892
      %v1894 = vrot.slane %v390, 1
      %v1895 = vrot.slane %v386, 2
      %v1896 = vor.u32 %v1894, %v1895
      %v1897 = vsel %vm1890, %v1893, %v1896
      %v1898 = vrot.slane %v398, 1
      %v1899 = vrot.slane %v394, 2
      %v1900 = vor.u32 %v1898, %v1899
      %v1901 = vsel %vm1890, %v1896, %v1900
      %v1902 = vrot.slane %v406, 1
      %v1903 = vrot.slane %v402, 2
      %v1904 = vor.u32 %v1902, %v1903
      %v1905 = vsel %vm1890, %v1900, %v1904
      %v1906 = vrot.slane %v414, 1
      %v1907 = vrot.slane %v410, 2
      %v1908 = vor.u32 %v1906, %v1907
      %v1909 = vsel %vm1890, %v1904, %v1908
      %v1910 = vrot.slane %v422, 1
      %v1911 = vrot.slane %v418, 2
      %v1912 = vor.u32 %v1910, %v1911
      %v1913 = vsel %vm1890, %v1908, %v1912
      %v1914 = vrot.slane %v430, 1
      %v1915 = vrot.slane %v426, 2
      %v1916 = vor.u32 %v1914, %v1915
      %v1917 = vsel %vm1890, %v1912, %v1916
      %v1918 = vrot.slane %v438, 1
      %v1919 = vrot.slane %v434, 2
      %v1920 = vor.u32 %v1918, %v1919
      %v1921 = vsel %vm1890, %v1916, %v1920
      %v1922 = vrot.slane %v446, 1
      %v1923 = vrot.slane %v442, 2
      %v1924 = vor.u32 %v1922, %v1923
      %v1925 = vsel %vm1890, %v1920, %v1924
      %v1926 = vrot.slane %v454, 1
      %v1927 = vrot.slane %v450, 2
      %v1928 = vor.u32 %v1926, %v1927
      %v1929 = vsel %vm1890, %v1924, %v1928
      %v1930 = vrot.slane %v462, 1
      %v1931 = vrot.slane %v458, 2
      %v1932 = vor.u32 %v1930, %v1931
      %v1933 = vsel %vm1890, %v1928, %v1932
      %v1934 = vrot.slane %v470, 1
      %v1935 = vrot.slane %v466, 2
      %v1936 = vor.u32 %v1934, %v1935
      %v1937 = vsel %vm1890, %v1932, %v1936
      %v1938 = vrot.slane %v478, 1
      %v1939 = vrot.slane %v474, 2
      %v1940 = vor.u32 %v1938, %v1939
      %v1941 = vsel %vm1890, %v1936, %v1940
      %v1942 = vrot.slane %v486, 1
      %v1943 = vrot.slane %v482, 2
      %v1944 = vor.u32 %v1942, %v1943
      %v1945 = vsel %vm1890, %v1940, %v1944
      %v1946 = vrot.slane %v494, 1
      %v1947 = vrot.slane %v490, 2
      %v1948 = vor.u32 %v1946, %v1947
      %v1949 = vsel %vm1890, %v1944, %v1948
      %v1950 = vrot.slane %v502, 1
      %v1951 = vrot.slane %v498, 2
      %v1952 = vor.u32 %v1950, %v1951
      %v1953 = vsel %vm1890, %v1948, %v1952
      %v1954 = vrot.slane %v510, 1
      %v1955 = vrot.slane %v506, 2
      %v1956 = vor.u32 %v1954, %v1955
      %v1957 = vsel %vm1890, %v1952, %v1956
      %v1958 = vrot.slane %v518, 1
      %v1959 = vrot.slane %v514, 2
      %v1960 = vor.u32 %v1958, %v1959
      %v1961 = vsel %vm1890, %v1956, %v1960
      %v1962 = vrot.slane %v526, 1
      %v1963 = vrot.slane %v522, 2
      %v1964 = vor.u32 %v1962, %v1963
      %v1965 = vsel %vm1890, %v1960, %v1964
      %v1966 = vrot.slane %v534, 1
      %v1967 = vrot.slane %v530, 2
      %v1968 = vor.u32 %v1966, %v1967
      %v1969 = vsel %vm1890, %v1964, %v1968
      %v1970 = vrot.slane %v542, 1
      %v1971 = vrot.slane %v538, 2
      %v1972 = vor.u32 %v1970, %v1971
      %v1973 = vsel %vm1890, %v1968, %v1972
      %v1974 = vrot.slane %v550, 1
      %v1975 = vrot.slane %v546, 2
      %v1976 = vor.u32 %v1974, %v1975
      %v1977 = vsel %vm1890, %v1972, %v1976
      %v1978 = vrot.slane %v558, 1
      %v1979 = vrot.slane %v554, 2
      %v1980 = vor.u32 %v1978, %v1979
      %v1981 = vsel %vm1890, %v1976, %v1980
      %v1982 = vrot.slane %v566, 1
      %v1983 = vrot.slane %v562, 2
      %v1984 = vor.u32 %v1982, %v1983
      %v1985 = vsel %vm1890, %v1980, %v1984
      %v1986 = vrot.slane %v574, 1
      %v1987 = vrot.slane %v570, 2
      %v1988 = vor.u32 %v1986, %v1987
      %v1989 = vsel %vm1890, %v1984, %v1988
      %v1990 = vrot.slane %v582, 1
      %v1991 = vrot.slane %v578, 2
      %v1992 = vor.u32 %v1990, %v1991
      %v1993 = vsel %vm1890, %v1988, %v1992
      %v1994 = vrot.slane %v590, 1
      %v1995 = vrot.slane %v586, 2
      %v1996 = vor.u32 %v1994, %v1995
      %v1997 = vsel %vm1890, %v1992, %v1996
      %v1998 = vrot.slane %v598, 1
      %v1999 = vrot.slane %v594, 2
      %v2000 = vor.u32 %v1998, %v1999
      %v2001 = vsel %vm1890, %v1996, %v2000
      %v2002 = vrot.slane %v606, 1
      %v2003 = vrot.slane %v602, 2
      %v2004 = vor.u32 %v2002, %v2003
      %v2005 = vsel %vm1890, %v2000, %v2004
      %v2006 = vrot.slane %v614, 1
      %v2007 = vrot.slane %v610, 2
      %v2008 = vor.u32 %v2006, %v2007
      %v2009 = vsel %vm1890, %v2004, %v2008
      %v2010 = vrot.slane %v622, 1
      %v2011 = vrot.slane %v618, 2
      %v2012 = vor.u32 %v2010, %v2011
      %v2013 = vsel %vm1890, %v2008, %v2012
      %v2015 = vshrl.u32 %v1350, 16
      %v2017 = vrot.slane %v2015, 1
      %v2018 = vshll.u32 %v1350, 16
      %v2020 = vrot.slane %v2018, 2
      %v2021 = vor.u32 %v2017, %v2020
      %v2022 = vsel %vm1890, %v2012, %v2021
      %v2024 = vsel %vm625, %v1897, 0
      %v2027 = vsel %vm625, %v1901, 0
      %v2030 = vsel %vm625, %v1905, 0
      %v2033 = vsel %vm625, %v1909, 0
      %v2036 = vsel %vm625, %v1913, 0
      %v2039 = vsel %vm625, %v1917, 0
      %v2042 = vsel %vm625, %v1921, 0
      %v2045 = vsel %vm625, %v1925, 0
      %v2048 = vsel %vm625, %v1929, 0
      %v2051 = vsel %vm625, %v1933, 0
      %v2054 = vsel %vm625, %v1937, 0
      %v2057 = vsel %vm625, %v1941, 0
      %v2060 = vsel %vm625, %v1945, 0
      %v2063 = vsel %vm625, %v1949, 0
      %v2066 = vsel %vm625, %v1953, 0
      %v2069 = vsel %vm625, %v1957, 0
      %v2072 = vsel %vm625, %v1961, 0
      %v2075 = vsel %vm625, %v1965, 0
      %v2078 = vsel %vm625, %v1969, 0
      %v2081 = vsel %vm625, %v1973, 0
      %v2084 = vsel %vm625, %v1977, 0
      %v2087 = vsel %vm625, %v1981, 0
      %v2090 = vsel %vm625, %v1985, 0
      %v2093 = vsel %vm625, %v1989, 0
      %v2096 = vsel %vm625, %v1993, 0
      %v2099 = vsel %vm625, %v1997, 0
      %v2102 = vsel %vm625, %v2001, 0
      %v2105 = vsel %vm625, %v2005, 0
      %v2108 = vsel %vm625, %v2009, 0
      %v2111 = vsel %vm625, %v2013, 0
      %v2114 = vsel %vm625, %v2022, 0
      %v2117 = vsel %vm719, %v1889, 0
      %2119 = vmatprep.subr.bf16.mxu0 0
      %2120 = vmatpush1.bf16.msra.mxu0 %v2117
      %2121 = vmatprep.subr.bf16.mxu0 0
      %2122 = vmatpush1.bf16.msra.mxu0 0
      %2123 = vmatprep.subr.bf16.mxu0 0
      %2124 = vmatpush1.bf16.msra.mxu0 0
      %2125 = vmatprep.subr.bf16.mxu0 0
      %2126 = vmatpush1.bf16.msra.mxu0 0
      %2127 = vmatprep.subr.bf16.mxu0 0
      %2128 = vmatpush1.bf16.msra.mxu0 0
      %2129 = vmatprep.subr.bf16.mxu0 0
      %2130 = vmatpush1.bf16.msra.mxu0 0
      %2131 = vmatprep.subr.bf16.mxu0 0
      %2132 = vmatpush1.bf16.msra.mxu0 0
      %2133 = vmatprep.subr.bf16.mxu0 0
      %2134 = vmatpush1.bf16.msra.mxu0 0
      %2135 = vmatprep.subr.bf16.mxu0 0
      %2136 = vmatpush1.bf16.msra.mxu0 0
      %2137 = vmatprep.subr.bf16.mxu0 0
      %2138 = vmatpush1.bf16.msra.mxu0 0
      %2139 = vmatprep.subr.bf16.mxu0 0
      %2140 = vmatpush1.bf16.msra.mxu0 0
      %2141 = vmatprep.subr.bf16.mxu0 0
      %2142 = vmatpush1.bf16.msra.mxu0 0
      %2143 = vmatprep.subr.bf16.mxu0 0
      %2144 = vmatpush1.bf16.msra.mxu0 0
      %2145 = vmatprep.subr.bf16.mxu0 0
      %2146 = vmatpush1.bf16.msra.mxu0 0
      %2147 = vmatprep.subr.bf16.mxu0 0
      %2148 = vmatpush1.bf16.msra.mxu0 0
      %2149 = vmatprep.subr.bf16.mxu0 0
      %2150 = vmatpush1.bf16.msra.mxu0 0
      %2151 = vmatprep.mubr.bf16.mxu0 0
      %2152 = vmatmul.mubr.bf16.gmra.mrb[0].mxu0 %v2024
      %v2153 = vpop.f32.mrb[0].mxu0
      %v2154 = vadd.f32 0.0, %v2153
      %v2155 = vpop.f32.mrb[0].mxu0
      %v2156 = vpop.f32.mrb[0].mxu0
      %v2157 = vadd.f32 0.0, %v2156
      %v2158 = vpop.f32.mrb[0].mxu0
      %2159 = vmatprep.mubr.bf16.mxu0 0
      %2160 = vmatmul.mubr.bf16.gmra.mrb[0].mxu0 %v2027
      %v2161 = vpop.f32.mrb[0].mxu0
      %v2162 = vadd.f32 0.0, %v2161
      %v2163 = vpop.f32.mrb[0].mxu0
      %v2164 = vpop.f32.mrb[0].mxu0
      %v2165 = vadd.f32 0.0, %v2164
      %v2166 = vpop.f32.mrb[0].mxu0
      %2167 = vmatprep.mubr.bf16.mxu0 0
      %2168 = vmatmul.mubr.bf16.gmra.mrb[0].mxu0 %v2030
      %v2169 = vpop.f32.mrb[0].mxu0
      %v2170 = vadd.f32 0.0, %v2169
      %v2171 = vpop.f32.mrb[0].mxu0
      %v2172 = vpop.f32.mrb[0].mxu0
      %v2173 = vadd.f32 0.0, %v2172
      %v2174 = vpop.f32.mrb[0].mxu0
      %2175 = vmatprep.mubr.bf16.mxu0 0
      %2176 = vmatmul.mubr.bf16.gmra.mrb[0].mxu0 %v2033
      %v2177 = vpop.f32.mrb[0].mxu0
      %v2178 = vadd.f32 0.0, %v2177
      %v2179 = vpop.f32.mrb[0].mxu0
      %v2180 = vpop.f32.mrb[0].mxu0
      %v2181 = vadd.f32 0.0, %v2180
      %v2182 = vpop.f32.mrb[0].mxu0
      %2183 = vmatprep.mubr.bf16.mxu0 0
      %2184 = vmatmul.mubr.bf16.gmra.mrb[0].mxu0 %v2036
      %v2185 = vpop.f32.mrb[0].mxu0
      %v2186 = vadd.f32 0.0, %v2185
      %v2187 = vpop.f32.mrb[0].mxu0
      %v2188 = vpop.f32.mrb[0].mxu0
      %v2189 = vadd.f32 0.0, %v2188
      %v2190 = vpop.f32.mrb[0].mxu0
      %2191 = vmatprep.mubr.bf16.mxu0 0
      %2192 = vmatmul.mubr.bf16.gmra.mrb[0].mxu0 %v2039
      %v2193 = vpop.f32.mrb[0].mxu0
      %v2194 = vadd.f32 0.0, %v2193
      %v2195 = vpop.f32.mrb[0].mxu0
      %v2196 = vpop.f32.mrb[0].mxu0
      %v2197 = vadd.f32 0.0, %v2196
      %v2198 = vpop.f32.mrb[0].mxu0
      %2199 = vmatprep.mubr.bf16.mxu0 0
      %2200 = vmatmul.mubr.bf16.gmra.mrb[0].mxu0 %v2042
      %v2201 = vpop.f32.mrb[0].mxu0
      %v2202 = vadd.f32 0.0, %v2201
      %v2203 = vpop.f32.mrb[0].mxu0
      %v2204 = vpop.f32.mrb[0].mxu0
      %v2205 = vadd.f32 0.0, %v2204
      %v2206 = vpop.f32.mrb[0].mxu0
      %2207 = vmatprep.mubr.bf16.mxu0 0
      %2208 = vmatmul.mubr.bf16.gmra.mrb[0].mxu0 %v2045
      %v2209 = vpop.f32.mrb[0].mxu0
      %v2210 = vadd.f32 0.0, %v2209
      %v2211 = vpop.f32.mrb[0].mxu0
      %v2212 = vpop.f32.mrb[0].mxu0
      %v2213 = vadd.f32 0.0, %v2212
      %v2214 = vpop.f32.mrb[0].mxu0
      %2215 = vmatprep.mubr.bf16.mxu0 0
      %2216 = vmatmul.mubr.bf16.gmra.mrb[0].mxu0 %v2048
      %v2217 = vpop.f32.mrb[0].mxu0
      %v2218 = vadd.f32 0.0, %v2217
      %v2219 = vpop.f32.mrb[0].mxu0
      %v2220 = vpop.f32.mrb[0].mxu0
      %v2221 = vadd.f32 0.0, %v2220
      %v2222 = vpop.f32.mrb[0].mxu0
      %2223 = vmatprep.mubr.bf16.mxu0 0
      %2224 = vmatmul.mubr.bf16.gmra.mrb[0].mxu0 %v2051
      %v2225 = vpop.f32.mrb[0].mxu0
      %v2226 = vadd.f32 0.0, %v2225
      %v2227 = vpop.f32.mrb[0].mxu0
      %v2228 = vpop.f32.mrb[0].mxu0
      %v2229 = vadd.f32 0.0, %v2228
      %v2230 = vpop.f32.mrb[0].mxu0
      %2231 = vmatprep.mubr.bf16.mxu0 0
      %2232 = vmatmul.mubr.bf16.gmra.mrb[0].mxu0 %v2054
      %v2233 = vpop.f32.mrb[0].mxu0
      %v2234 = vadd.f32 0.0, %v2233
      %v2235 = vpop.f32.mrb[0].mxu0
      %v2236 = vpop.f32.mrb[0].mxu0
      %v2237 = vadd.f32 0.0, %v2236
      %v2238 = vpop.f32.mrb[0].mxu0
      %2239 = vmatprep.mubr.bf16.mxu0 0
      %2240 = vmatmul.mubr.bf16.gmra.mrb[0].mxu0 %v2057
      %v2241 = vpop.f32.mrb[0].mxu0
      %v2242 = vadd.f32 0.0, %v2241
      %v2243 = vpop.f32.mrb[0].mxu0
      %v2244 = vpop.f32.mrb[0].mxu0
      %v2245 = vadd.f32 0.0, %v2244
      %v2246 = vpop.f32.mrb[0].mxu0
      %2247 = vmatprep.mubr.bf16.mxu0 0
      %2248 = vmatmul.mubr.bf16.gmra.mrb[0].mxu0 %v2060
      %v2249 = vpop.f32.mrb[0].mxu0
      %v2250 = vadd.f32 0.0, %v2249
      %v2251 = vpop.f32.mrb[0].mxu0
      %v2252 = vpop.f32.mrb[0].mxu0
      %v2253 = vadd.f32 0.0, %v2252
      %v2254 = vpop.f32.mrb[0].mxu0
      %2255 = vmatprep.mubr.bf16.mxu0 0
      %2256 = vmatmul.mubr.bf16.gmra.mrb[0].mxu0 %v2063
      %v2257 = vpop.f32.mrb[0].mxu0
      %v2258 = vadd.f32 0.0, %v2257
      %v2259 = vpop.f32.mrb[0].mxu0
      %v2260 = vpop.f32.mrb[0].mxu0
      %v2261 = vadd.f32 0.0, %v2260
      %v2262 = vpop.f32.mrb[0].mxu0
      %2263 = vmatprep.mubr.bf16.mxu0 0
      %2264 = vmatmul.mubr.bf16.gmra.mrb[0].mxu0 %v2066
      %v2265 = vpop.f32.mrb[0].mxu0
      %v2266 = vadd.f32 0.0, %v2265
      %v2267 = vpop.f32.mrb[0].mxu0
      %v2268 = vpop.f32.mrb[0].mxu0
      %v2269 = vadd.f32 0.0, %v2268
      %v2270 = vpop.f32.mrb[0].mxu0
      %2271 = vmatprep.mubr.bf16.mxu0 0
      %2272 = vmatmul.mubr.bf16.gmra.mrb[0].mxu0 %v2069
      %v2273 = vpop.f32.mrb[0].mxu0
      %v2274 = vadd.f32 0.0, %v2273
      %v2275 = vpop.f32.mrb[0].mxu0
      %v2276 = vpop.f32.mrb[0].mxu0
      %v2277 = vadd.f32 0.0, %v2276
      %v2278 = vpop.f32.mrb[0].mxu0
      %2279 = vmatprep.mubr.bf16.mxu0 0
      %2280 = vmatmul.mubr.bf16.gmra.mrb[0].mxu0 %v2072
      %v2281 = vpop.f32.mrb[0].mxu0
      %v2282 = vadd.f32 0.0, %v2281
      %v2283 = vpop.f32.mrb[0].mxu0
      %v2284 = vpop.f32.mrb[0].mxu0
      %v2285 = vadd.f32 0.0, %v2284
      %v2286 = vpop.f32.mrb[0].mxu0
      %2287 = vmatprep.mubr.bf16.mxu0 0
      %2288 = vmatmul.mubr.bf16.gmra.mrb[0].mxu0 %v2075
      %v2289 = vpop.f32.mrb[0].mxu0
      %v2290 = vadd.f32 0.0, %v2289
      %v2291 = vpop.f32.mrb[0].mxu0
      %v2292 = vpop.f32.mrb[0].mxu0
      %v2293 = vadd.f32 0.0, %v2292
      %v2294 = vpop.f32.mrb[0].mxu0
      %2295 = vmatprep.mubr.bf16.mxu0 0
      %2296 = vmatmul.mubr.bf16.gmra.mrb[0].mxu0 %v2078
      %v2297 = vpop.f32.mrb[0].mxu0
      %v2298 = vadd.f32 0.0, %v2297
      %v2299 = vpop.f32.mrb[0].mxu0
      %v2300 = vpop.f32.mrb[0].mxu0
      %v2301 = vadd.f32 0.0, %v2300
      %v2302 = vpop.f32.mrb[0].mxu0
      %2303 = vmatprep.mubr.bf16.mxu0 0
      %2304 = vmatmul.mubr.bf16.gmra.mrb[0].mxu0 %v2081
      %v2305 = vpop.f32.mrb[0].mxu0
      %v2306 = vadd.f32 0.0, %v2305
      %v2307 = vpop.f32.mrb[0].mxu0
      %v2308 = vpop.f32.mrb[0].mxu0
      %v2309 = vadd.f32 0.0, %v2308
      %v2310 = vpop.f32.mrb[0].mxu0
      %2311 = vmatprep.mubr.bf16.mxu0 0
      %2312 = vmatmul.mubr.bf16.gmra.mrb[0].mxu0 %v2084
      %v2313 = vpop.f32.mrb[0].mxu0
      %v2314 = vadd.f32 0.0, %v2313
      %v2315 = vpop.f32.mrb[0].mxu0
      %v2316 = vpop.f32.mrb[0].mxu0
      %v2317 = vadd.f32 0.0, %v2316
      %v2318 = vpop.f32.mrb[0].mxu0
      %2319 = vmatprep.mubr.bf16.mxu0 0
      %2320 = vmatmul.mubr.bf16.gmra.mrb[0].mxu0 %v2087
      %v2321 = vpop.f32.mrb[0].mxu0
      %v2322 = vadd.f32 0.0, %v2321
      %v2323 = vpop.f32.mrb[0].mxu0
      %v2324 = vpop.f32.mrb[0].mxu0
      %v2325 = vadd.f32 0.0, %v2324
      %v2326 = vpop.f32.mrb[0].mxu0
      %2327 = vmatprep.mubr.bf16.mxu0 0
      %2328 = vmatmul.mubr.bf16.gmra.mrb[0].mxu0 %v2090
      %v2329 = vpop.f32.mrb[0].mxu0
      %v2330 = vadd.f32 0.0, %v2329
      %v2331 = vpop.f32.mrb[0].mxu0
      %v2332 = vpop.f32.mrb[0].mxu0
      %v2333 = vadd.f32 0.0, %v2332
      %v2334 = vpop.f32.mrb[0].mxu0
      %2335 = vmatprep.mubr.bf16.mxu0 0
      %2336 = vmatmul.mubr.bf16.gmra.mrb[0].mxu0 %v2093
      %v2337 = vpop.f32.mrb[0].mxu0
      %v2338 = vadd.f32 0.0, %v2337
      %v2339 = vpop.f32.mrb[0].mxu0
      %v2340 = vpop.f32.mrb[0].mxu0
      %v2341 = vadd.f32 0.0, %v2340
      %v2342 = vpop.f32.mrb[0].mxu0
      %2343 = vmatprep.mubr.bf16.mxu0 0
      %2344 = vmatmul.mubr.bf16.gmra.mrb[0].mxu0 %v2096
      %v2345 = vpop.f32.mrb[0].mxu0
      %v2346 = vadd.f32 0.0, %v2345
      %v2347 = vpop.f32.mrb[0].mxu0
      %v2348 = vpop.f32.mrb[0].mxu0
      %v2349 = vadd.f32 0.0, %v2348
      %v2350 = vpop.f32.mrb[0].mxu0
      %2351 = vmatprep.mubr.bf16.mxu0 0
      %2352 = vmatmul.mubr.bf16.gmra.mrb[0].mxu0 %v2099
      %v2353 = vpop.f32.mrb[0].mxu0
      %v2354 = vadd.f32 0.0, %v2353
      %v2355 = vpop.f32.mrb[0].mxu0
      %v2356 = vpop.f32.mrb[0].mxu0
      %v2357 = vadd.f32 0.0, %v2356
      %v2358 = vpop.f32.mrb[0].mxu0
      %2359 = vmatprep.mubr.bf16.mxu0 0
      %2360 = vmatmul.mubr.bf16.gmra.mrb[0].mxu0 %v2102
      %v2361 = vpop.f32.mrb[0].mxu0
      %v2362 = vadd.f32 0.0, %v2361
      %v2363 = vpop.f32.mrb[0].mxu0
      %v2364 = vpop.f32.mrb[0].mxu0
      %v2365 = vadd.f32 0.0, %v2364
      %v2366 = vpop.f32.mrb[0].mxu0
      %2367 = vmatprep.mubr.bf16.mxu0 0
      %2368 = vmatmul.mubr.bf16.gmra.mrb[0].mxu0 %v2105
      %v2369 = vpop.f32.mrb[0].mxu0
      %v2370 = vadd.f32 0.0, %v2369
      %v2371 = vpop.f32.mrb[0].mxu0
      %v2372 = vpop.f32.mrb[0].mxu0
      %v2373 = vadd.f32 0.0, %v2372
      %v2374 = vpop.f32.mrb[0].mxu0
      %2375 = vmatprep.mubr.bf16.mxu0 0
      %2376 = vmatmul.mubr.bf16.gmra.mrb[0].mxu0 %v2108
      %v2377 = vpop.f32.mrb[0].mxu0
      %v2378 = vadd.f32 0.0, %v2377
      %v2379 = vpop.f32.mrb[0].mxu0
      %v2380 = vpop.f32.mrb[0].mxu0
      %v2381 = vadd.f32 0.0, %v2380
      %v2382 = vpop.f32.mrb[0].mxu0
      %2383 = vmatprep.mubr.bf16.mxu0 0
      %2384 = vmatmul.mubr.bf16.gmra.mrb[0].mxu0 %v2111
      %v2385 = vpop.f32.mrb[0].mxu0
      %v2386 = vadd.f32 0.0, %v2385
      %v2387 = vpop.f32.mrb[0].mxu0
      %v2388 = vpop.f32.mrb[0].mxu0
      %v2389 = vadd.f32 0.0, %v2388
      %v2390 = vpop.f32.mrb[0].mxu0
      %2391 = vmatprep.mubr.bf16.mxu0 0
      %2392 = vmatmul.mubr.bf16.gmra.mrb[0].mxu0 %v2114
      %v2393 = vpop.f32.mrb[0].mxu0
      %v2394 = vadd.f32 0.0, %v2393
      %v2395 = vpop.f32.mrb[0].mxu0
      %v2396 = vpop.f32.mrb[0].mxu0
      %v2397 = vadd.f32 0.0, %v2396
      %v2398 = vpop.f32.mrb[0].mxu0
      %2399 = vdwg.mxu0
      %v2400 = vadd.f32 %v1826, %v2154
      %v2401 = vadd.f32 %v1827, %v2157
      %v2402 = vadd.f32 %v1828, %v2162
      %v2403 = vadd.f32 %v1829, %v2165
      %v2404 = vadd.f32 %v1830, %v2170
      %v2405 = vadd.f32 %v1831, %v2173
      %v2406 = vadd.f32 %v1832, %v2178
      %v2407 = vadd.f32 %v1833, %v2181
      %v2408 = vadd.f32 %v1834, %v2186
      %v2409 = vadd.f32 %v1835, %v2189
      %v2410 = vadd.f32 %v1836, %v2194
      %v2411 = vadd.f32 %v1837, %v2197
      %v2412 = vadd.f32 %v1838, %v2202
      %v2413 = vadd.f32 %v1839, %v2205
      %v2414 = vadd.f32 %v1840, %v2210
      %v2415 = vadd.f32 %v1841, %v2213
      %v2416 = vadd.f32 %v1842, %v2218
      %v2417 = vadd.f32 %v1843, %v2221
      %v2418 = vadd.f32 %v1844, %v2226
      %v2419 = vadd.f32 %v1845, %v2229
      %v2420 = vadd.f32 %v1846, %v2234
      %v2421 = vadd.f32 %v1847, %v2237
      %v2422 = vadd.f32 %v1848, %v2242
      %v2423 = vadd.f32 %v1849, %v2245
      %v2424 = vadd.f32 %v1850, %v2250
      %v2425 = vadd.f32 %v1851, %v2253
      %v2426 = vadd.f32 %v1852, %v2258
      %v2427 = vadd.f32 %v1853, %v2261
      %v2428 = vadd.f32 %v1854, %v2266
      %v2429 = vadd.f32 %v1855, %v2269
      %v2430 = vadd.f32 %v1856, %v2274
      %v2431 = vadd.f32 %v1857, %v2277
      %v2432 = vadd.f32 %v1858, %v2282
      %v2433 = vadd.f32 %v1859, %v2285
      %v2434 = vadd.f32 %v1860, %v2290
      %v2435 = vadd.f32 %v1861, %v2293
      %v2436 = vadd.f32 %v1862, %v2298
      %v2437 = vadd.f32 %v1863, %v2301
      %v2438 = vadd.f32 %v1864, %v2306
      %v2439 = vadd.f32 %v1865, %v2309
      %v2440 = vadd.f32 %v1866, %v2314
      %v2441 = vadd.f32 %v1867, %v2317
      %v2442 = vadd.f32 %v1868, %v2322
      %v2443 = vadd.f32 %v1869, %v2325
      %v2444 = vadd.f32 %v1870, %v2330
      %v2445 = vadd.f32 %v1871, %v2333
      %v2446 = vadd.f32 %v1872, %v2338
      %v2447 = vadd.f32 %v1873, %v2341
      %v2448 = vadd.f32 %v1874, %v2346
      %v2449 = vadd.f32 %v1875, %v2349
      %v2450 = vadd.f32 %v1876, %v2354
      %v2451 = vadd.f32 %v1877, %v2357
      %v2452 = vadd.f32 %v1878, %v2362
      %v2453 = vadd.f32 %v1879, %v2365
      %v2454 = vadd.f32 %v1880, %v2370
      %v2455 = vadd.f32 %v1881, %v2373
      %v2456 = vadd.f32 %v1882, %v2378
      %v2457 = vadd.f32 %v1883, %v2381
      %v2458 = vadd.f32 %v1884, %v2386
      %v2459 = vadd.f32 %v1885, %v2389
      %v2460 = vadd.f32 %v1886, %v2394
      %v2461 = vadd.f32 %v1887, %v2397
      %s2462 = scalar_lea.vmem %s1, 16
      %v2463 = vld [vmem:[%s2462] sm:$0x7]
      %vm2464 = vcmask 1045504
      %v2465 = vrot.slane %v343, 2
      %v2466 = vrot.slane %v344, 2
      %v2467 = vsel %vm2464, %v2465, %v2466
      %v2468 = vrot.slane %v345, 2
      %v2469 = vsel %vm2464, %v2466, %v2468
      %v2470 = vrot.slane %v346, 2
      %v2471 = vsel %vm2464, %v2468, %v2470
      %v2472 = vrot.slane %v347, 2
      %v2473 = vsel %vm2464, %v2470, %v2472
      %v2474 = vrot.slane %v348, 2
      %v2475 = vsel %vm2464, %v2472, %v2474
      %v2476 = vrot.slane %v349, 2
      %v2477 = vsel %vm2464, %v2474, %v2476
      %v2478 = vrot.slane %v350, 2
      %v2479 = vsel %vm2464, %v2476, %v2478
      %v2480 = vrot.slane %v351, 2
      %v2481 = vsel %vm2464, %v2478, %v2480
      %v2482 = vrot.slane %v352, 2
      %v2483 = vsel %vm2464, %v2480, %v2482
      %v2484 = vrot.slane %v353, 2
      %v2485 = vsel %vm2464, %v2482, %v2484
      %v2486 = vrot.slane %v354, 2
      %v2487 = vsel %vm2464, %v2484, %v2486
      %v2488 = vrot.slane %v355, 2
      %v2489 = vsel %vm2464, %v2486, %v2488
      %v2490 = vrot.slane %v356, 2
      %v2491 = vsel %vm2464, %v2488, %v2490
      %v2492 = vrot.slane %v357, 2
      %v2493 = vsel %vm2464, %v2490, %v2492
      %v2494 = vrot.slane %v358, 2
      %v2495 = vsel %vm2464, %v2492, %v2494
      %v2496 = vrot.slane %v359, 2
      %v2497 = vsel %vm2464, %v2494, %v2496
      %v2498 = vrot.slane %v360, 2
      %v2499 = vsel %vm2464, %v2496, %v2498
      %v2500 = vrot.slane %v361, 2
      %v2501 = vsel %vm2464, %v2498, %v2500
      %v2502 = vrot.slane %v362, 2
      %v2503 = vsel %vm2464, %v2500, %v2502
      %v2504 = vrot.slane %v363, 2
      %v2505 = vsel %vm2464, %v2502, %v2504
      %v2506 = vrot.slane %v364, 2
      %v2507 = vsel %vm2464, %v2504, %v2506
      %v2508 = vrot.slane %v365, 2
      %v2509 = vsel %vm2464, %v2506, %v2508
      %v2510 = vrot.slane %v366, 2
      %v2511 = vsel %vm2464, %v2508, %v2510
      %v2512 = vrot.slane %v367, 2
      %v2513 = vsel %vm2464, %v2510, %v2512
      %v2514 = vrot.slane %v368, 2
      %v2515 = vsel %vm2464, %v2512, %v2514
      %v2516 = vrot.slane %v369, 2
      %v2517 = vsel %vm2464, %v2514, %v2516
      %v2518 = vrot.slane %v370, 2
      %v2519 = vsel %vm2464, %v2516, %v2518
      %v2520 = vrot.slane %v371, 2
      %v2521 = vsel %vm2464, %v2518, %v2520
      %v2522 = vrot.slane %v372, 2
      %v2523 = vsel %vm2464, %v2520, %v2522
      %v2524 = vrot.slane %v373, 2
      %v2525 = vsel %vm2464, %v2522, %v2524
      %v2526 = vrot.slane %v1350, 2
      %v2527 = vsel %vm2464, %v2524, %v2526
      %v2529 = vsel %vm625, %v2467, 0
      %v2532 = vsel %vm625, %v2469, 0
      %v2535 = vsel %vm625, %v2471, 0
      %v2538 = vsel %vm625, %v2473, 0
      %v2541 = vsel %vm625, %v2475, 0
      %v2544 = vsel %vm625, %v2477, 0
      %v2547 = vsel %vm625, %v2479, 0
      %v2550 = vsel %vm625, %v2481, 0
      %v2553 = vsel %vm625, %v2483, 0
      %v2556 = vsel %vm625, %v2485, 0
      %v2559 = vsel %vm625, %v2487, 0
      %v2562 = vsel %vm625, %v2489, 0
      %v2565 = vsel %vm625, %v2491, 0
      %v2568 = vsel %vm625, %v2493, 0
      %v2571 = vsel %vm625, %v2495, 0
      %v2574 = vsel %vm625, %v2497, 0
      %v2577 = vsel %vm625, %v2499, 0
      %v2580 = vsel %vm625, %v2501, 0
      %v2583 = vsel %vm625, %v2503, 0
      %v2586 = vsel %vm625, %v2505, 0
      %v2589 = vsel %vm625, %v2507, 0
      %v2592 = vsel %vm625, %v2509, 0
      %v2595 = vsel %vm625, %v2511, 0
      %v2598 = vsel %vm625, %v2513, 0
      %v2601 = vsel %vm625, %v2515, 0
      %v2604 = vsel %vm625, %v2517, 0
      %v2607 = vsel %vm625, %v2519, 0
      %v2610 = vsel %vm625, %v2521, 0
      %v2613 = vsel %vm625, %v2523, 0
      %v2616 = vsel %vm625, %v2525, 0
      %v2619 = vsel %vm625, %v2527, 0
      %v2622 = vsel %vm719, %v2463, 0
      %2624 = vmatprep.subr.bf16.mxu0 0
      %2625 = vmatpush1.bf16.msra.mxu0 %v2622
      %2626 = vmatprep.subr.bf16.mxu0 0
      %2627 = vmatpush1.bf16.msra.mxu0 0
      %2628 = vmatprep.subr.bf16.mxu0 0
      %2629 = vmatpush1.bf16.msra.mxu0 0
      %2630 = vmatprep.subr.bf16.mxu0 0
      %2631 = vmatpush1.bf16.msra.mxu0 0
      %2632 = vmatprep.subr.bf16.mxu0 0
      %2633 = vmatpush1.bf16.msra.mxu0 0
      %2634 = vmatprep.subr.bf16.mxu0 0
      %2635 = vmatpush1.bf16.msra.mxu0 0
      %2636 = vmatprep.subr.bf16.mxu0 0
      %2637 = vmatpush1.bf16.msra.mxu0 0
      %2638 = vmatprep.subr.bf16.mxu0 0
      %2639 = vmatpush1.bf16.msra.mxu0 0
      %2640 = vmatprep.subr.bf16.mxu0 0
      %2641 = vmatpush1.bf16.msra.mxu0 0
      %2642 = vmatprep.subr.bf16.mxu0 0
      %2643 = vmatpush1.bf16.msra.mxu0 0
      %2644 = vmatprep.subr.bf16.mxu0 0
      %2645 = vmatpush1.bf16.msra.mxu0 0
      %2646 = vmatprep.subr.bf16.mxu0 0
      %2647 = vmatpush1.bf16.msra.mxu0 0
      %2648 = vmatprep.subr.bf16.mxu0 0
      %2649 = vmatpush1.bf16.msra.mxu0 0
      %2650 = vmatprep.subr.bf16.mxu0 0
      %2651 = vmatpush1.bf16.msra.mxu0 0
      %2652 = vmatprep.subr.bf16.mxu0 0
      %2653 = vmatpush1.bf16.msra.mxu0 0
      %2654 = vmatprep.subr.bf16.mxu0 0
      %2655 = vmatpush1.bf16.msra.mxu0 0
      %2656 = vmatprep.mubr.bf16.mxu0 0
      %2657 = vmatmul.mubr.bf16.gmra.mrb[0].mxu0 %v2529
      %v2658 = vpop.f32.mrb[0].mxu0
      %v2659 = vadd.f32 0.0, %v2658
      %v2660 = vpop.f32.mrb[0].mxu0
      %v2661 = vpop.f32.mrb[0].mxu0
      %v2662 = vadd.f32 0.0, %v2661
      %v2663 = vpop.f32.mrb[0].mxu0
      %2664 = vmatprep.mubr.bf16.mxu0 0
      %2665 = vmatmul.mubr.bf16.gmra.mrb[0].mxu0 %v2532
      %v2666 = vpop.f32.mrb[0].mxu0
      %v2667 = vadd.f32 0.0, %v2666
      %v2668 = vpop.f32.mrb[0].mxu0
      %v2669 = vpop.f32.mrb[0].mxu0
      %v2670 = vadd.f32 0.0, %v2669
      %v2671 = vpop.f32.mrb[0].mxu0
      %2672 = vmatprep.mubr.bf16.mxu0 0
      %2673 = vmatmul.mubr.bf16.gmra.mrb[0].mxu0 %v2535
      %v2674 = vpop.f32.mrb[0].mxu0
      %v2675 = vadd.f32 0.0, %v2674
      %v2676 = vpop.f32.mrb[0].mxu0
      %v2677 = vpop.f32.mrb[0].mxu0
      %v2678 = vadd.f32 0.0, %v2677
      %v2679 = vpop.f32.mrb[0].mxu0
      %2680 = vmatprep.mubr.bf16.mxu0 0
      %2681 = vmatmul.mubr.bf16.gmra.mrb[0].mxu0 %v2538
      %v2682 = vpop.f32.mrb[0].mxu0
      %v2683 = vadd.f32 0.0, %v2682
      %v2684 = vpop.f32.mrb[0].mxu0
      %v2685 = vpop.f32.mrb[0].mxu0
      %v2686 = vadd.f32 0.0, %v2685
      %v2687 = vpop.f32.mrb[0].mxu0
      %2688 = vmatprep.mubr.bf16.mxu0 0
      %2689 = vmatmul.mubr.bf16.gmra.mrb[0].mxu0 %v2541
      %v2690 = vpop.f32.mrb[0].mxu0
      %v2691 = vadd.f32 0.0, %v2690
      %v2692 = vpop.f32.mrb[0].mxu0
      %v2693 = vpop.f32.mrb[0].mxu0
      %v2694 = vadd.f32 0.0, %v2693
      %v2695 = vpop.f32.mrb[0].mxu0
      %2696 = vmatprep.mubr.bf16.mxu0 0
      %2697 = vmatmul.mubr.bf16.gmra.mrb[0].mxu0 %v2544
      %v2698 = vpop.f32.mrb[0].mxu0
      %v2699 = vadd.f32 0.0, %v2698
      %v2700 = vpop.f32.mrb[0].mxu0
      %v2701 = vpop.f32.mrb[0].mxu0
      %v2702 = vadd.f32 0.0, %v2701
      %v2703 = vpop.f32.mrb[0].mxu0
      %2704 = vmatprep.mubr.bf16.mxu0 0
      %2705 = vmatmul.mubr.bf16.gmra.mrb[0].mxu0 %v2547
      %v2706 = vpop.f32.mrb[0].mxu0
      %v2707 = vadd.f32 0.0, %v2706
      %v2708 = vpop.f32.mrb[0].mxu0
      %v2709 = vpop.f32.mrb[0].mxu0
      %v2710 = vadd.f32 0.0, %v2709
      %v2711 = vpop.f32.mrb[0].mxu0
      %2712 = vmatprep.mubr.bf16.mxu0 0
      %2713 = vmatmul.mubr.bf16.gmra.mrb[0].mxu0 %v2550
      %v2714 = vpop.f32.mrb[0].mxu0
      %v2715 = vadd.f32 0.0, %v2714
      %v2716 = vpop.f32.mrb[0].mxu0
      %v2717 = vpop.f32.mrb[0].mxu0
      %v2718 = vadd.f32 0.0, %v2717
      %v2719 = vpop.f32.mrb[0].mxu0
      %2720 = vmatprep.mubr.bf16.mxu0 0
      %2721 = vmatmul.mubr.bf16.gmra.mrb[0].mxu0 %v2553
      %v2722 = vpop.f32.mrb[0].mxu0
      %v2723 = vadd.f32 0.0, %v2722
      %v2724 = vpop.f32.mrb[0].mxu0
      %v2725 = vpop.f32.mrb[0].mxu0
      %v2726 = vadd.f32 0.0, %v2725
      %v2727 = vpop.f32.mrb[0].mxu0
      %2728 = vmatprep.mubr.bf16.mxu0 0
      %2729 = vmatmul.mubr.bf16.gmra.mrb[0].mxu0 %v2556
      %v2730 = vpop.f32.mrb[0].mxu0
      %v2731 = vadd.f32 0.0, %v2730
      %v2732 = vpop.f32.mrb[0].mxu0
      %v2733 = vpop.f32.mrb[0].mxu0
      %v2734 = vadd.f32 0.0, %v2733
      %v2735 = vpop.f32.mrb[0].mxu0
      %2736 = vmatprep.mubr.bf16.mxu0 0
      %2737 = vmatmul.mubr.bf16.gmra.mrb[0].mxu0 %v2559
      %v2738 = vpop.f32.mrb[0].mxu0
      %v2739 = vadd.f32 0.0, %v2738
      %v2740 = vpop.f32.mrb[0].mxu0
      %v2741 = vpop.f32.mrb[0].mxu0
      %v2742 = vadd.f32 0.0, %v2741
      %v2743 = vpop.f32.mrb[0].mxu0
      %2744 = vmatprep.mubr.bf16.mxu0 0
      %2745 = vmatmul.mubr.bf16.gmra.mrb[0].mxu0 %v2562
      %v2746 = vpop.f32.mrb[0].mxu0
      %v2747 = vadd.f32 0.0, %v2746
      %v2748 = vpop.f32.mrb[0].mxu0
      %v2749 = vpop.f32.mrb[0].mxu0
      %v2750 = vadd.f32 0.0, %v2749
      %v2751 = vpop.f32.mrb[0].mxu0
      %2752 = vmatprep.mubr.bf16.mxu0 0
      %2753 = vmatmul.mubr.bf16.gmra.mrb[0].mxu0 %v2565
      %v2754 = vpop.f32.mrb[0].mxu0
      %v2755 = vadd.f32 0.0, %v2754
      %v2756 = vpop.f32.mrb[0].mxu0
      %v2757 = vpop.f32.mrb[0].mxu0
      %v2758 = vadd.f32 0.0, %v2757
      %v2759 = vpop.f32.mrb[0].mxu0
      %2760 = vmatprep.mubr.bf16.mxu0 0
      %2761 = vmatmul.mubr.bf16.gmra.mrb[0].mxu0 %v2568
      %v2762 = vpop.f32.mrb[0].mxu0
      %v2763 = vadd.f32 0.0, %v2762
      %v2764 = vpop.f32.mrb[0].mxu0
      %v2765 = vpop.f32.mrb[0].mxu0
      %v2766 = vadd.f32 0.0, %v2765
      %v2767 = vpop.f32.mrb[0].mxu0
      %2768 = vmatprep.mubr.bf16.mxu0 0
      %2769 = vmatmul.mubr.bf16.gmra.mrb[0].mxu0 %v2571
      %v2770 = vpop.f32.mrb[0].mxu0
      %v2771 = vadd.f32 0.0, %v2770
      %v2772 = vpop.f32.mrb[0].mxu0
      %v2773 = vpop.f32.mrb[0].mxu0
      %v2774 = vadd.f32 0.0, %v2773
      %v2775 = vpop.f32.mrb[0].mxu0
      %2776 = vmatprep.mubr.bf16.mxu0 0
      %2777 = vmatmul.mubr.bf16.gmra.mrb[0].mxu0 %v2574
      %v2778 = vpop.f32.mrb[0].mxu0
      %v2779 = vadd.f32 0.0, %v2778
      %v2780 = vpop.f32.mrb[0].mxu0
      %v2781 = vpop.f32.mrb[0].mxu0
      %v2782 = vadd.f32 0.0, %v2781
      %v2783 = vpop.f32.mrb[0].mxu0
      %2784 = vmatprep.mubr.bf16.mxu0 0
      %2785 = vmatmul.mubr.bf16.gmra.mrb[0].mxu0 %v2577
      %v2786 = vpop.f32.mrb[0].mxu0
      %v2787 = vadd.f32 0.0, %v2786
      %v2788 = vpop.f32.mrb[0].mxu0
      %v2789 = vpop.f32.mrb[0].mxu0
      %v2790 = vadd.f32 0.0, %v2789
      %v2791 = vpop.f32.mrb[0].mxu0
      %2792 = vmatprep.mubr.bf16.mxu0 0
      %2793 = vmatmul.mubr.bf16.gmra.mrb[0].mxu0 %v2580
      %v2794 = vpop.f32.mrb[0].mxu0
      %v2795 = vadd.f32 0.0, %v2794
      %v2796 = vpop.f32.mrb[0].mxu0
      %v2797 = vpop.f32.mrb[0].mxu0
      %v2798 = vadd.f32 0.0, %v2797
      %v2799 = vpop.f32.mrb[0].mxu0
      %2800 = vmatprep.mubr.bf16.mxu0 0
      %2801 = vmatmul.mubr.bf16.gmra.mrb[0].mxu0 %v2583
      %v2802 = vpop.f32.mrb[0].mxu0
      %v2803 = vadd.f32 0.0, %v2802
      %v2804 = vpop.f32.mrb[0].mxu0
      %v2805 = vpop.f32.mrb[0].mxu0
      %v2806 = vadd.f32 0.0, %v2805
      %v2807 = vpop.f32.mrb[0].mxu0
      %2808 = vmatprep.mubr.bf16.mxu0 0
      %2809 = vmatmul.mubr.bf16.gmra.mrb[0].mxu0 %v2586
      %v2810 = vpop.f32.mrb[0].mxu0
      %v2811 = vadd.f32 0.0, %v2810
      %v2812 = vpop.f32.mrb[0].mxu0
      %v2813 = vpop.f32.mrb[0].mxu0
      %v2814 = vadd.f32 0.0, %v2813
      %v2815 = vpop.f32.mrb[0].mxu0
      %2816 = vmatprep.mubr.bf16.mxu0 0
      %2817 = vmatmul.mubr.bf16.gmra.mrb[0].mxu0 %v2589
      %v2818 = vpop.f32.mrb[0].mxu0
      %v2819 = vadd.f32 0.0, %v2818
      %v2820 = vpop.f32.mrb[0].mxu0
      %v2821 = vpop.f32.mrb[0].mxu0
      %v2822 = vadd.f32 0.0, %v2821
      %v2823 = vpop.f32.mrb[0].mxu0
      %2824 = vmatprep.mubr.bf16.mxu0 0
      %2825 = vmatmul.mubr.bf16.gmra.mrb[0].mxu0 %v2592
      %v2826 = vpop.f32.mrb[0].mxu0
      %v2827 = vadd.f32 0.0, %v2826
      %v2828 = vpop.f32.mrb[0].mxu0
      %v2829 = vpop.f32.mrb[0].mxu0
      %v2830 = vadd.f32 0.0, %v2829
      %v2831 = vpop.f32.mrb[0].mxu0
      %2832 = vmatprep.mubr.bf16.mxu0 0
      %2833 = vmatmul.mubr.bf16.gmra.mrb[0].mxu0 %v2595
      %v2834 = vpop.f32.mrb[0].mxu0
      %v2835 = vadd.f32 0.0, %v2834
      %v2836 = vpop.f32.mrb[0].mxu0
      %v2837 = vpop.f32.mrb[0].mxu0
      %v2838 = vadd.f32 0.0, %v2837
      %v2839 = vpop.f32.mrb[0].mxu0
      %2840 = vmatprep.mubr.bf16.mxu0 0
      %2841 = vmatmul.mubr.bf16.gmra.mrb[0].mxu0 %v2598
      %v2842 = vpop.f32.mrb[0].mxu0
      %v2843 = vadd.f32 0.0, %v2842
      %v2844 = vpop.f32.mrb[0].mxu0
      %v2845 = vpop.f32.mrb[0].mxu0
      %v2846 = vadd.f32 0.0, %v2845
      %v2847 = vpop.f32.mrb[0].mxu0
      %2848 = vmatprep.mubr.bf16.mxu0 0
      %2849 = vmatmul.mubr.bf16.gmra.mrb[0].mxu0 %v2601
      %v2850 = vpop.f32.mrb[0].mxu0
      %v2851 = vadd.f32 0.0, %v2850
      %v2852 = vpop.f32.mrb[0].mxu0
      %v2853 = vpop.f32.mrb[0].mxu0
      %v2854 = vadd.f32 0.0, %v2853
      %v2855 = vpop.f32.mrb[0].mxu0
      %2856 = vmatprep.mubr.bf16.mxu0 0
      %2857 = vmatmul.mubr.bf16.gmra.mrb[0].mxu0 %v2604
      %v2858 = vpop.f32.mrb[0].mxu0
      %v2859 = vadd.f32 0.0, %v2858
      %v2860 = vpop.f32.mrb[0].mxu0
      %v2861 = vpop.f32.mrb[0].mxu0
      %v2862 = vadd.f32 0.0, %v2861
      %v2863 = vpop.f32.mrb[0].mxu0
      %2864 = vmatprep.mubr.bf16.mxu0 0
      %2865 = vmatmul.mubr.bf16.gmra.mrb[0].mxu0 %v2607
      %v2866 = vpop.f32.mrb[0].mxu0
      %v2867 = vadd.f32 0.0, %v2866
      %v2868 = vpop.f32.mrb[0].mxu0
      %v2869 = vpop.f32.mrb[0].mxu0
      %v2870 = vadd.f32 0.0, %v2869
      %v2871 = vpop.f32.mrb[0].mxu0
      %2872 = vmatprep.mubr.bf16.mxu0 0
      %2873 = vmatmul.mubr.bf16.gmra.mrb[0].mxu0 %v2610
      %v2874 = vpop.f32.mrb[0].mxu0
      %v2875 = vadd.f32 0.0, %v2874
      %v2876 = vpop.f32.mrb[0].mxu0
      %v2877 = vpop.f32.mrb[0].mxu0
      %v2878 = vadd.f32 0.0, %v2877
      %v2879 = vpop.f32.mrb[0].mxu0
      %2880 = vmatprep.mubr.bf16.mxu0 0
      %2881 = vmatmul.mubr.bf16.gmra.mrb[0].mxu0 %v2613
      %v2882 = vpop.f32.mrb[0].mxu0
      %v2883 = vadd.f32 0.0, %v2882
      %v2884 = vpop.f32.mrb[0].mxu0
      %v2885 = vpop.f32.mrb[0].mxu0
      %v2886 = vadd.f32 0.0, %v2885
      %v2887 = vpop.f32.mrb[0].mxu0
      %2888 = vmatprep.mubr.bf16.mxu0 0
      %2889 = vmatmul.mubr.bf16.gmra.mrb[0].mxu0 %v2616
      %v2890 = vpop.f32.mrb[0].mxu0
      %v2891 = vadd.f32 0.0, %v2890
      %v2892 = vpop.f32.mrb[0].mxu0
      %v2893 = vpop.f32.mrb[0].mxu0
      %v2894 = vadd.f32 0.0, %v2893
      %v2895 = vpop.f32.mrb[0].mxu0
      %2896 = vmatprep.mubr.bf16.mxu0 0
      %2897 = vmatmul.mubr.bf16.gmra.mrb[0].mxu0 %v2619
      %v2898 = vpop.f32.mrb[0].mxu0
      %v2899 = vadd.f32 0.0, %v2898
      %v2900 = vpop.f32.mrb[0].mxu0
      %v2901 = vpop.f32.mrb[0].mxu0
      %v2902 = vadd.f32 0.0, %v2901
      %v2903 = vpop.f32.mrb[0].mxu0
      %2904 = vdwg.mxu0
      %v2905 = vadd.f32 %v2400, %v2659
      %v2906 = vadd.f32 %v2401, %v2662
      %v2907 = vadd.f32 %v2402, %v2667
      %v2908 = vadd.f32 %v2403, %v2670
      %v2909 = vadd.f32 %v2404, %v2675
      %v2910 = vadd.f32 %v2405, %v2678
      %v2911 = vadd.f32 %v2406, %v2683
      %v2912 = vadd.f32 %v2407, %v2686
      %v2913 = vadd.f32 %v2408, %v2691
      %v2914 = vadd.f32 %v2409, %v2694
      %v2915 = vadd.f32 %v2410, %v2699
      %v2916 = vadd.f32 %v2411, %v2702
      %v2917 = vadd.f32 %v2412, %v2707
      %v2918 = vadd.f32 %v2413, %v2710
      %v2919 = vadd.f32 %v2414, %v2715
      %v2920 = vadd.f32 %v2415, %v2718
      %v2921 = vadd.f32 %v2416, %v2723
      %v2922 = vadd.f32 %v2417, %v2726
      %v2923 = vadd.f32 %v2418, %v2731
      %v2924 = vadd.f32 %v2419, %v2734
      %v2925 = vadd.f32 %v2420, %v2739
      %v2926 = vadd.f32 %v2421, %v2742
      %v2927 = vadd.f32 %v2422, %v2747
      %v2928 = vadd.f32 %v2423, %v2750
      %v2929 = vadd.f32 %v2424, %v2755
      %v2930 = vadd.f32 %v2425, %v2758
      %v2931 = vadd.f32 %v2426, %v2763
      %v2932 = vadd.f32 %v2427, %v2766
      %v2933 = vadd.f32 %v2428, %v2771
      %v2934 = vadd.f32 %v2429, %v2774
      %v2935 = vadd.f32 %v2430, %v2779
      %v2936 = vadd.f32 %v2431, %v2782
      %v2937 = vadd.f32 %v2432, %v2787
      %v2938 = vadd.f32 %v2433, %v2790
      %v2939 = vadd.f32 %v2434, %v2795
      %v2940 = vadd.f32 %v2435, %v2798
      %v2941 = vadd.f32 %v2436, %v2803
      %v2942 = vadd.f32 %v2437, %v2806
      %v2943 = vadd.f32 %v2438, %v2811
      %v2944 = vadd.f32 %v2439, %v2814
      %v2945 = vadd.f32 %v2440, %v2819
      %v2946 = vadd.f32 %v2441, %v2822
      %v2947 = vadd.f32 %v2442, %v2827
      %v2948 = vadd.f32 %v2443, %v2830
      %v2949 = vadd.f32 %v2444, %v2835
      %v2950 = vadd.f32 %v2445, %v2838
      %v2951 = vadd.f32 %v2446, %v2843
      %v2952 = vadd.f32 %v2447, %v2846
      %v2953 = vadd.f32 %v2448, %v2851
      %v2954 = vadd.f32 %v2449, %v2854
      %v2955 = vadd.f32 %v2450, %v2859
      %v2956 = vadd.f32 %v2451, %v2862
      %v2957 = vadd.f32 %v2452, %v2867
      %v2958 = vadd.f32 %v2453, %v2870
      %v2959 = vadd.f32 %v2454, %v2875
      %v2960 = vadd.f32 %v2455, %v2878
      %v2961 = vadd.f32 %v2456, %v2883
      %v2962 = vadd.f32 %v2457, %v2886
      %v2963 = vadd.f32 %v2458, %v2891
      %v2964 = vadd.f32 %v2459, %v2894
      %v2965 = vadd.f32 %v2460, %v2899
      %v2966 = vadd.f32 %v2461, %v2902
      %s2967 = scalar_lea.vmem %s1, 20
      %v2968 = vld [vmem:[%s2967] sm:$0x7]
      %vm2969 = vsmask.f32 5376
      %v2970 = vrot.slane %v379, 2
      %v2971 = vrot.slane %v381, 3
      %v2972 = vor.u32 %v2970, %v2971
      %v2973 = vrot.slane %v390, 2
      %v2974 = vrot.slane %v386, 3
      %v2975 = vor.u32 %v2973, %v2974
      %v2976 = vsel %vm2969, %v2972, %v2975
      %v2977 = vrot.slane %v398, 2
      %v2978 = vrot.slane %v394, 3
      %v2979 = vor.u32 %v2977, %v2978
      %v2980 = vsel %vm2969, %v2975, %v2979
      %v2981 = vrot.slane %v406, 2
      %v2982 = vrot.slane %v402, 3
      %v2983 = vor.u32 %v2981, %v2982
      %v2984 = vsel %vm2969, %v2979, %v2983
      %v2985 = vrot.slane %v414, 2
      %v2986 = vrot.slane %v410, 3
      %v2987 = vor.u32 %v2985, %v2986
      %v2988 = vsel %vm2969, %v2983, %v2987
      %v2989 = vrot.slane %v422, 2
      %v2990 = vrot.slane %v418, 3
      %v2991 = vor.u32 %v2989, %v2990
      %v2992 = vsel %vm2969, %v2987, %v2991
      %v2993 = vrot.slane %v430, 2
      %v2994 = vrot.slane %v426, 3
      %v2995 = vor.u32 %v2993, %v2994
      %v2996 = vsel %vm2969, %v2991, %v2995
      %v2997 = vrot.slane %v438, 2
      %v2998 = vrot.slane %v434, 3
      %v2999 = vor.u32 %v2997, %v2998
      %v3000 = vsel %vm2969, %v2995, %v2999
      %v3001 = vrot.slane %v446, 2
      %v3002 = vrot.slane %v442, 3
      %v3003 = vor.u32 %v3001, %v3002
      %v3004 = vsel %vm2969, %v2999, %v3003
      %v3005 = vrot.slane %v454, 2
      %v3006 = vrot.slane %v450, 3
      %v3007 = vor.u32 %v3005, %v3006
      %v3008 = vsel %vm2969, %v3003, %v3007
      %v3009 = vrot.slane %v462, 2
      %v3010 = vrot.slane %v458, 3
      %v3011 = vor.u32 %v3009, %v3010
      %v3012 = vsel %vm2969, %v3007, %v3011
      %v3013 = vrot.slane %v470, 2
      %v3014 = vrot.slane %v466, 3
      %v3015 = vor.u32 %v3013, %v3014
      %v3016 = vsel %vm2969, %v3011, %v3015
      %v3017 = vrot.slane %v478, 2
      %v3018 = vrot.slane %v474, 3
      %v3019 = vor.u32 %v3017, %v3018
      %v3020 = vsel %vm2969, %v3015, %v3019
      %v3021 = vrot.slane %v486, 2
      %v3022 = vrot.slane %v482, 3
      %v3023 = vor.u32 %v3021, %v3022
      %v3024 = vsel %vm2969, %v3019, %v3023
      %v3025 = vrot.slane %v494, 2
      %v3026 = vrot.slane %v490, 3
      %v3027 = vor.u32 %v3025, %v3026
      %v3028 = vsel %vm2969, %v3023, %v3027
      %v3029 = vrot.slane %v502, 2
      %v3030 = vrot.slane %v498, 3
      %v3031 = vor.u32 %v3029, %v3030
      %v3032 = vsel %vm2969, %v3027, %v3031
      %v3033 = vrot.slane %v510, 2
      %v3034 = vrot.slane %v506, 3
      %v3035 = vor.u32 %v3033, %v3034
      %v3036 = vsel %vm2969, %v3031, %v3035
      %v3037 = vrot.slane %v518, 2
      %v3038 = vrot.slane %v514, 3
      %v3039 = vor.u32 %v3037, %v3038
      %v3040 = vsel %vm2969, %v3035, %v3039
      %v3041 = vrot.slane %v526, 2
      %v3042 = vrot.slane %v522, 3
      %v3043 = vor.u32 %v3041, %v3042
      %v3044 = vsel %vm2969, %v3039, %v3043
      %v3045 = vrot.slane %v534, 2
      %v3046 = vrot.slane %v530, 3
      %v3047 = vor.u32 %v3045, %v3046
      %v3048 = vsel %vm2969, %v3043, %v3047
      %v3049 = vrot.slane %v542, 2
      %v3050 = vrot.slane %v538, 3
      %v3051 = vor.u32 %v3049, %v3050
      %v3052 = vsel %vm2969, %v3047, %v3051
      %v3053 = vrot.slane %v550, 2
      %v3054 = vrot.slane %v546, 3
      %v3055 = vor.u32 %v3053, %v3054
      %v3056 = vsel %vm2969, %v3051, %v3055
      %v3057 = vrot.slane %v558, 2
      %v3058 = vrot.slane %v554, 3
      %v3059 = vor.u32 %v3057, %v3058
      %v3060 = vsel %vm2969, %v3055, %v3059
      %v3061 = vrot.slane %v566, 2
      %v3062 = vrot.slane %v562, 3
      %v3063 = vor.u32 %v3061, %v3062
      %v3064 = vsel %vm2969, %v3059, %v3063
      %v3065 = vrot.slane %v574, 2
      %v3066 = vrot.slane %v570, 3
      %v3067 = vor.u32 %v3065, %v3066
      %v3068 = vsel %vm2969, %v3063, %v3067
      %v3069 = vrot.slane %v582, 2
      %v3070 = vrot.slane %v578, 3
      %v3071 = vor.u32 %v3069, %v3070
      %v3072 = vsel %vm2969, %v3067, %v3071
      %v3073 = vrot.slane %v590, 2
      %v3074 = vrot.slane %v586, 3
      %v3075 = vor.u32 %v3073, %v3074
      %v3076 = vsel %vm2969, %v3071, %v3075
      %v3077 = vrot.slane %v598, 2
      %v3078 = vrot.slane %v594, 3
      %v3079 = vor.u32 %v3077, %v3078
      %v3080 = vsel %vm2969, %v3075, %v3079
      %v3081 = vrot.slane %v606, 2
      %v3082 = vrot.slane %v602, 3
      %v3083 = vor.u32 %v3081, %v3082
      %v3084 = vsel %vm2969, %v3079, %v3083
      %v3085 = vrot.slane %v614, 2
      %v3086 = vrot.slane %v610, 3
      %v3087 = vor.u32 %v3085, %v3086
      %v3088 = vsel %vm2969, %v3083, %v3087
      %v3089 = vrot.slane %v622, 2
      %v3090 = vrot.slane %v618, 3
      %v3091 = vor.u32 %v3089, %v3090
      %v3092 = vsel %vm2969, %v3087, %v3091
      %v3093 = vrot.slane %v2015, 2
      %v3094 = vrot.slane %v2018, 3
      %v3095 = vor.u32 %v3093, %v3094
      %v3096 = vsel %vm2969, %v3091, %v3095
      %v3098 = vsel %vm625, %v2976, 0
      %v3101 = vsel %vm625, %v2980, 0
      %v3104 = vsel %vm625, %v2984, 0
      %v3107 = vsel %vm625, %v2988, 0
      %v3110 = vsel %vm625, %v2992, 0
      %v3113 = vsel %vm625, %v2996, 0
      %v3116 = vsel %vm625, %v3000, 0
      %v3119 = vsel %vm625, %v3004, 0
      %v3122 = vsel %vm625, %v3008, 0
      %v3125 = vsel %vm625, %v3012, 0
      %v3128 = vsel %vm625, %v3016, 0
      %v3131 = vsel %vm625, %v3020, 0
      %v3134 = vsel %vm625, %v3024, 0
      %v3137 = vsel %vm625, %v3028, 0
      %v3140 = vsel %vm625, %v3032, 0
      %v3143 = vsel %vm625, %v3036, 0
      %v3146 = vsel %vm625, %v3040, 0
      %v3149 = vsel %vm625, %v3044, 0
      %v3152 = vsel %vm625, %v3048, 0
      %v3155 = vsel %vm625, %v3052, 0
      %v3158 = vsel %vm625, %v3056, 0
      %v3161 = vsel %vm625, %v3060, 0
      %v3164 = vsel %vm625, %v3064, 0
      %v3167 = vsel %vm625, %v3068, 0
      %v3170 = vsel %vm625, %v3072, 0
      %v3173 = vsel %vm625, %v3076, 0
      %v3176 = vsel %vm625, %v3080, 0
      %v3179 = vsel %vm625, %v3084, 0
      %v3182 = vsel %vm625, %v3088, 0
      %v3185 = vsel %vm625, %v3092, 0
      %v3188 = vsel %vm625, %v3096, 0
      %v3191 = vsel %vm719, %v2968, 0
      %3193 = vmatprep.subr.bf16.mxu0 0
      %3194 = vmatpush1.bf16.msra.mxu0 %v3191
      %3195 = vmatprep.subr.bf16.mxu0 0
      %3196 = vmatpush1.bf16.msra.mxu0 0
      %3197 = vmatprep.subr.bf16.mxu0 0
      %3198 = vmatpush1.bf16.msra.mxu0 0
      %3199 = vmatprep.subr.bf16.mxu0 0
      %3200 = vmatpush1.bf16.msra.mxu0 0
      %3201 = vmatprep.subr.bf16.mxu0 0
      %3202 = vmatpush1.bf16.msra.mxu0 0
      %3203 = vmatprep.subr.bf16.mxu0 0
      %3204 = vmatpush1.bf16.msra.mxu0 0
      %3205 = vmatprep.subr.bf16.mxu0 0
      %3206 = vmatpush1.bf16.msra.mxu0 0
      %3207 = vmatprep.subr.bf16.mxu0 0
      %3208 = vmatpush1.bf16.msra.mxu0 0
      %3209 = vmatprep.subr.bf16.mxu0 0
      %3210 = vmatpush1.bf16.msra.mxu0 0
      %3211 = vmatprep.subr.bf16.mxu0 0
      %3212 = vmatpush1.bf16.msra.mxu0 0
      %3213 = vmatprep.subr.bf16.mxu0 0
      %3214 = vmatpush1.bf16.msra.mxu0 0
      %3215 = vmatprep.subr.bf16.mxu0 0
      %3216 = vmatpush1.bf16.msra.mxu0 0
      %3217 = vmatprep.subr.bf16.mxu0 0
      %3218 = vmatpush1.bf16.msra.mxu0 0
      %3219 = vmatprep.subr.bf16.mxu0 0
      %3220 = vmatpush1.bf16.msra.mxu0 0
      %3221 = vmatprep.subr.bf16.mxu0 0
      %3222 = vmatpush1.bf16.msra.mxu0 0
      %3223 = vmatprep.subr.bf16.mxu0 0
      %3224 = vmatpush1.bf16.msra.mxu0 0
      %3225 = vmatprep.mubr.bf16.mxu0 0
      %3226 = vmatmul.mubr.bf16.gmra.mrb[0].mxu0 %v3098
      %v3227 = vpop.f32.mrb[0].mxu0
      %v3228 = vadd.f32 0.0, %v3227
      %v3229 = vpop.f32.mrb[0].mxu0
      %v3230 = vpop.f32.mrb[0].mxu0
      %v3231 = vadd.f32 0.0, %v3230
      %v3232 = vpop.f32.mrb[0].mxu0
      %3233 = vmatprep.mubr.bf16.mxu0 0
      %3234 = vmatmul.mubr.bf16.gmra.mrb[0].mxu0 %v3101
      %v3235 = vpop.f32.mrb[0].mxu0
      %v3236 = vadd.f32 0.0, %v3235
      %v3237 = vpop.f32.mrb[0].mxu0
      %v3238 = vpop.f32.mrb[0].mxu0
      %v3239 = vadd.f32 0.0, %v3238
      %v3240 = vpop.f32.mrb[0].mxu0
      %3241 = vmatprep.mubr.bf16.mxu0 0
      %3242 = vmatmul.mubr.bf16.gmra.mrb[0].mxu0 %v3104
      %v3243 = vpop.f32.mrb[0].mxu0
      %v3244 = vadd.f32 0.0, %v3243
      %v3245 = vpop.f32.mrb[0].mxu0
      %v3246 = vpop.f32.mrb[0].mxu0
      %v3247 = vadd.f32 0.0, %v3246
      %v3248 = vpop.f32.mrb[0].mxu0
      %3249 = vmatprep.mubr.bf16.mxu0 0
      %3250 = vmatmul.mubr.bf16.gmra.mrb[0].mxu0 %v3107
      %v3251 = vpop.f32.mrb[0].mxu0
      %v3252 = vadd.f32 0.0, %v3251
      %v3253 = vpop.f32.mrb[0].mxu0
      %v3254 = vpop.f32.mrb[0].mxu0
      %v3255 = vadd.f32 0.0, %v3254
      %v3256 = vpop.f32.mrb[0].mxu0
      %3257 = vmatprep.mubr.bf16.mxu0 0
      %3258 = vmatmul.mubr.bf16.gmra.mrb[0].mxu0 %v3110
      %v3259 = vpop.f32.mrb[0].mxu0
      %v3260 = vadd.f32 0.0, %v3259
      %v3261 = vpop.f32.mrb[0].mxu0
      %v3262 = vpop.f32.mrb[0].mxu0
      %v3263 = vadd.f32 0.0, %v3262
      %v3264 = vpop.f32.mrb[0].mxu0
      %3265 = vmatprep.mubr.bf16.mxu0 0
      %3266 = vmatmul.mubr.bf16.gmra.mrb[0].mxu0 %v3113
      %v3267 = vpop.f32.mrb[0].mxu0
      %v3268 = vadd.f32 0.0, %v3267
      %v3269 = vpop.f32.mrb[0].mxu0
      %v3270 = vpop.f32.mrb[0].mxu0
      %v3271 = vadd.f32 0.0, %v3270
      %v3272 = vpop.f32.mrb[0].mxu0
      %3273 = vmatprep.mubr.bf16.mxu0 0
      %3274 = vmatmul.mubr.bf16.gmra.mrb[0].mxu0 %v3116
      %v3275 = vpop.f32.mrb[0].mxu0
      %v3276 = vadd.f32 0.0, %v3275
      %v3277 = vpop.f32.mrb[0].mxu0
      %v3278 = vpop.f32.mrb[0].mxu0
      %v3279 = vadd.f32 0.0, %v3278
      %v3280 = vpop.f32.mrb[0].mxu0
      %3281 = vmatprep.mubr.bf16.mxu0 0
      %3282 = vmatmul.mubr.bf16.gmra.mrb[0].mxu0 %v3119
      %v3283 = vpop.f32.mrb[0].mxu0
      %v3284 = vadd.f32 0.0, %v3283
      %v3285 = vpop.f32.mrb[0].mxu0
      %v3286 = vpop.f32.mrb[0].mxu0
      %v3287 = vadd.f32 0.0, %v3286
      %v3288 = vpop.f32.mrb[0].mxu0
      %3289 = vmatprep.mubr.bf16.mxu0 0
      %3290 = vmatmul.mubr.bf16.gmra.mrb[0].mxu0 %v3122
      %v3291 = vpop.f32.mrb[0].mxu0
      %v3292 = vadd.f32 0.0, %v3291
      %v3293 = vpop.f32.mrb[0].mxu0
      %v3294 = vpop.f32.mrb[0].mxu0
      %v3295 = vadd.f32 0.0, %v3294
      %v3296 = vpop.f32.mrb[0].mxu0
      %3297 = vmatprep.mubr.bf16.mxu0 0
      %3298 = vmatmul.mubr.bf16.gmra.mrb[0].mxu0 %v3125
      %v3299 = vpop.f32.mrb[0].mxu0
      %v3300 = vadd.f32 0.0, %v3299
      %v3301 = vpop.f32.mrb[0].mxu0
      %v3302 = vpop.f32.mrb[0].mxu0
      %v3303 = vadd.f32 0.0, %v3302
      %v3304 = vpop.f32.mrb[0].mxu0
      %3305 = vmatprep.mubr.bf16.mxu0 0
      %3306 = vmatmul.mubr.bf16.gmra.mrb[0].mxu0 %v3128
      %v3307 = vpop.f32.mrb[0].mxu0
      %v3308 = vadd.f32 0.0, %v3307
      %v3309 = vpop.f32.mrb[0].mxu0
      %v3310 = vpop.f32.mrb[0].mxu0
      %v3311 = vadd.f32 0.0, %v3310
      %v3312 = vpop.f32.mrb[0].mxu0
      %3313 = vmatprep.mubr.bf16.mxu0 0
      %3314 = vmatmul.mubr.bf16.gmra.mrb[0].mxu0 %v3131
      %v3315 = vpop.f32.mrb[0].mxu0
      %v3316 = vadd.f32 0.0, %v3315
      %v3317 = vpop.f32.mrb[0].mxu0
      %v3318 = vpop.f32.mrb[0].mxu0
      %v3319 = vadd.f32 0.0, %v3318
      %v3320 = vpop.f32.mrb[0].mxu0
      %3321 = vmatprep.mubr.bf16.mxu0 0
      %3322 = vmatmul.mubr.bf16.gmra.mrb[0].mxu0 %v3134
      %v3323 = vpop.f32.mrb[0].mxu0
      %v3324 = vadd.f32 0.0, %v3323
      %v3325 = vpop.f32.mrb[0].mxu0
      %v3326 = vpop.f32.mrb[0].mxu0
      %v3327 = vadd.f32 0.0, %v3326
      %v3328 = vpop.f32.mrb[0].mxu0
      %3329 = vmatprep.mubr.bf16.mxu0 0
      %3330 = vmatmul.mubr.bf16.gmra.mrb[0].mxu0 %v3137
      %v3331 = vpop.f32.mrb[0].mxu0
      %v3332 = vadd.f32 0.0, %v3331
      %v3333 = vpop.f32.mrb[0].mxu0
      %v3334 = vpop.f32.mrb[0].mxu0
      %v3335 = vadd.f32 0.0, %v3334
      %v3336 = vpop.f32.mrb[0].mxu0
      %3337 = vmatprep.mubr.bf16.mxu0 0
      %3338 = vmatmul.mubr.bf16.gmra.mrb[0].mxu0 %v3140
      %v3339 = vpop.f32.mrb[0].mxu0
      %v3340 = vadd.f32 0.0, %v3339
      %v3341 = vpop.f32.mrb[0].mxu0
      %v3342 = vpop.f32.mrb[0].mxu0
      %v3343 = vadd.f32 0.0, %v3342
      %v3344 = vpop.f32.mrb[0].mxu0
      %3345 = vmatprep.mubr.bf16.mxu0 0
      %3346 = vmatmul.mubr.bf16.gmra.mrb[0].mxu0 %v3143
      %v3347 = vpop.f32.mrb[0].mxu0
      %v3348 = vadd.f32 0.0, %v3347
      %v3349 = vpop.f32.mrb[0].mxu0
      %v3350 = vpop.f32.mrb[0].mxu0
      %v3351 = vadd.f32 0.0, %v3350
      %v3352 = vpop.f32.mrb[0].mxu0
      %3353 = vmatprep.mubr.bf16.mxu0 0
      %3354 = vmatmul.mubr.bf16.gmra.mrb[0].mxu0 %v3146
      %v3355 = vpop.f32.mrb[0].mxu0
      %v3356 = vadd.f32 0.0, %v3355
      %v3357 = vpop.f32.mrb[0].mxu0
      %v3358 = vpop.f32.mrb[0].mxu0
      %v3359 = vadd.f32 0.0, %v3358
      %v3360 = vpop.f32.mrb[0].mxu0
      %3361 = vmatprep.mubr.bf16.mxu0 0
      %3362 = vmatmul.mubr.bf16.gmra.mrb[0].mxu0 %v3149
      %v3363 = vpop.f32.mrb[0].mxu0
      %v3364 = vadd.f32 0.0, %v3363
      %v3365 = vpop.f32.mrb[0].mxu0
      %v3366 = vpop.f32.mrb[0].mxu0
      %v3367 = vadd.f32 0.0, %v3366
      %v3368 = vpop.f32.mrb[0].mxu0
      %3369 = vmatprep.mubr.bf16.mxu0 0
      %3370 = vmatmul.mubr.bf16.gmra.mrb[0].mxu0 %v3152
      %v3371 = vpop.f32.mrb[0].mxu0
      %v3372 = vadd.f32 0.0, %v3371
      %v3373 = vpop.f32.mrb[0].mxu0
      %v3374 = vpop.f32.mrb[0].mxu0
      %v3375 = vadd.f32 0.0, %v3374
      %v3376 = vpop.f32.mrb[0].mxu0
      %3377 = vmatprep.mubr.bf16.mxu0 0
      %3378 = vmatmul.mubr.bf16.gmra.mrb[0].mxu0 %v3155
      %v3379 = vpop.f32.mrb[0].mxu0
      %v3380 = vadd.f32 0.0, %v3379
      %v3381 = vpop.f32.mrb[0].mxu0
      %v3382 = vpop.f32.mrb[0].mxu0
      %v3383 = vadd.f32 0.0, %v3382
      %v3384 = vpop.f32.mrb[0].mxu0
      %3385 = vmatprep.mubr.bf16.mxu0 0
      %3386 = vmatmul.mubr.bf16.gmra.mrb[0].mxu0 %v3158
      %v3387 = vpop.f32.mrb[0].mxu0
      %v3388 = vadd.f32 0.0, %v3387
      %v3389 = vpop.f32.mrb[0].mxu0
      %v3390 = vpop.f32.mrb[0].mxu0
      %v3391 = vadd.f32 0.0, %v3390
      %v3392 = vpop.f32.mrb[0].mxu0
      %3393 = vmatprep.mubr.bf16.mxu0 0
      %3394 = vmatmul.mubr.bf16.gmra.mrb[0].mxu0 %v3161
      %v3395 = vpop.f32.mrb[0].mxu0
      %v3396 = vadd.f32 0.0, %v3395
      %v3397 = vpop.f32.mrb[0].mxu0
      %v3398 = vpop.f32.mrb[0].mxu0
      %v3399 = vadd.f32 0.0, %v3398
      %v3400 = vpop.f32.mrb[0].mxu0
      %3401 = vmatprep.mubr.bf16.mxu0 0
      %3402 = vmatmul.mubr.bf16.gmra.mrb[0].mxu0 %v3164
      %v3403 = vpop.f32.mrb[0].mxu0
      %v3404 = vadd.f32 0.0, %v3403
      %v3405 = vpop.f32.mrb[0].mxu0
      %v3406 = vpop.f32.mrb[0].mxu0
      %v3407 = vadd.f32 0.0, %v3406
      %v3408 = vpop.f32.mrb[0].mxu0
      %3409 = vmatprep.mubr.bf16.mxu0 0
      %3410 = vmatmul.mubr.bf16.gmra.mrb[0].mxu0 %v3167
      %v3411 = vpop.f32.mrb[0].mxu0
      %v3412 = vadd.f32 0.0, %v3411
      %v3413 = vpop.f32.mrb[0].mxu0
      %v3414 = vpop.f32.mrb[0].mxu0
      %v3415 = vadd.f32 0.0, %v3414
      %v3416 = vpop.f32.mrb[0].mxu0
      %3417 = vmatprep.mubr.bf16.mxu0 0
      %3418 = vmatmul.mubr.bf16.gmra.mrb[0].mxu0 %v3170
      %v3419 = vpop.f32.mrb[0].mxu0
      %v3420 = vadd.f32 0.0, %v3419
      %v3421 = vpop.f32.mrb[0].mxu0
      %v3422 = vpop.f32.mrb[0].mxu0
      %v3423 = vadd.f32 0.0, %v3422
      %v3424 = vpop.f32.mrb[0].mxu0
      %3425 = vmatprep.mubr.bf16.mxu0 0
      %3426 = vmatmul.mubr.bf16.gmra.mrb[0].mxu0 %v3173
      %v3427 = vpop.f32.mrb[0].mxu0
      %v3428 = vadd.f32 0.0, %v3427
      %v3429 = vpop.f32.mrb[0].mxu0
      %v3430 = vpop.f32.mrb[0].mxu0
      %v3431 = vadd.f32 0.0, %v3430
      %v3432 = vpop.f32.mrb[0].mxu0
      %3433 = vmatprep.mubr.bf16.mxu0 0
      %3434 = vmatmul.mubr.bf16.gmra.mrb[0].mxu0 %v3176
      %v3435 = vpop.f32.mrb[0].mxu0
      %v3436 = vadd.f32 0.0, %v3435
      %v3437 = vpop.f32.mrb[0].mxu0
      %v3438 = vpop.f32.mrb[0].mxu0
      %v3439 = vadd.f32 0.0, %v3438
      %v3440 = vpop.f32.mrb[0].mxu0
      %3441 = vmatprep.mubr.bf16.mxu0 0
      %3442 = vmatmul.mubr.bf16.gmra.mrb[0].mxu0 %v3179
      %v3443 = vpop.f32.mrb[0].mxu0
      %v3444 = vadd.f32 0.0, %v3443
      %v3445 = vpop.f32.mrb[0].mxu0
      %v3446 = vpop.f32.mrb[0].mxu0
      %v3447 = vadd.f32 0.0, %v3446
      %v3448 = vpop.f32.mrb[0].mxu0
      %3449 = vmatprep.mubr.bf16.mxu0 0
      %3450 = vmatmul.mubr.bf16.gmra.mrb[0].mxu0 %v3182
      %v3451 = vpop.f32.mrb[0].mxu0
      %v3452 = vadd.f32 0.0, %v3451
      %v3453 = vpop.f32.mrb[0].mxu0
      %v3454 = vpop.f32.mrb[0].mxu0
      %v3455 = vadd.f32 0.0, %v3454
      %v3456 = vpop.f32.mrb[0].mxu0
      %3457 = vmatprep.mubr.bf16.mxu0 0
      %3458 = vmatmul.mubr.bf16.gmra.mrb[0].mxu0 %v3185
      %v3459 = vpop.f32.mrb[0].mxu0
      %v3460 = vadd.f32 0.0, %v3459
      %v3461 = vpop.f32.mrb[0].mxu0
      %v3462 = vpop.f32.mrb[0].mxu0
      %v3463 = vadd.f32 0.0, %v3462
      %v3464 = vpop.f32.mrb[0].mxu0
      %3465 = vmatprep.mubr.bf16.mxu0 0
      %3466 = vmatmul.mubr.bf16.gmra.mrb[0].mxu0 %v3188
      %v3467 = vpop.f32.mrb[0].mxu0
      %v3468 = vadd.f32 0.0, %v3467
      %v3469 = vpop.f32.mrb[0].mxu0
      %v3470 = vpop.f32.mrb[0].mxu0
      %v3471 = vadd.f32 0.0, %v3470
      %v3472 = vpop.f32.mrb[0].mxu0
      %3473 = vdwg.mxu0
      %v3474 = vadd.f32 %v2905, %v3228
      %v3475 = vadd.f32 %v2906, %v3231
      %v3476 = vadd.f32 %v2907, %v3236
      %v3477 = vadd.f32 %v2908, %v3239
      %v3478 = vadd.f32 %v2909, %v3244
      %v3479 = vadd.f32 %v2910, %v3247
      %v3480 = vadd.f32 %v2911, %v3252
      %v3481 = vadd.f32 %v2912, %v3255
      %v3482 = vadd.f32 %v2913, %v3260
      %v3483 = vadd.f32 %v2914, %v3263
      %v3484 = vadd.f32 %v2915, %v3268
      %v3485 = vadd.f32 %v2916, %v3271
      %v3486 = vadd.f32 %v2917, %v3276
      %v3487 = vadd.f32 %v2918, %v3279
      %v3488 = vadd.f32 %v2919, %v3284
      %v3489 = vadd.f32 %v2920, %v3287
      %v3490 = vadd.f32 %v2921, %v3292
      %v3491 = vadd.f32 %v2922, %v3295
      %v3492 = vadd.f32 %v2923, %v3300
      %v3493 = vadd.f32 %v2924, %v3303
      %v3494 = vadd.f32 %v2925, %v3308
      %v3495 = vadd.f32 %v2926, %v3311
      %v3496 = vadd.f32 %v2927, %v3316
      %v3497 = vadd.f32 %v2928, %v3319
      %v3498 = vadd.f32 %v2929, %v3324
      %v3499 = vadd.f32 %v2930, %v3327
      %v3500 = vadd.f32 %v2931, %v3332
      %v3501 = vadd.f32 %v2932, %v3335
      %v3502 = vadd.f32 %v2933, %v3340
      %v3503 = vadd.f32 %v2934, %v3343
      %v3504 = vadd.f32 %v2935, %v3348
      %v3505 = vadd.f32 %v2936, %v3351
      %v3506 = vadd.f32 %v2937, %v3356
      %v3507 = vadd.f32 %v2938, %v3359
      %v3508 = vadd.f32 %v2939, %v3364
      %v3509 = vadd.f32 %v2940, %v3367
      %v3510 = vadd.f32 %v2941, %v3372
      %v3511 = vadd.f32 %v2942, %v3375
      %v3512 = vadd.f32 %v2943, %v3380
      %v3513 = vadd.f32 %v2944, %v3383
      %v3514 = vadd.f32 %v2945, %v3388
      %v3515 = vadd.f32 %v2946, %v3391
      %v3516 = vadd.f32 %v2947, %v3396
      %v3517 = vadd.f32 %v2948, %v3399
      %v3518 = vadd.f32 %v2949, %v3404
      %v3519 = vadd.f32 %v2950, %v3407
      %v3520 = vadd.f32 %v2951, %v3412
      %v3521 = vadd.f32 %v2952, %v3415
      %v3522 = vadd.f32 %v2953, %v3420
      %v3523 = vadd.f32 %v2954, %v3423
      %v3524 = vadd.f32 %v2955, %v3428
      %v3525 = vadd.f32 %v2956, %v3431
      %v3526 = vadd.f32 %v2957, %v3436
      %v3527 = vadd.f32 %v2958, %v3439
      %v3528 = vadd.f32 %v2959, %v3444
      %v3529 = vadd.f32 %v2960, %v3447
      %v3530 = vadd.f32 %v2961, %v3452
      %v3531 = vadd.f32 %v2962, %v3455
      %v3532 = vadd.f32 %v2963, %v3460
      %v3533 = vadd.f32 %v2964, %v3463
      %v3534 = vadd.f32 %v2965, %v3468
      %v3535 = vadd.f32 %v2966, %v3471
      %v3536 = vld [vmem:[%s2] sm:$0x1]
      %v3538 = vlaneseq
      %v3539 = vshrl.u32 %v3538, 7
      %v3540 = vsub.s32 0, %v3539
      %v3541 = vrot.slane %v3536, %v3540
      %v3543 = vadd.f32 %v3474, %v3541
      %v3544 = vadd.f32 %v3475, %v3541
      %v3545 = vadd.f32 %v3476, %v3541
      %v3546 = vadd.f32 %v3477, %v3541
      %v3547 = vadd.f32 %v3478, %v3541
      %v3548 = vadd.f32 %v3479, %v3541
      %v3549 = vadd.f32 %v3480, %v3541
      %v3550 = vadd.f32 %v3481, %v3541
      %v3551 = vadd.f32 %v3482, %v3541
      %v3552 = vadd.f32 %v3483, %v3541
      %v3553 = vadd.f32 %v3484, %v3541
      %v3554 = vadd.f32 %v3485, %v3541
      %v3555 = vadd.f32 %v3486, %v3541
      %v3556 = vadd.f32 %v3487, %v3541
      %v3557 = vadd.f32 %v3488, %v3541
      %v3558 = vadd.f32 %v3489, %v3541
      %v3559 = vadd.f32 %v3490, %v3541
      %v3560 = vadd.f32 %v3491, %v3541
      %v3561 = vadd.f32 %v3492, %v3541
      %v3562 = vadd.f32 %v3493, %v3541
      %v3563 = vadd.f32 %v3494, %v3541
      %v3564 = vadd.f32 %v3495, %v3541
      %v3565 = vadd.f32 %v3496, %v3541
      %v3566 = vadd.f32 %v3497, %v3541
      %v3567 = vadd.f32 %v3498, %v3541
      %v3568 = vadd.f32 %v3499, %v3541
      %v3569 = vadd.f32 %v3500, %v3541
      %v3570 = vadd.f32 %v3501, %v3541
      %v3571 = vadd.f32 %v3502, %v3541
      %v3572 = vadd.f32 %v3503, %v3541
      %v3573 = vadd.f32 %v3504, %v3541
      %v3574 = vadd.f32 %v3505, %v3541
      %v3575 = vadd.f32 %v3506, %v3541
      %v3576 = vadd.f32 %v3507, %v3541
      %v3577 = vadd.f32 %v3508, %v3541
      %v3578 = vadd.f32 %v3509, %v3541
      %v3579 = vadd.f32 %v3510, %v3541
      %v3580 = vadd.f32 %v3511, %v3541
      %v3581 = vadd.f32 %v3512, %v3541
      %v3582 = vadd.f32 %v3513, %v3541
      %v3583 = vadd.f32 %v3514, %v3541
      %v3584 = vadd.f32 %v3515, %v3541
      %v3585 = vadd.f32 %v3516, %v3541
      %v3586 = vadd.f32 %v3517, %v3541
      %v3587 = vadd.f32 %v3518, %v3541
      %v3588 = vadd.f32 %v3519, %v3541
      %v3589 = vadd.f32 %v3520, %v3541
      %v3590 = vadd.f32 %v3521, %v3541
      %v3591 = vadd.f32 %v3522, %v3541
      %v3592 = vadd.f32 %v3523, %v3541
      %v3593 = vadd.f32 %v3524, %v3541
      %v3594 = vadd.f32 %v3525, %v3541
      %v3595 = vadd.f32 %v3526, %v3541
      %v3596 = vadd.f32 %v3527, %v3541
      %v3597 = vadd.f32 %v3528, %v3541
      %v3598 = vadd.f32 %v3529, %v3541
      %v3599 = vadd.f32 %v3530, %v3541
      %v3600 = vadd.f32 %v3531, %v3541
      %v3601 = vadd.f32 %v3532, %v3541
      %v3602 = vadd.f32 %v3533, %v3541
      %v3603 = vadd.f32 %v3534, %v3541
      %v3604 = vadd.f32 %v3535, %v3541
      %v3605 = vmax.f32 %v3543, 0.0
      %v3606 = vmax.f32 %v3544, 0.0
      %v3607 = vmax.f32 %v3545, 0.0
      %v3608 = vmax.f32 %v3546, 0.0
      %v3609 = vmax.f32 %v3547, 0.0
      %v3610 = vmax.f32 %v3548, 0.0
      %v3611 = vmax.f32 %v3549, 0.0
      %v3612 = vmax.f32 %v3550, 0.0
      %v3613 = vmax.f32 %v3551, 0.0
      %v3614 = vmax.f32 %v3552, 0.0
      %v3615 = vmax.f32 %v3553, 0.0
      %v3616 = vmax.f32 %v3554, 0.0
      %v3617 = vmax.f32 %v3555, 0.0
      %v3618 = vmax.f32 %v3556, 0.0
      %v3619 = vmax.f32 %v3557, 0.0
      %v3620 = vmax.f32 %v3558, 0.0
      %v3621 = vmax.f32 %v3559, 0.0
      %v3622 = vmax.f32 %v3560, 0.0
      %v3623 = vmax.f32 %v3561, 0.0
      %v3624 = vmax.f32 %v3562, 0.0
      %v3625 = vmax.f32 %v3563, 0.0
      %v3626 = vmax.f32 %v3564, 0.0
      %v3627 = vmax.f32 %v3565, 0.0
      %v3628 = vmax.f32 %v3566, 0.0
      %v3629 = vmax.f32 %v3567, 0.0
      %v3630 = vmax.f32 %v3568, 0.0
      %v3631 = vmax.f32 %v3569, 0.0
      %v3632 = vmax.f32 %v3570, 0.0
      %v3633 = vmax.f32 %v3571, 0.0
      %v3634 = vmax.f32 %v3572, 0.0
      %v3635 = vmax.f32 %v3573, 0.0
      %v3636 = vmax.f32 %v3574, 0.0
      %v3637 = vmax.f32 %v3575, 0.0
      %v3638 = vmax.f32 %v3576, 0.0
      %v3639 = vmax.f32 %v3577, 0.0
      %v3640 = vmax.f32 %v3578, 0.0
      %v3641 = vmax.f32 %v3579, 0.0
      %v3642 = vmax.f32 %v3580, 0.0
      %v3643 = vmax.f32 %v3581, 0.0
      %v3644 = vmax.f32 %v3582, 0.0
      %v3645 = vmax.f32 %v3583, 0.0
      %v3646 = vmax.f32 %v3584, 0.0
      %v3647 = vmax.f32 %v3585, 0.0
      %v3648 = vmax.f32 %v3586, 0.0
      %v3649 = vmax.f32 %v3587, 0.0
      %v3650 = vmax.f32 %v3588, 0.0
      %v3651 = vmax.f32 %v3589, 0.0
      %v3652 = vmax.f32 %v3590, 0.0
      %v3653 = vmax.f32 %v3591, 0.0
      %v3654 = vmax.f32 %v3592, 0.0
      %v3655 = vmax.f32 %v3593, 0.0
      %v3656 = vmax.f32 %v3594, 0.0
      %v3657 = vmax.f32 %v3595, 0.0
      %v3658 = vmax.f32 %v3596, 0.0
      %v3659 = vmax.f32 %v3597, 0.0
      %v3660 = vmax.f32 %v3598, 0.0
      %v3661 = vmax.f32 %v3599, 0.0
      %v3662 = vmax.f32 %v3600, 0.0
      %v3663 = vmax.f32 %v3601, 0.0
      %v3664 = vmax.f32 %v3602, 0.0
      %v3665 = vmax.f32 %v3603, 0.0
      %v3666 = vmax.f32 %v3604, 0.0
      %vm3667 = vcmask 130048
      %3668 = vst.msk [vmem:[#allocation2] sm:$0xff] %vm3667, %v3605
      %3669 = vst.msk [vmem:[#allocation2 + $0x8] sm:$0xff] %vm3667, %v3606
      %3670 = vst.msk [vmem:[#allocation2 + $0x10] sm:$0xff] %vm3667, %v3607
      %3671 = vst.msk [vmem:[#allocation2 + $0x18] sm:$0xff] %vm3667, %v3608
      %3672 = vst.msk [vmem:[#allocation2 + $0x20] sm:$0xff] %vm3667, %v3609
      %3673 = vst.msk [vmem:[#allocation2 + $0x28] sm:$0xff] %vm3667, %v3610
      %3674 = vst.msk [vmem:[#allocation2 + $0x30] sm:$0xff] %vm3667, %v3611
      %3675 = vst.msk [vmem:[#allocation2 + $0x38] sm:$0xff] %vm3667, %v3612
      %3676 = vst.msk [vmem:[#allocation2 + $0x40] sm:$0xff] %vm3667, %v3613
      %3677 = vst.msk [vmem:[#allocation2 + $0x48] sm:$0xff] %vm3667, %v3614
      %3678 = vst.msk [vmem:[#allocation2 + $0x50] sm:$0xff] %vm3667, %v3615
      %3679 = vst.msk [vmem:[#allocation2 + $0x58] sm:$0xff] %vm3667, %v3616
      %3680 = vst.msk [vmem:[#allocation2 + $0x60] sm:$0xff] %vm3667, %v3617
      %3681 = vst.msk [vmem:[#allocation2 + $0x68] sm:$0xff] %vm3667, %v3618
      %3682 = vst.msk [vmem:[#allocation2 + $0x70] sm:$0xff] %vm3667, %v3619
      %3683 = vst.msk [vmem:[#allocation2 + $0x78] sm:$0xff] %vm3667, %v3620
      %3684 = vst.msk [vmem:[#allocation2 + $0x80] sm:$0xff] %vm3667, %v3621
      %3685 = vst.msk [vmem:[#allocation2 + $0x88] sm:$0xff] %vm3667, %v3622
      %3686 = vst.msk [vmem:[#allocation2 + $0x90] sm:$0xff] %vm3667, %v3623
      %3687 = vst.msk [vmem:[#allocation2 + $0x98] sm:$0xff] %vm3667, %v3624
      %3688 = vst.msk [vmem:[#allocation2 + $0xa0] sm:$0xff] %vm3667, %v3625
      %3689 = vst.msk [vmem:[#allocation2 + $0xa8] sm:$0xff] %vm3667, %v3626
      %3690 = vst.msk [vmem:[#allocation2 + $0xb0] sm:$0xff] %vm3667, %v3627
      %3691 = vst.msk [vmem:[#allocation2 + $0xb8] sm:$0xff] %vm3667, %v3628
      %3692 = vst.msk [vmem:[#allocation2 + $0xc0] sm:$0xff] %vm3667, %v3629
      %3693 = vst.msk [vmem:[#allocation2 + $0xc8] sm:$0xff] %vm3667, %v3630
      %3694 = vst.msk [vmem:[#allocation2 + $0xd0] sm:$0xff] %vm3667, %v3631
      %3695 = vst.msk [vmem:[#allocation2 + $0xd8] sm:$0xff] %vm3667, %v3632
      %3696 = vst.msk [vmem:[#allocation2 + $0xe0] sm:$0xff] %vm3667, %v3633
      %3697 = vst.msk [vmem:[#allocation2 + $0xe8] sm:$0xff] %vm3667, %v3634
      %3698 = vst.msk [vmem:[#allocation2 + $0xf0] sm:$0xff] %vm3667, %v3635
      %3699 = vst.msk [vmem:[#allocation2 + $0xf8] sm:$0xff] %vm3667, %v3636
      %3700 = vst.msk [vmem:[#allocation2 + $0x100] sm:$0xff] %vm3667, %v3637
      %3701 = vst.msk [vmem:[#allocation2 + $0x108] sm:$0xff] %vm3667, %v3638
      %3702 = vst.msk [vmem:[#allocation2 + $0x110] sm:$0xff] %vm3667, %v3639
      %3703 = vst.msk [vmem:[#allocation2 + $0x118] sm:$0xff] %vm3667, %v3640
      %3704 = vst.msk [vmem:[#allocation2 + $0x120] sm:$0xff] %vm3667, %v3641
      %3705 = vst.msk [vmem:[#allocation2 + $0x128] sm:$0xff] %vm3667, %v3642
      %3706 = vst.msk [vmem:[#allocation2 + $0x130] sm:$0xff] %vm3667, %v3643
      %3707 = vst.msk [vmem:[#allocation2 + $0x138] sm:$0xff] %vm3667, %v3644
      %3708 = vst.msk [vmem:[#allocation2 + $0x140] sm:$0xff] %vm3667, %v3645
      %3709 = vst.msk [vmem:[#allocation2 + $0x148] sm:$0xff] %vm3667, %v3646
      %3710 = vst.msk [vmem:[#allocation2 + $0x150] sm:$0xff] %vm3667, %v3647
      %3711 = vst.msk [vmem:[#allocation2 + $0x158] sm:$0xff] %vm3667, %v3648
      %3712 = vst.msk [vmem:[#allocation2 + $0x160] sm:$0xff] %vm3667, %v3649
      %3713 = vst.msk [vmem:[#allocation2 + $0x168] sm:$0xff] %vm3667, %v3650
      %3714 = vst.msk [vmem:[#allocation2 + $0x170] sm:$0xff] %vm3667, %v3651
      %3715 = vst.msk [vmem:[#allocation2 + $0x178] sm:$0xff] %vm3667, %v3652
      %3716 = vst.msk [vmem:[#allocation2 + $0x180] sm:$0xff] %vm3667, %v3653
      %3717 = vst.msk [vmem:[#allocation2 + $0x188] sm:$0xff] %vm3667, %v3654
      %3718 = vst.msk [vmem:[#allocation2 + $0x190] sm:$0xff] %vm3667, %v3655
      %3719 = vst.msk [vmem:[#allocation2 + $0x198] sm:$0xff] %vm3667, %v3656
      %3720 = vst.msk [vmem:[#allocation2 + $0x1a0] sm:$0xff] %vm3667, %v3657
      %3721 = vst.msk [vmem:[#allocation2 + $0x1a8] sm:$0xff] %vm3667, %v3658
      %3722 = vst.msk [vmem:[#allocation2 + $0x1b0] sm:$0xff] %vm3667, %v3659
      %3723 = vst.msk [vmem:[#allocation2 + $0x1b8] sm:$0xff] %vm3667, %v3660
      %3724 = vst.msk [vmem:[#allocation2 + $0x1c0] sm:$0xff] %vm3667, %v3661
      %3725 = vst.msk [vmem:[#allocation2 + $0x1c8] sm:$0xff] %vm3667, %v3662
      %3726 = vst.msk [vmem:[#allocation2 + $0x1d0] sm:$0xff] %vm3667, %v3663
      %3727 = vst.msk [vmem:[#allocation2 + $0x1d8] sm:$0xff] %vm3667, %v3664
      %3728 = vst.msk [vmem:[#allocation2 + $0x1e0] sm:$0xff] %vm3667, %v3665
      %vm3729 = vcmask 128000
      %3730 = vst.msk [vmem:[#allocation2 + $0x1e8] sm:$0x3f] %vm3729, %v3666
      %v3731 = vld [vmem:[#allocation2] ss:$2 sm:$0xff]
      %s3732 = scalar_lea.vmem [#allocation2], 16
      %v3733 = vld [vmem:[%s3732] ss:$2 sm:$0xff]
      %s3734 = scalar_lea.vmem [#allocation2], 32
      %v3735 = vld [vmem:[%s3734] ss:$2 sm:$0xff]
      %s3736 = scalar_lea.vmem [#allocation2], 48
      %v3737 = vld [vmem:[%s3736] ss:$2 sm:$0xff]
      %s3738 = scalar_lea.vmem [#allocation2], 64
      %v3739 = vld [vmem:[%s3738] ss:$2 sm:$0xff]
      %s3740 = scalar_lea.vmem [#allocation2], 80
      %v3741 = vld [vmem:[%s3740] ss:$2 sm:$0xff]
      %s3742 = scalar_lea.vmem [#allocation2], 96
      %v3743 = vld [vmem:[%s3742] ss:$2 sm:$0xff]
      %s3744 = scalar_lea.vmem [#allocation2], 112
      %v3745 = vld [vmem:[%s3744] ss:$2 sm:$0xff]
      %s3746 = scalar_lea.vmem [#allocation2], 128
      %v3747 = vld [vmem:[%s3746] ss:$2 sm:$0xff]
      %s3748 = scalar_lea.vmem [#allocation2], 144
      %v3749 = vld [vmem:[%s3748] ss:$2 sm:$0xff]
      %s3750 = scalar_lea.vmem [#allocation2], 160
      %v3751 = vld [vmem:[%s3750] ss:$2 sm:$0xff]
      %s3752 = scalar_lea.vmem [#allocation2], 176
      %v3753 = vld [vmem:[%s3752] ss:$2 sm:$0xff]
      %s3754 = scalar_lea.vmem [#allocation2], 192
      %v3755 = vld [vmem:[%s3754] ss:$2 sm:$0xff]
      %s3756 = scalar_lea.vmem [#allocation2], 208
      %v3757 = vld [vmem:[%s3756] ss:$2 sm:$0xff]
      %s3758 = scalar_lea.vmem [#allocation2], 224
      %v3759 = vld [vmem:[%s3758] ss:$2 sm:$0xff]
      %s3760 = scalar_lea.vmem [#allocation2], 240
      %v3761 = vld [vmem:[%s3760] ss:$2 sm:$0xff]
      %s3762 = scalar_lea.vmem [#allocation2], 256
      %v3763 = vld [vmem:[%s3762] ss:$2 sm:$0xff]
      %s3764 = scalar_lea.vmem [#allocation2], 272
      %v3765 = vld [vmem:[%s3764] ss:$2 sm:$0xff]
      %s3766 = scalar_lea.vmem [#allocation2], 288
      %v3767 = vld [vmem:[%s3766] ss:$2 sm:$0xff]
      %s3768 = scalar_lea.vmem [#allocation2], 304
      %v3769 = vld [vmem:[%s3768] ss:$2 sm:$0xff]
      %s3770 = scalar_lea.vmem [#allocation2], 320
      %v3771 = vld [vmem:[%s3770] ss:$2 sm:$0xff]
      %s3772 = scalar_lea.vmem [#allocation2], 336
      %v3773 = vld [vmem:[%s3772] ss:$2 sm:$0xff]
      %s3774 = scalar_lea.vmem [#allocation2], 352
      %v3775 = vld [vmem:[%s3774] ss:$2 sm:$0xff]
      %s3776 = scalar_lea.vmem [#allocation2], 368
      %v3777 = vld [vmem:[%s3776] ss:$2 sm:$0xff]
      %s3778 = scalar_lea.vmem [#allocation2], 384
      %v3779 = vld [vmem:[%s3778] ss:$2 sm:$0xff]
      %s3780 = scalar_lea.vmem [#allocation2], 400
      %v3781 = vld [vmem:[%s3780] ss:$2 sm:$0xff]
      %s3782 = scalar_lea.vmem [#allocation2], 416
      %v3783 = vld [vmem:[%s3782] ss:$2 sm:$0xff]
      %s3784 = scalar_lea.vmem [#allocation2], 432
      %v3785 = vld [vmem:[%s3784] ss:$2 sm:$0xff]
      %s3786 = scalar_lea.vmem [#allocation2], 448
      %v3787 = vld [vmem:[%s3786] ss:$2 sm:$0xff]
      %s3788 = scalar_lea.vmem [#allocation2], 464
      %v3789 = vld [vmem:[%s3788] ss:$2 sm:$0xff]
      %s3790 = scalar_lea.vmem [#allocation2], 480
      %v3791 = vld [vmem:[%s3790] ss:$2 sm:$0x7f]
      %s3792 = scalar_lea.vmem [#allocation2], 1
      %v3793 = vld [vmem:[%s3792] ss:$2 sm:$0xff]
      %s3794 = scalar_lea.vmem [#allocation2], 17
      %v3795 = vld [vmem:[%s3794] ss:$2 sm:$0xff]
      %s3796 = scalar_lea.vmem [#allocation2], 33
      %v3797 = vld [vmem:[%s3796] ss:$2 sm:$0xff]
      %s3798 = scalar_lea.vmem [#allocation2], 49
      %v3799 = vld [vmem:[%s3798] ss:$2 sm:$0xff]
      %s3800 = scalar_lea.vmem [#allocation2], 65
      %v3801 = vld [vmem:[%s3800] ss:$2 sm:$0xff]
      %s3802 = scalar_lea.vmem [#allocation2], 81
      %v3803 = vld [vmem:[%s3802] ss:$2 sm:$0xff]
      %s3804 = scalar_lea.vmem [#allocation2], 97
      %v3805 = vld [vmem:[%s3804] ss:$2 sm:$0xff]
      %s3806 = scalar_lea.vmem [#allocation2], 113
      %v3807 = vld [vmem:[%s3806] ss:$2 sm:$0xff]
      %s3808 = scalar_lea.vmem [#allocation2], 129
      %v3809 = vld [vmem:[%s3808] ss:$2 sm:$0xff]
      %s3810 = scalar_lea.vmem [#allocation2], 145
      %v3811 = vld [vmem:[%s3810] ss:$2 sm:$0xff]
      %s3812 = scalar_lea.vmem [#allocation2], 161
      %v3813 = vld [vmem:[%s3812] ss:$2 sm:$0xff]
      %s3814 = scalar_lea.vmem [#allocation2], 177
      %v3815 = vld [vmem:[%s3814] ss:$2 sm:$0xff]
      %s3816 = scalar_lea.vmem [#allocation2], 193
      %v3817 = vld [vmem:[%s3816] ss:$2 sm:$0xff]
      %s3818 = scalar_lea.vmem [#allocation2], 209
      %v3819 = vld [vmem:[%s3818] ss:$2 sm:$0xff]
      %s3820 = scalar_lea.vmem [#allocation2], 225
      %v3821 = vld [vmem:[%s3820] ss:$2 sm:$0xff]
      %s3822 = scalar_lea.vmem [#allocation2], 241
      %v3823 = vld [vmem:[%s3822] ss:$2 sm:$0xff]
      %s3824 = scalar_lea.vmem [#allocation2], 257
      %v3825 = vld [vmem:[%s3824] ss:$2 sm:$0xff]
      %s3826 = scalar_lea.vmem [#allocation2], 273
      %v3827 = vld [vmem:[%s3826] ss:$2 sm:$0xff]
      %s3828 = scalar_lea.vmem [#allocation2], 289
      %v3829 = vld [vmem:[%s3828] ss:$2 sm:$0xff]
      %s3830 = scalar_lea.vmem [#allocation2], 305
      %v3831 = vld [vmem:[%s3830] ss:$2 sm:$0xff]
      %s3832 = scalar_lea.vmem [#allocation2], 321
      %v3833 = vld [vmem:[%s3832] ss:$2 sm:$0xff]
      %s3834 = scalar_lea.vmem [#allocation2], 337
      %v3835 = vld [vmem:[%s3834] ss:$2 sm:$0xff]
      %s3836 = scalar_lea.vmem [#allocation2], 353
      %v3837 = vld [vmem:[%s3836] ss:$2 sm:$0xff]
      %s3838 = scalar_lea.vmem [#allocation2], 369
      %v3839 = vld [vmem:[%s3838] ss:$2 sm:$0xff]
      %s3840 = scalar_lea.vmem [#allocation2], 385
      %v3841 = vld [vmem:[%s3840] ss:$2 sm:$0xff]
      %s3842 = scalar_lea.vmem [#allocation2], 401
      %v3843 = vld [vmem:[%s3842] ss:$2 sm:$0xff]
      %s3844 = scalar_lea.vmem [#allocation2], 417
      %v3845 = vld [vmem:[%s3844] ss:$2 sm:$0xff]
      %s3846 = scalar_lea.vmem [#allocation2], 433
      %v3847 = vld [vmem:[%s3846] ss:$2 sm:$0xff]
      %s3848 = scalar_lea.vmem [#allocation2], 449
      %v3849 = vld [vmem:[%s3848] ss:$2 sm:$0xff]
      %s3850 = scalar_lea.vmem [#allocation2], 465
      %v3851 = vld [vmem:[%s3850] ss:$2 sm:$0xff]
      %s3852 = scalar_lea.vmem [#allocation2], 481
      %v3853 = vld [vmem:[%s3852] ss:$2 sm:$0x7f]
      %v3854 = vmax.f32 %v3731, %v3793
      %v3855 = vmax.f32 %v3733, %v3795
      %v3856 = vmax.f32 %v3735, %v3797
      %v3857 = vmax.f32 %v3737, %v3799
      %v3858 = vmax.f32 %v3739, %v3801
      %v3859 = vmax.f32 %v3741, %v3803
      %v3860 = vmax.f32 %v3743, %v3805
      %v3861 = vmax.f32 %v3745, %v3807
      %v3862 = vmax.f32 %v3747, %v3809
      %v3863 = vmax.f32 %v3749, %v3811
      %v3864 = vmax.f32 %v3751, %v3813
      %v3865 = vmax.f32 %v3753, %v3815
      %v3866 = vmax.f32 %v3755, %v3817
      %v3867 = vmax.f32 %v3757, %v3819
      %v3868 = vmax.f32 %v3759, %v3821
      %v3869 = vmax.f32 %v3761, %v3823
      %v3870 = vmax.f32 %v3763, %v3825
      %v3871 = vmax.f32 %v3765, %v3827
      %v3872 = vmax.f32 %v3767, %v3829
      %v3873 = vmax.f32 %v3769, %v3831
      %v3874 = vmax.f32 %v3771, %v3833
      %v3875 = vmax.f32 %v3773, %v3835
      %v3876 = vmax.f32 %v3775, %v3837
      %v3877 = vmax.f32 %v3777, %v3839
      %v3878 = vmax.f32 %v3779, %v3841
      %v3879 = vmax.f32 %v3781, %v3843
      %v3880 = vmax.f32 %v3783, %v3845
      %v3881 = vmax.f32 %v3785, %v3847
      %v3882 = vmax.f32 %v3787, %v3849
      %v3883 = vmax.f32 %v3789, %v3851
      %v3884 = vmax.f32 %v3791, %v3853
      %v3885 = vpack.c.bf16 %v3855, %v3854
      %v3886 = vpack.c.bf16 %v3857, %v3856
      %v3887 = vpack.c.bf16 %v3859, %v3858
      %v3888 = vpack.c.bf16 %v3861, %v3860
      %v3889 = vpack.c.bf16 %v3863, %v3862
      %v3890 = vpack.c.bf16 %v3865, %v3864
      %v3891 = vpack.c.bf16 %v3867, %v3866
      %v3892 = vpack.c.bf16 %v3869, %v3868
      %v3893 = vpack.c.bf16 %v3871, %v3870
      %v3894 = vpack.c.bf16 %v3873, %v3872
      %v3895 = vpack.c.bf16 %v3875, %v3874
      %v3896 = vpack.c.bf16 %v3877, %v3876
      %v3897 = vpack.c.bf16 %v3879, %v3878
      %v3898 = vpack.c.bf16 %v3881, %v3880
      %v3899 = vpack.c.bf16 %v3883, %v3882
      %v3900 = vpack.c.bf16 %v3884, %v3884
      %v3901 = vld [vmem:[%s3] sm:$0xf]
      %v3902 = vld [vmem:[%s3 + $0x4] sm:$0xf]
      %s3903 = scalar_lea.vmem %s3, 8
      %v3904 = vld [vmem:[%s3903] sm:$0xf]
      %v3905 = vld [vmem:[%s3903 + $0x4] sm:$0xf]
      %v3907 = vshrl.u32 %v3885, 16
      %v3909 = vshll.u32 %v3885, 16
      %v3911 = vrot.slane %v3909, 1
      %v3912 = vor.u32 %v3907, %v3911
      %v3914 = vshll.u32 %v3886, 16
      %v3916 = vrot.slane %v3914, 1
      %v3917 = vsel %vm377, %v3912, %v3916
      %v3918 = vshrl.u32 %v3886, 16
      %v3920 = vor.u32 %v3918, %v3916
      %v3922 = vshll.u32 %v3887, 16
      %v3924 = vrot.slane %v3922, 1
      %v3925 = vsel %vm377, %v3920, %v3924
      %v3926 = vshrl.u32 %v3887, 16
      %v3928 = vor.u32 %v3926, %v3924
      %v3930 = vshll.u32 %v3888, 16
      %v3932 = vrot.slane %v3930, 1
      %v3933 = vsel %vm377, %v3928, %v3932
      %v3934 = vshrl.u32 %v3888, 16
      %v3936 = vor.u32 %v3934, %v3932
      %v3938 = vshll.u32 %v3889, 16
      %v3940 = vrot.slane %v3938, 1
      %v3941 = vsel %vm377, %v3936, %v3940
      %v3942 = vshrl.u32 %v3889, 16
      %v3944 = vor.u32 %v3942, %v3940
      %v3946 = vshll.u32 %v3890, 16
      %v3948 = vrot.slane %v3946, 1
      %v3949 = vsel %vm377, %v3944, %v3948
      %v3950 = vshrl.u32 %v3890, 16
      %v3952 = vor.u32 %v3950, %v3948
      %v3954 = vshll.u32 %v3891, 16
      %v3956 = vrot.slane %v3954, 1
      %v3957 = vsel %vm377, %v3952, %v3956
      %v3958 = vshrl.u32 %v3891, 16
      %v3960 = vor.u32 %v3958, %v3956
      %v3962 = vshll.u32 %v3892, 16
      %v3964 = vrot.slane %v3962, 1
      %v3965 = vsel %vm377, %v3960, %v3964
      %v3966 = vshrl.u32 %v3892, 16
      %v3968 = vor.u32 %v3966, %v3964
      %v3970 = vshll.u32 %v3893, 16
      %v3972 = vrot.slane %v3970, 1
      %v3973 = vsel %vm377, %v3968, %v3972
      %v3974 = vshrl.u32 %v3893, 16
      %v3976 = vor.u32 %v3974, %v3972
      %v3978 = vshll.u32 %v3894, 16
      %v3980 = vrot.slane %v3978, 1
      %v3981 = vsel %vm377, %v3976, %v3980
      %v3982 = vshrl.u32 %v3894, 16
      %v3984 = vor.u32 %v3982, %v3980
      %v3986 = vshll.u32 %v3895, 16
      %v3988 = vrot.slane %v3986, 1
      %v3989 = vsel %vm377, %v3984, %v3988
      %v3990 = vshrl.u32 %v3895, 16
      %v3992 = vor.u32 %v3990, %v3988
      %v3994 = vshll.u32 %v3896, 16
      %v3996 = vrot.slane %v3994, 1
      %v3997 = vsel %vm377, %v3992, %v3996
      %v3998 = vshrl.u32 %v3896, 16
      %v4000 = vor.u32 %v3998, %v3996
      %v4002 = vshll.u32 %v3897, 16
      %v4004 = vrot.slane %v4002, 1
      %v4005 = vsel %vm377, %v4000, %v4004
      %v4006 = vshrl.u32 %v3897, 16
      %v4008 = vor.u32 %v4006, %v4004
      %v4010 = vshll.u32 %v3898, 16
      %v4012 = vrot.slane %v4010, 1
      %v4013 = vsel %vm377, %v4008, %v4012
      %v4014 = vshrl.u32 %v3898, 16
      %v4016 = vor.u32 %v4014, %v4012
      %v4018 = vshll.u32 %v3899, 16
      %v4020 = vrot.slane %v4018, 1
      %v4021 = vsel %vm377, %v4016, %v4020
      %v4022 = vshrl.u32 %v3899, 16
      %v4024 = vor.u32 %v4022, %v4020
      %v4026 = vshll.u32 %v3900, 16
      %v4028 = vrot.slane %v4026, 1
      %v4029 = vsel %vm377, %v4024, %v4028
      %v4030 = vshrl.u32 %v3900, 16
      %v4032 = vor.u32 %v4030, %v4028
      %v4035 = vunpack.c.l.b16 %v3904
      %v4036 = vunpack.c.l.b16 %v3905
      %v4037 = vpack.c.b16 %v4036, %v4035
      %v4040 = vsel %vm3667, %v3917, 0
      %v4043 = vsel %vm3667, %v3925, 0
      %v4046 = vsel %vm3667, %v3933, 0
      %v4049 = vsel %vm3667, %v3941, 0
      %v4052 = vsel %vm3667, %v3949, 0
      %v4055 = vsel %vm3667, %v3957, 0
      %v4058 = vsel %vm3667, %v3965, 0
      %v4061 = vsel %vm3667, %v3973, 0
      %v4064 = vsel %vm3667, %v3981, 0
      %v4067 = vsel %vm3667, %v3989, 0
      %v4070 = vsel %vm3667, %v3997, 0
      %v4073 = vsel %vm3667, %v4005, 0
      %v4076 = vsel %vm3667, %v4013, 0
      %v4079 = vsel %vm3667, %v4021, 0
      %v4082 = vsel %vm3667, %v4029, 0
      %v4085 = vsel %vm3667, %v4032, 0
      %4087 = vmatprep.subr.bf16.mxu0 0
      %4088 = vmatpush1.bf16.msra.mxu0 %v4037
      %4089 = vmatprep.subr.bf16.mxu0 0
      %4090 = vmatpush1.bf16.msra.mxu0 0
      %4091 = vmatprep.subr.bf16.mxu0 0
      %4092 = vmatpush1.bf16.msra.mxu0 0
      %4093 = vmatprep.subr.bf16.mxu0 0
      %4094 = vmatpush1.bf16.msra.mxu0 0
      %4095 = vmatprep.subr.bf16.mxu0 0
      %4096 = vmatpush1.bf16.msra.mxu0 0
      %4097 = vmatprep.subr.bf16.mxu0 0
      %4098 = vmatpush1.bf16.msra.mxu0 0
      %4099 = vmatprep.subr.bf16.mxu0 0
      %4100 = vmatpush1.bf16.msra.mxu0 0
      %4101 = vmatprep.subr.bf16.mxu0 0
      %4102 = vmatpush1.bf16.msra.mxu0 0
      %4103 = vmatprep.subr.bf16.mxu0 0
      %4104 = vmatpush1.bf16.msra.mxu0 0
      %4105 = vmatprep.subr.bf16.mxu0 0
      %4106 = vmatpush1.bf16.msra.mxu0 0
      %4107 = vmatprep.subr.bf16.mxu0 0
      %4108 = vmatpush1.bf16.msra.mxu0 0
      %4109 = vmatprep.subr.bf16.mxu0 0
      %4110 = vmatpush1.bf16.msra.mxu0 0
      %4111 = vmatprep.subr.bf16.mxu0 0
      %4112 = vmatpush1.bf16.msra.mxu0 0
      %4113 = vmatprep.subr.bf16.mxu0 0
      %4114 = vmatpush1.bf16.msra.mxu0 0
      %4115 = vmatprep.subr.bf16.mxu0 0
      %4116 = vmatpush1.bf16.msra.mxu0 0
      %4117 = vmatprep.subr.bf16.mxu0 0
      %4118 = vmatpush1.bf16.msra.mxu0 0
      %4119 = vmatprep.mubr.bf16.mxu0 0
      %4120 = vmatmul.mubr.bf16.gmra.mrb[0].mxu0 %v4040
      %v4121 = vpop.f32.mrb[0].mxu0
      %v4122 = vadd.f32 0.0, %v4121
      %v4123 = vpop.f32.mrb[0].mxu0
      %v4124 = vpop.f32.mrb[0].mxu0
      %v4125 = vadd.f32 0.0, %v4124
      %v4126 = vpop.f32.mrb[0].mxu0
      %4127 = vmatprep.mubr.bf16.mxu0 0
      %4128 = vmatmul.mubr.bf16.gmra.mrb[0].mxu0 %v4043
      %v4129 = vpop.f32.mrb[0].mxu0
      %v4130 = vadd.f32 0.0, %v4129
      %v4131 = vpop.f32.mrb[0].mxu0
      %v4132 = vpop.f32.mrb[0].mxu0
      %v4133 = vadd.f32 0.0, %v4132
      %v4134 = vpop.f32.mrb[0].mxu0
      %4135 = vmatprep.mubr.bf16.mxu0 0
      %4136 = vmatmul.mubr.bf16.gmra.mrb[0].mxu0 %v4046
      %v4137 = vpop.f32.mrb[0].mxu0
      %v4138 = vadd.f32 0.0, %v4137
      %v4139 = vpop.f32.mrb[0].mxu0
      %v4140 = vpop.f32.mrb[0].mxu0
      %v4141 = vadd.f32 0.0, %v4140
      %v4142 = vpop.f32.mrb[0].mxu0
      %4143 = vmatprep.mubr.bf16.mxu0 0
      %4144 = vmatmul.mubr.bf16.gmra.mrb[0].mxu0 %v4049
      %v4145 = vpop.f32.mrb[0].mxu0
      %v4146 = vadd.f32 0.0, %v4145
      %v4147 = vpop.f32.mrb[0].mxu0
      %v4148 = vpop.f32.mrb[0].mxu0
      %v4149 = vadd.f32 0.0, %v4148
      %v4150 = vpop.f32.mrb[0].mxu0
      %4151 = vmatprep.mubr.bf16.mxu0 0
      %4152 = vmatmul.mubr.bf16.gmra.mrb[0].mxu0 %v4052
      %v4153 = vpop.f32.mrb[0].mxu0
      %v4154 = vadd.f32 0.0, %v4153
      %v4155 = vpop.f32.mrb[0].mxu0
      %v4156 = vpop.f32.mrb[0].mxu0
      %v4157 = vadd.f32 0.0, %v4156
      %v4158 = vpop.f32.mrb[0].mxu0
      %4159 = vmatprep.mubr.bf16.mxu0 0
      %4160 = vmatmul.mubr.bf16.gmra.mrb[0].mxu0 %v4055
      %v4161 = vpop.f32.mrb[0].mxu0
      %v4162 = vadd.f32 0.0, %v4161
      %v4163 = vpop.f32.mrb[0].mxu0
      %v4164 = vpop.f32.mrb[0].mxu0
      %v4165 = vadd.f32 0.0, %v4164
      %v4166 = vpop.f32.mrb[0].mxu0
      %4167 = vmatprep.mubr.bf16.mxu0 0
      %4168 = vmatmul.mubr.bf16.gmra.mrb[0].mxu0 %v4058
      %v4169 = vpop.f32.mrb[0].mxu0
      %v4170 = vadd.f32 0.0, %v4169
      %v4171 = vpop.f32.mrb[0].mxu0
      %v4172 = vpop.f32.mrb[0].mxu0
      %v4173 = vadd.f32 0.0, %v4172
      %v4174 = vpop.f32.mrb[0].mxu0
      %4175 = vmatprep.mubr.bf16.mxu0 0
      %4176 = vmatmul.mubr.bf16.gmra.mrb[0].mxu0 %v4061
      %v4177 = vpop.f32.mrb[0].mxu0
      %v4178 = vadd.f32 0.0, %v4177
      %v4179 = vpop.f32.mrb[0].mxu0
      %v4180 = vpop.f32.mrb[0].mxu0
      %v4181 = vadd.f32 0.0, %v4180
      %v4182 = vpop.f32.mrb[0].mxu0
      %4183 = vmatprep.mubr.bf16.mxu0 0
      %4184 = vmatmul.mubr.bf16.gmra.mrb[0].mxu0 %v4064
      %v4185 = vpop.f32.mrb[0].mxu0
      %v4186 = vadd.f32 0.0, %v4185
      %v4187 = vpop.f32.mrb[0].mxu0
      %v4188 = vpop.f32.mrb[0].mxu0
      %v4189 = vadd.f32 0.0, %v4188
      %v4190 = vpop.f32.mrb[0].mxu0
      %4191 = vmatprep.mubr.bf16.mxu0 0
      %4192 = vmatmul.mubr.bf16.gmra.mrb[0].mxu0 %v4067
      %v4193 = vpop.f32.mrb[0].mxu0
      %v4194 = vadd.f32 0.0, %v4193
      %v4195 = vpop.f32.mrb[0].mxu0
      %v4196 = vpop.f32.mrb[0].mxu0
      %v4197 = vadd.f32 0.0, %v4196
      %v4198 = vpop.f32.mrb[0].mxu0
      %4199 = vmatprep.mubr.bf16.mxu0 0
      %4200 = vmatmul.mubr.bf16.gmra.mrb[0].mxu0 %v4070
      %v4201 = vpop.f32.mrb[0].mxu0
      %v4202 = vadd.f32 0.0, %v4201
      %v4203 = vpop.f32.mrb[0].mxu0
      %v4204 = vpop.f32.mrb[0].mxu0
      %v4205 = vadd.f32 0.0, %v4204
      %v4206 = vpop.f32.mrb[0].mxu0
      %4207 = vmatprep.mubr.bf16.mxu0 0
      %4208 = vmatmul.mubr.bf16.gmra.mrb[0].mxu0 %v4073
      %v4209 = vpop.f32.mrb[0].mxu0
      %v4210 = vadd.f32 0.0, %v4209
      %v4211 = vpop.f32.mrb[0].mxu0
      %v4212 = vpop.f32.mrb[0].mxu0
      %v4213 = vadd.f32 0.0, %v4212
      %v4214 = vpop.f32.mrb[0].mxu0
      %4215 = vmatprep.mubr.bf16.mxu0 0
      %4216 = vmatmul.mubr.bf16.gmra.mrb[0].mxu0 %v4076
      %v4217 = vpop.f32.mrb[0].mxu0
      %v4218 = vadd.f32 0.0, %v4217
      %v4219 = vpop.f32.mrb[0].mxu0
      %v4220 = vpop.f32.mrb[0].mxu0
      %v4221 = vadd.f32 0.0, %v4220
      %v4222 = vpop.f32.mrb[0].mxu0
      %4223 = vmatprep.mubr.bf16.mxu0 0
      %4224 = vmatmul.mubr.bf16.gmra.mrb[0].mxu0 %v4079
      %v4225 = vpop.f32.mrb[0].mxu0
      %v4226 = vadd.f32 0.0, %v4225
      %v4227 = vpop.f32.mrb[0].mxu0
      %v4228 = vpop.f32.mrb[0].mxu0
      %v4229 = vadd.f32 0.0, %v4228
      %v4230 = vpop.f32.mrb[0].mxu0
      %4231 = vmatprep.mubr.bf16.mxu0 0
      %4232 = vmatmul.mubr.bf16.gmra.mrb[0].mxu0 %v4082
      %v4233 = vpop.f32.mrb[0].mxu0
      %v4234 = vadd.f32 0.0, %v4233
      %v4235 = vpop.f32.mrb[0].mxu0
      %v4236 = vpop.f32.mrb[0].mxu0
      %v4237 = vadd.f32 0.0, %v4236
      %v4238 = vpop.f32.mrb[0].mxu0
      %4239 = vmatprep.mubr.bf16.mxu0 0
      %4240 = vmatmul.mubr.bf16.gmra.mrb[0].mxu0 %v4085
      %v4241 = vpop.f32.mrb[0].mxu0
      %v4242 = vadd.f32 0.0, %v4241
      %v4243 = vpop.f32.mrb[0].mxu0
      %v4244 = vpop.f32.mrb[0].mxu0
      %v4245 = vpop.f32.mrb[0].mxu0
      %4246 = vdwg.mxu0
      %v4249 = vunpack.c.l.b16 %v3901
      %v4250 = vunpack.c.l.b16 %v3902
      %v4251 = vpack.c.b16 %v4250, %v4249
      %v4253 = vsel %vm3667, %v3885, 0
      %v4255 = vsel %vm3667, %v3886, 0
      %v4257 = vsel %vm3667, %v3887, 0
      %v4259 = vsel %vm3667, %v3888, 0
      %v4261 = vsel %vm3667, %v3889, 0
      %v4263 = vsel %vm3667, %v3890, 0
      %v4265 = vsel %vm3667, %v3891, 0
      %v4267 = vsel %vm3667, %v3892, 0
      %v4269 = vsel %vm3667, %v3893, 0
      %v4271 = vsel %vm3667, %v3894, 0
      %v4273 = vsel %vm3667, %v3895, 0
      %v4275 = vsel %vm3667, %v3896, 0
      %v4277 = vsel %vm3667, %v3897, 0
      %v4279 = vsel %vm3667, %v3898, 0
      %v4281 = vsel %vm3667, %v3899, 0
      %v4283 = vsel %vm3667, %v3900, 0
      %4285 = vmatprep.subr.bf16.mxu0 0
      %4286 = vmatpush1.bf16.msra.mxu0 %v4251
      %4287 = vmatprep.subr.bf16.mxu0 0
      %4288 = vmatpush1.bf16.msra.mxu0 0
      %4289 = vmatprep.subr.bf16.mxu0 0
      %4290 = vmatpush1.bf16.msra.mxu0 0
      %4291 = vmatprep.subr.bf16.mxu0 0
      %4292 = vmatpush1.bf16.msra.mxu0 0
      %4293 = vmatprep.subr.bf16.mxu0 0
      %4294 = vmatpush1.bf16.msra.mxu0 0
      %4295 = vmatprep.subr.bf16.mxu0 0
      %4296 = vmatpush1.bf16.msra.mxu0 0
      %4297 = vmatprep.subr.bf16.mxu0 0
      %4298 = vmatpush1.bf16.msra.mxu0 0
      %4299 = vmatprep.subr.bf16.mxu0 0
      %4300 = vmatpush1.bf16.msra.mxu0 0
      %4301 = vmatprep.subr.bf16.mxu0 0
      %4302 = vmatpush1.bf16.msra.mxu0 0
      %4303 = vmatprep.subr.bf16.mxu0 0
      %4304 = vmatpush1.bf16.msra.mxu0 0
      %4305 = vmatprep.subr.bf16.mxu0 0
      %4306 = vmatpush1.bf16.msra.mxu0 0
      %4307 = vmatprep.subr.bf16.mxu0 0
      %4308 = vmatpush1.bf16.msra.mxu0 0
      %4309 = vmatprep.subr.bf16.mxu0 0
      %4310 = vmatpush1.bf16.msra.mxu0 0
      %4311 = vmatprep.subr.bf16.mxu0 0
      %4312 = vmatpush1.bf16.msra.mxu0 0
      %4313 = vmatprep.subr.bf16.mxu0 0
      %4314 = vmatpush1.bf16.msra.mxu0 0
      %4315 = vmatprep.subr.bf16.mxu0 0
      %4316 = vmatpush1.bf16.msra.mxu0 0
      %4317 = vmatprep.mubr.bf16.mxu0 0
      %4318 = vmatmul.mubr.bf16.gmra.mrb[0].mxu0 %v4253
      %v4319 = vpop.f32.mrb[0].mxu0
      %v4320 = vadd.f32 %v4122, %v4319
      %v4321 = vpop.f32.mrb[0].mxu0
      %v4322 = vpop.f32.mrb[0].mxu0
      %v4323 = vadd.f32 %v4125, %v4322
      %v4324 = vpop.f32.mrb[0].mxu0
      %4325 = vmatprep.mubr.bf16.mxu0 0
      %4326 = vmatmul.mubr.bf16.gmra.mrb[0].mxu0 %v4255
      %v4327 = vpop.f32.mrb[0].mxu0
      %v4328 = vadd.f32 %v4130, %v4327
      %v4329 = vpop.f32.mrb[0].mxu0
      %v4330 = vpop.f32.mrb[0].mxu0
      %v4331 = vadd.f32 %v4133, %v4330
      %v4332 = vpop.f32.mrb[0].mxu0
      %4333 = vmatprep.mubr.bf16.mxu0 0
      %4334 = vmatmul.mubr.bf16.gmra.mrb[0].mxu0 %v4257
      %v4335 = vpop.f32.mrb[0].mxu0
      %v4336 = vadd.f32 %v4138, %v4335
      %v4337 = vpop.f32.mrb[0].mxu0
      %v4338 = vpop.f32.mrb[0].mxu0
      %v4339 = vadd.f32 %v4141, %v4338
      %v4340 = vpop.f32.mrb[0].mxu0
      %4341 = vmatprep.mubr.bf16.mxu0 0
      %4342 = vmatmul.mubr.bf16.gmra.mrb[0].mxu0 %v4259
      %v4343 = vpop.f32.mrb[0].mxu0
      %v4344 = vadd.f32 %v4146, %v4343
      %v4345 = vpop.f32.mrb[0].mxu0
      %v4346 = vpop.f32.mrb[0].mxu0
      %v4347 = vadd.f32 %v4149, %v4346
      %v4348 = vpop.f32.mrb[0].mxu0
      %4349 = vmatprep.mubr.bf16.mxu0 0
      %4350 = vmatmul.mubr.bf16.gmra.mrb[0].mxu0 %v4261
      %v4351 = vpop.f32.mrb[0].mxu0
      %v4352 = vadd.f32 %v4154, %v4351
      %v4353 = vpop.f32.mrb[0].mxu0
      %v4354 = vpop.f32.mrb[0].mxu0
      %v4355 = vadd.f32 %v4157, %v4354
      %v4356 = vpop.f32.mrb[0].mxu0
      %4357 = vmatprep.mubr.bf16.mxu0 0
      %4358 = vmatmul.mubr.bf16.gmra.mrb[0].mxu0 %v4263
      %v4359 = vpop.f32.mrb[0].mxu0
      %v4360 = vadd.f32 %v4162, %v4359
      %v4361 = vpop.f32.mrb[0].mxu0
      %v4362 = vpop.f32.mrb[0].mxu0
      %v4363 = vadd.f32 %v4165, %v4362
      %v4364 = vpop.f32.mrb[0].mxu0
      %4365 = vmatprep.mubr.bf16.mxu0 0
      %4366 = vmatmul.mubr.bf16.gmra.mrb[0].mxu0 %v4265
      %v4367 = vpop.f32.mrb[0].mxu0
      %v4368 = vadd.f32 %v4170, %v4367
      %v4369 = vpop.f32.mrb[0].mxu0
      %v4370 = vpop.f32.mrb[0].mxu0
      %v4371 = vadd.f32 %v4173, %v4370
      %v4372 = vpop.f32.mrb[0].mxu0
      %4373 = vmatprep.mubr.bf16.mxu0 0
      %4374 = vmatmul.mubr.bf16.gmra.mrb[0].mxu0 %v4267
      %v4375 = vpop.f32.mrb[0].mxu0
      %v4376 = vadd.f32 %v4178, %v4375
      %v4377 = vpop.f32.mrb[0].mxu0
      %v4378 = vpop.f32.mrb[0].mxu0
      %v4379 = vadd.f32 %v4181, %v4378
      %v4380 = vpop.f32.mrb[0].mxu0
      %4381 = vmatprep.mubr.bf16.mxu0 0
      %4382 = vmatmul.mubr.bf16.gmra.mrb[0].mxu0 %v4269
      %v4383 = vpop.f32.mrb[0].mxu0
      %v4384 = vadd.f32 %v4186, %v4383
      %v4385 = vpop.f32.mrb[0].mxu0
      %v4386 = vpop.f32.mrb[0].mxu0
      %v4387 = vadd.f32 %v4189, %v4386
      %v4388 = vpop.f32.mrb[0].mxu0
      %4389 = vmatprep.mubr.bf16.mxu0 0
      %4390 = vmatmul.mubr.bf16.gmra.mrb[0].mxu0 %v4271
      %v4391 = vpop.f32.mrb[0].mxu0
      %v4392 = vadd.f32 %v4194, %v4391
      %v4393 = vpop.f32.mrb[0].mxu0
      %v4394 = vpop.f32.mrb[0].mxu0
      %v4395 = vadd.f32 %v4197, %v4394
      %v4396 = vpop.f32.mrb[0].mxu0
      %4397 = vmatprep.mubr.bf16.mxu0 0
      %4398 = vmatmul.mubr.bf16.gmra.mrb[0].mxu0 %v4273
      %v4399 = vpop.f32.mrb[0].mxu0
      %v4400 = vadd.f32 %v4202, %v4399
      %v4401 = vpop.f32.mrb[0].mxu0
      %v4402 = vpop.f32.mrb[0].mxu0
      %v4403 = vadd.f32 %v4205, %v4402
      %v4404 = vpop.f32.mrb[0].mxu0
      %4405 = vmatprep.mubr.bf16.mxu0 0
      %4406 = vmatmul.mubr.bf16.gmra.mrb[0].mxu0 %v4275
      %v4407 = vpop.f32.mrb[0].mxu0
      %v4408 = vadd.f32 %v4210, %v4407
      %v4409 = vpop.f32.mrb[0].mxu0
      %v4410 = vpop.f32.mrb[0].mxu0
      %v4411 = vadd.f32 %v4213, %v4410
      %v4412 = vpop.f32.mrb[0].mxu0
      %4413 = vmatprep.mubr.bf16.mxu0 0
      %4414 = vmatmul.mubr.bf16.gmra.mrb[0].mxu0 %v4277
      %v4415 = vpop.f32.mrb[0].mxu0
      %v4416 = vadd.f32 %v4218, %v4415
      %v4417 = vpop.f32.mrb[0].mxu0
      %v4418 = vpop.f32.mrb[0].mxu0
      %v4419 = vadd.f32 %v4221, %v4418
      %v4420 = vpop.f32.mrb[0].mxu0
      %4421 = vmatprep.mubr.bf16.mxu0 0
      %4422 = vmatmul.mubr.bf16.gmra.mrb[0].mxu0 %v4279
      %v4423 = vpop.f32.mrb[0].mxu0
      %v4424 = vadd.f32 %v4226, %v4423
      %v4425 = vpop.f32.mrb[0].mxu0
      %v4426 = vpop.f32.mrb[0].mxu0
      %v4427 = vadd.f32 %v4229, %v4426
      %v4428 = vpop.f32.mrb[0].mxu0
      %4429 = vmatprep.mubr.bf16.mxu0 0
      %4430 = vmatmul.mubr.bf16.gmra.mrb[0].mxu0 %v4281
      %v4431 = vpop.f32.mrb[0].mxu0
      %v4432 = vadd.f32 %v4234, %v4431
      %v4433 = vpop.f32.mrb[0].mxu0
      %v4434 = vpop.f32.mrb[0].mxu0
      %v4435 = vadd.f32 %v4237, %v4434
      %v4436 = vpop.f32.mrb[0].mxu0
      %4437 = vmatprep.mubr.bf16.mxu0 0
      %4438 = vmatmul.mubr.bf16.gmra.mrb[0].mxu0 %v4283
      %v4439 = vpop.f32.mrb[0].mxu0
      %v4440 = vadd.f32 %v4242, %v4439
      %v4441 = vpop.f32.mrb[0].mxu0
      %v4442 = vpop.f32.mrb[0].mxu0
      %v4443 = vpop.f32.mrb[0].mxu0
      %4444 = vdwg.mxu0
      %s4445 = scalar_lea.vmem %s3, 16
      %v4446 = vld [vmem:[%s4445] sm:$0xf]
      %v4447 = vld [vmem:[%s4445 + $0x4] sm:$0xf]
      %v4464 = vrot.slane %v3885, 1
      %v4465 = vrot.slane %v3886, 1
      %v4466 = vsel %vm1385, %v4464, %v4465
      %v4467 = vrot.slane %v3887, 1
      %v4468 = vsel %vm1385, %v4465, %v4467
      %v4469 = vrot.slane %v3888, 1
      %v4470 = vsel %vm1385, %v4467, %v4469
      %v4471 = vrot.slane %v3889, 1
      %v4472 = vsel %vm1385, %v4469, %v4471
      %v4473 = vrot.slane %v3890, 1
      %v4474 = vsel %vm1385, %v4471, %v4473
      %v4475 = vrot.slane %v3891, 1
      %v4476 = vsel %vm1385, %v4473, %v4475
      %v4477 = vrot.slane %v3892, 1
      %v4478 = vsel %vm1385, %v4475, %v4477
      %v4479 = vrot.slane %v3893, 1
      %v4480 = vsel %vm1385, %v4477, %v4479
      %v4481 = vrot.slane %v3894, 1
      %v4482 = vsel %vm1385, %v4479, %v4481
      %v4483 = vrot.slane %v3895, 1
      %v4484 = vsel %vm1385, %v4481, %v4483
      %v4485 = vrot.slane %v3896, 1
      %v4486 = vsel %vm1385, %v4483, %v4485
      %v4487 = vrot.slane %v3897, 1
      %v4488 = vsel %vm1385, %v4485, %v4487
      %v4489 = vrot.slane %v3898, 1
      %v4490 = vsel %vm1385, %v4487, %v4489
      %v4491 = vrot.slane %v3899, 1
      %v4492 = vsel %vm1385, %v4489, %v4491
      %v4493 = vrot.slane %v3900, 1
      %v4494 = vsel %vm1385, %v4491, %v4493
      %v4497 = vunpack.c.l.b16 %v4446
      %v4498 = vunpack.c.l.b16 %v4447
      %v4499 = vpack.c.b16 %v4498, %v4497
      %v4502 = vsel %vm3667, %v4466, 0
      %v4505 = vsel %vm3667, %v4468, 0
      %v4508 = vsel %vm3667, %v4470, 0
      %v4511 = vsel %vm3667, %v4472, 0
      %v4514 = vsel %vm3667, %v4474, 0
      %v4517 = vsel %vm3667, %v4476, 0
      %v4520 = vsel %vm3667, %v4478, 0
      %v4523 = vsel %vm3667, %v4480, 0
      %v4526 = vsel %vm3667, %v4482, 0
      %v4529 = vsel %vm3667, %v4484, 0
      %v4532 = vsel %vm3667, %v4486, 0
      %v4535 = vsel %vm3667, %v4488, 0
      %v4538 = vsel %vm3667, %v4490, 0
      %v4541 = vsel %vm3667, %v4492, 0
      %v4544 = vsel %vm3667, %v4494, 0
      %v4547 = vsel %vm3667, %v4493, 0
      %4549 = vmatprep.subr.bf16.mxu0 0
      %4550 = vmatpush1.bf16.msra.mxu0 %v4499
      %4551 = vmatprep.subr.bf16.mxu0 0
      %4552 = vmatpush1.bf16.msra.mxu0 0
      %4553 = vmatprep.subr.bf16.mxu0 0
      %4554 = vmatpush1.bf16.msra.mxu0 0
      %4555 = vmatprep.subr.bf16.mxu0 0
      %4556 = vmatpush1.bf16.msra.mxu0 0
      %4557 = vmatprep.subr.bf16.mxu0 0
      %4558 = vmatpush1.bf16.msra.mxu0 0
      %4559 = vmatprep.subr.bf16.mxu0 0
      %4560 = vmatpush1.bf16.msra.mxu0 0
      %4561 = vmatprep.subr.bf16.mxu0 0
      %4562 = vmatpush1.bf16.msra.mxu0 0
      %4563 = vmatprep.subr.bf16.mxu0 0
      %4564 = vmatpush1.bf16.msra.mxu0 0
      %4565 = vmatprep.subr.bf16.mxu0 0
      %4566 = vmatpush1.bf16.msra.mxu0 0
      %4567 = vmatprep.subr.bf16.mxu0 0
      %4568 = vmatpush1.bf16.msra.mxu0 0
      %4569 = vmatprep.subr.bf16.mxu0 0
      %4570 = vmatpush1.bf16.msra.mxu0 0
      %4571 = vmatprep.subr.bf16.mxu0 0
      %4572 = vmatpush1.bf16.msra.mxu0 0
      %4573 = vmatprep.subr.bf16.mxu0 0
      %4574 = vmatpush1.bf16.msra.mxu0 0
      %4575 = vmatprep.subr.bf16.mxu0 0
      %4576 = vmatpush1.bf16.msra.mxu0 0
      %4577 = vmatprep.subr.bf16.mxu0 0
      %4578 = vmatpush1.bf16.msra.mxu0 0
      %4579 = vmatprep.subr.bf16.mxu0 0
      %4580 = vmatpush1.bf16.msra.mxu0 0
      %4581 = vmatprep.mubr.bf16.mxu0 0
      %4582 = vmatmul.mubr.bf16.gmra.mrb[0].mxu0 %v4502
      %v4583 = vpop.f32.mrb[0].mxu0
      %v4584 = vadd.f32 0.0, %v4583
      %v4585 = vpop.f32.mrb[0].mxu0
      %v4586 = vpop.f32.mrb[0].mxu0
      %v4587 = vadd.f32 0.0, %v4586
      %v4588 = vpop.f32.mrb[0].mxu0
      %4589 = vmatprep.mubr.bf16.mxu0 0
      %4590 = vmatmul.mubr.bf16.gmra.mrb[0].mxu0 %v4505
      %v4591 = vpop.f32.mrb[0].mxu0
      %v4592 = vadd.f32 0.0, %v4591
      %v4593 = vpop.f32.mrb[0].mxu0
      %v4594 = vpop.f32.mrb[0].mxu0
      %v4595 = vadd.f32 0.0, %v4594
      %v4596 = vpop.f32.mrb[0].mxu0
      %4597 = vmatprep.mubr.bf16.mxu0 0
      %4598 = vmatmul.mubr.bf16.gmra.mrb[0].mxu0 %v4508
      %v4599 = vpop.f32.mrb[0].mxu0
      %v4600 = vadd.f32 0.0, %v4599
      %v4601 = vpop.f32.mrb[0].mxu0
      %v4602 = vpop.f32.mrb[0].mxu0
      %v4603 = vadd.f32 0.0, %v4602
      %v4604 = vpop.f32.mrb[0].mxu0
      %4605 = vmatprep.mubr.bf16.mxu0 0
      %4606 = vmatmul.mubr.bf16.gmra.mrb[0].mxu0 %v4511
      %v4607 = vpop.f32.mrb[0].mxu0
      %v4608 = vadd.f32 0.0, %v4607
      %v4609 = vpop.f32.mrb[0].mxu0
      %v4610 = vpop.f32.mrb[0].mxu0
      %v4611 = vadd.f32 0.0, %v4610
      %v4612 = vpop.f32.mrb[0].mxu0
      %4613 = vmatprep.mubr.bf16.mxu0 0
      %4614 = vmatmul.mubr.bf16.gmra.mrb[0].mxu0 %v4514
      %v4615 = vpop.f32.mrb[0].mxu0
      %v4616 = vadd.f32 0.0, %v4615
      %v4617 = vpop.f32.mrb[0].mxu0
      %v4618 = vpop.f32.mrb[0].mxu0
      %v4619 = vadd.f32 0.0, %v4618
      %v4620 = vpop.f32.mrb[0].mxu0
      %4621 = vmatprep.mubr.bf16.mxu0 0
      %4622 = vmatmul.mubr.bf16.gmra.mrb[0].mxu0 %v4517
      %v4623 = vpop.f32.mrb[0].mxu0
      %v4624 = vadd.f32 0.0, %v4623
      %v4625 = vpop.f32.mrb[0].mxu0
      %v4626 = vpop.f32.mrb[0].mxu0
      %v4627 = vadd.f32 0.0, %v4626
      %v4628 = vpop.f32.mrb[0].mxu0
      %4629 = vmatprep.mubr.bf16.mxu0 0
      %4630 = vmatmul.mubr.bf16.gmra.mrb[0].mxu0 %v4520
      %v4631 = vpop.f32.mrb[0].mxu0
      %v4632 = vadd.f32 0.0, %v4631
      %v4633 = vpop.f32.mrb[0].mxu0
      %v4634 = vpop.f32.mrb[0].mxu0
      %v4635 = vadd.f32 0.0, %v4634
      %v4636 = vpop.f32.mrb[0].mxu0
      %4637 = vmatprep.mubr.bf16.mxu0 0
      %4638 = vmatmul.mubr.bf16.gmra.mrb[0].mxu0 %v4523
      %v4639 = vpop.f32.mrb[0].mxu0
      %v4640 = vadd.f32 0.0, %v4639
      %v4641 = vpop.f32.mrb[0].mxu0
      %v4642 = vpop.f32.mrb[0].mxu0
      %v4643 = vadd.f32 0.0, %v4642
      %v4644 = vpop.f32.mrb[0].mxu0
      %4645 = vmatprep.mubr.bf16.mxu0 0
      %4646 = vmatmul.mubr.bf16.gmra.mrb[0].mxu0 %v4526
      %v4647 = vpop.f32.mrb[0].mxu0
      %v4648 = vadd.f32 0.0, %v4647
      %v4649 = vpop.f32.mrb[0].mxu0
      %v4650 = vpop.f32.mrb[0].mxu0
      %v4651 = vadd.f32 0.0, %v4650
      %v4652 = vpop.f32.mrb[0].mxu0
      %4653 = vmatprep.mubr.bf16.mxu0 0
      %4654 = vmatmul.mubr.bf16.gmra.mrb[0].mxu0 %v4529
      %v4655 = vpop.f32.mrb[0].mxu0
      %v4656 = vadd.f32 0.0, %v4655
      %v4657 = vpop.f32.mrb[0].mxu0
      %v4658 = vpop.f32.mrb[0].mxu0
      %v4659 = vadd.f32 0.0, %v4658
      %v4660 = vpop.f32.mrb[0].mxu0
      %4661 = vmatprep.mubr.bf16.mxu0 0
      %4662 = vmatmul.mubr.bf16.gmra.mrb[0].mxu0 %v4532
      %v4663 = vpop.f32.mrb[0].mxu0
      %v4664 = vadd.f32 0.0, %v4663
      %v4665 = vpop.f32.mrb[0].mxu0
      %v4666 = vpop.f32.mrb[0].mxu0
      %v4667 = vadd.f32 0.0, %v4666
      %v4668 = vpop.f32.mrb[0].mxu0
      %4669 = vmatprep.mubr.bf16.mxu0 0
      %4670 = vmatmul.mubr.bf16.gmra.mrb[0].mxu0 %v4535
      %v4671 = vpop.f32.mrb[0].mxu0
      %v4672 = vadd.f32 0.0, %v4671
      %v4673 = vpop.f32.mrb[0].mxu0
      %v4674 = vpop.f32.mrb[0].mxu0
      %v4675 = vadd.f32 0.0, %v4674
      %v4676 = vpop.f32.mrb[0].mxu0
      %4677 = vmatprep.mubr.bf16.mxu0 0
      %4678 = vmatmul.mubr.bf16.gmra.mrb[0].mxu0 %v4538
      %v4679 = vpop.f32.mrb[0].mxu0
      %v4680 = vadd.f32 0.0, %v4679
      %v4681 = vpop.f32.mrb[0].mxu0
      %v4682 = vpop.f32.mrb[0].mxu0
      %v4683 = vadd.f32 0.0, %v4682
      %v4684 = vpop.f32.mrb[0].mxu0
      %4685 = vmatprep.mubr.bf16.mxu0 0
      %4686 = vmatmul.mubr.bf16.gmra.mrb[0].mxu0 %v4541
      %v4687 = vpop.f32.mrb[0].mxu0
      %v4688 = vadd.f32 0.0, %v4687
      %v4689 = vpop.f32.mrb[0].mxu0
      %v4690 = vpop.f32.mrb[0].mxu0
      %v4691 = vadd.f32 0.0, %v4690
      %v4692 = vpop.f32.mrb[0].mxu0
      %4693 = vmatprep.mubr.bf16.mxu0 0
      %4694 = vmatmul.mubr.bf16.gmra.mrb[0].mxu0 %v4544
      %v4695 = vpop.f32.mrb[0].mxu0
      %v4696 = vadd.f32 0.0, %v4695
      %v4697 = vpop.f32.mrb[0].mxu0
      %v4698 = vpop.f32.mrb[0].mxu0
      %v4699 = vadd.f32 0.0, %v4698
      %v4700 = vpop.f32.mrb[0].mxu0
      %4701 = vmatprep.mubr.bf16.mxu0 0
      %4702 = vmatmul.mubr.bf16.gmra.mrb[0].mxu0 %v4547
      %v4703 = vpop.f32.mrb[0].mxu0
      %v4704 = vadd.f32 0.0, %v4703
      %v4705 = vpop.f32.mrb[0].mxu0
      %v4706 = vpop.f32.mrb[0].mxu0
      %v4707 = vpop.f32.mrb[0].mxu0
      %4708 = vdwg.mxu0
      %v4709 = vadd.f32 %v4320, %v4584
      %v4710 = vadd.f32 %v4323, %v4587
      %v4711 = vadd.f32 %v4328, %v4592
      %v4712 = vadd.f32 %v4331, %v4595
      %v4713 = vadd.f32 %v4336, %v4600
      %v4714 = vadd.f32 %v4339, %v4603
      %v4715 = vadd.f32 %v4344, %v4608
      %v4716 = vadd.f32 %v4347, %v4611
      %v4717 = vadd.f32 %v4352, %v4616
      %v4718 = vadd.f32 %v4355, %v4619
      %v4719 = vadd.f32 %v4360, %v4624
      %v4720 = vadd.f32 %v4363, %v4627
      %v4721 = vadd.f32 %v4368, %v4632
      %v4722 = vadd.f32 %v4371, %v4635
      %v4723 = vadd.f32 %v4376, %v4640
      %v4724 = vadd.f32 %v4379, %v4643
      %v4725 = vadd.f32 %v4384, %v4648
      %v4726 = vadd.f32 %v4387, %v4651
      %v4727 = vadd.f32 %v4392, %v4656
      %v4728 = vadd.f32 %v4395, %v4659
      %v4729 = vadd.f32 %v4400, %v4664
      %v4730 = vadd.f32 %v4403, %v4667
      %v4731 = vadd.f32 %v4408, %v4672
      %v4732 = vadd.f32 %v4411, %v4675
      %v4733 = vadd.f32 %v4416, %v4680
      %v4734 = vadd.f32 %v4419, %v4683
      %v4735 = vadd.f32 %v4424, %v4688
      %v4736 = vadd.f32 %v4427, %v4691
      %v4737 = vadd.f32 %v4432, %v4696
      %v4738 = vadd.f32 %v4435, %v4699
      %v4739 = vadd.f32 %v4440, %v4704
      %s4740 = scalar_lea.vmem %s3, 24
      %v4741 = vld [vmem:[%s4740] sm:$0xf]
      %v4742 = vld [vmem:[%s4740 + $0x4] sm:$0xf]
      %v4743 = vrot.slane %v3907, 1
      %v4744 = vrot.slane %v3909, 2
      %v4745 = vor.u32 %v4743, %v4744
      %v4746 = vrot.slane %v3918, 1
      %v4747 = vrot.slane %v3914, 2
      %v4748 = vor.u32 %v4746, %v4747
      %v4749 = vsel %vm1890, %v4745, %v4748
      %v4750 = vrot.slane %v3926, 1
      %v4751 = vrot.slane %v3922, 2
      %v4752 = vor.u32 %v4750, %v4751
      %v4753 = vsel %vm1890, %v4748, %v4752
      %v4754 = vrot.slane %v3934, 1
      %v4755 = vrot.slane %v3930, 2
      %v4756 = vor.u32 %v4754, %v4755
      %v4757 = vsel %vm1890, %v4752, %v4756
      %v4758 = vrot.slane %v3942, 1
      %v4759 = vrot.slane %v3938, 2
      %v4760 = vor.u32 %v4758, %v4759
      %v4761 = vsel %vm1890, %v4756, %v4760
      %v4762 = vrot.slane %v3950, 1
      %v4763 = vrot.slane %v3946, 2
      %v4764 = vor.u32 %v4762, %v4763
      %v4765 = vsel %vm1890, %v4760, %v4764
      %v4766 = vrot.slane %v3958, 1
      %v4767 = vrot.slane %v3954, 2
      %v4768 = vor.u32 %v4766, %v4767
      %v4769 = vsel %vm1890, %v4764, %v4768
      %v4770 = vrot.slane %v3966, 1
      %v4771 = vrot.slane %v3962, 2
      %v4772 = vor.u32 %v4770, %v4771
      %v4773 = vsel %vm1890, %v4768, %v4772
      %v4774 = vrot.slane %v3974, 1
      %v4775 = vrot.slane %v3970, 2
      %v4776 = vor.u32 %v4774, %v4775
      %v4777 = vsel %vm1890, %v4772, %v4776
      %v4778 = vrot.slane %v3982, 1
      %v4779 = vrot.slane %v3978, 2
      %v4780 = vor.u32 %v4778, %v4779
      %v4781 = vsel %vm1890, %v4776, %v4780
      %v4782 = vrot.slane %v3990, 1
      %v4783 = vrot.slane %v3986, 2
      %v4784 = vor.u32 %v4782, %v4783
      %v4785 = vsel %vm1890, %v4780, %v4784
      %v4786 = vrot.slane %v3998, 1
      %v4787 = vrot.slane %v3994, 2
      %v4788 = vor.u32 %v4786, %v4787
      %v4789 = vsel %vm1890, %v4784, %v4788
      %v4790 = vrot.slane %v4006, 1
      %v4791 = vrot.slane %v4002, 2
      %v4792 = vor.u32 %v4790, %v4791
      %v4793 = vsel %vm1890, %v4788, %v4792
      %v4794 = vrot.slane %v4014, 1
      %v4795 = vrot.slane %v4010, 2
      %v4796 = vor.u32 %v4794, %v4795
      %v4797 = vsel %vm1890, %v4792, %v4796
      %v4798 = vrot.slane %v4022, 1
      %v4799 = vrot.slane %v4018, 2
      %v4800 = vor.u32 %v4798, %v4799
      %v4801 = vsel %vm1890, %v4796, %v4800
      %v4802 = vrot.slane %v4030, 1
      %v4803 = vrot.slane %v4026, 2
      %v4804 = vor.u32 %v4802, %v4803
      %v4805 = vsel %vm1890, %v4800, %v4804
      %v4808 = vunpack.c.l.b16 %v4741
      %v4809 = vunpack.c.l.b16 %v4742
      %v4810 = vpack.c.b16 %v4809, %v4808
      %v4813 = vsel %vm3667, %v4749, 0
      %v4816 = vsel %vm3667, %v4753, 0
      %v4819 = vsel %vm3667, %v4757, 0
      %v4822 = vsel %vm3667, %v4761, 0
      %v4825 = vsel %vm3667, %v4765, 0
      %v4828 = vsel %vm3667, %v4769, 0
      %v4831 = vsel %vm3667, %v4773, 0
      %v4834 = vsel %vm3667, %v4777, 0
      %v4837 = vsel %vm3667, %v4781, 0
      %v4840 = vsel %vm3667, %v4785, 0
      %v4843 = vsel %vm3667, %v4789, 0
      %v4846 = vsel %vm3667, %v4793, 0
      %v4849 = vsel %vm3667, %v4797, 0
      %v4852 = vsel %vm3667, %v4801, 0
      %v4855 = vsel %vm3667, %v4805, 0
      %v4858 = vsel %vm3667, %v4804, 0
      %4860 = vmatprep.subr.bf16.mxu0 0
      %4861 = vmatpush1.bf16.msra.mxu0 %v4810
      %4862 = vmatprep.subr.bf16.mxu0 0
      %4863 = vmatpush1.bf16.msra.mxu0 0
      %4864 = vmatprep.subr.bf16.mxu0 0
      %4865 = vmatpush1.bf16.msra.mxu0 0
      %4866 = vmatprep.subr.bf16.mxu0 0
      %4867 = vmatpush1.bf16.msra.mxu0 0
      %4868 = vmatprep.subr.bf16.mxu0 0
      %4869 = vmatpush1.bf16.msra.mxu0 0
      %4870 = vmatprep.subr.bf16.mxu0 0
      %4871 = vmatpush1.bf16.msra.mxu0 0
      %4872 = vmatprep.subr.bf16.mxu0 0
      %4873 = vmatpush1.bf16.msra.mxu0 0
      %4874 = vmatprep.subr.bf16.mxu0 0
      %4875 = vmatpush1.bf16.msra.mxu0 0
      %4876 = vmatprep.subr.bf16.mxu0 0
      %4877 = vmatpush1.bf16.msra.mxu0 0
      %4878 = vmatprep.subr.bf16.mxu0 0
      %4879 = vmatpush1.bf16.msra.mxu0 0
      %4880 = vmatprep.subr.bf16.mxu0 0
      %4881 = vmatpush1.bf16.msra.mxu0 0
      %4882 = vmatprep.subr.bf16.mxu0 0
      %4883 = vmatpush1.bf16.msra.mxu0 0
      %4884 = vmatprep.subr.bf16.mxu0 0
      %4885 = vmatpush1.bf16.msra.mxu0 0
      %4886 = vmatprep.subr.bf16.mxu0 0
      %4887 = vmatpush1.bf16.msra.mxu0 0
      %4888 = vmatprep.subr.bf16.mxu0 0
      %4889 = vmatpush1.bf16.msra.mxu0 0
      %4890 = vmatprep.subr.bf16.mxu0 0
      %4891 = vmatpush1.bf16.msra.mxu0 0
      %4892 = vmatprep.mubr.bf16.mxu0 0
      %4893 = vmatmul.mubr.bf16.gmra.mrb[0].mxu0 %v4813
      %v4894 = vpop.f32.mrb[0].mxu0
      %v4895 = vadd.f32 0.0, %v4894
      %v4896 = vpop.f32.mrb[0].mxu0
      %v4897 = vpop.f32.mrb[0].mxu0
      %v4898 = vadd.f32 0.0, %v4897
      %v4899 = vpop.f32.mrb[0].mxu0
      %4900 = vmatprep.mubr.bf16.mxu0 0
      %4901 = vmatmul.mubr.bf16.gmra.mrb[0].mxu0 %v4816
      %v4902 = vpop.f32.mrb[0].mxu0
      %v4903 = vadd.f32 0.0, %v4902
      %v4904 = vpop.f32.mrb[0].mxu0
      %v4905 = vpop.f32.mrb[0].mxu0
      %v4906 = vadd.f32 0.0, %v4905
      %v4907 = vpop.f32.mrb[0].mxu0
      %4908 = vmatprep.mubr.bf16.mxu0 0
      %4909 = vmatmul.mubr.bf16.gmra.mrb[0].mxu0 %v4819
      %v4910 = vpop.f32.mrb[0].mxu0
      %v4911 = vadd.f32 0.0, %v4910
      %v4912 = vpop.f32.mrb[0].mxu0
      %v4913 = vpop.f32.mrb[0].mxu0
      %v4914 = vadd.f32 0.0, %v4913
      %v4915 = vpop.f32.mrb[0].mxu0
      %4916 = vmatprep.mubr.bf16.mxu0 0
      %4917 = vmatmul.mubr.bf16.gmra.mrb[0].mxu0 %v4822
      %v4918 = vpop.f32.mrb[0].mxu0
      %v4919 = vadd.f32 0.0, %v4918
      %v4920 = vpop.f32.mrb[0].mxu0
      %v4921 = vpop.f32.mrb[0].mxu0
      %v4922 = vadd.f32 0.0, %v4921
      %v4923 = vpop.f32.mrb[0].mxu0
      %4924 = vmatprep.mubr.bf16.mxu0 0
      %4925 = vmatmul.mubr.bf16.gmra.mrb[0].mxu0 %v4825
      %v4926 = vpop.f32.mrb[0].mxu0
      %v4927 = vadd.f32 0.0, %v4926
      %v4928 = vpop.f32.mrb[0].mxu0
      %v4929 = vpop.f32.mrb[0].mxu0
      %v4930 = vadd.f32 0.0, %v4929
      %v4931 = vpop.f32.mrb[0].mxu0
      %4932 = vmatprep.mubr.bf16.mxu0 0
      %4933 = vmatmul.mubr.bf16.gmra.mrb[0].mxu0 %v4828
      %v4934 = vpop.f32.mrb[0].mxu0
      %v4935 = vadd.f32 0.0, %v4934
      %v4936 = vpop.f32.mrb[0].mxu0
      %v4937 = vpop.f32.mrb[0].mxu0
      %v4938 = vadd.f32 0.0, %v4937
      %v4939 = vpop.f32.mrb[0].mxu0
      %4940 = vmatprep.mubr.bf16.mxu0 0
      %4941 = vmatmul.mubr.bf16.gmra.mrb[0].mxu0 %v4831
      %v4942 = vpop.f32.mrb[0].mxu0
      %v4943 = vadd.f32 0.0, %v4942
      %v4944 = vpop.f32.mrb[0].mxu0
      %v4945 = vpop.f32.mrb[0].mxu0
      %v4946 = vadd.f32 0.0, %v4945
      %v4947 = vpop.f32.mrb[0].mxu0
      %4948 = vmatprep.mubr.bf16.mxu0 0
      %4949 = vmatmul.mubr.bf16.gmra.mrb[0].mxu0 %v4834
      %v4950 = vpop.f32.mrb[0].mxu0
      %v4951 = vadd.f32 0.0, %v4950
      %v4952 = vpop.f32.mrb[0].mxu0
      %v4953 = vpop.f32.mrb[0].mxu0
      %v4954 = vadd.f32 0.0, %v4953
      %v4955 = vpop.f32.mrb[0].mxu0
      %4956 = vmatprep.mubr.bf16.mxu0 0
      %4957 = vmatmul.mubr.bf16.gmra.mrb[0].mxu0 %v4837
      %v4958 = vpop.f32.mrb[0].mxu0
      %v4959 = vadd.f32 0.0, %v4958
      %v4960 = vpop.f32.mrb[0].mxu0
      %v4961 = vpop.f32.mrb[0].mxu0
      %v4962 = vadd.f32 0.0, %v4961
      %v4963 = vpop.f32.mrb[0].mxu0
      %4964 = vmatprep.mubr.bf16.mxu0 0
      %4965 = vmatmul.mubr.bf16.gmra.mrb[0].mxu0 %v4840
      %v4966 = vpop.f32.mrb[0].mxu0
      %v4967 = vadd.f32 0.0, %v4966
      %v4968 = vpop.f32.mrb[0].mxu0
      %v4969 = vpop.f32.mrb[0].mxu0
      %v4970 = vadd.f32 0.0, %v4969
      %v4971 = vpop.f32.mrb[0].mxu0
      %4972 = vmatprep.mubr.bf16.mxu0 0
      %4973 = vmatmul.mubr.bf16.gmra.mrb[0].mxu0 %v4843
      %v4974 = vpop.f32.mrb[0].mxu0
      %v4975 = vadd.f32 0.0, %v4974
      %v4976 = vpop.f32.mrb[0].mxu0
      %v4977 = vpop.f32.mrb[0].mxu0
      %v4978 = vadd.f32 0.0, %v4977
      %v4979 = vpop.f32.mrb[0].mxu0
      %4980 = vmatprep.mubr.bf16.mxu0 0
      %4981 = vmatmul.mubr.bf16.gmra.mrb[0].mxu0 %v4846
      %v4982 = vpop.f32.mrb[0].mxu0
      %v4983 = vadd.f32 0.0, %v4982
      %v4984 = vpop.f32.mrb[0].mxu0
      %v4985 = vpop.f32.mrb[0].mxu0
      %v4986 = vadd.f32 0.0, %v4985
      %v4987 = vpop.f32.mrb[0].mxu0
      %4988 = vmatprep.mubr.bf16.mxu0 0
      %4989 = vmatmul.mubr.bf16.gmra.mrb[0].mxu0 %v4849
      %v4990 = vpop.f32.mrb[0].mxu0
      %v4991 = vadd.f32 0.0, %v4990
      %v4992 = vpop.f32.mrb[0].mxu0
      %v4993 = vpop.f32.mrb[0].mxu0
      %v4994 = vadd.f32 0.0, %v4993
      %v4995 = vpop.f32.mrb[0].mxu0
      %4996 = vmatprep.mubr.bf16.mxu0 0
      %4997 = vmatmul.mubr.bf16.gmra.mrb[0].mxu0 %v4852
      %v4998 = vpop.f32.mrb[0].mxu0
      %v4999 = vadd.f32 0.0, %v4998
      %v5000 = vpop.f32.mrb[0].mxu0
      %v5001 = vpop.f32.mrb[0].mxu0
      %v5002 = vadd.f32 0.0, %v5001
      %v5003 = vpop.f32.mrb[0].mxu0
      %5004 = vmatprep.mubr.bf16.mxu0 0
      %5005 = vmatmul.mubr.bf16.gmra.mrb[0].mxu0 %v4855
      %v5006 = vpop.f32.mrb[0].mxu0
      %v5007 = vadd.f32 0.0, %v5006
      %v5008 = vpop.f32.mrb[0].mxu0
      %v5009 = vpop.f32.mrb[0].mxu0
      %v5010 = vadd.f32 0.0, %v5009
      %v5011 = vpop.f32.mrb[0].mxu0
      %5012 = vmatprep.mubr.bf16.mxu0 0
      %5013 = vmatmul.mubr.bf16.gmra.mrb[0].mxu0 %v4858
      %v5014 = vpop.f32.mrb[0].mxu0
      %v5015 = vadd.f32 0.0, %v5014
      %v5016 = vpop.f32.mrb[0].mxu0
      %v5017 = vpop.f32.mrb[0].mxu0
      %v5018 = vpop.f32.mrb[0].mxu0
      %5019 = vdwg.mxu0
      %v5020 = vadd.f32 %v4709, %v4895
      %v5021 = vadd.f32 %v4710, %v4898
      %v5022 = vadd.f32 %v4711, %v4903
      %v5023 = vadd.f32 %v4712, %v4906
      %v5024 = vadd.f32 %v4713, %v4911
      %v5025 = vadd.f32 %v4714, %v4914
      %v5026 = vadd.f32 %v4715, %v4919
      %v5027 = vadd.f32 %v4716, %v4922
      %v5028 = vadd.f32 %v4717, %v4927
      %v5029 = vadd.f32 %v4718, %v4930
      %v5030 = vadd.f32 %v4719, %v4935
      %v5031 = vadd.f32 %v4720, %v4938
      %v5032 = vadd.f32 %v4721, %v4943
      %v5033 = vadd.f32 %v4722, %v4946
      %v5034 = vadd.f32 %v4723, %v4951
      %v5035 = vadd.f32 %v4724, %v4954
      %v5036 = vadd.f32 %v4725, %v4959
      %v5037 = vadd.f32 %v4726, %v4962
      %v5038 = vadd.f32 %v4727, %v4967
      %v5039 = vadd.f32 %v4728, %v4970
      %v5040 = vadd.f32 %v4729, %v4975
      %v5041 = vadd.f32 %v4730, %v4978
      %v5042 = vadd.f32 %v4731, %v4983
      %v5043 = vadd.f32 %v4732, %v4986
      %v5044 = vadd.f32 %v4733, %v4991
      %v5045 = vadd.f32 %v4734, %v4994
      %v5046 = vadd.f32 %v4735, %v4999
      %v5047 = vadd.f32 %v4736, %v5002
      %v5048 = vadd.f32 %v4737, %v5007
      %v5049 = vadd.f32 %v4738, %v5010
      %v5050 = vadd.f32 %v4739, %v5015
      %s5051 = scalar_lea.vmem %s3, 32
      %v5052 = vld [vmem:[%s5051] sm:$0xf]
      %v5053 = vld [vmem:[%s5051 + $0x4] sm:$0xf]
      %v5054 = vrot.slane %v3885, 2
      %v5055 = vrot.slane %v3886, 2
      %v5056 = vsel %vm2464, %v5054, %v5055
      %v5057 = vrot.slane %v3887, 2
      %v5058 = vsel %vm2464, %v5055, %v5057
      %v5059 = vrot.slane %v3888, 2
      %v5060 = vsel %vm2464, %v5057, %v5059
      %v5061 = vrot.slane %v3889, 2
      %v5062 = vsel %vm2464, %v5059, %v5061
      %v5063 = vrot.slane %v3890, 2
      %v5064 = vsel %vm2464, %v5061, %v5063
      %v5065 = vrot.slane %v3891, 2
      %v5066 = vsel %vm2464, %v5063, %v5065
      %v5067 = vrot.slane %v3892, 2
      %v5068 = vsel %vm2464, %v5065, %v5067
      %v5069 = vrot.slane %v3893, 2
      %v5070 = vsel %vm2464, %v5067, %v5069
      %v5071 = vrot.slane %v3894, 2
      %v5072 = vsel %vm2464, %v5069, %v5071
      %v5073 = vrot.slane %v3895, 2
      %v5074 = vsel %vm2464, %v5071, %v5073
      %v5075 = vrot.slane %v3896, 2
      %v5076 = vsel %vm2464, %v5073, %v5075
      %v5077 = vrot.slane %v3897, 2
      %v5078 = vsel %vm2464, %v5075, %v5077
      %v5079 = vrot.slane %v3898, 2
      %v5080 = vsel %vm2464, %v5077, %v5079
      %v5081 = vrot.slane %v3899, 2
      %v5082 = vsel %vm2464, %v5079, %v5081
      %v5083 = vrot.slane %v3900, 2
      %v5084 = vsel %vm2464, %v5081, %v5083
      %v5087 = vunpack.c.l.b16 %v5052
      %v5088 = vunpack.c.l.b16 %v5053
      %v5089 = vpack.c.b16 %v5088, %v5087
      %v5092 = vsel %vm3667, %v5056, 0
      %v5095 = vsel %vm3667, %v5058, 0
      %v5098 = vsel %vm3667, %v5060, 0
      %v5101 = vsel %vm3667, %v5062, 0
      %v5104 = vsel %vm3667, %v5064, 0
      %v5107 = vsel %vm3667, %v5066, 0
      %v5110 = vsel %vm3667, %v5068, 0
      %v5113 = vsel %vm3667, %v5070, 0
      %v5116 = vsel %vm3667, %v5072, 0
      %v5119 = vsel %vm3667, %v5074, 0
      %v5122 = vsel %vm3667, %v5076, 0
      %v5125 = vsel %vm3667, %v5078, 0
      %v5128 = vsel %vm3667, %v5080, 0
      %v5131 = vsel %vm3667, %v5082, 0
      %v5134 = vsel %vm3667, %v5084, 0
      %v5137 = vsel %vm3667, %v5083, 0
      %5139 = vmatprep.subr.bf16.mxu0 0
      %5140 = vmatpush1.bf16.msra.mxu0 %v5089
      %5141 = vmatprep.subr.bf16.mxu0 0
      %5142 = vmatpush1.bf16.msra.mxu0 0
      %5143 = vmatprep.subr.bf16.mxu0 0
      %5144 = vmatpush1.bf16.msra.mxu0 0
      %5145 = vmatprep.subr.bf16.mxu0 0
      %5146 = vmatpush1.bf16.msra.mxu0 0
      %5147 = vmatprep.subr.bf16.mxu0 0
      %5148 = vmatpush1.bf16.msra.mxu0 0
      %5149 = vmatprep.subr.bf16.mxu0 0
      %5150 = vmatpush1.bf16.msra.mxu0 0
      %5151 = vmatprep.subr.bf16.mxu0 0
      %5152 = vmatpush1.bf16.msra.mxu0 0
      %5153 = vmatprep.subr.bf16.mxu0 0
      %5154 = vmatpush1.bf16.msra.mxu0 0
      %5155 = vmatprep.subr.bf16.mxu0 0
      %5156 = vmatpush1.bf16.msra.mxu0 0
      %5157 = vmatprep.subr.bf16.mxu0 0
      %5158 = vmatpush1.bf16.msra.mxu0 0
      %5159 = vmatprep.subr.bf16.mxu0 0
      %5160 = vmatpush1.bf16.msra.mxu0 0
      %5161 = vmatprep.subr.bf16.mxu0 0
      %5162 = vmatpush1.bf16.msra.mxu0 0
      %5163 = vmatprep.subr.bf16.mxu0 0
      %5164 = vmatpush1.bf16.msra.mxu0 0
      %5165 = vmatprep.subr.bf16.mxu0 0
      %5166 = vmatpush1.bf16.msra.mxu0 0
      %5167 = vmatprep.subr.bf16.mxu0 0
      %5168 = vmatpush1.bf16.msra.mxu0 0
      %5169 = vmatprep.subr.bf16.mxu0 0
      %5170 = vmatpush1.bf16.msra.mxu0 0
      %5171 = vmatprep.mubr.bf16.mxu0 0
      %5172 = vmatmul.mubr.bf16.gmra.mrb[0].mxu0 %v5092
      %v5173 = vpop.f32.mrb[0].mxu0
      %v5174 = vadd.f32 0.0, %v5173
      %v5175 = vpop.f32.mrb[0].mxu0
      %v5176 = vpop.f32.mrb[0].mxu0
      %v5177 = vadd.f32 0.0, %v5176
      %v5178 = vpop.f32.mrb[0].mxu0
      %5179 = vmatprep.mubr.bf16.mxu0 0
      %5180 = vmatmul.mubr.bf16.gmra.mrb[0].mxu0 %v5095
      %v5181 = vpop.f32.mrb[0].mxu0
      %v5182 = vadd.f32 0.0, %v5181
      %v5183 = vpop.f32.mrb[0].mxu0
      %v5184 = vpop.f32.mrb[0].mxu0
      %v5185 = vadd.f32 0.0, %v5184
      %v5186 = vpop.f32.mrb[0].mxu0
      %5187 = vmatprep.mubr.bf16.mxu0 0
      %5188 = vmatmul.mubr.bf16.gmra.mrb[0].mxu0 %v5098
      %v5189 = vpop.f32.mrb[0].mxu0
      %v5190 = vadd.f32 0.0, %v5189
      %v5191 = vpop.f32.mrb[0].mxu0
      %v5192 = vpop.f32.mrb[0].mxu0
      %v5193 = vadd.f32 0.0, %v5192
      %v5194 = vpop.f32.mrb[0].mxu0
      %5195 = vmatprep.mubr.bf16.mxu0 0
      %5196 = vmatmul.mubr.bf16.gmra.mrb[0].mxu0 %v5101
      %v5197 = vpop.f32.mrb[0].mxu0
      %v5198 = vadd.f32 0.0, %v5197
      %v5199 = vpop.f32.mrb[0].mxu0
      %v5200 = vpop.f32.mrb[0].mxu0
      %v5201 = vadd.f32 0.0, %v5200
      %v5202 = vpop.f32.mrb[0].mxu0
      %5203 = vmatprep.mubr.bf16.mxu0 0
      %5204 = vmatmul.mubr.bf16.gmra.mrb[0].mxu0 %v5104
      %v5205 = vpop.f32.mrb[0].mxu0
      %v5206 = vadd.f32 0.0, %v5205
      %v5207 = vpop.f32.mrb[0].mxu0
      %v5208 = vpop.f32.mrb[0].mxu0
      %v5209 = vadd.f32 0.0, %v5208
      %v5210 = vpop.f32.mrb[0].mxu0
      %5211 = vmatprep.mubr.bf16.mxu0 0
      %5212 = vmatmul.mubr.bf16.gmra.mrb[0].mxu0 %v5107
      %v5213 = vpop.f32.mrb[0].mxu0
      %v5214 = vadd.f32 0.0, %v5213
      %v5215 = vpop.f32.mrb[0].mxu0
      %v5216 = vpop.f32.mrb[0].mxu0
      %v5217 = vadd.f32 0.0, %v5216
      %v5218 = vpop.f32.mrb[0].mxu0
      %5219 = vmatprep.mubr.bf16.mxu0 0
      %5220 = vmatmul.mubr.bf16.gmra.mrb[0].mxu0 %v5110
      %v5221 = vpop.f32.mrb[0].mxu0
      %v5222 = vadd.f32 0.0, %v5221
      %v5223 = vpop.f32.mrb[0].mxu0
      %v5224 = vpop.f32.mrb[0].mxu0
      %v5225 = vadd.f32 0.0, %v5224
      %v5226 = vpop.f32.mrb[0].mxu0
      %5227 = vmatprep.mubr.bf16.mxu0 0
      %5228 = vmatmul.mubr.bf16.gmra.mrb[0].mxu0 %v5113
      %v5229 = vpop.f32.mrb[0].mxu0
      %v5230 = vadd.f32 0.0, %v5229
      %v5231 = vpop.f32.mrb[0].mxu0
      %v5232 = vpop.f32.mrb[0].mxu0
      %v5233 = vadd.f32 0.0, %v5232
      %v5234 = vpop.f32.mrb[0].mxu0
      %5235 = vmatprep.mubr.bf16.mxu0 0
      %5236 = vmatmul.mubr.bf16.gmra.mrb[0].mxu0 %v5116
      %v5237 = vpop.f32.mrb[0].mxu0
      %v5238 = vadd.f32 0.0, %v5237
      %v5239 = vpop.f32.mrb[0].mxu0
      %v5240 = vpop.f32.mrb[0].mxu0
      %v5241 = vadd.f32 0.0, %v5240
      %v5242 = vpop.f32.mrb[0].mxu0
      %5243 = vmatprep.mubr.bf16.mxu0 0
      %5244 = vmatmul.mubr.bf16.gmra.mrb[0].mxu0 %v5119
      %v5245 = vpop.f32.mrb[0].mxu0
      %v5246 = vadd.f32 0.0, %v5245
      %v5247 = vpop.f32.mrb[0].mxu0
      %v5248 = vpop.f32.mrb[0].mxu0
      %v5249 = vadd.f32 0.0, %v5248
      %v5250 = vpop.f32.mrb[0].mxu0
      %5251 = vmatprep.mubr.bf16.mxu0 0
      %5252 = vmatmul.mubr.bf16.gmra.mrb[0].mxu0 %v5122
      %v5253 = vpop.f32.mrb[0].mxu0
      %v5254 = vadd.f32 0.0, %v5253
      %v5255 = vpop.f32.mrb[0].mxu0
      %v5256 = vpop.f32.mrb[0].mxu0
      %v5257 = vadd.f32 0.0, %v5256
      %v5258 = vpop.f32.mrb[0].mxu0
      %5259 = vmatprep.mubr.bf16.mxu0 0
      %5260 = vmatmul.mubr.bf16.gmra.mrb[0].mxu0 %v5125
      %v5261 = vpop.f32.mrb[0].mxu0
      %v5262 = vadd.f32 0.0, %v5261
      %v5263 = vpop.f32.mrb[0].mxu0
      %v5264 = vpop.f32.mrb[0].mxu0
      %v5265 = vadd.f32 0.0, %v5264
      %v5266 = vpop.f32.mrb[0].mxu0
      %5267 = vmatprep.mubr.bf16.mxu0 0
      %5268 = vmatmul.mubr.bf16.gmra.mrb[0].mxu0 %v5128
      %v5269 = vpop.f32.mrb[0].mxu0
      %v5270 = vadd.f32 0.0, %v5269
      %v5271 = vpop.f32.mrb[0].mxu0
      %v5272 = vpop.f32.mrb[0].mxu0
      %v5273 = vadd.f32 0.0, %v5272
      %v5274 = vpop.f32.mrb[0].mxu0
      %5275 = vmatprep.mubr.bf16.mxu0 0
      %5276 = vmatmul.mubr.bf16.gmra.mrb[0].mxu0 %v5131
      %v5277 = vpop.f32.mrb[0].mxu0
      %v5278 = vadd.f32 0.0, %v5277
      %v5279 = vpop.f32.mrb[0].mxu0
      %v5280 = vpop.f32.mrb[0].mxu0
      %v5281 = vadd.f32 0.0, %v5280
      %v5282 = vpop.f32.mrb[0].mxu0
      %5283 = vmatprep.mubr.bf16.mxu0 0
      %5284 = vmatmul.mubr.bf16.gmra.mrb[0].mxu0 %v5134
      %v5285 = vpop.f32.mrb[0].mxu0
      %v5286 = vadd.f32 0.0, %v5285
      %v5287 = vpop.f32.mrb[0].mxu0
      %v5288 = vpop.f32.mrb[0].mxu0
      %v5289 = vadd.f32 0.0, %v5288
      %v5290 = vpop.f32.mrb[0].mxu0
      %5291 = vmatprep.mubr.bf16.mxu0 0
      %5292 = vmatmul.mubr.bf16.gmra.mrb[0].mxu0 %v5137
      %v5293 = vpop.f32.mrb[0].mxu0
      %v5294 = vadd.f32 0.0, %v5293
      %v5295 = vpop.f32.mrb[0].mxu0
      %v5296 = vpop.f32.mrb[0].mxu0
      %v5297 = vpop.f32.mrb[0].mxu0
      %5298 = vdwg.mxu0
      %v5299 = vadd.f32 %v5020, %v5174
      %v5300 = vadd.f32 %v5021, %v5177
      %v5301 = vadd.f32 %v5022, %v5182
      %v5302 = vadd.f32 %v5023, %v5185
      %v5303 = vadd.f32 %v5024, %v5190
      %v5304 = vadd.f32 %v5025, %v5193
      %v5305 = vadd.f32 %v5026, %v5198
      %v5306 = vadd.f32 %v5027, %v5201
      %v5307 = vadd.f32 %v5028, %v5206
      %v5308 = vadd.f32 %v5029, %v5209
      %v5309 = vadd.f32 %v5030, %v5214
      %v5310 = vadd.f32 %v5031, %v5217
      %v5311 = vadd.f32 %v5032, %v5222
      %v5312 = vadd.f32 %v5033, %v5225
      %v5313 = vadd.f32 %v5034, %v5230
      %v5314 = vadd.f32 %v5035, %v5233
      %v5315 = vadd.f32 %v5036, %v5238
      %v5316 = vadd.f32 %v5037, %v5241
      %v5317 = vadd.f32 %v5038, %v5246
      %v5318 = vadd.f32 %v5039, %v5249
      %v5319 = vadd.f32 %v5040, %v5254
      %v5320 = vadd.f32 %v5041, %v5257
      %v5321 = vadd.f32 %v5042, %v5262
      %v5322 = vadd.f32 %v5043, %v5265
      %v5323 = vadd.f32 %v5044, %v5270
      %v5324 = vadd.f32 %v5045, %v5273
      %v5325 = vadd.f32 %v5046, %v5278
      %v5326 = vadd.f32 %v5047, %v5281
      %v5327 = vadd.f32 %v5048, %v5286
      %v5328 = vadd.f32 %v5049, %v5289
      %v5329 = vadd.f32 %v5050, %v5294
      %s5330 = scalar_lea.vmem %s3, 40
      %v5331 = vld [vmem:[%s5330] sm:$0xf]
      %v5332 = vld [vmem:[%s5330 + $0x4] sm:$0xf]
      %v5333 = vrot.slane %v3907, 2
      %v5334 = vrot.slane %v3909, 3
      %v5335 = vor.u32 %v5333, %v5334
      %v5336 = vrot.slane %v3918, 2
      %v5337 = vrot.slane %v3914, 3
      %v5338 = vor.u32 %v5336, %v5337
      %v5339 = vsel %vm2969, %v5335, %v5338
      %v5340 = vrot.slane %v3926, 2
      %v5341 = vrot.slane %v3922, 3
      %v5342 = vor.u32 %v5340, %v5341
      %v5343 = vsel %vm2969, %v5338, %v5342
      %v5344 = vrot.slane %v3934, 2
      %v5345 = vrot.slane %v3930, 3
      %v5346 = vor.u32 %v5344, %v5345
      %v5347 = vsel %vm2969, %v5342, %v5346
      %v5348 = vrot.slane %v3942, 2
      %v5349 = vrot.slane %v3938, 3
      %v5350 = vor.u32 %v5348, %v5349
      %v5351 = vsel %vm2969, %v5346, %v5350
      %v5352 = vrot.slane %v3950, 2
      %v5353 = vrot.slane %v3946, 3
      %v5354 = vor.u32 %v5352, %v5353
      %v5355 = vsel %vm2969, %v5350, %v5354
      %v5356 = vrot.slane %v3958, 2
      %v5357 = vrot.slane %v3954, 3
      %v5358 = vor.u32 %v5356, %v5357
      %v5359 = vsel %vm2969, %v5354, %v5358
      %v5360 = vrot.slane %v3966, 2
      %v5361 = vrot.slane %v3962, 3
      %v5362 = vor.u32 %v5360, %v5361
      %v5363 = vsel %vm2969, %v5358, %v5362
      %v5364 = vrot.slane %v3974, 2
      %v5365 = vrot.slane %v3970, 3
      %v5366 = vor.u32 %v5364, %v5365
      %v5367 = vsel %vm2969, %v5362, %v5366
      %v5368 = vrot.slane %v3982, 2
      %v5369 = vrot.slane %v3978, 3
      %v5370 = vor.u32 %v5368, %v5369
      %v5371 = vsel %vm2969, %v5366, %v5370
      %v5372 = vrot.slane %v3990, 2
      %v5373 = vrot.slane %v3986, 3
      %v5374 = vor.u32 %v5372, %v5373
      %v5375 = vsel %vm2969, %v5370, %v5374
      %v5376 = vrot.slane %v3998, 2
      %v5377 = vrot.slane %v3994, 3
      %v5378 = vor.u32 %v5376, %v5377
      %v5379 = vsel %vm2969, %v5374, %v5378
      %v5380 = vrot.slane %v4006, 2
      %v5381 = vrot.slane %v4002, 3
      %v5382 = vor.u32 %v5380, %v5381
      %v5383 = vsel %vm2969, %v5378, %v5382
      %v5384 = vrot.slane %v4014, 2
      %v5385 = vrot.slane %v4010, 3
      %v5386 = vor.u32 %v5384, %v5385
      %v5387 = vsel %vm2969, %v5382, %v5386
      %v5388 = vrot.slane %v4022, 2
      %v5389 = vrot.slane %v4018, 3
      %v5390 = vor.u32 %v5388, %v5389
      %v5391 = vsel %vm2969, %v5386, %v5390
      %v5392 = vrot.slane %v4030, 2
      %v5393 = vrot.slane %v4026, 3
      %v5394 = vor.u32 %v5392, %v5393
      %v5395 = vsel %vm2969, %v5390, %v5394
      %v5398 = vunpack.c.l.b16 %v5331
      %v5399 = vunpack.c.l.b16 %v5332
      %v5400 = vpack.c.b16 %v5399, %v5398
      %v5403 = vsel %vm3667, %v5339, 0
      %v5406 = vsel %vm3667, %v5343, 0
      %v5409 = vsel %vm3667, %v5347, 0
      %v5412 = vsel %vm3667, %v5351, 0
      %v5415 = vsel %vm3667, %v5355, 0
      %v5418 = vsel %vm3667, %v5359, 0
      %v5421 = vsel %vm3667, %v5363, 0
      %v5424 = vsel %vm3667, %v5367, 0
      %v5427 = vsel %vm3667, %v5371, 0
      %v5430 = vsel %vm3667, %v5375, 0
      %v5433 = vsel %vm3667, %v5379, 0
      %v5436 = vsel %vm3667, %v5383, 0
      %v5439 = vsel %vm3667, %v5387, 0
      %v5442 = vsel %vm3667, %v5391, 0
      %v5445 = vsel %vm3667, %v5395, 0
      %v5448 = vsel %vm3667, %v5394, 0
      %5450 = vmatprep.subr.bf16.mxu0 0
      %5451 = vmatpush1.bf16.msra.mxu0 %v5400
      %5452 = vmatprep.subr.bf16.mxu0 0
      %5453 = vmatpush1.bf16.msra.mxu0 0
      %5454 = vmatprep.subr.bf16.mxu0 0
      %5455 = vmatpush1.bf16.msra.mxu0 0
      %5456 = vmatprep.subr.bf16.mxu0 0
      %5457 = vmatpush1.bf16.msra.mxu0 0
      %5458 = vmatprep.subr.bf16.mxu0 0
      %5459 = vmatpush1.bf16.msra.mxu0 0
      %5460 = vmatprep.subr.bf16.mxu0 0
      %5461 = vmatpush1.bf16.msra.mxu0 0
      %5462 = vmatprep.subr.bf16.mxu0 0
      %5463 = vmatpush1.bf16.msra.mxu0 0
      %5464 = vmatprep.subr.bf16.mxu0 0
      %5465 = vmatpush1.bf16.msra.mxu0 0
      %5466 = vmatprep.subr.bf16.mxu0 0
      %5467 = vmatpush1.bf16.msra.mxu0 0
      %5468 = vmatprep.subr.bf16.mxu0 0
      %5469 = vmatpush1.bf16.msra.mxu0 0
      %5470 = vmatprep.subr.bf16.mxu0 0
      %5471 = vmatpush1.bf16.msra.mxu0 0
      %5472 = vmatprep.subr.bf16.mxu0 0
      %5473 = vmatpush1.bf16.msra.mxu0 0
      %5474 = vmatprep.subr.bf16.mxu0 0
      %5475 = vmatpush1.bf16.msra.mxu0 0
      %5476 = vmatprep.subr.bf16.mxu0 0
      %5477 = vmatpush1.bf16.msra.mxu0 0
      %5478 = vmatprep.subr.bf16.mxu0 0
      %5479 = vmatpush1.bf16.msra.mxu0 0
      %5480 = vmatprep.subr.bf16.mxu0 0
      %5481 = vmatpush1.bf16.msra.mxu0 0
      %5482 = vmatprep.mubr.bf16.mxu0 0
      %5483 = vmatmul.mubr.bf16.gmra.mrb[0].mxu0 %v5403
      %v5484 = vpop.f32.mrb[0].mxu0
      %v5485 = vadd.f32 0.0, %v5484
      %v5486 = vpop.f32.mrb[0].mxu0
      %v5487 = vpop.f32.mrb[0].mxu0
      %v5488 = vadd.f32 0.0, %v5487
      %v5489 = vpop.f32.mrb[0].mxu0
      %5490 = vmatprep.mubr.bf16.mxu0 0
      %5491 = vmatmul.mubr.bf16.gmra.mrb[0].mxu0 %v5406
      %v5492 = vpop.f32.mrb[0].mxu0
      %v5493 = vadd.f32 0.0, %v5492
      %v5494 = vpop.f32.mrb[0].mxu0
      %v5495 = vpop.f32.mrb[0].mxu0
      %v5496 = vadd.f32 0.0, %v5495
      %v5497 = vpop.f32.mrb[0].mxu0
      %5498 = vmatprep.mubr.bf16.mxu0 0
      %5499 = vmatmul.mubr.bf16.gmra.mrb[0].mxu0 %v5409
      %v5500 = vpop.f32.mrb[0].mxu0
      %v5501 = vadd.f32 0.0, %v5500
      %v5502 = vpop.f32.mrb[0].mxu0
      %v5503 = vpop.f32.mrb[0].mxu0
      %v5504 = vadd.f32 0.0, %v5503
      %v5505 = vpop.f32.mrb[0].mxu0
      %5506 = vmatprep.mubr.bf16.mxu0 0
      %5507 = vmatmul.mubr.bf16.gmra.mrb[0].mxu0 %v5412
      %v5508 = vpop.f32.mrb[0].mxu0
      %v5509 = vadd.f32 0.0, %v5508
      %v5510 = vpop.f32.mrb[0].mxu0
      %v5511 = vpop.f32.mrb[0].mxu0
      %v5512 = vadd.f32 0.0, %v5511
      %v5513 = vpop.f32.mrb[0].mxu0
      %5514 = vmatprep.mubr.bf16.mxu0 0
      %5515 = vmatmul.mubr.bf16.gmra.mrb[0].mxu0 %v5415
      %v5516 = vpop.f32.mrb[0].mxu0
      %v5517 = vadd.f32 0.0, %v5516
      %v5518 = vpop.f32.mrb[0].mxu0
      %v5519 = vpop.f32.mrb[0].mxu0
      %v5520 = vadd.f32 0.0, %v5519
      %v5521 = vpop.f32.mrb[0].mxu0
      %5522 = vmatprep.mubr.bf16.mxu0 0
      %5523 = vmatmul.mubr.bf16.gmra.mrb[0].mxu0 %v5418
      %v5524 = vpop.f32.mrb[0].mxu0
      %v5525 = vadd.f32 0.0, %v5524
      %v5526 = vpop.f32.mrb[0].mxu0
      %v5527 = vpop.f32.mrb[0].mxu0
      %v5528 = vadd.f32 0.0, %v5527
      %v5529 = vpop.f32.mrb[0].mxu0
      %5530 = vmatprep.mubr.bf16.mxu0 0
      %5531 = vmatmul.mubr.bf16.gmra.mrb[0].mxu0 %v5421
      %v5532 = vpop.f32.mrb[0].mxu0
      %v5533 = vadd.f32 0.0, %v5532
      %v5534 = vpop.f32.mrb[0].mxu0
      %v5535 = vpop.f32.mrb[0].mxu0
      %v5536 = vadd.f32 0.0, %v5535
      %v5537 = vpop.f32.mrb[0].mxu0
      %5538 = vmatprep.mubr.bf16.mxu0 0
      %5539 = vmatmul.mubr.bf16.gmra.mrb[0].mxu0 %v5424
      %v5540 = vpop.f32.mrb[0].mxu0
      %v5541 = vadd.f32 0.0, %v5540
      %v5542 = vpop.f32.mrb[0].mxu0
      %v5543 = vpop.f32.mrb[0].mxu0
      %v5544 = vadd.f32 0.0, %v5543
      %v5545 = vpop.f32.mrb[0].mxu0
      %5546 = vmatprep.mubr.bf16.mxu0 0
      %5547 = vmatmul.mubr.bf16.gmra.mrb[0].mxu0 %v5427
      %v5548 = vpop.f32.mrb[0].mxu0
      %v5549 = vadd.f32 0.0, %v5548
      %v5550 = vpop.f32.mrb[0].mxu0
      %v5551 = vpop.f32.mrb[0].mxu0
      %v5552 = vadd.f32 0.0, %v5551
      %v5553 = vpop.f32.mrb[0].mxu0
      %5554 = vmatprep.mubr.bf16.mxu0 0
      %5555 = vmatmul.mubr.bf16.gmra.mrb[0].mxu0 %v5430
      %v5556 = vpop.f32.mrb[0].mxu0
      %v5557 = vadd.f32 0.0, %v5556
      %v5558 = vpop.f32.mrb[0].mxu0
      %v5559 = vpop.f32.mrb[0].mxu0
      %v5560 = vadd.f32 0.0, %v5559
      %v5561 = vpop.f32.mrb[0].mxu0
      %5562 = vmatprep.mubr.bf16.mxu0 0
      %5563 = vmatmul.mubr.bf16.gmra.mrb[0].mxu0 %v5433
      %v5564 = vpop.f32.mrb[0].mxu0
      %v5565 = vadd.f32 0.0, %v5564
      %v5566 = vpop.f32.mrb[0].mxu0
      %v5567 = vpop.f32.mrb[0].mxu0
      %v5568 = vadd.f32 0.0, %v5567
      %v5569 = vpop.f32.mrb[0].mxu0
      %5570 = vmatprep.mubr.bf16.mxu0 0
      %5571 = vmatmul.mubr.bf16.gmra.mrb[0].mxu0 %v5436
      %v5572 = vpop.f32.mrb[0].mxu0
      %v5573 = vadd.f32 0.0, %v5572
      %v5574 = vpop.f32.mrb[0].mxu0
      %v5575 = vpop.f32.mrb[0].mxu0
      %v5576 = vadd.f32 0.0, %v5575
      %v5577 = vpop.f32.mrb[0].mxu0
      %5578 = vmatprep.mubr.bf16.mxu0 0
      %5579 = vmatmul.mubr.bf16.gmra.mrb[0].mxu0 %v5439
      %v5580 = vpop.f32.mrb[0].mxu0
      %v5581 = vadd.f32 0.0, %v5580
      %v5582 = vpop.f32.mrb[0].mxu0
      %v5583 = vpop.f32.mrb[0].mxu0
      %v5584 = vadd.f32 0.0, %v5583
      %v5585 = vpop.f32.mrb[0].mxu0
      %5586 = vmatprep.mubr.bf16.mxu0 0
      %5587 = vmatmul.mubr.bf16.gmra.mrb[0].mxu0 %v5442
      %v5588 = vpop.f32.mrb[0].mxu0
      %v5589 = vadd.f32 0.0, %v5588
      %v5590 = vpop.f32.mrb[0].mxu0
      %v5591 = vpop.f32.mrb[0].mxu0
      %v5592 = vadd.f32 0.0, %v5591
      %v5593 = vpop.f32.mrb[0].mxu0
      %5594 = vmatprep.mubr.bf16.mxu0 0
      %5595 = vmatmul.mubr.bf16.gmra.mrb[0].mxu0 %v5445
      %v5596 = vpop.f32.mrb[0].mxu0
      %v5597 = vadd.f32 0.0, %v5596
      %v5598 = vpop.f32.mrb[0].mxu0
      %v5599 = vpop.f32.mrb[0].mxu0
      %v5600 = vadd.f32 0.0, %v5599
      %v5601 = vpop.f32.mrb[0].mxu0
      %5602 = vmatprep.mubr.bf16.mxu0 0
      %5603 = vmatmul.mubr.bf16.gmra.mrb[0].mxu0 %v5448
      %v5604 = vpop.f32.mrb[0].mxu0
      %v5605 = vadd.f32 0.0, %v5604
      %v5606 = vpop.f32.mrb[0].mxu0
      %v5607 = vpop.f32.mrb[0].mxu0
      %v5608 = vpop.f32.mrb[0].mxu0
      %5609 = vdwg.mxu0
      %v5610 = vadd.f32 %v5299, %v5485
      %v5611 = vadd.f32 %v5300, %v5488
      %v5612 = vadd.f32 %v5301, %v5493
      %v5613 = vadd.f32 %v5302, %v5496
      %v5614 = vadd.f32 %v5303, %v5501
      %v5615 = vadd.f32 %v5304, %v5504
      %v5616 = vadd.f32 %v5305, %v5509
      %v5617 = vadd.f32 %v5306, %v5512
      %v5618 = vadd.f32 %v5307, %v5517
      %v5619 = vadd.f32 %v5308, %v5520
      %v5620 = vadd.f32 %v5309, %v5525
      %v5621 = vadd.f32 %v5310, %v5528
      %v5622 = vadd.f32 %v5311, %v5533
      %v5623 = vadd.f32 %v5312, %v5536
      %v5624 = vadd.f32 %v5313, %v5541
      %v5625 = vadd.f32 %v5314, %v5544
      %v5626 = vadd.f32 %v5315, %v5549
      %v5627 = vadd.f32 %v5316, %v5552
      %v5628 = vadd.f32 %v5317, %v5557
      %v5629 = vadd.f32 %v5318, %v5560
      %v5630 = vadd.f32 %v5319, %v5565
      %v5631 = vadd.f32 %v5320, %v5568
      %v5632 = vadd.f32 %v5321, %v5573
      %v5633 = vadd.f32 %v5322, %v5576
      %v5634 = vadd.f32 %v5323, %v5581
      %v5635 = vadd.f32 %v5324, %v5584
      %v5636 = vadd.f32 %v5325, %v5589
      %v5637 = vadd.f32 %v5326, %v5592
      %v5638 = vadd.f32 %v5327, %v5597
      %v5639 = vadd.f32 %v5328, %v5600
      %v5640 = vadd.f32 %v5329, %v5605
      %v5641 = vld [vmem:[%s4] sm:$0x1]
      %v5643 = vlaneseq
      %v5644 = vshrl.u32 %v5643, 7
      %v5645 = vsub.s32 0, %v5644
      %v5646 = vrot.slane %v5641, %v5645
      %v5648 = vadd.f32 %v5610, %v5646
      %v5649 = vadd.f32 %v5611, %v5646
      %v5650 = vadd.f32 %v5612, %v5646
      %v5651 = vadd.f32 %v5613, %v5646
      %v5652 = vadd.f32 %v5614, %v5646
      %v5653 = vadd.f32 %v5615, %v5646
      %v5654 = vadd.f32 %v5616, %v5646
      %v5655 = vadd.f32 %v5617, %v5646
      %v5656 = vadd.f32 %v5618, %v5646
      %v5657 = vadd.f32 %v5619, %v5646
      %v5658 = vadd.f32 %v5620, %v5646
      %v5659 = vadd.f32 %v5621, %v5646
      %v5660 = vadd.f32 %v5622, %v5646
      %v5661 = vadd.f32 %v5623, %v5646
      %v5662 = vadd.f32 %v5624, %v5646
      %v5663 = vadd.f32 %v5625, %v5646
      %v5664 = vadd.f32 %v5626, %v5646
      %v5665 = vadd.f32 %v5627, %v5646
      %v5666 = vadd.f32 %v5628, %v5646
      %v5667 = vadd.f32 %v5629, %v5646
      %v5668 = vadd.f32 %v5630, %v5646
      %v5669 = vadd.f32 %v5631, %v5646
      %v5670 = vadd.f32 %v5632, %v5646
      %v5671 = vadd.f32 %v5633, %v5646
      %v5672 = vadd.f32 %v5634, %v5646
      %v5673 = vadd.f32 %v5635, %v5646
      %v5674 = vadd.f32 %v5636, %v5646
      %v5675 = vadd.f32 %v5637, %v5646
      %v5676 = vadd.f32 %v5638, %v5646
      %v5677 = vadd.f32 %v5639, %v5646
      %v5678 = vadd.f32 %v5640, %v5646
      %v5679 = vmax.f32 %v5648, 0.0
      %v5680 = vmax.f32 %v5649, 0.0
      %v5681 = vmax.f32 %v5650, 0.0
      %v5682 = vmax.f32 %v5651, 0.0
      %v5683 = vmax.f32 %v5652, 0.0
      %v5684 = vmax.f32 %v5653, 0.0
      %v5685 = vmax.f32 %v5654, 0.0
      %v5686 = vmax.f32 %v5655, 0.0
      %v5687 = vmax.f32 %v5656, 0.0
      %v5688 = vmax.f32 %v5657, 0.0
      %v5689 = vmax.f32 %v5658, 0.0
      %v5690 = vmax.f32 %v5659, 0.0
      %v5691 = vmax.f32 %v5660, 0.0
      %v5692 = vmax.f32 %v5661, 0.0
      %v5693 = vmax.f32 %v5662, 0.0
      %v5694 = vmax.f32 %v5663, 0.0
      %v5695 = vmax.f32 %v5664, 0.0
      %v5696 = vmax.f32 %v5665, 0.0
      %v5697 = vmax.f32 %v5666, 0.0
      %v5698 = vmax.f32 %v5667, 0.0
      %v5699 = vmax.f32 %v5668, 0.0
      %v5700 = vmax.f32 %v5669, 0.0
      %v5701 = vmax.f32 %v5670, 0.0
      %v5702 = vmax.f32 %v5671, 0.0
      %v5703 = vmax.f32 %v5672, 0.0
      %v5704 = vmax.f32 %v5673, 0.0
      %v5705 = vmax.f32 %v5674, 0.0
      %v5706 = vmax.f32 %v5675, 0.0
      %v5707 = vmax.f32 %v5676, 0.0
      %v5708 = vmax.f32 %v5677, 0.0
      %v5709 = vmax.f32 %v5678, 0.0
      %vm5710 = vcmask 261120
      %5711 = vst.msk [vmem:[#allocation3] sm:$0xff] %vm5710, %v5679
      %5712 = vst.msk [vmem:[#allocation3 + $0x8] sm:$0xff] %vm5710, %v5680
      %5713 = vst.msk [vmem:[#allocation3 + $0x10] sm:$0xff] %vm5710, %v5681
      %5714 = vst.msk [vmem:[#allocation3 + $0x18] sm:$0xff] %vm5710, %v5682
      %5715 = vst.msk [vmem:[#allocation3 + $0x20] sm:$0xff] %vm5710, %v5683
      %5716 = vst.msk [vmem:[#allocation3 + $0x28] sm:$0xff] %vm5710, %v5684
      %5717 = vst.msk [vmem:[#allocation3 + $0x30] sm:$0xff] %vm5710, %v5685
      %5718 = vst.msk [vmem:[#allocation3 + $0x38] sm:$0xff] %vm5710, %v5686
      %5719 = vst.msk [vmem:[#allocation3 + $0x40] sm:$0xff] %vm5710, %v5687
      %5720 = vst.msk [vmem:[#allocation3 + $0x48] sm:$0xff] %vm5710, %v5688
      %5721 = vst.msk [vmem:[#allocation3 + $0x50] sm:$0xff] %vm5710, %v5689
      %5722 = vst.msk [vmem:[#allocation3 + $0x58] sm:$0xff] %vm5710, %v5690
      %5723 = vst.msk [vmem:[#allocation3 + $0x60] sm:$0xff] %vm5710, %v5691
      %5724 = vst.msk [vmem:[#allocation3 + $0x68] sm:$0xff] %vm5710, %v5692
      %5725 = vst.msk [vmem:[#allocation3 + $0x70] sm:$0xff] %vm5710, %v5693
      %5726 = vst.msk [vmem:[#allocation3 + $0x78] sm:$0xff] %vm5710, %v5694
      %5727 = vst.msk [vmem:[#allocation3 + $0x80] sm:$0xff] %vm5710, %v5695
      %5728 = vst.msk [vmem:[#allocation3 + $0x88] sm:$0xff] %vm5710, %v5696
      %5729 = vst.msk [vmem:[#allocation3 + $0x90] sm:$0xff] %vm5710, %v5697
      %5730 = vst.msk [vmem:[#allocation3 + $0x98] sm:$0xff] %vm5710, %v5698
      %5731 = vst.msk [vmem:[#allocation3 + $0xa0] sm:$0xff] %vm5710, %v5699
      %5732 = vst.msk [vmem:[#allocation3 + $0xa8] sm:$0xff] %vm5710, %v5700
      %5733 = vst.msk [vmem:[#allocation3 + $0xb0] sm:$0xff] %vm5710, %v5701
      %5734 = vst.msk [vmem:[#allocation3 + $0xb8] sm:$0xff] %vm5710, %v5702
      %5735 = vst.msk [vmem:[#allocation3 + $0xc0] sm:$0xff] %vm5710, %v5703
      %5736 = vst.msk [vmem:[#allocation3 + $0xc8] sm:$0xff] %vm5710, %v5704
      %5737 = vst.msk [vmem:[#allocation3 + $0xd0] sm:$0xff] %vm5710, %v5705
      %5738 = vst.msk [vmem:[#allocation3 + $0xd8] sm:$0xff] %vm5710, %v5706
      %5739 = vst.msk [vmem:[#allocation3 + $0xe0] sm:$0xff] %vm5710, %v5707
      %5740 = vst.msk [vmem:[#allocation3 + $0xe8] sm:$0xff] %vm5710, %v5708
      %vm5741 = vcmask 254976
      %5742 = vst.msk [vmem:[#allocation3 + $0xf0] sm:$0x3] %vm5741, %v5709
      %v5743 = vld [vmem:[#allocation3] ss:$2 sm:$0xff]
      %s5744 = scalar_lea.vmem [#allocation3], 16
      %v5745 = vld [vmem:[%s5744] ss:$2 sm:$0xff]
      %s5746 = scalar_lea.vmem [#allocation3], 32
      %v5747 = vld [vmem:[%s5746] ss:$2 sm:$0xff]
      %s5748 = scalar_lea.vmem [#allocation3], 48
      %v5749 = vld [vmem:[%s5748] ss:$2 sm:$0xff]
      %s5750 = scalar_lea.vmem [#allocation3], 64
      %v5751 = vld [vmem:[%s5750] ss:$2 sm:$0xff]
      %s5752 = scalar_lea.vmem [#allocation3], 80
      %v5753 = vld [vmem:[%s5752] ss:$2 sm:$0xff]
      %s5754 = scalar_lea.vmem [#allocation3], 96
      %v5755 = vld [vmem:[%s5754] ss:$2 sm:$0xff]
      %s5756 = scalar_lea.vmem [#allocation3], 112
      %v5757 = vld [vmem:[%s5756] ss:$2 sm:$0xff]
      %s5758 = scalar_lea.vmem [#allocation3], 128
      %v5759 = vld [vmem:[%s5758] ss:$2 sm:$0xff]
      %s5760 = scalar_lea.vmem [#allocation3], 144
      %v5761 = vld [vmem:[%s5760] ss:$2 sm:$0xff]
      %s5762 = scalar_lea.vmem [#allocation3], 160
      %v5763 = vld [vmem:[%s5762] ss:$2 sm:$0xff]
      %s5764 = scalar_lea.vmem [#allocation3], 176
      %v5765 = vld [vmem:[%s5764] ss:$2 sm:$0xff]
      %s5766 = scalar_lea.vmem [#allocation3], 192
      %v5767 = vld [vmem:[%s5766] ss:$2 sm:$0xff]
      %s5768 = scalar_lea.vmem [#allocation3], 208
      %v5769 = vld [vmem:[%s5768] ss:$2 sm:$0xff]
      %s5770 = scalar_lea.vmem [#allocation3], 224
      %v5771 = vld [vmem:[%s5770] ss:$2 sm:$0xff]
      %s5772 = scalar_lea.vmem [#allocation3], 240
      %v5773 = vld [vmem:[%s5772] ss:$2 sm:$0x1]
      %s5774 = scalar_lea.vmem [#allocation3], 1
      %v5775 = vld [vmem:[%s5774] ss:$2 sm:$0xff]
      %s5776 = scalar_lea.vmem [#allocation3], 17
      %v5777 = vld [vmem:[%s5776] ss:$2 sm:$0xff]
      %s5778 = scalar_lea.vmem [#allocation3], 33
      %v5779 = vld [vmem:[%s5778] ss:$2 sm:$0xff]
      %s5780 = scalar_lea.vmem [#allocation3], 49
      %v5781 = vld [vmem:[%s5780] ss:$2 sm:$0xff]
      %s5782 = scalar_lea.vmem [#allocation3], 65
      %v5783 = vld [vmem:[%s5782] ss:$2 sm:$0xff]
      %s5784 = scalar_lea.vmem [#allocation3], 81
      %v5785 = vld [vmem:[%s5784] ss:$2 sm:$0xff]
      %s5786 = scalar_lea.vmem [#allocation3], 97
      %v5787 = vld [vmem:[%s5786] ss:$2 sm:$0xff]
      %s5788 = scalar_lea.vmem [#allocation3], 113
      %v5789 = vld [vmem:[%s5788] ss:$2 sm:$0xff]
      %s5790 = scalar_lea.vmem [#allocation3], 129
      %v5791 = vld [vmem:[%s5790] ss:$2 sm:$0xff]
      %s5792 = scalar_lea.vmem [#allocation3], 145
      %v5793 = vld [vmem:[%s5792] ss:$2 sm:$0xff]
      %s5794 = scalar_lea.vmem [#allocation3], 161
      %v5795 = vld [vmem:[%s5794] ss:$2 sm:$0xff]
      %s5796 = scalar_lea.vmem [#allocation3], 177
      %v5797 = vld [vmem:[%s5796] ss:$2 sm:$0xff]
      %s5798 = scalar_lea.vmem [#allocation3], 193
      %v5799 = vld [vmem:[%s5798] ss:$2 sm:$0xff]
      %s5800 = scalar_lea.vmem [#allocation3], 209
      %v5801 = vld [vmem:[%s5800] ss:$2 sm:$0xff]
      %s5802 = scalar_lea.vmem [#allocation3], 225
      %v5803 = vld [vmem:[%s5802] ss:$2 sm:$0xff]
      %s5804 = scalar_lea.vmem [#allocation3], 241
      %v5805 = vld [vmem:[%s5804] ss:$2 sm:$0x1]
      %v5806 = vmax.f32 %v5743, %v5775
      %v5807 = vmax.f32 %v5745, %v5777
      %v5808 = vmax.f32 %v5747, %v5779
      %v5809 = vmax.f32 %v5749, %v5781
      %v5810 = vmax.f32 %v5751, %v5783
      %v5811 = vmax.f32 %v5753, %v5785
      %v5812 = vmax.f32 %v5755, %v5787
      %v5813 = vmax.f32 %v5757, %v5789
      %v5814 = vmax.f32 %v5759, %v5791
      %v5815 = vmax.f32 %v5761, %v5793
      %v5816 = vmax.f32 %v5763, %v5795
      %v5817 = vmax.f32 %v5765, %v5797
      %v5818 = vmax.f32 %v5767, %v5799
      %v5819 = vmax.f32 %v5769, %v5801
      %v5820 = vmax.f32 %v5771, %v5803
      %v5821 = vmax.f32 %v5773, %v5805
      %v5822 = vpack.c.bf16 %v5807, %v5806
      %v5823 = vpack.c.bf16 %v5809, %v5808
      %v5824 = vpack.c.bf16 %v5811, %v5810
      %v5825 = vpack.c.bf16 %v5813, %v5812
      %v5826 = vpack.c.bf16 %v5815, %v5814
      %v5827 = vpack.c.bf16 %v5817, %v5816
      %v5828 = vpack.c.bf16 %v5819, %v5818
      %v5829 = vpack.c.bf16 %v5820, %v5820
      %v5830 = vld [vmem:[%s5] sm:$0xf]
      %v5831 = vld [vmem:[%s5 + $0x4] sm:$0xf]
      %v5832 = vld [vmem:[%s5 + $0x8] sm:$0xf]
      %v5833 = vld [vmem:[%s5 + $0xc] sm:$0xf]
      %s5834 = scalar_lea.vmem %s5, 16
      %v5835 = vld [vmem:[%s5834] sm:$0xf]
      %v5836 = vld [vmem:[%s5834 + $0x4] sm:$0xf]
      %v5837 = vld [vmem:[%s5834 + $0x8] sm:$0xf]
      %v5838 = vld [vmem:[%s5834 + $0xc] sm:$0xf]
      %v5840 = vshrl.u32 %v5822, 16
      %v5842 = vshll.u32 %v5822, 16
      %v5844 = vrot.slane %v5842, 1
      %v5845 = vor.u32 %v5840, %v5844
      %v5847 = vshll.u32 %v5823, 16
      %v5849 = vrot.slane %v5847, 1
      %v5850 = vsel %vm377, %v5845, %v5849
      %v5851 = vshrl.u32 %v5823, 16
      %v5853 = vor.u32 %v5851, %v5849
      %v5855 = vshll.u32 %v5824, 16
      %v5857 = vrot.slane %v5855, 1
      %v5858 = vsel %vm377, %v5853, %v5857
      %v5859 = vshrl.u32 %v5824, 16
      %v5861 = vor.u32 %v5859, %v5857
      %v5863 = vshll.u32 %v5825, 16
      %v5865 = vrot.slane %v5863, 1
      %v5866 = vsel %vm377, %v5861, %v5865
      %v5867 = vshrl.u32 %v5825, 16
      %v5869 = vor.u32 %v5867, %v5865
      %v5871 = vshll.u32 %v5826, 16
      %v5873 = vrot.slane %v5871, 1
      %v5874 = vsel %vm377, %v5869, %v5873
      %v5875 = vshrl.u32 %v5826, 16
      %v5877 = vor.u32 %v5875, %v5873
      %v5879 = vshll.u32 %v5827, 16
      %v5881 = vrot.slane %v5879, 1
      %v5882 = vsel %vm377, %v5877, %v5881
      %v5883 = vshrl.u32 %v5827, 16
      %v5885 = vor.u32 %v5883, %v5881
      %v5887 = vshll.u32 %v5828, 16
      %v5889 = vrot.slane %v5887, 1
      %v5890 = vsel %vm377, %v5885, %v5889
      %v5891 = vshrl.u32 %v5828, 16
      %v5893 = vor.u32 %v5891, %v5889
      %v5895 = vshll.u32 %v5829, 16
      %v5897 = vrot.slane %v5895, 1
      %v5898 = vsel %vm377, %v5893, %v5897
      %v5899 = vshrl.u32 %v5829, 16
      %v5901 = vor.u32 %v5899, %v5897
      %v5906 = vunpack.c.l.b16 %v5835
      %v5907 = vunpack.c.l.b16 %v5836
      %v5908 = vunpack.c.l.b16 %v5837
      %v5909 = vunpack.c.l.b16 %v5838
      %v5910 = vpack.c.b16 %v5907, %v5906
      %v5911 = vpack.c.b16 %v5909, %v5908
      %v5915 = vsel %vm5710, %v5850, 0
      %v5918 = vsel %vm5710, %v5858, 0
      %v5921 = vsel %vm5710, %v5866, 0
      %v5924 = vsel %vm5710, %v5874, 0
      %v5927 = vsel %vm5710, %v5882, 0
      %v5930 = vsel %vm5710, %v5890, 0
      %v5933 = vsel %vm5710, %v5898, 0
      %v5936 = vsel %vm5710, %v5901, 0
      %5938 = vmatprep.subr.bf16.mxu0 0
      %5939 = vmatpush1.bf16.msra.mxu0 %v5910
      %5940 = vmatprep.subr.bf16.mxu0 0
      %5941 = vmatpush1.bf16.msra.mxu0 %v5911
      %5942 = vmatprep.subr.bf16.mxu0 0
      %5943 = vmatpush1.bf16.msra.mxu0 0
      %5944 = vmatprep.subr.bf16.mxu0 0
      %5945 = vmatpush1.bf16.msra.mxu0 0
      %5946 = vmatprep.subr.bf16.mxu0 0
      %5947 = vmatpush1.bf16.msra.mxu0 0
      %5948 = vmatprep.subr.bf16.mxu0 0
      %5949 = vmatpush1.bf16.msra.mxu0 0
      %5950 = vmatprep.subr.bf16.mxu0 0
      %5951 = vmatpush1.bf16.msra.mxu0 0
      %5952 = vmatprep.subr.bf16.mxu0 0
      %5953 = vmatpush1.bf16.msra.mxu0 0
      %5954 = vmatprep.subr.bf16.mxu0 0
      %5955 = vmatpush1.bf16.msra.mxu0 0
      %5956 = vmatprep.subr.bf16.mxu0 0
      %5957 = vmatpush1.bf16.msra.mxu0 0
      %5958 = vmatprep.subr.bf16.mxu0 0
      %5959 = vmatpush1.bf16.msra.mxu0 0
      %5960 = vmatprep.subr.bf16.mxu0 0
      %5961 = vmatpush1.bf16.msra.mxu0 0
      %5962 = vmatprep.subr.bf16.mxu0 0
      %5963 = vmatpush1.bf16.msra.mxu0 0
      %5964 = vmatprep.subr.bf16.mxu0 0
      %5965 = vmatpush1.bf16.msra.mxu0 0
      %5966 = vmatprep.subr.bf16.mxu0 0
      %5967 = vmatpush1.bf16.msra.mxu0 0
      %5968 = vmatprep.subr.bf16.mxu0 0
      %5969 = vmatpush1.bf16.msra.mxu0 0
      %5970 = vmatprep.mubr.bf16.mxu0 0
      %5971 = vmatmul.mubr.bf16.gmra.mrb[0].mxu0 %v5915
      %v5972 = vpop.f32.mrb[0].mxu0
      %v5973 = vadd.f32 0.0, %v5972
      %v5974 = vpop.f32.mrb[0].mxu0
      %v5975 = vpop.f32.mrb[0].mxu0
      %v5976 = vadd.f32 0.0, %v5975
      %v5977 = vpop.f32.mrb[0].mxu0
      %5978 = vmatprep.mubr.bf16.mxu0 0
      %5979 = vmatmul.mubr.bf16.gmra.mrb[0].mxu0 %v5918
      %v5980 = vpop.f32.mrb[0].mxu0
      %v5981 = vadd.f32 0.0, %v5980
      %v5982 = vpop.f32.mrb[0].mxu0
      %v5983 = vpop.f32.mrb[0].mxu0
      %v5984 = vadd.f32 0.0, %v5983
      %v5985 = vpop.f32.mrb[0].mxu0
      %5986 = vmatprep.mubr.bf16.mxu0 0
      %5987 = vmatmul.mubr.bf16.gmra.mrb[0].mxu0 %v5921
      %v5988 = vpop.f32.mrb[0].mxu0
      %v5989 = vadd.f32 0.0, %v5988
      %v5990 = vpop.f32.mrb[0].mxu0
      %v5991 = vpop.f32.mrb[0].mxu0
      %v5992 = vadd.f32 0.0, %v5991
      %v5993 = vpop.f32.mrb[0].mxu0
      %5994 = vmatprep.mubr.bf16.mxu0 0
      %5995 = vmatmul.mubr.bf16.gmra.mrb[0].mxu0 %v5924
      %v5996 = vpop.f32.mrb[0].mxu0
      %v5997 = vadd.f32 0.0, %v5996
      %v5998 = vpop.f32.mrb[0].mxu0
      %v5999 = vpop.f32.mrb[0].mxu0
      %v6000 = vadd.f32 0.0, %v5999
      %v6001 = vpop.f32.mrb[0].mxu0
      %6002 = vmatprep.mubr.bf16.mxu0 0
      %6003 = vmatmul.mubr.bf16.gmra.mrb[0].mxu0 %v5927
      %v6004 = vpop.f32.mrb[0].mxu0
      %v6005 = vadd.f32 0.0, %v6004
      %v6006 = vpop.f32.mrb[0].mxu0
      %v6007 = vpop.f32.mrb[0].mxu0
      %v6008 = vadd.f32 0.0, %v6007
      %v6009 = vpop.f32.mrb[0].mxu0
      %6010 = vmatprep.mubr.bf16.mxu0 0
      %6011 = vmatmul.mubr.bf16.gmra.mrb[0].mxu0 %v5930
      %v6012 = vpop.f32.mrb[0].mxu0
      %v6013 = vadd.f32 0.0, %v6012
      %v6014 = vpop.f32.mrb[0].mxu0
      %v6015 = vpop.f32.mrb[0].mxu0
      %v6016 = vadd.f32 0.0, %v6015
      %v6017 = vpop.f32.mrb[0].mxu0
      %6018 = vmatprep.mubr.bf16.mxu0 0
      %6019 = vmatmul.mubr.bf16.gmra.mrb[0].mxu0 %v5933
      %v6020 = vpop.f32.mrb[0].mxu0
      %v6021 = vadd.f32 0.0, %v6020
      %v6022 = vpop.f32.mrb[0].mxu0
      %v6023 = vpop.f32.mrb[0].mxu0
      %v6024 = vadd.f32 0.0, %v6023
      %v6025 = vpop.f32.mrb[0].mxu0
      %6026 = vmatprep.mubr.bf16.mxu0 0
      %6027 = vmatmul.mubr.bf16.gmra.mrb[0].mxu0 %v5936
      %v6028 = vpop.f32.mrb[0].mxu0
      %v6029 = vadd.f32 0.0, %v6028
      %v6030 = vpop.f32.mrb[0].mxu0
      %v6031 = vpop.f32.mrb[0].mxu0
      %v6032 = vpop.f32.mrb[0].mxu0
      %6033 = vdwg.mxu0
      %v6038 = vunpack.c.l.b16 %v5830
      %v6039 = vunpack.c.l.b16 %v5831
      %v6040 = vunpack.c.l.b16 %v5832
      %v6041 = vunpack.c.l.b16 %v5833
      %v6042 = vpack.c.b16 %v6039, %v6038
      %v6043 = vpack.c.b16 %v6041, %v6040
      %v6046 = vsel %vm5710, %v5822, 0
      %v6048 = vsel %vm5710, %v5823, 0
      %v6050 = vsel %vm5710, %v5824, 0
      %v6052 = vsel %vm5710, %v5825, 0
      %v6054 = vsel %vm5710, %v5826, 0
      %v6056 = vsel %vm5710, %v5827, 0
      %v6058 = vsel %vm5710, %v5828, 0
      %v6060 = vsel %vm5710, %v5829, 0
      %6062 = vmatprep.subr.bf16.mxu0 0
      %6063 = vmatpush1.bf16.msra.mxu0 %v6042
      %6064 = vmatprep.subr.bf16.mxu0 0
      %6065 = vmatpush1.bf16.msra.mxu0 %v6043
      %6066 = vmatprep.subr.bf16.mxu0 0
      %6067 = vmatpush1.bf16.msra.mxu0 0
      %6068 = vmatprep.subr.bf16.mxu0 0
      %6069 = vmatpush1.bf16.msra.mxu0 0
      %6070 = vmatprep.subr.bf16.mxu0 0
      %6071 = vmatpush1.bf16.msra.mxu0 0
      %6072 = vmatprep.subr.bf16.mxu0 0
      %6073 = vmatpush1.bf16.msra.mxu0 0
      %6074 = vmatprep.subr.bf16.mxu0 0
      %6075 = vmatpush1.bf16.msra.mxu0 0
      %6076 = vmatprep.subr.bf16.mxu0 0
      %6077 = vmatpush1.bf16.msra.mxu0 0
      %6078 = vmatprep.subr.bf16.mxu0 0
      %6079 = vmatpush1.bf16.msra.mxu0 0
      %6080 = vmatprep.subr.bf16.mxu0 0
      %6081 = vmatpush1.bf16.msra.mxu0 0
      %6082 = vmatprep.subr.bf16.mxu0 0
      %6083 = vmatpush1.bf16.msra.mxu0 0
      %6084 = vmatprep.subr.bf16.mxu0 0
      %6085 = vmatpush1.bf16.msra.mxu0 0
      %6086 = vmatprep.subr.bf16.mxu0 0
      %6087 = vmatpush1.bf16.msra.mxu0 0
      %6088 = vmatprep.subr.bf16.mxu0 0
      %6089 = vmatpush1.bf16.msra.mxu0 0
      %6090 = vmatprep.subr.bf16.mxu0 0
      %6091 = vmatpush1.bf16.msra.mxu0 0
      %6092 = vmatprep.subr.bf16.mxu0 0
      %6093 = vmatpush1.bf16.msra.mxu0 0
      %6094 = vmatprep.mubr.bf16.mxu0 0
      %6095 = vmatmul.mubr.bf16.gmra.mrb[0].mxu0 %v6046
      %v6096 = vpop.f32.mrb[0].mxu0
      %v6097 = vadd.f32 %v5973, %v6096
      %v6098 = vpop.f32.mrb[0].mxu0
      %v6099 = vpop.f32.mrb[0].mxu0
      %v6100 = vadd.f32 %v5976, %v6099
      %v6101 = vpop.f32.mrb[0].mxu0
      %6102 = vmatprep.mubr.bf16.mxu0 0
      %6103 = vmatmul.mubr.bf16.gmra.mrb[0].mxu0 %v6048
      %v6104 = vpop.f32.mrb[0].mxu0
      %v6105 = vadd.f32 %v5981, %v6104
      %v6106 = vpop.f32.mrb[0].mxu0
      %v6107 = vpop.f32.mrb[0].mxu0
      %v6108 = vadd.f32 %v5984, %v6107
      %v6109 = vpop.f32.mrb[0].mxu0
      %6110 = vmatprep.mubr.bf16.mxu0 0
      %6111 = vmatmul.mubr.bf16.gmra.mrb[0].mxu0 %v6050
      %v6112 = vpop.f32.mrb[0].mxu0
      %v6113 = vadd.f32 %v5989, %v6112
      %v6114 = vpop.f32.mrb[0].mxu0
      %v6115 = vpop.f32.mrb[0].mxu0
      %v6116 = vadd.f32 %v5992, %v6115
      %v6117 = vpop.f32.mrb[0].mxu0
      %6118 = vmatprep.mubr.bf16.mxu0 0
      %6119 = vmatmul.mubr.bf16.gmra.mrb[0].mxu0 %v6052
      %v6120 = vpop.f32.mrb[0].mxu0
      %v6121 = vadd.f32 %v5997, %v6120
      %v6122 = vpop.f32.mrb[0].mxu0
      %v6123 = vpop.f32.mrb[0].mxu0
      %v6124 = vadd.f32 %v6000, %v6123
      %v6125 = vpop.f32.mrb[0].mxu0
      %6126 = vmatprep.mubr.bf16.mxu0 0
      %6127 = vmatmul.mubr.bf16.gmra.mrb[0].mxu0 %v6054
      %v6128 = vpop.f32.mrb[0].mxu0
      %v6129 = vadd.f32 %v6005, %v6128
      %v6130 = vpop.f32.mrb[0].mxu0
      %v6131 = vpop.f32.mrb[0].mxu0
      %v6132 = vadd.f32 %v6008, %v6131
      %v6133 = vpop.f32.mrb[0].mxu0
      %6134 = vmatprep.mubr.bf16.mxu0 0
      %6135 = vmatmul.mubr.bf16.gmra.mrb[0].mxu0 %v6056
      %v6136 = vpop.f32.mrb[0].mxu0
      %v6137 = vadd.f32 %v6013, %v6136
      %v6138 = vpop.f32.mrb[0].mxu0
      %v6139 = vpop.f32.mrb[0].mxu0
      %v6140 = vadd.f32 %v6016, %v6139
      %v6141 = vpop.f32.mrb[0].mxu0
      %6142 = vmatprep.mubr.bf16.mxu0 0
      %6143 = vmatmul.mubr.bf16.gmra.mrb[0].mxu0 %v6058
      %v6144 = vpop.f32.mrb[0].mxu0
      %v6145 = vadd.f32 %v6021, %v6144
      %v6146 = vpop.f32.mrb[0].mxu0
      %v6147 = vpop.f32.mrb[0].mxu0
      %v6148 = vadd.f32 %v6024, %v6147
      %v6149 = vpop.f32.mrb[0].mxu0
      %6150 = vmatprep.mubr.bf16.mxu0 0
      %6151 = vmatmul.mubr.bf16.gmra.mrb[0].mxu0 %v6060
      %v6152 = vpop.f32.mrb[0].mxu0
      %v6153 = vadd.f32 %v6029, %v6152
      %v6154 = vpop.f32.mrb[0].mxu0
      %v6155 = vpop.f32.mrb[0].mxu0
      %v6156 = vpop.f32.mrb[0].mxu0
      %6157 = vdwg.mxu0
      %s6158 = scalar_lea.vmem %s5, 32
      %v6159 = vld [vmem:[%s6158] sm:$0xf]
      %v6160 = vld [vmem:[%s6158 + $0x4] sm:$0xf]
      %v6161 = vld [vmem:[%s6158 + $0x8] sm:$0xf]
      %v6162 = vld [vmem:[%s6158 + $0xc] sm:$0xf]
      %v6171 = vrot.slane %v5822, 1
      %v6172 = vrot.slane %v5823, 1
      %v6173 = vsel %vm1385, %v6171, %v6172
      %v6174 = vrot.slane %v5824, 1
      %v6175 = vsel %vm1385, %v6172, %v6174
      %v6176 = vrot.slane %v5825, 1
      %v6177 = vsel %vm1385, %v6174, %v6176
      %v6178 = vrot.slane %v5826, 1
      %v6179 = vsel %vm1385, %v6176, %v6178
      %v6180 = vrot.slane %v5827, 1
      %v6181 = vsel %vm1385, %v6178, %v6180
      %v6182 = vrot.slane %v5828, 1
      %v6183 = vsel %vm1385, %v6180, %v6182
      %v6184 = vrot.slane %v5829, 1
      %v6185 = vsel %vm1385, %v6182, %v6184
      %v6190 = vunpack.c.l.b16 %v6159
      %v6191 = vunpack.c.l.b16 %v6160
      %v6192 = vunpack.c.l.b16 %v6161
      %v6193 = vunpack.c.l.b16 %v6162
      %v6194 = vpack.c.b16 %v6191, %v6190
      %v6195 = vpack.c.b16 %v6193, %v6192
      %v6199 = vsel %vm5710, %v6173, 0
      %v6202 = vsel %vm5710, %v6175, 0
      %v6205 = vsel %vm5710, %v6177, 0
      %v6208 = vsel %vm5710, %v6179, 0
      %v6211 = vsel %vm5710, %v6181, 0
      %v6214 = vsel %vm5710, %v6183, 0
      %v6217 = vsel %vm5710, %v6185, 0
      %v6220 = vsel %vm5710, %v6184, 0
      %6222 = vmatprep.subr.bf16.mxu0 0
      %6223 = vmatpush1.bf16.msra.mxu0 %v6194
      %6224 = vmatprep.subr.bf16.mxu0 0
      %6225 = vmatpush1.bf16.msra.mxu0 %v6195
      %6226 = vmatprep.subr.bf16.mxu0 0
      %6227 = vmatpush1.bf16.msra.mxu0 0
      %6228 = vmatprep.subr.bf16.mxu0 0
      %6229 = vmatpush1.bf16.msra.mxu0 0
      %6230 = vmatprep.subr.bf16.mxu0 0
      %6231 = vmatpush1.bf16.msra.mxu0 0
      %6232 = vmatprep.subr.bf16.mxu0 0
      %6233 = vmatpush1.bf16.msra.mxu0 0
      %6234 = vmatprep.subr.bf16.mxu0 0
      %6235 = vmatpush1.bf16.msra.mxu0 0
      %6236 = vmatprep.subr.bf16.mxu0 0
      %6237 = vmatpush1.bf16.msra.mxu0 0
      %6238 = vmatprep.subr.bf16.mxu0 0
      %6239 = vmatpush1.bf16.msra.mxu0 0
      %6240 = vmatprep.subr.bf16.mxu0 0
      %6241 = vmatpush1.bf16.msra.mxu0 0
      %6242 = vmatprep.subr.bf16.mxu0 0
      %6243 = vmatpush1.bf16.msra.mxu0 0
      %6244 = vmatprep.subr.bf16.mxu0 0
      %6245 = vmatpush1.bf16.msra.mxu0 0
      %6246 = vmatprep.subr.bf16.mxu0 0
      %6247 = vmatpush1.bf16.msra.mxu0 0
      %6248 = vmatprep.subr.bf16.mxu0 0
      %6249 = vmatpush1.bf16.msra.mxu0 0
      %6250 = vmatprep.subr.bf16.mxu0 0
      %6251 = vmatpush1.bf16.msra.mxu0 0
      %6252 = vmatprep.subr.bf16.mxu0 0
      %6253 = vmatpush1.bf16.msra.mxu0 0
      %6254 = vmatprep.mubr.bf16.mxu0 0
      %6255 = vmatmul.mubr.bf16.gmra.mrb[0].mxu0 %v6199
      %v6256 = vpop.f32.mrb[0].mxu0
      %v6257 = vadd.f32 0.0, %v6256
      %v6258 = vpop.f32.mrb[0].mxu0
      %v6259 = vpop.f32.mrb[0].mxu0
      %v6260 = vadd.f32 0.0, %v6259
      %v6261 = vpop.f32.mrb[0].mxu0
      %6262 = vmatprep.mubr.bf16.mxu0 0
      %6263 = vmatmul.mubr.bf16.gmra.mrb[0].mxu0 %v6202
      %v6264 = vpop.f32.mrb[0].mxu0
      %v6265 = vadd.f32 0.0, %v6264
      %v6266 = vpop.f32.mrb[0].mxu0
      %v6267 = vpop.f32.mrb[0].mxu0
      %v6268 = vadd.f32 0.0, %v6267
      %v6269 = vpop.f32.mrb[0].mxu0
      %6270 = vmatprep.mubr.bf16.mxu0 0
      %6271 = vmatmul.mubr.bf16.gmra.mrb[0].mxu0 %v6205
      %v6272 = vpop.f32.mrb[0].mxu0
      %v6273 = vadd.f32 0.0, %v6272
      %v6274 = vpop.f32.mrb[0].mxu0
      %v6275 = vpop.f32.mrb[0].mxu0
      %v6276 = vadd.f32 0.0, %v6275
      %v6277 = vpop.f32.mrb[0].mxu0
      %6278 = vmatprep.mubr.bf16.mxu0 0
      %6279 = vmatmul.mubr.bf16.gmra.mrb[0].mxu0 %v6208
      %v6280 = vpop.f32.mrb[0].mxu0
      %v6281 = vadd.f32 0.0, %v6280
      %v6282 = vpop.f32.mrb[0].mxu0
      %v6283 = vpop.f32.mrb[0].mxu0
      %v6284 = vadd.f32 0.0, %v6283
      %v6285 = vpop.f32.mrb[0].mxu0
      %6286 = vmatprep.mubr.bf16.mxu0 0
      %6287 = vmatmul.mubr.bf16.gmra.mrb[0].mxu0 %v6211
      %v6288 = vpop.f32.mrb[0].mxu0
      %v6289 = vadd.f32 0.0, %v6288
      %v6290 = vpop.f32.mrb[0].mxu0
      %v6291 = vpop.f32.mrb[0].mxu0
      %v6292 = vadd.f32 0.0, %v6291
      %v6293 = vpop.f32.mrb[0].mxu0
      %6294 = vmatprep.mubr.bf16.mxu0 0
      %6295 = vmatmul.mubr.bf16.gmra.mrb[0].mxu0 %v6214
      %v6296 = vpop.f32.mrb[0].mxu0
      %v6297 = vadd.f32 0.0, %v6296
      %v6298 = vpop.f32.mrb[0].mxu0
      %v6299 = vpop.f32.mrb[0].mxu0
      %v6300 = vadd.f32 0.0, %v6299
      %v6301 = vpop.f32.mrb[0].mxu0
      %6302 = vmatprep.mubr.bf16.mxu0 0
      %6303 = vmatmul.mubr.bf16.gmra.mrb[0].mxu0 %v6217
      %v6304 = vpop.f32.mrb[0].mxu0
      %v6305 = vadd.f32 0.0, %v6304
      %v6306 = vpop.f32.mrb[0].mxu0
      %v6307 = vpop.f32.mrb[0].mxu0
      %v6308 = vadd.f32 0.0, %v6307
      %v6309 = vpop.f32.mrb[0].mxu0
      %6310 = vmatprep.mubr.bf16.mxu0 0
      %6311 = vmatmul.mubr.bf16.gmra.mrb[0].mxu0 %v6220
      %v6312 = vpop.f32.mrb[0].mxu0
      %v6313 = vadd.f32 0.0, %v6312
      %v6314 = vpop.f32.mrb[0].mxu0
      %v6315 = vpop.f32.mrb[0].mxu0
      %v6316 = vpop.f32.mrb[0].mxu0
      %6317 = vdwg.mxu0
      %v6318 = vadd.f32 %v6097, %v6257
      %v6319 = vadd.f32 %v6100, %v6260
      %v6320 = vadd.f32 %v6105, %v6265
      %v6321 = vadd.f32 %v6108, %v6268
      %v6322 = vadd.f32 %v6113, %v6273
      %v6323 = vadd.f32 %v6116, %v6276
      %v6324 = vadd.f32 %v6121, %v6281
      %v6325 = vadd.f32 %v6124, %v6284
      %v6326 = vadd.f32 %v6129, %v6289
      %v6327 = vadd.f32 %v6132, %v6292
      %v6328 = vadd.f32 %v6137, %v6297
      %v6329 = vadd.f32 %v6140, %v6300
      %v6330 = vadd.f32 %v6145, %v6305
      %v6331 = vadd.f32 %v6148, %v6308
      %v6332 = vadd.f32 %v6153, %v6313
      %s6333 = scalar_lea.vmem %s5, 48
      %v6334 = vld [vmem:[%s6333] sm:$0xf]
      %v6335 = vld [vmem:[%s6333 + $0x4] sm:$0xf]
      %v6336 = vld [vmem:[%s6333 + $0x8] sm:$0xf]
      %v6337 = vld [vmem:[%s6333 + $0xc] sm:$0xf]
      %v6338 = vrot.slane %v5840, 1
      %v6339 = vrot.slane %v5842, 2
      %v6340 = vor.u32 %v6338, %v6339
      %v6341 = vrot.slane %v5851, 1
      %v6342 = vrot.slane %v5847, 2
      %v6343 = vor.u32 %v6341, %v6342
      %v6344 = vsel %vm1890, %v6340, %v6343
      %v6345 = vrot.slane %v5859, 1
      %v6346 = vrot.slane %v5855, 2
      %v6347 = vor.u32 %v6345, %v6346
      %v6348 = vsel %vm1890, %v6343, %v6347
      %v6349 = vrot.slane %v5867, 1
      %v6350 = vrot.slane %v5863, 2
      %v6351 = vor.u32 %v6349, %v6350
      %v6352 = vsel %vm1890, %v6347, %v6351
      %v6353 = vrot.slane %v5875, 1
      %v6354 = vrot.slane %v5871, 2
      %v6355 = vor.u32 %v6353, %v6354
      %v6356 = vsel %vm1890, %v6351, %v6355
      %v6357 = vrot.slane %v5883, 1
      %v6358 = vrot.slane %v5879, 2
      %v6359 = vor.u32 %v6357, %v6358
      %v6360 = vsel %vm1890, %v6355, %v6359
      %v6361 = vrot.slane %v5891, 1
      %v6362 = vrot.slane %v5887, 2
      %v6363 = vor.u32 %v6361, %v6362
      %v6364 = vsel %vm1890, %v6359, %v6363
      %v6365 = vrot.slane %v5899, 1
      %v6366 = vrot.slane %v5895, 2
      %v6367 = vor.u32 %v6365, %v6366
      %v6368 = vsel %vm1890, %v6363, %v6367
      %v6373 = vunpack.c.l.b16 %v6334
      %v6374 = vunpack.c.l.b16 %v6335
      %v6375 = vunpack.c.l.b16 %v6336
      %v6376 = vunpack.c.l.b16 %v6337
      %v6377 = vpack.c.b16 %v6374, %v6373
      %v6378 = vpack.c.b16 %v6376, %v6375
      %v6382 = vsel %vm5710, %v6344, 0
      %v6385 = vsel %vm5710, %v6348, 0
      %v6388 = vsel %vm5710, %v6352, 0
      %v6391 = vsel %vm5710, %v6356, 0
      %v6394 = vsel %vm5710, %v6360, 0
      %v6397 = vsel %vm5710, %v6364, 0
      %v6400 = vsel %vm5710, %v6368, 0
      %v6403 = vsel %vm5710, %v6367, 0
      %6405 = vmatprep.subr.bf16.mxu0 0
      %6406 = vmatpush1.bf16.msra.mxu0 %v6377
      %6407 = vmatprep.subr.bf16.mxu0 0
      %6408 = vmatpush1.bf16.msra.mxu0 %v6378
      %6409 = vmatprep.subr.bf16.mxu0 0
      %6410 = vmatpush1.bf16.msra.mxu0 0
      %6411 = vmatprep.subr.bf16.mxu0 0
      %6412 = vmatpush1.bf16.msra.mxu0 0
      %6413 = vmatprep.subr.bf16.mxu0 0
      %6414 = vmatpush1.bf16.msra.mxu0 0
      %6415 = vmatprep.subr.bf16.mxu0 0
      %6416 = vmatpush1.bf16.msra.mxu0 0
      %6417 = vmatprep.subr.bf16.mxu0 0
      %6418 = vmatpush1.bf16.msra.mxu0 0
      %6419 = vmatprep.subr.bf16.mxu0 0
      %6420 = vmatpush1.bf16.msra.mxu0 0
      %6421 = vmatprep.subr.bf16.mxu0 0
      %6422 = vmatpush1.bf16.msra.mxu0 0
      %6423 = vmatprep.subr.bf16.mxu0 0
      %6424 = vmatpush1.bf16.msra.mxu0 0
      %6425 = vmatprep.subr.bf16.mxu0 0
      %6426 = vmatpush1.bf16.msra.mxu0 0
      %6427 = vmatprep.subr.bf16.mxu0 0
      %6428 = vmatpush1.bf16.msra.mxu0 0
      %6429 = vmatprep.subr.bf16.mxu0 0
      %6430 = vmatpush1.bf16.msra.mxu0 0
      %6431 = vmatprep.subr.bf16.mxu0 0
      %6432 = vmatpush1.bf16.msra.mxu0 0
      %6433 = vmatprep.subr.bf16.mxu0 0
      %6434 = vmatpush1.bf16.msra.mxu0 0
      %6435 = vmatprep.subr.bf16.mxu0 0
      %6436 = vmatpush1.bf16.msra.mxu0 0
      %6437 = vmatprep.mubr.bf16.mxu0 0
      %6438 = vmatmul.mubr.bf16.gmra.mrb[0].mxu0 %v6382
      %v6439 = vpop.f32.mrb[0].mxu0
      %v6440 = vadd.f32 0.0, %v6439
      %v6441 = vpop.f32.mrb[0].mxu0
      %v6442 = vpop.f32.mrb[0].mxu0
      %v6443 = vadd.f32 0.0, %v6442
      %v6444 = vpop.f32.mrb[0].mxu0
      %6445 = vmatprep.mubr.bf16.mxu0 0
      %6446 = vmatmul.mubr.bf16.gmra.mrb[0].mxu0 %v6385
      %v6447 = vpop.f32.mrb[0].mxu0
      %v6448 = vadd.f32 0.0, %v6447
      %v6449 = vpop.f32.mrb[0].mxu0
      %v6450 = vpop.f32.mrb[0].mxu0
      %v6451 = vadd.f32 0.0, %v6450
      %v6452 = vpop.f32.mrb[0].mxu0
      %6453 = vmatprep.mubr.bf16.mxu0 0
      %6454 = vmatmul.mubr.bf16.gmra.mrb[0].mxu0 %v6388
      %v6455 = vpop.f32.mrb[0].mxu0
      %v6456 = vadd.f32 0.0, %v6455
      %v6457 = vpop.f32.mrb[0].mxu0
      %v6458 = vpop.f32.mrb[0].mxu0
      %v6459 = vadd.f32 0.0, %v6458
      %v6460 = vpop.f32.mrb[0].mxu0
      %6461 = vmatprep.mubr.bf16.mxu0 0
      %6462 = vmatmul.mubr.bf16.gmra.mrb[0].mxu0 %v6391
      %v6463 = vpop.f32.mrb[0].mxu0
      %v6464 = vadd.f32 0.0, %v6463
      %v6465 = vpop.f32.mrb[0].mxu0
      %v6466 = vpop.f32.mrb[0].mxu0
      %v6467 = vadd.f32 0.0, %v6466
      %v6468 = vpop.f32.mrb[0].mxu0
      %6469 = vmatprep.mubr.bf16.mxu0 0
      %6470 = vmatmul.mubr.bf16.gmra.mrb[0].mxu0 %v6394
      %v6471 = vpop.f32.mrb[0].mxu0
      %v6472 = vadd.f32 0.0, %v6471
      %v6473 = vpop.f32.mrb[0].mxu0
      %v6474 = vpop.f32.mrb[0].mxu0
      %v6475 = vadd.f32 0.0, %v6474
      %v6476 = vpop.f32.mrb[0].mxu0
      %6477 = vmatprep.mubr.bf16.mxu0 0
      %6478 = vmatmul.mubr.bf16.gmra.mrb[0].mxu0 %v6397
      %v6479 = vpop.f32.mrb[0].mxu0
      %v6480 = vadd.f32 0.0, %v6479
      %v6481 = vpop.f32.mrb[0].mxu0
      %v6482 = vpop.f32.mrb[0].mxu0
      %v6483 = vadd.f32 0.0, %v6482
      %v6484 = vpop.f32.mrb[0].mxu0
      %6485 = vmatprep.mubr.bf16.mxu0 0
      %6486 = vmatmul.mubr.bf16.gmra.mrb[0].mxu0 %v6400
      %v6487 = vpop.f32.mrb[0].mxu0
      %v6488 = vadd.f32 0.0, %v6487
      %v6489 = vpop.f32.mrb[0].mxu0
      %v6490 = vpop.f32.mrb[0].mxu0
      %v6491 = vadd.f32 0.0, %v6490
      %v6492 = vpop.f32.mrb[0].mxu0
      %6493 = vmatprep.mubr.bf16.mxu0 0
      %6494 = vmatmul.mubr.bf16.gmra.mrb[0].mxu0 %v6403
      %v6495 = vpop.f32.mrb[0].mxu0
      %v6496 = vadd.f32 0.0, %v6495
      %v6497 = vpop.f32.mrb[0].mxu0
      %v6498 = vpop.f32.mrb[0].mxu0
      %v6499 = vpop.f32.mrb[0].mxu0
      %6500 = vdwg.mxu0
      %v6501 = vadd.f32 %v6318, %v6440
      %v6502 = vadd.f32 %v6319, %v6443
      %v6503 = vadd.f32 %v6320, %v6448
      %v6504 = vadd.f32 %v6321, %v6451
      %v6505 = vadd.f32 %v6322, %v6456
      %v6506 = vadd.f32 %v6323, %v6459
      %v6507 = vadd.f32 %v6324, %v6464
      %v6508 = vadd.f32 %v6325, %v6467
      %v6509 = vadd.f32 %v6326, %v6472
      %v6510 = vadd.f32 %v6327, %v6475
      %v6511 = vadd.f32 %v6328, %v6480
      %v6512 = vadd.f32 %v6329, %v6483
      %v6513 = vadd.f32 %v6330, %v6488
      %v6514 = vadd.f32 %v6331, %v6491
      %v6515 = vadd.f32 %v6332, %v6496
      %s6516 = scalar_lea.vmem %s5, 64
      %v6517 = vld [vmem:[%s6516] sm:$0xf]
      %v6518 = vld [vmem:[%s6516 + $0x4] sm:$0xf]
      %v6519 = vld [vmem:[%s6516 + $0x8] sm:$0xf]
      %v6520 = vld [vmem:[%s6516 + $0xc] sm:$0xf]
      %v6521 = vrot.slane %v5822, 2
      %v6522 = vrot.slane %v5823, 2
      %v6523 = vsel %vm2464, %v6521, %v6522
      %v6524 = vrot.slane %v5824, 2
      %v6525 = vsel %vm2464, %v6522, %v6524
      %v6526 = vrot.slane %v5825, 2
      %v6527 = vsel %vm2464, %v6524, %v6526
      %v6528 = vrot.slane %v5826, 2
      %v6529 = vsel %vm2464, %v6526, %v6528
      %v6530 = vrot.slane %v5827, 2
      %v6531 = vsel %vm2464, %v6528, %v6530
      %v6532 = vrot.slane %v5828, 2
      %v6533 = vsel %vm2464, %v6530, %v6532
      %v6534 = vrot.slane %v5829, 2
      %v6535 = vsel %vm2464, %v6532, %v6534
      %v6540 = vunpack.c.l.b16 %v6517
      %v6541 = vunpack.c.l.b16 %v6518
      %v6542 = vunpack.c.l.b16 %v6519
      %v6543 = vunpack.c.l.b16 %v6520
      %v6544 = vpack.c.b16 %v6541, %v6540
      %v6545 = vpack.c.b16 %v6543, %v6542
      %v6549 = vsel %vm5710, %v6523, 0
      %v6552 = vsel %vm5710, %v6525, 0
      %v6555 = vsel %vm5710, %v6527, 0
      %v6558 = vsel %vm5710, %v6529, 0
      %v6561 = vsel %vm5710, %v6531, 0
      %v6564 = vsel %vm5710, %v6533, 0
      %v6567 = vsel %vm5710, %v6535, 0
      %v6570 = vsel %vm5710, %v6534, 0
      %6572 = vmatprep.subr.bf16.mxu0 0
      %6573 = vmatpush1.bf16.msra.mxu0 %v6544
      %6574 = vmatprep.subr.bf16.mxu0 0
      %6575 = vmatpush1.bf16.msra.mxu0 %v6545
      %6576 = vmatprep.subr.bf16.mxu0 0
      %6577 = vmatpush1.bf16.msra.mxu0 0
      %6578 = vmatprep.subr.bf16.mxu0 0
      %6579 = vmatpush1.bf16.msra.mxu0 0
      %6580 = vmatprep.subr.bf16.mxu0 0
      %6581 = vmatpush1.bf16.msra.mxu0 0
      %6582 = vmatprep.subr.bf16.mxu0 0
      %6583 = vmatpush1.bf16.msra.mxu0 0
      %6584 = vmatprep.subr.bf16.mxu0 0
      %6585 = vmatpush1.bf16.msra.mxu0 0
      %6586 = vmatprep.subr.bf16.mxu0 0
      %6587 = vmatpush1.bf16.msra.mxu0 0
      %6588 = vmatprep.subr.bf16.mxu0 0
      %6589 = vmatpush1.bf16.msra.mxu0 0
      %6590 = vmatprep.subr.bf16.mxu0 0
      %6591 = vmatpush1.bf16.msra.mxu0 0
      %6592 = vmatprep.subr.bf16.mxu0 0
      %6593 = vmatpush1.bf16.msra.mxu0 0
      %6594 = vmatprep.subr.bf16.mxu0 0
      %6595 = vmatpush1.bf16.msra.mxu0 0
      %6596 = vmatprep.subr.bf16.mxu0 0
      %6597 = vmatpush1.bf16.msra.mxu0 0
      %6598 = vmatprep.subr.bf16.mxu0 0
      %6599 = vmatpush1.bf16.msra.mxu0 0
      %6600 = vmatprep.subr.bf16.mxu0 0
      %6601 = vmatpush1.bf16.msra.mxu0 0
      %6602 = vmatprep.subr.bf16.mxu0 0
      %6603 = vmatpush1.bf16.msra.mxu0 0
      %6604 = vmatprep.mubr.bf16.mxu0 0
      %6605 = vmatmul.mubr.bf16.gmra.mrb[0].mxu0 %v6549
      %v6606 = vpop.f32.mrb[0].mxu0
      %v6607 = vadd.f32 0.0, %v6606
      %v6608 = vpop.f32.mrb[0].mxu0
      %v6609 = vpop.f32.mrb[0].mxu0
      %v6610 = vadd.f32 0.0, %v6609
      %v6611 = vpop.f32.mrb[0].mxu0
      %6612 = vmatprep.mubr.bf16.mxu0 0
      %6613 = vmatmul.mubr.bf16.gmra.mrb[0].mxu0 %v6552
      %v6614 = vpop.f32.mrb[0].mxu0
      %v6615 = vadd.f32 0.0, %v6614
      %v6616 = vpop.f32.mrb[0].mxu0
      %v6617 = vpop.f32.mrb[0].mxu0
      %v6618 = vadd.f32 0.0, %v6617
      %v6619 = vpop.f32.mrb[0].mxu0
      %6620 = vmatprep.mubr.bf16.mxu0 0
      %6621 = vmatmul.mubr.bf16.gmra.mrb[0].mxu0 %v6555
      %v6622 = vpop.f32.mrb[0].mxu0
      %v6623 = vadd.f32 0.0, %v6622
      %v6624 = vpop.f32.mrb[0].mxu0
      %v6625 = vpop.f32.mrb[0].mxu0
      %v6626 = vadd.f32 0.0, %v6625
      %v6627 = vpop.f32.mrb[0].mxu0
      %6628 = vmatprep.mubr.bf16.mxu0 0
      %6629 = vmatmul.mubr.bf16.gmra.mrb[0].mxu0 %v6558
      %v6630 = vpop.f32.mrb[0].mxu0
      %v6631 = vadd.f32 0.0, %v6630
      %v6632 = vpop.f32.mrb[0].mxu0
      %v6633 = vpop.f32.mrb[0].mxu0
      %v6634 = vadd.f32 0.0, %v6633
      %v6635 = vpop.f32.mrb[0].mxu0
      %6636 = vmatprep.mubr.bf16.mxu0 0
      %6637 = vmatmul.mubr.bf16.gmra.mrb[0].mxu0 %v6561
      %v6638 = vpop.f32.mrb[0].mxu0
      %v6639 = vadd.f32 0.0, %v6638
      %v6640 = vpop.f32.mrb[0].mxu0
      %v6641 = vpop.f32.mrb[0].mxu0
      %v6642 = vadd.f32 0.0, %v6641
      %v6643 = vpop.f32.mrb[0].mxu0
      %6644 = vmatprep.mubr.bf16.mxu0 0
      %6645 = vmatmul.mubr.bf16.gmra.mrb[0].mxu0 %v6564
      %v6646 = vpop.f32.mrb[0].mxu0
      %v6647 = vadd.f32 0.0, %v6646
      %v6648 = vpop.f32.mrb[0].mxu0
      %v6649 = vpop.f32.mrb[0].mxu0
      %v6650 = vadd.f32 0.0, %v6649
      %v6651 = vpop.f32.mrb[0].mxu0
      %6652 = vmatprep.mubr.bf16.mxu0 0
      %6653 = vmatmul.mubr.bf16.gmra.mrb[0].mxu0 %v6567
      %v6654 = vpop.f32.mrb[0].mxu0
      %v6655 = vadd.f32 0.0, %v6654
      %v6656 = vpop.f32.mrb[0].mxu0
      %v6657 = vpop.f32.mrb[0].mxu0
      %v6658 = vadd.f32 0.0, %v6657
      %v6659 = vpop.f32.mrb[0].mxu0
      %6660 = vmatprep.mubr.bf16.mxu0 0
      %6661 = vmatmul.mubr.bf16.gmra.mrb[0].mxu0 %v6570
      %v6662 = vpop.f32.mrb[0].mxu0
      %v6663 = vadd.f32 0.0, %v6662
      %v6664 = vpop.f32.mrb[0].mxu0
      %v6665 = vpop.f32.mrb[0].mxu0
      %v6666 = vpop.f32.mrb[0].mxu0
      %6667 = vdwg.mxu0
      %v6668 = vadd.f32 %v6501, %v6607
      %v6669 = vadd.f32 %v6502, %v6610
      %v6670 = vadd.f32 %v6503, %v6615
      %v6671 = vadd.f32 %v6504, %v6618
      %v6672 = vadd.f32 %v6505, %v6623
      %v6673 = vadd.f32 %v6506, %v6626
      %v6674 = vadd.f32 %v6507, %v6631
      %v6675 = vadd.f32 %v6508, %v6634
      %v6676 = vadd.f32 %v6509, %v6639
      %v6677 = vadd.f32 %v6510, %v6642
      %v6678 = vadd.f32 %v6511, %v6647
      %v6679 = vadd.f32 %v6512, %v6650
      %v6680 = vadd.f32 %v6513, %v6655
      %v6681 = vadd.f32 %v6514, %v6658
      %v6682 = vadd.f32 %v6515, %v6663
      %v6683 = vpack.c.bf16 %v5821, %v5820
      %s6684 = scalar_lea.vmem %s5, 80
      %v6685 = vld [vmem:[%s6684] sm:$0xf]
      %v6686 = vld [vmem:[%s6684 + $0x4] sm:$0xf]
      %v6687 = vld [vmem:[%s6684 + $0x8] sm:$0xf]
      %v6688 = vld [vmem:[%s6684 + $0xc] sm:$0xf]
      %v6689 = vrot.slane %v5840, 2
      %v6690 = vrot.slane %v5842, 3
      %v6691 = vor.u32 %v6689, %v6690
      %v6692 = vrot.slane %v5851, 2
      %v6693 = vrot.slane %v5847, 3
      %v6694 = vor.u32 %v6692, %v6693
      %v6695 = vsel %vm2969, %v6691, %v6694
      %v6696 = vrot.slane %v5859, 2
      %v6697 = vrot.slane %v5855, 3
      %v6698 = vor.u32 %v6696, %v6697
      %v6699 = vsel %vm2969, %v6694, %v6698
      %v6700 = vrot.slane %v5867, 2
      %v6701 = vrot.slane %v5863, 3
      %v6702 = vor.u32 %v6700, %v6701
      %v6703 = vsel %vm2969, %v6698, %v6702
      %v6704 = vrot.slane %v5875, 2
      %v6705 = vrot.slane %v5871, 3
      %v6706 = vor.u32 %v6704, %v6705
      %v6707 = vsel %vm2969, %v6702, %v6706
      %v6708 = vrot.slane %v5883, 2
      %v6709 = vrot.slane %v5879, 3
      %v6710 = vor.u32 %v6708, %v6709
      %v6711 = vsel %vm2969, %v6706, %v6710
      %v6712 = vrot.slane %v5891, 2
      %v6713 = vrot.slane %v5887, 3
      %v6714 = vor.u32 %v6712, %v6713
      %v6715 = vsel %vm2969, %v6710, %v6714
      %v6717 = vshrl.u32 %v6683, 16
      %v6719 = vrot.slane %v6717, 2
      %v6720 = vshll.u32 %v6683, 16
      %v6722 = vrot.slane %v6720, 3
      %v6723 = vor.u32 %v6719, %v6722
      %v6724 = vsel %vm2969, %v6714, %v6723
      %v6729 = vunpack.c.l.b16 %v6685
      %v6730 = vunpack.c.l.b16 %v6686
      %v6731 = vunpack.c.l.b16 %v6687
      %v6732 = vunpack.c.l.b16 %v6688
      %v6733 = vpack.c.b16 %v6730, %v6729
      %v6734 = vpack.c.b16 %v6732, %v6731
      %v6738 = vsel %vm5710, %v6695, 0
      %v6741 = vsel %vm5710, %v6699, 0
      %v6744 = vsel %vm5710, %v6703, 0
      %v6747 = vsel %vm5710, %v6707, 0
      %v6750 = vsel %vm5710, %v6711, 0
      %v6753 = vsel %vm5710, %v6715, 0
      %v6756 = vsel %vm5710, %v6724, 0
      %v6759 = vsel %vm5710, %v6723, 0
      %6761 = vmatprep.subr.bf16.mxu0 0
      %6762 = vmatpush1.bf16.msra.mxu0 %v6733
      %6763 = vmatprep.subr.bf16.mxu0 0
      %6764 = vmatpush1.bf16.msra.mxu0 %v6734
      %6765 = vmatprep.subr.bf16.mxu0 0
      %6766 = vmatpush1.bf16.msra.mxu0 0
      %6767 = vmatprep.subr.bf16.mxu0 0
      %6768 = vmatpush1.bf16.msra.mxu0 0
      %6769 = vmatprep.subr.bf16.mxu0 0
      %6770 = vmatpush1.bf16.msra.mxu0 0
      %6771 = vmatprep.subr.bf16.mxu0 0
      %6772 = vmatpush1.bf16.msra.mxu0 0
      %6773 = vmatprep.subr.bf16.mxu0 0
      %6774 = vmatpush1.bf16.msra.mxu0 0
      %6775 = vmatprep.subr.bf16.mxu0 0
      %6776 = vmatpush1.bf16.msra.mxu0 0
      %6777 = vmatprep.subr.bf16.mxu0 0
      %6778 = vmatpush1.bf16.msra.mxu0 0
      %6779 = vmatprep.subr.bf16.mxu0 0
      %6780 = vmatpush1.bf16.msra.mxu0 0
      %6781 = vmatprep.subr.bf16.mxu0 0
      %6782 = vmatpush1.bf16.msra.mxu0 0
      %6783 = vmatprep.subr.bf16.mxu0 0
      %6784 = vmatpush1.bf16.msra.mxu0 0
      %6785 = vmatprep.subr.bf16.mxu0 0
      %6786 = vmatpush1.bf16.msra.mxu0 0
      %6787 = vmatprep.subr.bf16.mxu0 0
      %6788 = vmatpush1.bf16.msra.mxu0 0
      %6789 = vmatprep.subr.bf16.mxu0 0
      %6790 = vmatpush1.bf16.msra.mxu0 0
      %6791 = vmatprep.subr.bf16.mxu0 0
      %6792 = vmatpush1.bf16.msra.mxu0 0
      %6793 = vmatprep.mubr.bf16.mxu0 0
      %6794 = vmatmul.mubr.bf16.gmra.mrb[0].mxu0 %v6738
      %v6795 = vpop.f32.mrb[0].mxu0
      %v6796 = vadd.f32 0.0, %v6795
      %v6797 = vpop.f32.mrb[0].mxu0
      %v6798 = vpop.f32.mrb[0].mxu0
      %v6799 = vadd.f32 0.0, %v6798
      %v6800 = vpop.f32.mrb[0].mxu0
      %6801 = vmatprep.mubr.bf16.mxu0 0
      %6802 = vmatmul.mubr.bf16.gmra.mrb[0].mxu0 %v6741
      %v6803 = vpop.f32.mrb[0].mxu0
      %v6804 = vadd.f32 0.0, %v6803
      %v6805 = vpop.f32.mrb[0].mxu0
      %v6806 = vpop.f32.mrb[0].mxu0
      %v6807 = vadd.f32 0.0, %v6806
      %v6808 = vpop.f32.mrb[0].mxu0
      %6809 = vmatprep.mubr.bf16.mxu0 0
      %6810 = vmatmul.mubr.bf16.gmra.mrb[0].mxu0 %v6744
      %v6811 = vpop.f32.mrb[0].mxu0
      %v6812 = vadd.f32 0.0, %v6811
      %v6813 = vpop.f32.mrb[0].mxu0
      %v6814 = vpop.f32.mrb[0].mxu0
      %v6815 = vadd.f32 0.0, %v6814
      %v6816 = vpop.f32.mrb[0].mxu0
      %6817 = vmatprep.mubr.bf16.mxu0 0
      %6818 = vmatmul.mubr.bf16.gmra.mrb[0].mxu0 %v6747
      %v6819 = vpop.f32.mrb[0].mxu0
      %v6820 = vadd.f32 0.0, %v6819
      %v6821 = vpop.f32.mrb[0].mxu0
      %v6822 = vpop.f32.mrb[0].mxu0
      %v6823 = vadd.f32 0.0, %v6822
      %v6824 = vpop.f32.mrb[0].mxu0
      %6825 = vmatprep.mubr.bf16.mxu0 0
      %6826 = vmatmul.mubr.bf16.gmra.mrb[0].mxu0 %v6750
      %v6827 = vpop.f32.mrb[0].mxu0
      %v6828 = vadd.f32 0.0, %v6827
      %v6829 = vpop.f32.mrb[0].mxu0
      %v6830 = vpop.f32.mrb[0].mxu0
      %v6831 = vadd.f32 0.0, %v6830
      %v6832 = vpop.f32.mrb[0].mxu0
      %6833 = vmatprep.mubr.bf16.mxu0 0
      %6834 = vmatmul.mubr.bf16.gmra.mrb[0].mxu0 %v6753
      %v6835 = vpop.f32.mrb[0].mxu0
      %v6836 = vadd.f32 0.0, %v6835
      %v6837 = vpop.f32.mrb[0].mxu0
      %v6838 = vpop.f32.mrb[0].mxu0
      %v6839 = vadd.f32 0.0, %v6838
      %v6840 = vpop.f32.mrb[0].mxu0
      %6841 = vmatprep.mubr.bf16.mxu0 0
      %6842 = vmatmul.mubr.bf16.gmra.mrb[0].mxu0 %v6756
      %v6843 = vpop.f32.mrb[0].mxu0
      %v6844 = vadd.f32 0.0, %v6843
      %v6845 = vpop.f32.mrb[0].mxu0
      %v6846 = vpop.f32.mrb[0].mxu0
      %v6847 = vadd.f32 0.0, %v6846
      %v6848 = vpop.f32.mrb[0].mxu0
      %6849 = vmatprep.mubr.bf16.mxu0 0
      %6850 = vmatmul.mubr.bf16.gmra.mrb[0].mxu0 %v6759
      %v6851 = vpop.f32.mrb[0].mxu0
      %v6852 = vadd.f32 0.0, %v6851
      %v6853 = vpop.f32.mrb[0].mxu0
      %v6854 = vpop.f32.mrb[0].mxu0
      %v6855 = vpop.f32.mrb[0].mxu0
      %6856 = vdwg.mxu0
      %v6857 = vadd.f32 %v6668, %v6796
      %v6858 = vadd.f32 %v6669, %v6799
      %v6859 = vadd.f32 %v6670, %v6804
      %v6860 = vadd.f32 %v6671, %v6807
      %v6861 = vadd.f32 %v6672, %v6812
      %v6862 = vadd.f32 %v6673, %v6815
      %v6863 = vadd.f32 %v6674, %v6820
      %v6864 = vadd.f32 %v6675, %v6823
      %v6865 = vadd.f32 %v6676, %v6828
      %v6866 = vadd.f32 %v6677, %v6831
      %v6867 = vadd.f32 %v6678, %v6836
      %v6868 = vadd.f32 %v6679, %v6839
      %v6869 = vadd.f32 %v6680, %v6844
      %v6870 = vadd.f32 %v6681, %v6847
      %v6871 = vadd.f32 %v6682, %v6852
      %v6872 = vld [vmem:[%s6] sm:$0x1]
      %v6874 = vlaneseq
      %v6875 = vshrl.u32 %v6874, 7
      %v6876 = vsub.s32 0, %v6875
      %v6877 = vrot.slane %v6872, %v6876
      %v6879 = vadd.f32 %v6857, %v6877
      %v6880 = vadd.f32 %v6858, %v6877
      %v6881 = vadd.f32 %v6859, %v6877
      %v6882 = vadd.f32 %v6860, %v6877
      %v6883 = vadd.f32 %v6861, %v6877
      %v6884 = vadd.f32 %v6862, %v6877
      %v6885 = vadd.f32 %v6863, %v6877
      %v6886 = vadd.f32 %v6864, %v6877
      %v6887 = vadd.f32 %v6865, %v6877
      %v6888 = vadd.f32 %v6866, %v6877
      %v6889 = vadd.f32 %v6867, %v6877
      %v6890 = vadd.f32 %v6868, %v6877
      %v6891 = vadd.f32 %v6869, %v6877
      %v6892 = vadd.f32 %v6870, %v6877
      %v6893 = vadd.f32 %v6871, %v6877
      %v6894 = vmax.f32 %v6879, 0.0
      %v6895 = vmax.f32 %v6880, 0.0
      %v6896 = vmax.f32 %v6881, 0.0
      %v6897 = vmax.f32 %v6882, 0.0
      %v6898 = vmax.f32 %v6883, 0.0
      %v6899 = vmax.f32 %v6884, 0.0
      %v6900 = vmax.f32 %v6885, 0.0
      %v6901 = vmax.f32 %v6886, 0.0
      %v6902 = vmax.f32 %v6887, 0.0
      %v6903 = vmax.f32 %v6888, 0.0
      %v6904 = vmax.f32 %v6889, 0.0
      %v6905 = vmax.f32 %v6890, 0.0
      %v6906 = vmax.f32 %v6891, 0.0
      %v6907 = vmax.f32 %v6892, 0.0
      %v6908 = vmax.f32 %v6893, 0.0
      %vm6909 = vcmask 523264
      %6910 = vst.msk [vmem:[#allocation4] sm:$0xff] %vm6909, %v6894
      %6911 = vst.msk [vmem:[#allocation4 + $0x8] sm:$0xff] %vm6909, %v6895
      %6912 = vst.msk [vmem:[#allocation4 + $0x10] sm:$0xff] %vm6909, %v6896
      %6913 = vst.msk [vmem:[#allocation4 + $0x18] sm:$0xff] %vm6909, %v6897
      %6914 = vst.msk [vmem:[#allocation4 + $0x20] sm:$0xff] %vm6909, %v6898
      %6915 = vst.msk [vmem:[#allocation4 + $0x28] sm:$0xff] %vm6909, %v6899
      %6916 = vst.msk [vmem:[#allocation4 + $0x30] sm:$0xff] %vm6909, %v6900
      %6917 = vst.msk [vmem:[#allocation4 + $0x38] sm:$0xff] %vm6909, %v6901
      %6918 = vst.msk [vmem:[#allocation4 + $0x40] sm:$0xff] %vm6909, %v6902
      %6919 = vst.msk [vmem:[#allocation4 + $0x48] sm:$0xff] %vm6909, %v6903
      %6920 = vst.msk [vmem:[#allocation4 + $0x50] sm:$0xff] %vm6909, %v6904
      %6921 = vst.msk [vmem:[#allocation4 + $0x58] sm:$0xff] %vm6909, %v6905
      %6922 = vst.msk [vmem:[#allocation4 + $0x60] sm:$0xff] %vm6909, %v6906
      %6923 = vst.msk [vmem:[#allocation4 + $0x68] sm:$0xff] %vm6909, %v6907
      %vm6924 = vcmask 519168
      %6925 = vst.msk [vmem:[#allocation4 + $0x70] sm:$0xf] %vm6924, %v6908
      %v6926 = vld [vmem:[#allocation4] ss:$2 sm:$0xff]
      %s6927 = scalar_lea.vmem [#allocation4], 16
      %v6928 = vld [vmem:[%s6927] ss:$2 sm:$0xff]
      %s6929 = scalar_lea.vmem [#allocation4], 32
      %v6930 = vld [vmem:[%s6929] ss:$2 sm:$0xff]
      %s6931 = scalar_lea.vmem [#allocation4], 48
      %v6932 = vld [vmem:[%s6931] ss:$2 sm:$0xff]
      %s6933 = scalar_lea.vmem [#allocation4], 64
      %v6934 = vld [vmem:[%s6933] ss:$2 sm:$0xff]
      %s6935 = scalar_lea.vmem [#allocation4], 80
      %v6936 = vld [vmem:[%s6935] ss:$2 sm:$0xff]
      %s6937 = scalar_lea.vmem [#allocation4], 96
      %v6938 = vld [vmem:[%s6937] ss:$2 sm:$0xff]
      %s6939 = scalar_lea.vmem [#allocation4], 112
      %v6940 = vld [vmem:[%s6939] ss:$2 sm:$0x3]
      %s6941 = scalar_lea.vmem [#allocation4], 1
      %v6942 = vld [vmem:[%s6941] ss:$2 sm:$0xff]
      %s6943 = scalar_lea.vmem [#allocation4], 17
      %v6944 = vld [vmem:[%s6943] ss:$2 sm:$0xff]
      %s6945 = scalar_lea.vmem [#allocation4], 33
      %v6946 = vld [vmem:[%s6945] ss:$2 sm:$0xff]
      %s6947 = scalar_lea.vmem [#allocation4], 49
      %v6948 = vld [vmem:[%s6947] ss:$2 sm:$0xff]
      %s6949 = scalar_lea.vmem [#allocation4], 65
      %v6950 = vld [vmem:[%s6949] ss:$2 sm:$0xff]
      %s6951 = scalar_lea.vmem [#allocation4], 81
      %v6952 = vld [vmem:[%s6951] ss:$2 sm:$0xff]
      %s6953 = scalar_lea.vmem [#allocation4], 97
      %v6954 = vld [vmem:[%s6953] ss:$2 sm:$0xff]
      %s6955 = scalar_lea.vmem [#allocation4], 113
      %v6956 = vld [vmem:[%s6955] ss:$2 sm:$0x3]
      %v6957 = vmax.f32 %v6926, %v6942
      %v6958 = vmax.f32 %v6928, %v6944
      %v6959 = vmax.f32 %v6930, %v6946
      %v6960 = vmax.f32 %v6932, %v6948
      %v6961 = vmax.f32 %v6934, %v6950
      %v6962 = vmax.f32 %v6936, %v6952
      %v6963 = vmax.f32 %v6938, %v6954
      %v6964 = vmax.f32 %v6940, %v6956
      %6965 = vst.msk [vmem:[%s278] sm:$0xff] %vm6909, %v6957
      %6966 = vst.msk [vmem:[%s278 + $0x8] sm:$0xff] %vm6909, %v6958
      %6967 = vst.msk [vmem:[%s278 + $0x10] sm:$0xff] %vm6909, %v6959
      %6968 = vst.msk [vmem:[%s278 + $0x18] sm:$0xff] %vm6909, %v6960
      %6969 = vst.msk [vmem:[%s278 + $0x20] sm:$0xff] %vm6909, %v6961
      %6970 = vst.msk [vmem:[%s278 + $0x28] sm:$0xff] %vm6909, %v6962
      %6971 = vst.msk [vmem:[%s278 + $0x30] sm:$0xff] %vm6909, %v6963
      %vm6972 = vcmask 517120
      %6973 = vst.msk [vmem:[%s278 + $0x38] sm:$0x3] %vm6972, %v6964
      %p6974 = scmp.lt.s32.totalorder %s18, 1
      %s6975 = scalar_select %p6974, %s18, 1
      %s6976 = smul.addr %s6975, 8
      %s6977 = smul.addr %s6976, 8
      %s6978 = scalar_lea.vmem %s7, %s6977
      // Predicated region
      $region49: #{act_network_usc_forward.1} parent=47 // pred_check
        %p6979 = pneg %p188
      $region50: #{act_network_usc_forward.1} parent=47 // pred_check_branch
        %6981 = sbr.rel (%p6979) target = $region52
      $region51: #{act_network_usc_forward.1} parent=47 // pred_region
        _
      $region52: #{act_network_usc_forward.1} parent=47 // pred_fallthru
        _
    $region48: #{act_network_usc_forward.1} parent=5 // pred_fallthru
      _
    %p6982 = scmp.le.s32.totalorder 2, %s13
    // Predicated region
    $region53: #{act_network_usc_forward.1} parent=5 // pred_check
      %p6983 = pneg %p6982
    $region54: #{act_network_usc_forward.1} parent=5 // pred_check_branch
      %6985 = sbr.rel (%p6983) target = $region56
    $region55: #{act_network_usc_forward.1} parent=5 // pred_region
      %s6986 = ssub.s32 %s13, 2
      // Predicated region
      $region57: #{act_network_usc_forward.1} parent=55 // pred_check
        %p6987 = pneg %p194
      $region58: #{act_network_usc_forward.1} parent=55 // pred_check_branch
        %6989 = sbr.rel (%p6987) target = $region60
      $region59: #{act_network_usc_forward.1} parent=55 // pred_region
        %p6990 = scmp.lt.s32.totalorder %s19, 1
        %s6991 = scalar_select %p6990, %s19, 1
        %s6992 = smul.addr %s6991, 8
        %s6993 = smul.addr %s6992, 8
        %s6994 = scalar_lea.vmem %s7, %s6993
      $region60: #{act_network_usc_forward.1} parent=55 // pred_fallthru
        _
    $region56: #{act_network_usc_forward.1} parent=5 // pred_fallthru
      _
  $region6: #{act_network_usc_forward.1} parent=0 // loop_footer
    %s17 = sadd.s32 1, %s13
  $region7: #{act_network_usc_forward.1} parent=0 // loop_footer_branch
    %12 = sbr.rel target = $region3
  $region8: #{act_network_usc_forward.1} parent=0 // loop_exit
    _

</llo_original>
